<compile_context>
chip_gen: v5e
topology: v5e:2x2
jax: 0.10.0
libtpu: 0.0.40
codegen_flags: <defaults>
</compile_context>

<pallas_src>
import functools

import jax
import jax.numpy as jnp
from jax.experimental import pallas as pl
from jax.experimental.pallas import tpu as pltpu


# ----------------------------------------------------------------------------
# small helpers
# ----------------------------------------------------------------------------
def _round_up(x, m):
    return (x + m - 1) // m * m


def _full(shape):
    """BlockSpec covering the whole array as a single block (grid=(1,))."""
    return pl.BlockSpec(shape, lambda i: (0,) * len(shape))


_ARB1 = pltpu.CompilerParams(dimension_semantics=("arbitrary",))


def _pad2(x, mp, kp):
    m, k = x.shape
    if m == mp and k == kp:
        return x
    return jnp.pad(x, ((0, mp - m), (0, kp - k)))


def _pad_vec(v, np_):
    v = jnp.asarray(v, jnp.float32).reshape(1, -1)
    n = v.shape[1]
    if n != np_:
        v = jnp.pad(v, ((0, 0), (0, np_ - n)))
    return v


# ----------------------------------------------------------------------------
# General tiled matmul kernel with fused BN/ReLU prologue+epilogue or bias+clamp
#   Y = epilogue( prologue(A) @ W )
#     prologue (optional): relu(A * in_scale + in_shift)     (per-K column)
#     epilogue (optional): relu(Y * out_scale + out_shift)   (per-N column)
#     bias/clamp (optional): max(Y + bias, clamp)            (per-N column)
# A, W are bf16 (MXU native); accumulation in f32 VMEM scratch.
# ----------------------------------------------------------------------------
def _mm_kernel(*refs, nk, in_affine, out_affine, out_bias):
    acc_ref = refs[-1]
    o_ref = refs[-2]
    a_ref, w_ref = refs[0], refs[1]
    idx = 2
    if in_affine:
        si_ref, bi_ref = refs[idx], refs[idx + 1]
        idx += 2
    if out_affine:
        so_ref, bo_ref = refs[idx], refs[idx + 1]
        idx += 2
    if out_bias:
        b_ref, cl_ref = refs[idx], refs[idx + 1]
        idx += 2

    k = pl.program_id(2)

    @pl.when(k == 0)
    def _init():
        acc_ref[...] = jnp.zeros_like(acc_ref)

    a = a_ref[...]
    if in_affine:
        a32 = a.astype(jnp.float32) * si_ref[...] + bi_ref[...]
        a = jnp.maximum(a32, 0.0).astype(jnp.bfloat16)
    acc_ref[...] += jnp.dot(a, w_ref[...], preferred_element_type=jnp.float32)

    @pl.when(k == nk - 1)
    def _finalize():
        y = acc_ref[...]
        if out_affine:
            y = jnp.maximum(y * so_ref[...] + bo_ref[...], 0.0)
        if out_bias:
            y = jnp.maximum(y + b_ref[...], cl_ref[...])
        o_ref[...] = y.astype(o_ref.dtype)


def pallas_mm(a, w, *, in_scale=None, in_shift=None,
              out_scale=None, out_shift=None,
              bias=None, clamp=None, out_dtype=jnp.bfloat16):
    m, k = a.shape
    kw_, n = w.shape
    assert k == kw_, (a.shape, w.shape)

    # Tile sizes: multiples of (8,128), capped so worst-case double-buffered
    # blocks stay far below the 64 MiB v7x VMEM (and 32 MiB scoped default).
    tm = min(256, _round_up(m, 8))
    tk = min(512, _round_up(k, 128))
    tn = min(256, _round_up(n, 128))
    mp, kp, np_ = _round_up(m, tm), _round_up(k, tk), _round_up(n, tn)
    nk = kp // tk

    in_affine = in_scale is not None
    out_affine = out_scale is not None
    out_bias = bias is not None

    inputs = [_pad2(a.astype(jnp.bfloat16), mp, kp),
              _pad2(w.astype(jnp.bfloat16), kp, np_)]
    in_specs = [pl.BlockSpec((tm, tk), lambda i, j, kk: (i, kk)),
                pl.BlockSpec((tk, tn), lambda i, j, kk: (kk, j))]
    vec_k = pl.BlockSpec((1, tk), lambda i, j, kk: (0, kk))
    vec_n = pl.BlockSpec((1, tn), lambda i, j, kk: (0, j))
    if in_affine:
        inputs += [_pad_vec(in_scale, kp), _pad_vec(in_shift, kp)]
        in_specs += [vec_k, vec_k]
    if out_affine:
        inputs += [_pad_vec(out_scale, np_), _pad_vec(out_shift, np_)]
        in_specs += [vec_n, vec_n]
    if out_bias:
        cl = clamp if clamp is not None else jnp.full((n,), -jnp.inf, jnp.float32)
        inputs += [_pad_vec(bias, np_), _pad_vec(cl, np_)]
        in_specs += [vec_n, vec_n]

    kern = functools.partial(_mm_kernel, nk=nk, in_affine=in_affine,
                             out_affine=out_affine, out_bias=out_bias)
    out_bytes = mp * np_ * jnp.dtype(out_dtype).itemsize
    cost = pl.CostEstimate(flops=2 * mp * np_ * kp, transcendentals=0,
                           bytes_accessed=mp * kp * 2 + kp * np_ * 2 + out_bytes)

    y = pl.pallas_call(
        kern,
        grid=(mp // tm, np_ // tn, nk),
        in_specs=in_specs,
        out_specs=pl.BlockSpec((tm, tn), lambda i, j, kk: (i, j)),
        out_shape=jax.ShapeDtypeStruct((mp, np_), out_dtype),
        scratch_shapes=[pltpu.VMEM((tm, tn), jnp.float32)],
        compiler_params=pltpu.CompilerParams(
            dimension_semantics=("parallel", "parallel", "arbitrary"),
            vmem_limit_bytes=32 * 1024 * 1024),
        cost_estimate=cost,
    )(*inputs)
    if mp != m or np_ != n:
        y = y[:m, :n]
    return y


# ----------------------------------------------------------------------------
# MaxPool 3x3 / stride 2 / pad 1 -- single kernel, no window replication.
# The padded slab is reshaped (free, row-major) to split rows/cols into
# (even, odd) pairs; the overlapping 3-window max becomes max of 3 shifted
# contiguous slices (leading-dim / sublane slices only).
# ----------------------------------------------------------------------------
def _maxpool_kernel(x_ref, o_ref, *, ho, wo):
    x = x_ref[...]                                  # (n, H2, 2, W2, 2, c)
    e_r = x[:, :, 0]                                # even rows  (n, H2, W2, 2, c)
    o_r = x[:, :, 1]                                # odd rows
    rmax = jnp.maximum(jnp.maximum(e_r[:, 0:ho], o_r[:, 0:ho]),
                       e_r[:, 1:ho + 1])            # (n, ho, W2, 2, c)
    e_c = rmax[:, :, :, 0:1, :]                     # even cols  (n, ho, W2, 1, c)
    o_c = rmax[:, :, :, 1:2, :]                     # odd cols
    out = jnp.maximum(jnp.maximum(e_c[:, :, 0:wo], o_c[:, :, 0:wo]),
                      e_c[:, :, 1:wo + 1])          # (n, ho, wo, 1, c)
    o_ref[...] = out


def max_pool_3x3_s2_p1(x):
    n, h, w, c = x.shape
    ho = (h + 2 - 3) // 2 + 1
    wo = (w + 2 - 3) // 2 + 1
    hp, wp = 2 * (ho + 1), 2 * (wo + 1)
    xp = jnp.pad(x, ((0, 0), (1, hp - h - 1), (1, wp - w - 1), (0, 0)),
                 constant_values=float("-inf"))
    x6 = xp.reshape(n, hp // 2, 2, wp // 2, 2, c)   # free reshape
    y = pl.pallas_call(
        functools.partial(_maxpool_kernel, ho=ho, wo=wo),
        grid=(1,),
        in_specs=[_full(x6.shape)],
        out_specs=_full((n, ho, wo, 1, c)),
        out_shape=jax.ShapeDtypeStruct((n, ho, wo, 1, c), x.dtype),
        compiler_params=_ARB1,
    )(x6)
    return y.reshape(n, ho, wo, c)


# ----------------------------------------------------------------------------
# AvgPool 2x2 / stride 2 -- non-overlapping, so a free reshape exposes the
# window; the kernel just sums two leading-dim halves and two sublane halves.
# ----------------------------------------------------------------------------
def _avgpool_kernel(x_ref, o_ref):
    x = x_ref[...].astype(jnp.float32)              # (m, 2, wo, 2, c)
    s = x[:, 0] + x[:, 1]                           # (m, wo, 2, c)
    s = s[:, :, 0:1, :] + s[:, :, 1:2, :]           # (m, wo, 1, c)
    o_ref[...] = (0.25 * s).astype(o_ref.dtype)


def avg_pool_2x2_s2(x):
    n, h, w, c = x.shape
    ho, wo = h // 2, w // 2
    x = x[:, :2 * ho, :2 * wo, :]
    x5 = x.reshape(n * ho, 2, wo, 2, c)             # free reshape
    y = pl.pallas_call(
        _avgpool_kernel,
        grid=(1,),
        in_specs=[_full(x5.shape)],
        out_specs=_full((n * ho, wo, 1, c)),
        out_shape=jax.ShapeDtypeStruct((n * ho, wo, 1, c), x.dtype),
        compiler_params=_ARB1,
    )(x5)
    return y.reshape(n, ho, wo, c)


# ----------------------------------------------------------------------------
# fused ReLU + global average pool (adaptive_avg_pool2d((1,1)) + flatten)
# ----------------------------------------------------------------------------
def _relu_gap_kernel(x_ref, o_ref):
    x = x_ref[...].astype(jnp.float32)
    o_ref[...] = jnp.mean(jnp.maximum(x, 0.0), axis=1)


def relu_global_avg_pool(x):
    n, h, w, c = x.shape
    return pl.pallas_call(
        _relu_gap_kernel,
        grid=(1,),
        in_specs=[_full((n, h * w, c))],
        out_specs=_full((n, c)),
        out_shape=jax.ShapeDtypeStruct((n, c), jnp.float32),
        compiler_params=_ARB1,
    )(x.reshape(n, h * w, c))


# ----------------------------------------------------------------------------
# im2col glue for convolutions (channels-last).  1x1 convs skip this entirely.
# ----------------------------------------------------------------------------
def _im2col(x, kh, kw, stride, pad):
    n, h, w, c = x.shape
    if pad:
        x = jnp.pad(x, ((0, 0), (pad, pad), (pad, pad), (0, 0)))
    ho = (h + 2 * pad - kh) // stride + 1
    wo = (w + 2 * pad - kw) // stride + 1
    cols = []
    for dy in range(kh):
        for dx in range(kw):
            cols.append(x[:, dy:dy + stride * (ho - 1) + 1:stride,
                          dx:dx + stride * (wo - 1) + 1:stride, :])
    patches = jnp.concatenate(cols, axis=-1)        # (n, ho, wo, kh*kw*c)
    return patches.reshape(n * ho * wo, kh * kw * c), (n, ho, wo)


# ----------------------------------------------------------------------------
# Deterministic parameter initialization (synthetic, no checkpoint)
# ----------------------------------------------------------------------------
class KeyGen:
    def __init__(self, key):
        self.key = key

    def __call__(self):
        self.key, sub = jax.random.split(self.key)
        return sub


def conv_init(kg, cout, cin, kh, kw):
    std = (2.0 / (cin * kh * kw)) ** 0.5
    return std * jax.random.normal(kg(), (cout, cin, kh, kw), dtype=jnp.float32)


def bn_init(kg, c):
    gamma = 1.0 + 0.1 * jax.random.normal(kg(), (c,), dtype=jnp.float32)
    beta = 0.1 * jax.random.normal(kg(), (c,), dtype=jnp.float32)
    mean = 0.1 * jax.random.normal(kg(), (c,), dtype=jnp.float32)
    var = 0.5 + jax.random.uniform(kg(), (c,), dtype=jnp.float32)
    return (gamma, beta, mean, var)


def linear_init(kg, cin, cout):
    w = (1.0 / (cin ** 0.5)) * jax.random.normal(kg(), (cin, cout), dtype=jnp.float32)
    b = 0.01 * jax.random.normal(kg(), (cout,), dtype=jnp.float32)
    return (w, b)


def init_params(key, growth_rate, block_config, num_init_features, bn_size,
                latent_size, decode_size, num_lights):
    kg = KeyGen(key)
    p = {}
    p["conv0"] = conv_init(kg, num_init_features, 3, 7, 7)
    p["norm0"] = bn_init(kg, num_init_features)
    num_features = num_init_features
    blocks, transitions = [], []
    for i, num_layers in enumerate(block_config):
        layers = []
        for j in range(num_layers):
            cin = num_features + j * growth_rate
            layers.append(dict(
                norm1=bn_init(kg, cin),
                conv1=conv_init(kg, bn_size * growth_rate, cin, 1, 1),
                norm2=bn_init(kg, bn_size * growth_rate),
                conv2=conv_init(kg, growth_rate, bn_size * growth_rate, 3, 3),
            ))
        blocks.append(layers)
        num_features += num_layers * growth_rate
        if i != len(block_config) - 1:
            transitions.append(dict(
                norm=bn_init(kg, num_features),
                conv=conv_init(kg, num_features // 2, num_features, 1, 1),
            ))
            num_features //= 2
    p["blocks"] = blocks
    p["transitions"] = transitions
    p["latent"] = linear_init(kg, num_features, latent_size)
    p["decoder"] = linear_init(kg, latent_size, decode_size)
    p["l_out"] = linear_init(kg, decode_size, 3 * num_lights)
    p["s_out"] = linear_init(kg, decode_size, num_lights)
    p["c_out"] = linear_init(kg, decode_size, 3 * num_lights)
    p["a_out"] = linear_init(kg, decode_size, 3)
    p["d_out"] = linear_init(kg, latent_size + 3 * num_lights, num_lights)
    return p


# ----------------------------------------------------------------------------
# One-time parameter preparation (hoisted out of the forward hot path):
#   * fold BN running stats into (scale, shift)
#   * reshape conv weights (cout,cin,kh,kw) -> (kh*kw*cin, cout) bf16
#   * fuse the 4 head Linears into one weight/bias/clamp triple
# ----------------------------------------------------------------------------
def prepare_params(p, num_lights):
    eps = 1e-5

    def fold_bn(bn):
        gamma, beta, mean, var = bn
        scale = gamma / jnp.sqrt(var + eps)
        shift = beta - mean * scale
        return scale.astype(jnp.float32), shift.astype(jnp.float32)

    def conv_w(w):
        cout, cin, kh, kw = w.shape
        return (jnp.transpose(w, (2, 3, 1, 0))
                .reshape(kh * kw * cin, cout).astype(jnp.bfloat16))

    prep = {
        "conv0_w": conv_w(p["conv0"]),
        "norm0": fold_bn(p["norm0"]),
        "blocks": [[dict(norm1=fold_bn(lp["norm1"]), conv1_w=conv_w(lp["conv1"]),
                         norm2=fold_bn(lp["norm2"]), conv2_w=conv_w(lp["conv2"]))
                    for lp in layers] for layers in p["blocks"]],
        "transitions": [dict(norm=fold_bn(tp["norm"]), conv_w=conv_w(tp["conv"]))
                        for tp in p["transitions"]],
        "latent_w": p["latent"][0].astype(jnp.bfloat16),
        "latent_b": p["latent"][1].astype(jnp.float32),
        "decoder_w": p["decoder"][0].astype(jnp.bfloat16),
        "decoder_b": p["decoder"][1].astype(jnp.float32),
        "d_out_w": p["d_out"][0].astype(jnp.bfloat16),
        "d_out_b": p["d_out"][1].astype(jnp.float32),
        "d_clamp": jnp.full((num_lights,), 1e-4, jnp.float32),
    }
    wl, bl = p["l_out"]; ws, bs = p["s_out"]
    wc, bc = p["c_out"]; wa, ba = p["a_out"]
    prep["heads_w"] = jnp.concatenate([wl, ws, wc, wa], axis=1).astype(jnp.bfloat16)
    prep["heads_b"] = jnp.concatenate([bl, bs, bc, ba]).astype(jnp.float32)
    prep["heads_clamp"] = jnp.concatenate([
        jnp.full((3 * num_lights,), -jnp.inf, jnp.float32),   # l: no clamp
        jnp.full((num_lights,), 1e-4, jnp.float32),           # s: clamp_min 1e-4
        jnp.full((3 * num_lights,), 0.0, jnp.float32),        # c: clamp_min 0
        jnp.full((3,), 0.0, jnp.float32)])                    # a: clamp_min 0
    return prep


# ----------------------------------------------------------------------------
# Forward pass (mirrors ParamLENet.forward, eval semantics)
# ----------------------------------------------------------------------------
@functools.partial(jax.jit, static_argnums=(2,))
def param_lenet_forward(prep, x_nchw, num_lights):
    x = jnp.transpose(x_nchw, (0, 2, 3, 1)).astype(jnp.bfloat16)  # NCHW -> NHWC
    n = x.shape[0]

    # conv0 (7x7/s2/p3) with fused norm0+relu0 epilogue
    cols, (_, ho, wo) = _im2col(x, 7, 7, 2, 3)
    s0, b0 = prep["norm0"]
    h = pallas_mm(cols, prep["conv0_w"], out_scale=s0, out_shift=b0,
                  out_dtype=jnp.bfloat16).reshape(n, ho, wo, -1)

    # pool0: 3x3/s2/p1 max pool
    h = max_pool_3x3_s2_p1(h)

    nb = len(prep["blocks"])
    for bi, layers in enumerate(prep["blocks"]):
        feats = h
        for lp in layers:                           # _DenseLayer
            nn_, hh, ww, cin = feats.shape
            m = nn_ * hh * ww
            s1, sh1 = lp["norm1"]
            s2, sh2 = lp["norm2"]
            # fused: relu(norm1(x)) -> 1x1 conv1 -> relu(norm2(.))  (one kernel)
            t = pallas_mm(feats.reshape(m, cin), lp["conv1_w"],
                          in_scale=s1, in_shift=sh1,
                          out_scale=s2, out_shift=sh2,
                          out_dtype=jnp.bfloat16).reshape(nn_, hh, ww, -1)
            # 3x3 conv2 (im2col + tiled matmul)
            cols2, _ = _im2col(t, 3, 3, 1, 1)
            newf = pallas_mm(cols2, lp["conv2_w"],
                             out_dtype=jnp.bfloat16).reshape(nn_, hh, ww, -1)
            feats = jnp.concatenate([feats, newf], axis=-1)
        h = feats
        if bi != nb - 1:                            # _Transition
            tp = prep["transitions"][bi]
            nn_, hh, ww, cin = h.shape
            sc, sh = tp["norm"]
            h = pallas_mm(h.reshape(nn_ * hh * ww, cin), tp["conv_w"],
                          in_scale=sc, in_shift=sh,
                          out_dtype=jnp.bfloat16).reshape(nn_, hh, ww, -1)
            h = avg_pool_2x2_s2(h)

    # relu + adaptive_avg_pool2d((1,1)) + flatten  (fused)
    out = relu_global_avg_pool(h)                   # (n, C) f32

    latent_vec = pallas_mm(out, prep["latent_w"], bias=prep["latent_b"],
                           out_dtype=jnp.float32)
    decode_vec = pallas_mm(latent_vec, prep["decoder_w"], bias=prep["decoder_b"],
                           out_dtype=jnp.float32)
    # l/s/c/a heads fused into one matmul with per-column clamps
    heads = pallas_mm(decode_vec, prep["heads_w"], bias=prep["heads_b"],
                      clamp=prep["heads_clamp"], out_dtype=jnp.float32)
    nl3 = 3 * num_lights
    l = heads[:, :nl3]
    s = heads[:, nl3:nl3 + num_lights]
    c = heads[:, nl3 + num_lights:2 * nl3 + num_lights]
    a = heads[:, 2 * nl3 + num_lights:2 * nl3 + num_lights + 3]
    z_l_cat = jnp.concatenate([latent_vec, l], axis=1)
    d = pallas_mm(z_l_cat, prep["d_out_w"], bias=prep["d_out_b"],
                  clamp=prep["d_clamp"], out_dtype=jnp.float32)
    return [d, l, s, c, a]


# ----------------------------------------------------------------------------
if __name__ == "__main__":
    key = jax.random.PRNGKey(0)
    k_param, k_x = jax.random.split(key)

    NUM_LIGHTS = 3
    # Small but structurally faithful configuration of ParamLENet
    params = init_params(
        k_param,
        growth_rate=8,
        block_config=(2, 2),
        num_init_features=16,
        bn_size=2,
        latent_size=64,
        decode_size=32,
        num_lights=NUM_LIGHTS,
    )
    prep = prepare_params(params, NUM_LIGHTS)

    x = jax.random.normal(k_x, (2, 3, 32, 32), dtype=jnp.float32)  # NCHW input

    outs = param_lenet_forward(prep, x, NUM_LIGHTS)
    outs = jax.block_until_ready(outs)

    d, l, s, c, a = outs
    assert d.shape == (2, 3) and l.shape == (2, 9) and s.shape == (2, 3)
    assert c.shape == (2, 9) and a.shape == (2, 3)
    assert all(bool(jnp.all(jnp.isfinite(o))) for o in outs)
    assert bool(jnp.all(s >= 1e-4)) and bool(jnp.all(d >= 1e-4))
    assert bool(jnp.all(c >= 0.0)) and bool(jnp.all(a >= 0.0))
    print("KERNEL_OK")
</pallas_src>

<mosaic_0001>
module attributes {stable_mosaic.version = 11 : i64} {
  func.func @_mm_kernel(%arg0: i32, %arg1: i32, %arg2: i32, %arg3: memref<256x256xbf16, #tpu.memory_space<vmem>>, %arg4: memref<256x128xbf16, #tpu.memory_space<vmem>>, %arg5: memref<1x128xf32, #tpu.memory_space<vmem>>, %arg6: memref<1x128xf32, #tpu.memory_space<vmem>>, %arg7: memref<256x128xbf16, #tpu.memory_space<vmem>>, %arg8: memref<256x128xf32, #tpu.memory_space<vmem>>) attributes {dimension_semantics = [#tpu.dimension_semantics<parallel>, #tpu.dimension_semantics<parallel>, #tpu.dimension_semantics<arbitrary>], iteration_bounds = array<i64: 2, 1, 1>, scalar_prefetch = 0 : i64, scratch_operands = 1 : i64, tpu.core_type = #tpu.core_type<tc>, window_params = [{transform_indices = @transform_0, window_bounds = array<i64: 256, 256>}, {transform_indices = @transform_1, window_bounds = array<i64: 256, 128>}, {transform_indices = @transform_2, window_bounds = array<i64: 1, 128>}, {transform_indices = @transform_3, window_bounds = array<i64: 1, 128>}, {transform_indices = @transform_4, window_bounds = array<i64: 256, 128>}]} {
    %c0_i32 = arith.constant 0 : i32
    %0 = arith.cmpi eq, %arg2, %c0_i32 : i32
    %1 = arith.extui %0 : i1 to i32
    %c0_i32_0 = arith.constant 0 : i32
    %2 = arith.cmpi ne, %1, %c0_i32_0 : i32
    scf.if %2 {
      %cst_10 = arith.constant 0.000000e+00 : f32
      %12 = vector.broadcast %cst_10 : f32 to vector<256x128xf32>
      %c0_11 = arith.constant 0 : index
      %c0_12 = arith.constant 0 : index
      %13 = vector.load %arg8[%c0_11, %c0_12] : memref<256x128xf32, #tpu.memory_space<vmem>>, vector<256x128xf32>
      tpu.vector_store %arg8[%c0_11, %c0_12], %12 {strides = array<i32>} : memref<256x128xf32, #tpu.memory_space<vmem>>, vector<256x128xf32>,
    } else {
    }
    %c0 = arith.constant 0 : index
    %c0_1 = arith.constant 0 : index
    %3 = vector.load %arg3[%c0, %c0_1] : memref<256x256xbf16, #tpu.memory_space<vmem>>, vector<256x256xbf16>
    %c0_2 = arith.constant 0 : index
    %c0_3 = arith.constant 0 : index
    %4 = vector.load %arg8[%c0_2, %c0_3] : memref<256x128xf32, #tpu.memory_space<vmem>>, vector<256x128xf32>
    %c0_4 = arith.constant 0 : index
    %c0_5 = arith.constant 0 : index
    %5 = vector.load %arg4[%c0_4, %c0_5] : memref<256x128xbf16, #tpu.memory_space<vmem>>, vector<256x128xbf16>
    %cst = arith.constant dense<0.000000e+00> : vector<256x128xf32>
    %6 = tpu.matmul %3, %5, %cst {dimension_numbers = #tpu.dot_dimension_numbers<[1], [0], [0], [1], [0, 0, 1, 1], [], []>} : vector<256x256xbf16>, vector<256x128xbf16>, vector<256x128xf32> -> vector<256x128xf32>
    %7 = arith.addf %4, %6 : vector<256x128xf32>
    %c0_6 = arith.constant 0 : index
    %c0_7 = arith.constant 0 : index
    %8 = vector.load %arg8[%c0_6, %c0_7] : memref<256x128xf32, #tpu.memory_space<vmem>>, vector<256x128xf32>
    tpu.vector_store %arg8[%c0_6, %c0_7], %7 {strides = array<i32>} : memref<256x128xf32, #tpu.memory_space<vmem>>, vector<256x128xf32>,
    %c0_i32_8 = arith.constant 0 : i32
    %9 = arith.cmpi eq, %arg2, %c0_i32_8 : i32
    %10 = arith.extui %9 : i1 to i32
    %c0_i32_9 = arith.constant 0 : i32
    %11 = arith.cmpi ne, %10, %c0_i32_9 : i32
    scf.if %11 {
      %c0_10 = arith.constant 0 : index
      %c0_11 = arith.constant 0 : index
      %12 = vector.load %arg8[%c0_10, %c0_11] : memref<256x128xf32, #tpu.memory_space<vmem>>, vector<256x128xf32>
      %c0_12 = arith.constant 0 : index
      %c0_13 = arith.constant 0 : index
      %13 = vector.load %arg5[%c0_12, %c0_13] : memref<1x128xf32, #tpu.memory_space<vmem>>, vector<1x128xf32>
      %14 = vector.broadcast %13 : vector<1x128xf32> to vector<256x128xf32>
      %15 = arith.mulf %12, %14 : vector<256x128xf32>
      %c0_14 = arith.constant 0 : index
      %c0_15 = arith.constant 0 : index
      %16 = vector.load %arg6[%c0_14, %c0_15] : memref<1x128xf32, #tpu.memory_space<vmem>>, vector<1x128xf32>
      %17 = vector.broadcast %16 : vector<1x128xf32> to vector<256x128xf32>
      %18 = arith.addf %15, %17 : vector<256x128xf32>
      %cst_16 = arith.constant 0.000000e+00 : f32
      %19 = vector.broadcast %cst_16 : f32 to vector<256x128xf32>
      %20 = arith.maximumf %18, %19 : vector<256x128xf32>
      %21 = arith.truncf %20 : vector<256x128xf32> to vector<256x128xbf16>
      %c0_17 = arith.constant 0 : index
      %c0_18 = arith.constant 0 : index
      %22 = vector.load %arg7[%c0_17, %c0_18] : memref<256x128xbf16, #tpu.memory_space<vmem>>, vector<256x128xbf16>
      tpu.vector_store %arg7[%c0_17, %c0_18], %21 {strides = array<i32>} : memref<256x128xbf16, #tpu.memory_space<vmem>>, vector<256x128xbf16>,
    } else {
    }
    return
  }
  func.func @transform_0(%arg0: i32, %arg1: i32, %arg2: i32) -> (i32, i32) {
    %c0_i32 = arith.constant 0 : i32
    return %arg0, %arg2 : i32, i32
  }
  func.func @transform_1(%arg0: i32, %arg1: i32, %arg2: i32) -> (i32, i32) {
    %c0_i32 = arith.constant 0 : i32
    return %arg2, %arg1 : i32, i32
  }
  func.func @transform_2(%arg0: i32, %arg1: i32, %arg2: i32) -> (i32, i32) {
    %c0_i32 = arith.constant 0 : i32
    %c0_i32_0 = arith.constant 0 : i32
    return %c0_i32, %arg1 : i32, i32
  }
  func.func @transform_3(%arg0: i32, %arg1: i32, %arg2: i32) -> (i32, i32) {
    %c0_i32 = arith.constant 0 : i32
    %c0_i32_0 = arith.constant 0 : i32
    return %c0_i32, %arg1 : i32, i32
  }
  func.func @transform_4(%arg0: i32, %arg1: i32, %arg2: i32) -> (i32, i32) {
    %c0_i32 = arith.constant 0 : i32
    return %arg0, %arg1 : i32, i32
  }
}

module attributes {stable_mosaic.version = 11 : i64} {
  func.func @_maxpool_kernel(%arg0: i32, %arg1: memref<2x9x2x9x2x16xbf16, #tpu.memory_space<vmem>>, %arg2: memref<2x8x8x1x16xbf16, #tpu.memory_space<vmem>>) attributes {dimension_semantics = [#tpu.dimension_semantics<arbitrary>], iteration_bounds = array<i64: 1>, scalar_prefetch = 0 : i64, scratch_operands = 0 : i64, tpu.core_type = #tpu.core_type<tc>, window_params = [{pipeline_mode = #tpu.pipeline_mode<synchronous>, transform_indices = @transform_0, window_bounds = array<i64: 2, 9, 2, 9, 2, 16>}, {pipeline_mode = #tpu.pipeline_mode<synchronous>, transform_indices = @transform_1, window_bounds = array<i64: 2, 8, 8, 1, 16>}]} {
    %c0 = arith.constant 0 : index
    %c0_0 = arith.constant 0 : index
    %c0_1 = arith.constant 0 : index
    %c0_2 = arith.constant 0 : index
    %c0_3 = arith.constant 0 : index
    %c0_4 = arith.constant 0 : index
    %0 = vector.load %arg1[%c0, %c0_0, %c0_1, %c0_2, %c0_3, %c0_4] : memref<2x9x2x9x2x16xbf16, #tpu.memory_space<vmem>>, vector<2x9x2x9x2x16xbf16>
    %1 = vector.extract_strided_slice %0 {offsets = [0, 0, 0, 0, 0, 0], sizes = [2, 9, 1, 9, 2, 16], strides = [1, 1, 1, 1, 1, 1]} : vector<2x9x2x9x2x16xbf16> to vector<2x9x1x9x2x16xbf16>
    %2 = vector.shape_cast %1 : vector<2x9x1x9x2x16xbf16> to vector<2x9x9x2x16xbf16>
    %3 = vector.extract_strided_slice %0 {offsets = [0, 0, 1, 0, 0, 0], sizes = [2, 9, 1, 9, 2, 16], strides = [1, 1, 1, 1, 1, 1]} : vector<2x9x2x9x2x16xbf16> to vector<2x9x1x9x2x16xbf16>
    %4 = vector.shape_cast %3 : vector<2x9x1x9x2x16xbf16> to vector<2x9x9x2x16xbf16>
    %5 = vector.extract_strided_slice %2 {offsets = [0, 0, 0, 0, 0], sizes = [2, 8, 9, 2, 16], strides = [1, 1, 1, 1, 1]} : vector<2x9x9x2x16xbf16> to vector<2x8x9x2x16xbf16>
    %6 = vector.extract_strided_slice %4 {offsets = [0, 0, 0, 0, 0], sizes = [2, 8, 9, 2, 16], strides = [1, 1, 1, 1, 1]} : vector<2x9x9x2x16xbf16> to vector<2x8x9x2x16xbf16>
    %7 = arith.maximumf %5, %6 : vector<2x8x9x2x16xbf16>
    %8 = vector.extract_strided_slice %2 {offsets = [0, 1, 0, 0, 0], sizes = [2, 8, 9, 2, 16], strides = [1, 1, 1, 1, 1]} : vector<2x9x9x2x16xbf16> to vector<2x8x9x2x16xbf16>
    %9 = arith.maximumf %7, %8 : vector<2x8x9x2x16xbf16>
    %10 = vector.extract_strided_slice %9 {offsets = [0, 0, 0, 0, 0], sizes = [2, 8, 9, 1, 16], strides = [1, 1, 1, 1, 1]} : vector<2x8x9x2x16xbf16> to vector<2x8x9x1x16xbf16>
    %11 = vector.extract_strided_slice %9 {offsets = [0, 0, 0, 1, 0], sizes = [2, 8, 9, 1, 16], strides = [1, 1, 1, 1, 1]} : vector<2x8x9x2x16xbf16> to vector<2x8x9x1x16xbf16>
    %12 = vector.extract_strided_slice %10 {offsets = [0, 0, 0, 0, 0], sizes = [2, 8, 8, 1, 16], strides = [1, 1, 1, 1, 1]} : vector<2x8x9x1x16xbf16> to vector<2x8x8x1x16xbf16>
    %13 = vector.extract_strided_slice %11 {offsets = [0, 0, 0, 0, 0], sizes = [2, 8, 8, 1, 16], strides = [1, 1, 1, 1, 1]} : vector<2x8x9x1x16xbf16> to vector<2x8x8x1x16xbf16>
    %14 = arith.maximumf %12, %13 : vector<2x8x8x1x16xbf16>
    %15 = vector.extract_strided_slice %10 {offsets = [0, 0, 1, 0, 0], sizes = [2, 8, 8, 1, 16], strides = [1, 1, 1, 1, 1]} : vector<2x8x9x1x16xbf16> to vector<2x8x8x1x16xbf16>
    %16 = arith.maximumf %14, %15 : vector<2x8x8x1x16xbf16>
    %c0_5 = arith.constant 0 : index
    %c0_6 = arith.constant 0 : index
    %c0_7 = arith.constant 0 : index
    %c0_8 = arith.constant 0 : index
    %c0_9 = arith.constant 0 : index
    %17 = vector.load %arg2[%c0_5, %c0_6, %c0_7, %c0_8, %c0_9] : memref<2x8x8x1x16xbf16, #tpu.memory_space<vmem>>, vector<2x8x8x1x16xbf16>
    tpu.vector_store %arg2[%c0_5, %c0_6, %c0_7, %c0_8, %c0_9], %16 {strides = array<i32>} : memref<2x8x8x1x16xbf16, #tpu.memory_space<vmem>>, vector<2x8x8x1x16xbf16>,
    return
  }
  func.func @transform_0(%arg0: i32) -> (i32, i32, i32, i32, i32, i32) {
    %c0_i32 = arith.constant 0 : i32
    %c0_i32_0 = arith.constant 0 : i32
    %c0_i32_1 = arith.constant 0 : i32
    %c0_i32_2 = arith.constant 0 : i32
    %c0_i32_3 = arith.constant 0 : i32
    %c0_i32_4 = arith.constant 0 : i32
    %c0_i32_5 = arith.constant 0 : i32
    return %c0_i32, %c0_i32_0, %c0_i32_1, %c0_i32_2, %c0_i32_3, %c0_i32_4 : i32, i32, i32, i32, i32, i32
  }
  func.func @transform_1(%arg0: i32) -> (i32, i32, i32, i32, i32) {
    %c0_i32 = arith.constant 0 : i32
    %c0_i32_0 = arith.constant 0 : i32
    %c0_i32_1 = arith.constant 0 : i32
    %c0_i32_2 = arith.constant 0 : i32
    %c0_i32_3 = arith.constant 0 : i32
    %c0_i32_4 = arith.constant 0 : i32
    return %c0_i32, %c0_i32_0, %c0_i32_1, %c0_i32_2, %c0_i32_3 : i32, i32, i32, i32, i32
  }
}

module attributes {stable_mosaic.version = 11 : i64} {
  func.func @_mm_kernel(%arg0: i32, %arg1: i32, %arg2: i32, %arg3: memref<128x128xbf16, #tpu.memory_space<vmem>>, %arg4: memref<128x128xbf16, #tpu.memory_space<vmem>>, %arg5: memref<1x128xf32, #tpu.memory_space<vmem>>, %arg6: memref<1x128xf32, #tpu.memory_space<vmem>>, %arg7: memref<1x128xf32, #tpu.memory_space<vmem>>, %arg8: memref<1x128xf32, #tpu.memory_space<vmem>>, %arg9: memref<128x128xbf16, #tpu.memory_space<vmem>>, %arg10: memref<128x128xf32, #tpu.memory_space<vmem>>) attributes {dimension_semantics = [#tpu.dimension_semantics<parallel>, #tpu.dimension_semantics<parallel>, #tpu.dimension_semantics<arbitrary>], iteration_bounds = array<i64: 1, 1, 1>, scalar_prefetch = 0 : i64, scratch_operands = 1 : i64, tpu.core_type = #tpu.core_type<tc>, window_params = [{transform_indices = @transform_0, window_bounds = array<i64: 128, 128>}, {transform_indices = @transform_1, window_bounds = array<i64: 128, 128>}, {transform_indices = @transform_2, window_bounds = array<i64: 1, 128>}, {transform_indices = @transform_3, window_bounds = array<i64: 1, 128>}, {transform_indices = @transform_4, window_bounds = array<i64: 1, 128>}, {transform_indices = @transform_5, window_bounds = array<i64: 1, 128>}, {transform_indices = @transform_6, window_bounds = array<i64: 128, 128>}]} {
    %c0_i32 = arith.constant 0 : i32
    %0 = arith.cmpi eq, %arg2, %c0_i32 : i32
    %1 = arith.extui %0 : i1 to i32
    %c0_i32_0 = arith.constant 0 : i32
    %2 = arith.cmpi ne, %1, %c0_i32_0 : i32
    scf.if %2 {
      %cst_15 = arith.constant 0.000000e+00 : f32
      %22 = vector.broadcast %cst_15 : f32 to vector<128x128xf32>
      %c0_16 = arith.constant 0 : index
      %c0_17 = arith.constant 0 : index
      %23 = vector.load %arg10[%c0_16, %c0_17] : memref<128x128xf32, #tpu.memory_space<vmem>>, vector<128x128xf32>
      tpu.vector_store %arg10[%c0_16, %c0_17], %22 {strides = array<i32>} : memref<128x128xf32, #tpu.memory_space<vmem>>, vector<128x128xf32>,
    } else {
    }
    %c0 = arith.constant 0 : index
    %c0_1 = arith.constant 0 : index
    %3 = vector.load %arg3[%c0, %c0_1] : memref<128x128xbf16, #tpu.memory_space<vmem>>, vector<128x128xbf16>
    %4 = arith.extf %3 : vector<128x128xbf16> to vector<128x128xf32>
    %c0_2 = arith.constant 0 : index
    %c0_3 = arith.constant 0 : index
    %5 = vector.load %arg5[%c0_2, %c0_3] : memref<1x128xf32, #tpu.memory_space<vmem>>, vector<1x128xf32>
    %6 = vector.broadcast %5 : vector<1x128xf32> to vector<128x128xf32>
    %7 = arith.mulf %4, %6 : vector<128x128xf32>
    %c0_4 = arith.constant 0 : index
    %c0_5 = arith.constant 0 : index
    %8 = vector.load %arg6[%c0_4, %c0_5] : memref<1x128xf32, #tpu.memory_space<vmem>>, vector<1x128xf32>
    %9 = vector.broadcast %8 : vector<1x128xf32> to vector<128x128xf32>
    %10 = arith.addf %7, %9 : vector<128x128xf32>
    %cst = arith.constant 0.000000e+00 : f32
    %11 = vector.broadcast %cst : f32 to vector<128x128xf32>
    %12 = arith.maximumf %10, %11 : vector<128x128xf32>
    %13 = arith.truncf %12 : vector<128x128xf32> to vector<128x128xbf16>
    %c0_6 = arith.constant 0 : index
    %c0_7 = arith.constant 0 : index
    %14 = vector.load %arg10[%c0_6, %c0_7] : memref<128x128xf32, #tpu.memory_space<vmem>>, vector<128x128xf32>
    %c0_8 = arith.constant 0 : index
    %c0_9 = arith.constant 0 : index
    %15 = vector.load %arg4[%c0_8, %c0_9] : memref<128x128xbf16, #tpu.memory_space<vmem>>, vector<128x128xbf16>
    %cst_10 = arith.constant dense<0.000000e+00> : vector<128x128xf32>
    %16 = tpu.matmul %13, %15, %cst_10 {dimension_numbers = #tpu.dot_dimension_numbers<[1], [0], [0], [1], [0, 0, 1, 1], [], []>} : vector<128x128xbf16>, vector<128x128xbf16>, vector<128x128xf32> -> vector<128x128xf32>
    %17 = arith.addf %14, %16 : vector<128x128xf32>
    %c0_11 = arith.constant 0 : index
    %c0_12 = arith.constant 0 : index
    %18 = vector.load %arg10[%c0_11, %c0_12] : memref<128x128xf32, #tpu.memory_space<vmem>>, vector<128x128xf32>
    tpu.vector_store %arg10[%c0_11, %c0_12], %17 {strides = array<i32>} : memref<128x128xf32, #tpu.memory_space<vmem>>, vector<128x128xf32>,
    %c0_i32_13 = arith.constant 0 : i32
    %19 = arith.cmpi eq, %arg2, %c0_i32_13 : i32
    %20 = arith.extui %19 : i1 to i32
    %c0_i32_14 = arith.constant 0 : i32
    %21 = arith.cmpi ne, %20, %c0_i32_14 : i32
    scf.if %21 {
      %c0_15 = arith.constant 0 : index
      %c0_16 = arith.constant 0 : index
      %22 = vector.load %arg10[%c0_15, %c0_16] : memref<128x128xf32, #tpu.memory_space<vmem>>, vector<128x128xf32>
      %c0_17 = arith.constant 0 : index
      %c0_18 = arith.constant 0 : index
      %23 = vector.load %arg7[%c0_17, %c0_18] : memref<1x128xf32, #tpu.memory_space<vmem>>, vector<1x128xf32>
      %24 = vector.broadcast %23 : vector<1x128xf32> to vector<128x128xf32>
      %25 = arith.mulf %22, %24 : vector<128x128xf32>
      %c0_19 = arith.constant 0 : index
      %c0_20 = arith.constant 0 : index
      %26 = vector.load %arg8[%c0_19, %c0_20] : memref<1x128xf32, #tpu.memory_space<vmem>>, vector<1x128xf32>
      %27 = vector.broadcast %26 : vector<1x128xf32> to vector<128x128xf32>
      %28 = arith.addf %25, %27 : vector<128x128xf32>
      %cst_21 = arith.constant 0.000000e+00 : f32
      %29 = vector.broadcast %cst_21 : f32 to vector<128x128xf32>
      %30 = arith.maximumf %28, %29 : vector<128x128xf32>
      %31 = arith.truncf %30 : vector<128x128xf32> to vector<128x128xbf16>
      %c0_22 = arith.constant 0 : index
      %c0_23 = arith.constant 0 : index
      %32 = vector.load %arg9[%c0_22, %c0_23] : memref<128x128xbf16, #tpu.memory_space<vmem>>, vector<128x128xbf16>
      tpu.vector_store %arg9[%c0_22, %c0_23], %31 {strides = array<i32>} : memref<128x128xbf16, #tpu.memory_space<vmem>>, vector<128x128xbf16>,
    } else {
    }
    return
  }
  func.func @transform_0(%arg0: i32, %arg1: i32, %arg2: i32) -> (i32, i32) {
    %c0_i32 = arith.constant 0 : i32
    return %arg0, %arg2 : i32, i32
  }
  func.func @transform_1(%arg0: i32, %arg1: i32, %arg2: i32) -> (i32, i32) {
    %c0_i32 = arith.constant 0 : i32
    return %arg2, %arg1 : i32, i32
  }
  func.func @transform_2(%arg0: i32, %arg1: i32, %arg2: i32) -> (i32, i32) {
    %c0_i32 = arith.constant 0 : i32
    %c0_i32_0 = arith.constant 0 : i32
    return %c0_i32, %arg2 : i32, i32
  }
  func.func @transform_3(%arg0: i32, %arg1: i32, %arg2: i32) -> (i32, i32) {
    %c0_i32 = arith.constant 0 : i32
    %c0_i32_0 = arith.constant 0 : i32
    return %c0_i32, %arg2 : i32, i32
  }
  func.func @transform_4(%arg0: i32, %arg1: i32, %arg2: i32) -> (i32, i32) {
    %c0_i32 = arith.constant 0 : i32
    %c0_i32_0 = arith.constant 0 : i32
    return %c0_i32, %arg1 : i32, i32
  }
  func.func @transform_5(%arg0: i32, %arg1: i32, %arg2: i32) -> (i32, i32) {
    %c0_i32 = arith.constant 0 : i32
    %c0_i32_0 = arith.constant 0 : i32
    return %c0_i32, %arg1 : i32, i32
  }
  func.func @transform_6(%arg0: i32, %arg1: i32, %arg2: i32) -> (i32, i32) {
    %c0_i32 = arith.constant 0 : i32
    return %arg0, %arg1 : i32, i32
  }
}

module attributes {stable_mosaic.version = 11 : i64} {
  func.func @_mm_kernel(%arg0: i32, %arg1: i32, %arg2: i32, %arg3: memref<128x256xbf16, #tpu.memory_space<vmem>>, %arg4: memref<256x128xbf16, #tpu.memory_space<vmem>>, %arg5: memref<128x128xbf16, #tpu.memory_space<vmem>>, %arg6: memref<128x128xf32, #tpu.memory_space<vmem>>) attributes {dimension_semantics = [#tpu.dimension_semantics<parallel>, #tpu.dimension_semantics<parallel>, #tpu.dimension_semantics<arbitrary>], iteration_bounds = array<i64: 1, 1, 1>, scalar_prefetch = 0 : i64, scratch_operands = 1 : i64, tpu.core_type = #tpu.core_type<tc>, window_params = [{transform_indices = @transform_0, window_bounds = array<i64: 128, 256>}, {transform_indices = @transform_1, window_bounds = array<i64: 256, 128>}, {transform_indices = @transform_2, window_bounds = array<i64: 128, 128>}]} {
    %c0_i32 = arith.constant 0 : i32
    %0 = arith.cmpi eq, %arg2, %c0_i32 : i32
    %1 = arith.extui %0 : i1 to i32
    %c0_i32_0 = arith.constant 0 : i32
    %2 = arith.cmpi ne, %1, %c0_i32_0 : i32
    scf.if %2 {
      %cst_10 = arith.constant 0.000000e+00 : f32
      %12 = vector.broadcast %cst_10 : f32 to vector<128x128xf32>
      %c0_11 = arith.constant 0 : index
      %c0_12 = arith.constant 0 : index
      %13 = vector.load %arg6[%c0_11, %c0_12] : memref<128x128xf32, #tpu.memory_space<vmem>>, vector<128x128xf32>
      tpu.vector_store %arg6[%c0_11, %c0_12], %12 {strides = array<i32>} : memref<128x128xf32, #tpu.memory_space<vmem>>, vector<128x128xf32>,
    } else {
    }
    %c0 = arith.constant 0 : index
    %c0_1 = arith.constant 0 : index
    %3 = vector.load %arg3[%c0, %c0_1] : memref<128x256xbf16, #tpu.memory_space<vmem>>, vector<128x256xbf16>
    %c0_2 = arith.constant 0 : index
    %c0_3 = arith.constant 0 : index
    %4 = vector.load %arg6[%c0_2, %c0_3] : memref<128x128xf32, #tpu.memory_space<vmem>>, vector<128x128xf32>
    %c0_4 = arith.constant 0 : index
    %c0_5 = arith.constant 0 : index
    %5 = vector.load %arg4[%c0_4, %c0_5] : memref<256x128xbf16, #tpu.memory_space<vmem>>, vector<256x128xbf16>
    %cst = arith.constant dense<0.000000e+00> : vector<128x128xf32>
    %6 = tpu.matmul %3, %5, %cst {dimension_numbers = #tpu.dot_dimension_numbers<[1], [0], [0], [1], [0, 0, 1, 1], [], []>} : vector<128x256xbf16>, vector<256x128xbf16>, vector<128x128xf32> -> vector<128x128xf32>
    %7 = arith.addf %4, %6 : vector<128x128xf32>
    %c0_6 = arith.constant 0 : index
    %c0_7 = arith.constant 0 : index
    %8 = vector.load %arg6[%c0_6, %c0_7] : memref<128x128xf32, #tpu.memory_space<vmem>>, vector<128x128xf32>
    tpu.vector_store %arg6[%c0_6, %c0_7], %7 {strides = array<i32>} : memref<128x128xf32, #tpu.memory_space<vmem>>, vector<128x128xf32>,
    %c0_i32_8 = arith.constant 0 : i32
    %9 = arith.cmpi eq, %arg2, %c0_i32_8 : i32
    %10 = arith.extui %9 : i1 to i32
    %c0_i32_9 = arith.constant 0 : i32
    %11 = arith.cmpi ne, %10, %c0_i32_9 : i32
    scf.if %11 {
      %c0_10 = arith.constant 0 : index
      %c0_11 = arith.constant 0 : index
      %12 = vector.load %arg6[%c0_10, %c0_11] : memref<128x128xf32, #tpu.memory_space<vmem>>, vector<128x128xf32>
      %13 = arith.truncf %12 : vector<128x128xf32> to vector<128x128xbf16>
      %c0_12 = arith.constant 0 : index
      %c0_13 = arith.constant 0 : index
      %14 = vector.load %arg5[%c0_12, %c0_13] : memref<128x128xbf16, #tpu.memory_space<vmem>>, vector<128x128xbf16>
      tpu.vector_store %arg5[%c0_12, %c0_13], %13 {strides = array<i32>} : memref<128x128xbf16, #tpu.memory_space<vmem>>, vector<128x128xbf16>,
    } else {
    }
    return
  }
  func.func @transform_0(%arg0: i32, %arg1: i32, %arg2: i32) -> (i32, i32) {
    %c0_i32 = arith.constant 0 : i32
    return %arg0, %arg2 : i32, i32
  }
  func.func @transform_1(%arg0: i32, %arg1: i32, %arg2: i32) -> (i32, i32) {
    %c0_i32 = arith.constant 0 : i32
    return %arg2, %arg1 : i32, i32
  }
  func.func @transform_2(%arg0: i32, %arg1: i32, %arg2: i32) -> (i32, i32) {
    %c0_i32 = arith.constant 0 : i32
    return %arg0, %arg1 : i32, i32
  }
}

module attributes {stable_mosaic.version = 11 : i64} {
  func.func @_avgpool_kernel(%arg0: i32, %arg1: memref<8x2x4x2x16xbf16, #tpu.memory_space<vmem>>, %arg2: memref<8x4x1x16xbf16, #tpu.memory_space<vmem>>) attributes {dimension_semantics = [#tpu.dimension_semantics<arbitrary>], iteration_bounds = array<i64: 1>, scalar_prefetch = 0 : i64, scratch_operands = 0 : i64, tpu.core_type = #tpu.core_type<tc>, window_params = [{pipeline_mode = #tpu.pipeline_mode<synchronous>, transform_indices = @transform_0, window_bounds = array<i64: 8, 2, 4, 2, 16>}, {pipeline_mode = #tpu.pipeline_mode<synchronous>, transform_indices = @transform_1, window_bounds = array<i64: 8, 4, 1, 16>}]} {
    %c0 = arith.constant 0 : index
    %c0_0 = arith.constant 0 : index
    %c0_1 = arith.constant 0 : index
    %c0_2 = arith.constant 0 : index
    %c0_3 = arith.constant 0 : index
    %0 = vector.load %arg1[%c0, %c0_0, %c0_1, %c0_2, %c0_3] : memref<8x2x4x2x16xbf16, #tpu.memory_space<vmem>>, vector<8x2x4x2x16xbf16>
    %1 = arith.extf %0 : vector<8x2x4x2x16xbf16> to vector<8x2x4x2x16xf32>
    %2 = vector.extract_strided_slice %1 {offsets = [0, 0, 0, 0, 0], sizes = [8, 1, 4, 2, 16], strides = [1, 1, 1, 1, 1]} : vector<8x2x4x2x16xf32> to vector<8x1x4x2x16xf32>
    %3 = vector.shape_cast %2 : vector<8x1x4x2x16xf32> to vector<8x4x2x16xf32>
    %4 = vector.extract_strided_slice %1 {offsets = [0, 1, 0, 0, 0], sizes = [8, 1, 4, 2, 16], strides = [1, 1, 1, 1, 1]} : vector<8x2x4x2x16xf32> to vector<8x1x4x2x16xf32>
    %5 = vector.shape_cast %4 : vector<8x1x4x2x16xf32> to vector<8x4x2x16xf32>
    %6 = arith.addf %3, %5 : vector<8x4x2x16xf32>
    %7 = vector.extract_strided_slice %6 {offsets = [0, 0, 0, 0], sizes = [8, 4, 1, 16], strides = [1, 1, 1, 1]} : vector<8x4x2x16xf32> to vector<8x4x1x16xf32>
    %8 = vector.extract_strided_slice %6 {offsets = [0, 0, 1, 0], sizes = [8, 4, 1, 16], strides = [1, 1, 1, 1]} : vector<8x4x2x16xf32> to vector<8x4x1x16xf32>
    %9 = arith.addf %7, %8 : vector<8x4x1x16xf32>
    %cst = arith.constant 2.500000e-01 : f32
    %10 = vector.broadcast %cst : f32 to vector<8x4x1x16xf32>
    %11 = arith.mulf %10, %9 : vector<8x4x1x16xf32>
    %12 = arith.truncf %11 : vector<8x4x1x16xf32> to vector<8x4x1x16xbf16>
    %c0_4 = arith.constant 0 : index
    %c0_5 = arith.constant 0 : index
    %c0_6 = arith.constant 0 : index
    %c0_7 = arith.constant 0 : index
    %13 = vector.load %arg2[%c0_4, %c0_5, %c0_6, %c0_7] : memref<8x4x1x16xbf16, #tpu.memory_space<vmem>>, vector<8x4x1x16xbf16>
    tpu.vector_store %arg2[%c0_4, %c0_5, %c0_6, %c0_7], %12 {strides = array<i32>} : memref<8x4x1x16xbf16, #tpu.memory_space<vmem>>, vector<8x4x1x16xbf16>,
    return
  }
  func.func @transform_0(%arg0: i32) -> (i32, i32, i32, i32, i32) {
    %c0_i32 = arith.constant 0 : i32
    %c0_i32_0 = arith.constant 0 : i32
    %c0_i32_1 = arith.constant 0 : i32
    %c0_i32_2 = arith.constant 0 : i32
    %c0_i32_3 = arith.constant 0 : i32
    %c0_i32_4 = arith.constant 0 : i32
    return %c0_i32, %c0_i32_0, %c0_i32_1, %c0_i32_2, %c0_i32_3 : i32, i32, i32, i32, i32
  }
  func.func @transform_1(%arg0: i32) -> (i32, i32, i32, i32) {
    %c0_i32 = arith.constant 0 : i32
    %c0_i32_0 = arith.constant 0 : i32
    %c0_i32_1 = arith.constant 0 : i32
    %c0_i32_2 = arith.constant 0 : i32
    %c0_i32_3 = arith.constant 0 : i32
    return %c0_i32, %c0_i32_0, %c0_i32_1, %c0_i32_2 : i32, i32, i32, i32
  }
}

module attributes {stable_mosaic.version = 11 : i64} {
  func.func @_mm_kernel(%arg0: i32, %arg1: i32, %arg2: i32, %arg3: memref<128x128xbf16, #tpu.memory_space<vmem>>, %arg4: memref<128x128xbf16, #tpu.memory_space<vmem>>, %arg5: memref<1x128xf32, #tpu.memory_space<vmem>>, %arg6: memref<1x128xf32, #tpu.memory_space<vmem>>, %arg7: memref<128x128xbf16, #tpu.memory_space<vmem>>, %arg8: memref<128x128xf32, #tpu.memory_space<vmem>>) attributes {dimension_semantics = [#tpu.dimension_semantics<parallel>, #tpu.dimension_semantics<parallel>, #tpu.dimension_semantics<arbitrary>], iteration_bounds = array<i64: 1, 1, 1>, scalar_prefetch = 0 : i64, scratch_operands = 1 : i64, tpu.core_type = #tpu.core_type<tc>, window_params = [{transform_indices = @transform_0, window_bounds = array<i64: 128, 128>}, {transform_indices = @transform_1, window_bounds = array<i64: 128, 128>}, {transform_indices = @transform_2, window_bounds = array<i64: 1, 128>}, {transform_indices = @transform_3, window_bounds = array<i64: 1, 128>}, {transform_indices = @transform_4, window_bounds = array<i64: 128, 128>}]} {
    %c0_i32 = arith.constant 0 : i32
    %0 = arith.cmpi eq, %arg2, %c0_i32 : i32
    %1 = arith.extui %0 : i1 to i32
    %c0_i32_0 = arith.constant 0 : i32
    %2 = arith.cmpi ne, %1, %c0_i32_0 : i32
    scf.if %2 {
      %cst_15 = arith.constant 0.000000e+00 : f32
      %22 = vector.broadcast %cst_15 : f32 to vector<128x128xf32>
      %c0_16 = arith.constant 0 : index
      %c0_17 = arith.constant 0 : index
      %23 = vector.load %arg8[%c0_16, %c0_17] : memref<128x128xf32, #tpu.memory_space<vmem>>, vector<128x128xf32>
      tpu.vector_store %arg8[%c0_16, %c0_17], %22 {strides = array<i32>} : memref<128x128xf32, #tpu.memory_space<vmem>>, vector<128x128xf32>,
    } else {
    }
    %c0 = arith.constant 0 : index
    %c0_1 = arith.constant 0 : index
    %3 = vector.load %arg3[%c0, %c0_1] : memref<128x128xbf16, #tpu.memory_space<vmem>>, vector<128x128xbf16>
    %4 = arith.extf %3 : vector<128x128xbf16> to vector<128x128xf32>
    %c0_2 = arith.constant 0 : index
    %c0_3 = arith.constant 0 : index
    %5 = vector.load %arg5[%c0_2, %c0_3] : memref<1x128xf32, #tpu.memory_space<vmem>>, vector<1x128xf32>
    %6 = vector.broadcast %5 : vector<1x128xf32> to vector<128x128xf32>
    %7 = arith.mulf %4, %6 : vector<128x128xf32>
    %c0_4 = arith.constant 0 : index
    %c0_5 = arith.constant 0 : index
    %8 = vector.load %arg6[%c0_4, %c0_5] : memref<1x128xf32, #tpu.memory_space<vmem>>, vector<1x128xf32>
    %9 = vector.broadcast %8 : vector<1x128xf32> to vector<128x128xf32>
    %10 = arith.addf %7, %9 : vector<128x128xf32>
    %cst = arith.constant 0.000000e+00 : f32
    %11 = vector.broadcast %cst : f32 to vector<128x128xf32>
    %12 = arith.maximumf %10, %11 : vector<128x128xf32>
    %13 = arith.truncf %12 : vector<128x128xf32> to vector<128x128xbf16>
    %c0_6 = arith.constant 0 : index
    %c0_7 = arith.constant 0 : index
    %14 = vector.load %arg8[%c0_6, %c0_7] : memref<128x128xf32, #tpu.memory_space<vmem>>, vector<128x128xf32>
    %c0_8 = arith.constant 0 : index
    %c0_9 = arith.constant 0 : index
    %15 = vector.load %arg4[%c0_8, %c0_9] : memref<128x128xbf16, #tpu.memory_space<vmem>>, vector<128x128xbf16>
    %cst_10 = arith.constant dense<0.000000e+00> : vector<128x128xf32>
    %16 = tpu.matmul %13, %15, %cst_10 {dimension_numbers = #tpu.dot_dimension_numbers<[1], [0], [0], [1], [0, 0, 1, 1], [], []>} : vector<128x128xbf16>, vector<128x128xbf16>, vector<128x128xf32> -> vector<128x128xf32>
    %17 = arith.addf %14, %16 : vector<128x128xf32>
    %c0_11 = arith.constant 0 : index
    %c0_12 = arith.constant 0 : index
    %18 = vector.load %arg8[%c0_11, %c0_12] : memref<128x128xf32, #tpu.memory_space<vmem>>, vector<128x128xf32>
    tpu.vector_store %arg8[%c0_11, %c0_12], %17 {strides = array<i32>} : memref<128x128xf32, #tpu.memory_space<vmem>>, vector<128x128xf32>,
    %c0_i32_13 = arith.constant 0 : i32
    %19 = arith.cmpi eq, %arg2, %c0_i32_13 : i32
    %20 = arith.extui %19 : i1 to i32
    %c0_i32_14 = arith.constant 0 : i32
    %21 = arith.cmpi ne, %20, %c0_i32_14 : i32
    scf.if %21 {
      %c0_15 = arith.constant 0 : index
      %c0_16 = arith.constant 0 : index
      %22 = vector.load %arg8[%c0_15, %c0_16] : memref<128x128xf32, #tpu.memory_space<vmem>>, vector<128x128xf32>
      %23 = arith.truncf %22 : vector<128x128xf32> to vector<128x128xbf16>
      %c0_17 = arith.constant 0 : index
      %c0_18 = arith.constant 0 : index
      %24 = vector.load %arg7[%c0_17, %c0_18] : memref<128x128xbf16, #tpu.memory_space<vmem>>, vector<128x128xbf16>
      tpu.vector_store %arg7[%c0_17, %c0_18], %23 {strides = array<i32>} : memref<128x128xbf16, #tpu.memory_space<vmem>>, vector<128x128xbf16>,
    } else {
    }
    return
  }
  func.func @transform_0(%arg0: i32, %arg1: i32, %arg2: i32) -> (i32, i32) {
    %c0_i32 = arith.constant 0 : i32
    return %arg0, %arg2 : i32, i32
  }
  func.func @transform_1(%arg0: i32, %arg1: i32, %arg2: i32) -> (i32, i32) {
    %c0_i32 = arith.constant 0 : i32
    return %arg2, %arg1 : i32, i32
  }
  func.func @transform_2(%arg0: i32, %arg1: i32, %arg2: i32) -> (i32, i32) {
    %c0_i32 = arith.constant 0 : i32
    %c0_i32_0 = arith.constant 0 : i32
    return %c0_i32, %arg2 : i32, i32
  }
  func.func @transform_3(%arg0: i32, %arg1: i32, %arg2: i32) -> (i32, i32) {
    %c0_i32 = arith.constant 0 : i32
    %c0_i32_0 = arith.constant 0 : i32
    return %c0_i32, %arg2 : i32, i32
  }
  func.func @transform_4(%arg0: i32, %arg1: i32, %arg2: i32) -> (i32, i32) {
    %c0_i32 = arith.constant 0 : i32
    return %arg0, %arg1 : i32, i32
  }
}

module attributes {stable_mosaic.version = 11 : i64} {
  func.func @_mm_kernel(%arg0: i32, %arg1: i32, %arg2: i32, %arg3: memref<32x128xbf16, #tpu.memory_space<vmem>>, %arg4: memref<128x128xbf16, #tpu.memory_space<vmem>>, %arg5: memref<1x128xf32, #tpu.memory_space<vmem>>, %arg6: memref<1x128xf32, #tpu.memory_space<vmem>>, %arg7: memref<1x128xf32, #tpu.memory_space<vmem>>, %arg8: memref<1x128xf32, #tpu.memory_space<vmem>>, %arg9: memref<32x128xbf16, #tpu.memory_space<vmem>>, %arg10: memref<32x128xf32, #tpu.memory_space<vmem>>) attributes {dimension_semantics = [#tpu.dimension_semantics<parallel>, #tpu.dimension_semantics<parallel>, #tpu.dimension_semantics<arbitrary>], iteration_bounds = array<i64: 1, 1, 1>, scalar_prefetch = 0 : i64, scratch_operands = 1 : i64, tpu.core_type = #tpu.core_type<tc>, window_params = [{transform_indices = @transform_0, window_bounds = array<i64: 32, 128>}, {transform_indices = @transform_1, window_bounds = array<i64: 128, 128>}, {transform_indices = @transform_2, window_bounds = array<i64: 1, 128>}, {transform_indices = @transform_3, window_bounds = array<i64: 1, 128>}, {transform_indices = @transform_4, window_bounds = array<i64: 1, 128>}, {transform_indices = @transform_5, window_bounds = array<i64: 1, 128>}, {transform_indices = @transform_6, window_bounds = array<i64: 32, 128>}]} {
    %c0_i32 = arith.constant 0 : i32
    %0 = arith.cmpi eq, %arg2, %c0_i32 : i32
    %1 = arith.extui %0 : i1 to i32
    %c0_i32_0 = arith.constant 0 : i32
    %2 = arith.cmpi ne, %1, %c0_i32_0 : i32
    scf.if %2 {
      %cst_15 = arith.constant 0.000000e+00 : f32
      %22 = vector.broadcast %cst_15 : f32 to vector<32x128xf32>
      %c0_16 = arith.constant 0 : index
      %c0_17 = arith.constant 0 : index
      %23 = vector.load %arg10[%c0_16, %c0_17] : memref<32x128xf32, #tpu.memory_space<vmem>>, vector<32x128xf32>
      tpu.vector_store %arg10[%c0_16, %c0_17], %22 {strides = array<i32>} : memref<32x128xf32, #tpu.memory_space<vmem>>, vector<32x128xf32>,
    } else {
    }
    %c0 = arith.constant 0 : index
    %c0_1 = arith.constant 0 : index
    %3 = vector.load %arg3[%c0, %c0_1] : memref<32x128xbf16, #tpu.memory_space<vmem>>, vector<32x128xbf16>
    %4 = arith.extf %3 : vector<32x128xbf16> to vector<32x128xf32>
    %c0_2 = arith.constant 0 : index
    %c0_3 = arith.constant 0 : index
    %5 = vector.load %arg5[%c0_2, %c0_3] : memref<1x128xf32, #tpu.memory_space<vmem>>, vector<1x128xf32>
    %6 = vector.broadcast %5 : vector<1x128xf32> to vector<32x128xf32>
    %7 = arith.mulf %4, %6 : vector<32x128xf32>
    %c0_4 = arith.constant 0 : index
    %c0_5 = arith.constant 0 : index
    %8 = vector.load %arg6[%c0_4, %c0_5] : memref<1x128xf32, #tpu.memory_space<vmem>>, vector<1x128xf32>
    %9 = vector.broadcast %8 : vector<1x128xf32> to vector<32x128xf32>
    %10 = arith.addf %7, %9 : vector<32x128xf32>
    %cst = arith.constant 0.000000e+00 : f32
    %11 = vector.broadcast %cst : f32 to vector<32x128xf32>
    %12 = arith.maximumf %10, %11 : vector<32x128xf32>
    %13 = arith.truncf %12 : vector<32x128xf32> to vector<32x128xbf16>
    %c0_6 = arith.constant 0 : index
    %c0_7 = arith.constant 0 : index
    %14 = vector.load %arg10[%c0_6, %c0_7] : memref<32x128xf32, #tpu.memory_space<vmem>>, vector<32x128xf32>
    %c0_8 = arith.constant 0 : index
    %c0_9 = arith.constant 0 : index
    %15 = vector.load %arg4[%c0_8, %c0_9] : memref<128x128xbf16, #tpu.memory_space<vmem>>, vector<128x128xbf16>
    %cst_10 = arith.constant dense<0.000000e+00> : vector<32x128xf32>
    %16 = tpu.matmul %13, %15, %cst_10 {dimension_numbers = #tpu.dot_dimension_numbers<[1], [0], [0], [1], [0, 0, 1, 1], [], []>} : vector<32x128xbf16>, vector<128x128xbf16>, vector<32x128xf32> -> vector<32x128xf32>
    %17 = arith.addf %14, %16 : vector<32x128xf32>
    %c0_11 = arith.constant 0 : index
    %c0_12 = arith.constant 0 : index
    %18 = vector.load %arg10[%c0_11, %c0_12] : memref<32x128xf32, #tpu.memory_space<vmem>>, vector<32x128xf32>
    tpu.vector_store %arg10[%c0_11, %c0_12], %17 {strides = array<i32>} : memref<32x128xf32, #tpu.memory_space<vmem>>, vector<32x128xf32>,
    %c0_i32_13 = arith.constant 0 : i32
    %19 = arith.cmpi eq, %arg2, %c0_i32_13 : i32
    %20 = arith.extui %19 : i1 to i32
    %c0_i32_14 = arith.constant 0 : i32
    %21 = arith.cmpi ne, %20, %c0_i32_14 : i32
    scf.if %21 {
      %c0_15 = arith.constant 0 : index
      %c0_16 = arith.constant 0 : index
      %22 = vector.load %arg10[%c0_15, %c0_16] : memref<32x128xf32, #tpu.memory_space<vmem>>, vector<32x128xf32>
      %c0_17 = arith.constant 0 : index
      %c0_18 = arith.constant 0 : index
      %23 = vector.load %arg7[%c0_17, %c0_18] : memref<1x128xf32, #tpu.memory_space<vmem>>, vector<1x128xf32>
      %24 = vector.broadcast %23 : vector<1x128xf32> to vector<32x128xf32>
      %25 = arith.mulf %22, %24 : vector<32x128xf32>
      %c0_19 = arith.constant 0 : index
      %c0_20 = arith.constant 0 : index
      %26 = vector.load %arg8[%c0_19, %c0_20] : memref<1x128xf32, #tpu.memory_space<vmem>>, vector<1x128xf32>
      %27 = vector.broadcast %26 : vector<1x128xf32> to vector<32x128xf32>
      %28 = arith.addf %25, %27 : vector<32x128xf32>
      %cst_21 = arith.constant 0.000000e+00 : f32
      %29 = vector.broadcast %cst_21 : f32 to vector<32x128xf32>
      %30 = arith.maximumf %28, %29 : vector<32x128xf32>
      %31 = arith.truncf %30 : vector<32x128xf32> to vector<32x128xbf16>
      %c0_22 = arith.constant 0 : index
      %c0_23 = arith.constant 0 : index
      %32 = vector.load %arg9[%c0_22, %c0_23] : memref<32x128xbf16, #tpu.memory_space<vmem>>, vector<32x128xbf16>
      tpu.vector_store %arg9[%c0_22, %c0_23], %31 {strides = array<i32>} : memref<32x128xbf16, #tpu.memory_space<vmem>>, vector<32x128xbf16>,
    } else {
    }
    return
  }
  func.func @transform_0(%arg0: i32, %arg1: i32, %arg2: i32) -> (i32, i32) {
    %c0_i32 = arith.constant 0 : i32
    return %arg0, %arg2 : i32, i32
  }
  func.func @transform_1(%arg0: i32, %arg1: i32, %arg2: i32) -> (i32, i32) {
    %c0_i32 = arith.constant 0 : i32
    return %arg2, %arg1 : i32, i32
  }
  func.func @transform_2(%arg0: i32, %arg1: i32, %arg2: i32) -> (i32, i32) {
    %c0_i32 = arith.constant 0 : i32
    %c0_i32_0 = arith.constant 0 : i32
    return %c0_i32, %arg2 : i32, i32
  }
  func.func @transform_3(%arg0: i32, %arg1: i32, %arg2: i32) -> (i32, i32) {
    %c0_i32 = arith.constant 0 : i32
    %c0_i32_0 = arith.constant 0 : i32
    return %c0_i32, %arg2 : i32, i32
  }
  func.func @transform_4(%arg0: i32, %arg1: i32, %arg2: i32) -> (i32, i32) {
    %c0_i32 = arith.constant 0 : i32
    %c0_i32_0 = arith.constant 0 : i32
    return %c0_i32, %arg1 : i32, i32
  }
  func.func @transform_5(%arg0: i32, %arg1: i32, %arg2: i32) -> (i32, i32) {
    %c0_i32 = arith.constant 0 : i32
    %c0_i32_0 = arith.constant 0 : i32
    return %c0_i32, %arg1 : i32, i32
  }
  func.func @transform_6(%arg0: i32, %arg1: i32, %arg2: i32) -> (i32, i32) {
    %c0_i32 = arith.constant 0 : i32
    return %arg0, %arg1 : i32, i32
  }
}

module attributes {stable_mosaic.version = 11 : i64} {
  func.func @_mm_kernel(%arg0: i32, %arg1: i32, %arg2: i32, %arg3: memref<32x256xbf16, #tpu.memory_space<vmem>>, %arg4: memref<256x128xbf16, #tpu.memory_space<vmem>>, %arg5: memref<32x128xbf16, #tpu.memory_space<vmem>>, %arg6: memref<32x128xf32, #tpu.memory_space<vmem>>) attributes {dimension_semantics = [#tpu.dimension_semantics<parallel>, #tpu.dimension_semantics<parallel>, #tpu.dimension_semantics<arbitrary>], iteration_bounds = array<i64: 1, 1, 1>, scalar_prefetch = 0 : i64, scratch_operands = 1 : i64, tpu.core_type = #tpu.core_type<tc>, window_params = [{transform_indices = @transform_0, window_bounds = array<i64: 32, 256>}, {transform_indices = @transform_1, window_bounds = array<i64: 256, 128>}, {transform_indices = @transform_2, window_bounds = array<i64: 32, 128>}]} {
    %c0_i32 = arith.constant 0 : i32
    %0 = arith.cmpi eq, %arg2, %c0_i32 : i32
    %1 = arith.extui %0 : i1 to i32
    %c0_i32_0 = arith.constant 0 : i32
    %2 = arith.cmpi ne, %1, %c0_i32_0 : i32
    scf.if %2 {
      %cst_10 = arith.constant 0.000000e+00 : f32
      %12 = vector.broadcast %cst_10 : f32 to vector<32x128xf32>
      %c0_11 = arith.constant 0 : index
      %c0_12 = arith.constant 0 : index
      %13 = vector.load %arg6[%c0_11, %c0_12] : memref<32x128xf32, #tpu.memory_space<vmem>>, vector<32x128xf32>
      tpu.vector_store %arg6[%c0_11, %c0_12], %12 {strides = array<i32>} : memref<32x128xf32, #tpu.memory_space<vmem>>, vector<32x128xf32>,
    } else {
    }
    %c0 = arith.constant 0 : index
    %c0_1 = arith.constant 0 : index
    %3 = vector.load %arg3[%c0, %c0_1] : memref<32x256xbf16, #tpu.memory_space<vmem>>, vector<32x256xbf16>
    %c0_2 = arith.constant 0 : index
    %c0_3 = arith.constant 0 : index
    %4 = vector.load %arg6[%c0_2, %c0_3] : memref<32x128xf32, #tpu.memory_space<vmem>>, vector<32x128xf32>
    %c0_4 = arith.constant 0 : index
    %c0_5 = arith.constant 0 : index
    %5 = vector.load %arg4[%c0_4, %c0_5] : memref<256x128xbf16, #tpu.memory_space<vmem>>, vector<256x128xbf16>
    %cst = arith.constant dense<0.000000e+00> : vector<32x128xf32>
    %6 = tpu.matmul %3, %5, %cst {dimension_numbers = #tpu.dot_dimension_numbers<[1], [0], [0], [1], [0, 0, 1, 1], [], []>} : vector<32x256xbf16>, vector<256x128xbf16>, vector<32x128xf32> -> vector<32x128xf32>
    %7 = arith.addf %4, %6 : vector<32x128xf32>
    %c0_6 = arith.constant 0 : index
    %c0_7 = arith.constant 0 : index
    %8 = vector.load %arg6[%c0_6, %c0_7] : memref<32x128xf32, #tpu.memory_space<vmem>>, vector<32x128xf32>
    tpu.vector_store %arg6[%c0_6, %c0_7], %7 {strides = array<i32>} : memref<32x128xf32, #tpu.memory_space<vmem>>, vector<32x128xf32>,
    %c0_i32_8 = arith.constant 0 : i32
    %9 = arith.cmpi eq, %arg2, %c0_i32_8 : i32
    %10 = arith.extui %9 : i1 to i32
    %c0_i32_9 = arith.constant 0 : i32
    %11 = arith.cmpi ne, %10, %c0_i32_9 : i32
    scf.if %11 {
      %c0_10 = arith.constant 0 : index
      %c0_11 = arith.constant 0 : index
      %12 = vector.load %arg6[%c0_10, %c0_11] : memref<32x128xf32, #tpu.memory_space<vmem>>, vector<32x128xf32>
      %13 = arith.truncf %12 : vector<32x128xf32> to vector<32x128xbf16>
      %c0_12 = arith.constant 0 : index
      %c0_13 = arith.constant 0 : index
      %14 = vector.load %arg5[%c0_12, %c0_13] : memref<32x128xbf16, #tpu.memory_space<vmem>>, vector<32x128xbf16>
      tpu.vector_store %arg5[%c0_12, %c0_13], %13 {strides = array<i32>} : memref<32x128xbf16, #tpu.memory_space<vmem>>, vector<32x128xbf16>,
    } else {
    }
    return
  }
  func.func @transform_0(%arg0: i32, %arg1: i32, %arg2: i32) -> (i32, i32) {
    %c0_i32 = arith.constant 0 : i32
    return %arg0, %arg2 : i32, i32
  }
  func.func @transform_1(%arg0: i32, %arg1: i32, %arg2: i32) -> (i32, i32) {
    %c0_i32 = arith.constant 0 : i32
    return %arg2, %arg1 : i32, i32
  }
  func.func @transform_2(%arg0: i32, %arg1: i32, %arg2: i32) -> (i32, i32) {
    %c0_i32 = arith.constant 0 : i32
    return %arg0, %arg1 : i32, i32
  }
}

module attributes {stable_mosaic.version = 11 : i64} {
  func.func @_relu_gap_kernel(%arg0: i32, %arg1: memref<2x16x32xbf16, #tpu.memory_space<vmem>>, %arg2: memref<2x32xf32, #tpu.memory_space<vmem>>) attributes {dimension_semantics = [#tpu.dimension_semantics<arbitrary>], iteration_bounds = array<i64: 1>, scalar_prefetch = 0 : i64, scratch_operands = 0 : i64, tpu.core_type = #tpu.core_type<tc>, window_params = [{pipeline_mode = #tpu.pipeline_mode<synchronous>, transform_indices = @transform_0, window_bounds = array<i64: 2, 16, 32>}, {pipeline_mode = #tpu.pipeline_mode<synchronous>, transform_indices = @transform_1, window_bounds = array<i64: 2, 32>}]} {
    %c0 = arith.constant 0 : index
    %c0_0 = arith.constant 0 : index
    %c0_1 = arith.constant 0 : index
    %0 = vector.load %arg1[%c0, %c0_0, %c0_1] : memref<2x16x32xbf16, #tpu.memory_space<vmem>>, vector<2x16x32xbf16>
    %1 = arith.extf %0 : vector<2x16x32xbf16> to vector<2x16x32xf32>
    %cst = arith.constant 0.000000e+00 : f32
    %2 = vector.broadcast %cst : f32 to vector<2x16x32xf32>
    %3 = arith.maximumf %1, %2 : vector<2x16x32xf32>
    %cst_2 = arith.constant dense<0.000000e+00> : vector<2x32xf32>
    %4 = vector.multi_reduction <add>, %3, %cst_2 [1] : vector<2x16x32xf32> to vector<2x32xf32>
    %cst_3 = arith.constant 1.600000e+01 : f32
    %5 = vector.broadcast %cst_3 : f32 to vector<2x32xf32>
    %6 = arith.divf %4, %5 : vector<2x32xf32>
    %c0_4 = arith.constant 0 : index
    %c0_5 = arith.constant 0 : index
    %7 = vector.load %arg2[%c0_4, %c0_5] : memref<2x32xf32, #tpu.memory_space<vmem>>, vector<2x32xf32>
    tpu.vector_store %arg2[%c0_4, %c0_5], %6 {strides = array<i32>} : memref<2x32xf32, #tpu.memory_space<vmem>>, vector<2x32xf32>,
    return
  }
  func.func @transform_0(%arg0: i32) -> (i32, i32, i32) {
    %c0_i32 = arith.constant 0 : i32
    %c0_i32_0 = arith.constant 0 : i32
    %c0_i32_1 = arith.constant 0 : i32
    %c0_i32_2 = arith.constant 0 : i32
    return %c0_i32, %c0_i32_0, %c0_i32_1 : i32, i32, i32
  }
  func.func @transform_1(%arg0: i32) -> (i32, i32) {
    %c0_i32 = arith.constant 0 : i32
    %c0_i32_0 = arith.constant 0 : i32
    %c0_i32_1 = arith.constant 0 : i32
    return %c0_i32, %c0_i32_0 : i32, i32
  }
}

module attributes {stable_mosaic.version = 11 : i64} {
  func.func @_mm_kernel(%arg0: i32, %arg1: i32, %arg2: i32, %arg3: memref<8x128xbf16, #tpu.memory_space<vmem>>, %arg4: memref<128x128xbf16, #tpu.memory_space<vmem>>, %arg5: memref<1x128xf32, #tpu.memory_space<vmem>>, %arg6: memref<1x128xf32, #tpu.memory_space<vmem>>, %arg7: memref<8x128xf32, #tpu.memory_space<vmem>>, %arg8: memref<8x128xf32, #tpu.memory_space<vmem>>) attributes {dimension_semantics = [#tpu.dimension_semantics<parallel>, #tpu.dimension_semantics<parallel>, #tpu.dimension_semantics<arbitrary>], iteration_bounds = array<i64: 1, 1, 1>, scalar_prefetch = 0 : i64, scratch_operands = 1 : i64, tpu.core_type = #tpu.core_type<tc>, window_params = [{transform_indices = @transform_0, window_bounds = array<i64: 8, 128>}, {transform_indices = @transform_1, window_bounds = array<i64: 128, 128>}, {transform_indices = @transform_2, window_bounds = array<i64: 1, 128>}, {transform_indices = @transform_3, window_bounds = array<i64: 1, 128>}, {transform_indices = @transform_4, window_bounds = array<i64: 8, 128>}]} {
    %c0_i32 = arith.constant 0 : i32
    %0 = arith.cmpi eq, %arg2, %c0_i32 : i32
    %1 = arith.extui %0 : i1 to i32
    %c0_i32_0 = arith.constant 0 : i32
    %2 = arith.cmpi ne, %1, %c0_i32_0 : i32
    scf.if %2 {
      %cst_10 = arith.constant 0.000000e+00 : f32
      %12 = vector.broadcast %cst_10 : f32 to vector<8x128xf32>
      %c0_11 = arith.constant 0 : index
      %c0_12 = arith.constant 0 : index
      %13 = vector.load %arg8[%c0_11, %c0_12] : memref<8x128xf32, #tpu.memory_space<vmem>>, vector<8x128xf32>
      tpu.vector_store %arg8[%c0_11, %c0_12], %12 {strides = array<i32>} : memref<8x128xf32, #tpu.memory_space<vmem>>, vector<8x128xf32>,
    } else {
    }
    %c0 = arith.constant 0 : index
    %c0_1 = arith.constant 0 : index
    %3 = vector.load %arg3[%c0, %c0_1] : memref<8x128xbf16, #tpu.memory_space<vmem>>, vector<8x128xbf16>
    %c0_2 = arith.constant 0 : index
    %c0_3 = arith.constant 0 : index
    %4 = vector.load %arg8[%c0_2, %c0_3] : memref<8x128xf32, #tpu.memory_space<vmem>>, vector<8x128xf32>
    %c0_4 = arith.constant 0 : index
    %c0_5 = arith.constant 0 : index
    %5 = vector.load %arg4[%c0_4, %c0_5] : memref<128x128xbf16, #tpu.memory_space<vmem>>, vector<128x128xbf16>
    %cst = arith.constant dense<0.000000e+00> : vector<8x128xf32>
    %6 = tpu.matmul %3, %5, %cst {dimension_numbers = #tpu.dot_dimension_numbers<[1], [0], [0], [1], [0, 0, 1, 1], [], []>} : vector<8x128xbf16>, vector<128x128xbf16>, vector<8x128xf32> -> vector<8x128xf32>
    %7 = arith.addf %4, %6 : vector<8x128xf32>
    %c0_6 = arith.constant 0 : index
    %c0_7 = arith.constant 0 : index
    %8 = vector.load %arg8[%c0_6, %c0_7] : memref<8x128xf32, #tpu.memory_space<vmem>>, vector<8x128xf32>
    tpu.vector_store %arg8[%c0_6, %c0_7], %7 {strides = array<i32>} : memref<8x128xf32, #tpu.memory_space<vmem>>, vector<8x128xf32>,
    %c0_i32_8 = arith.constant 0 : i32
    %9 = arith.cmpi eq, %arg2, %c0_i32_8 : i32
    %10 = arith.extui %9 : i1 to i32
    %c0_i32_9 = arith.constant 0 : i32
    %11 = arith.cmpi ne, %10, %c0_i32_9 : i32
    scf.if %11 {
      %c0_10 = arith.constant 0 : index
      %c0_11 = arith.constant 0 : index
      %12 = vector.load %arg8[%c0_10, %c0_11] : memref<8x128xf32, #tpu.memory_space<vmem>>, vector<8x128xf32>
      %c0_12 = arith.constant 0 : index
      %c0_13 = arith.constant 0 : index
      %13 = vector.load %arg5[%c0_12, %c0_13] : memref<1x128xf32, #tpu.memory_space<vmem>>, vector<1x128xf32>
      %14 = vector.broadcast %13 : vector<1x128xf32> to vector<8x128xf32>
      %15 = arith.addf %12, %14 : vector<8x128xf32>
      %c0_14 = arith.constant 0 : index
      %c0_15 = arith.constant 0 : index
      %16 = vector.load %arg6[%c0_14, %c0_15] : memref<1x128xf32, #tpu.memory_space<vmem>>, vector<1x128xf32>
      %17 = vector.broadcast %16 : vector<1x128xf32> to vector<8x128xf32>
      %18 = arith.maximumf %15, %17 : vector<8x128xf32>
      %c0_16 = arith.constant 0 : index
      %c0_17 = arith.constant 0 : index
      %19 = vector.load %arg7[%c0_16, %c0_17] : memref<8x128xf32, #tpu.memory_space<vmem>>, vector<8x128xf32>
      tpu.vector_store %arg7[%c0_16, %c0_17], %18 {strides = array<i32>} : memref<8x128xf32, #tpu.memory_space<vmem>>, vector<8x128xf32>,
    } else {
    }
    return
  }
  func.func @transform_0(%arg0: i32, %arg1: i32, %arg2: i32) -> (i32, i32) {
    %c0_i32 = arith.constant 0 : i32
    return %arg0, %arg2 : i32, i32
  }
  func.func @transform_1(%arg0: i32, %arg1: i32, %arg2: i32) -> (i32, i32) {
    %c0_i32 = arith.constant 0 : i32
    return %arg2, %arg1 : i32, i32
  }
  func.func @transform_2(%arg0: i32, %arg1: i32, %arg2: i32) -> (i32, i32) {
    %c0_i32 = arith.constant 0 : i32
    %c0_i32_0 = arith.constant 0 : i32
    return %c0_i32, %arg1 : i32, i32
  }
  func.func @transform_3(%arg0: i32, %arg1: i32, %arg2: i32) -> (i32, i32) {
    %c0_i32 = arith.constant 0 : i32
    %c0_i32_0 = arith.constant 0 : i32
    return %c0_i32, %arg1 : i32, i32
  }
  func.func @transform_4(%arg0: i32, %arg1: i32, %arg2: i32) -> (i32, i32) {
    %c0_i32 = arith.constant 0 : i32
    return %arg0, %arg1 : i32, i32
  }
}

</mosaic_0001>

<llo_original>
// kernel: param_lenet_forward.17
$region0: #{param_lenet_forward.17}
  #allocation0 [shape = 'u32[]', space=smem, size = 0x4, offset = 0x4, fixed_abs, tag = 'smem constant byte address 0x4 - core index']
  #allocation1 [shape = 'u32[72,128]{1,0:T(1,128)}', space=vmem, size = 0x9000, scoped, tag = 'internal scratch']
  #allocation2 [shape = 'f32[256,128]{1,0:T(8,128)}', space=vmem, size = 0x20000, scoped, tag = 'scratch operand']
  %s0 = inlined_call_operand.vmem [shape: bf16[512,256], index: 0, kind: input, shape index: {}]
  %s1 = inlined_call_operand.vmem [shape: bf16[256,128], index: 1, kind: input, shape index: {}]
  %s2 = inlined_call_operand.vmem [shape: f32[1,128], index: 2, kind: input, shape index: {}]
  %s3 = inlined_call_operand.vmem [shape: f32[1,128], index: 3, kind: input, shape index: {}]
  %s4 = inlined_call_operand.vmem [shape: bf16[512,128], index: 4, kind: output, shape index: {}]
  %s5 = sld [smem:[#allocation0]]
  $region57: #{param_lenet_forward.17} parent=0
    _
  %s7 = ssub.s32 1, %s5
  %s8 = scalar_select 0, %s7, %s5
  loop: start=0, step=1, limit=4
  $region2: #{param_lenet_forward.17} parent=0 // loop_pre_header
    _
  $region3: #{param_lenet_forward.17} parent=0 // loop_header
    %s10 = sphi 0, %s14
    %p11 = scmp.ge.s32.totalorder %s10, 4
    %s17 = sphi 0, %s36
    %s18 = sphi 0, %s32
    %s19 = sphi 0, %s28
    %s20 = sphi 0, %s17
    %s21 = sphi 0, %s18
    %s22 = sphi 0, %s19
    %s23 = sphi 0, %s20
    %s24 = sphi 0, %s21
    %s25 = sphi 0, %s22
    %s41 = sphi 0, %s43
    %s44 = sphi 0, %s41
    %s45 = sphi 0, %s44
    %s61 = sphi 0, %s45
    %s69 = sphi 0, %s71
    %s72 = sphi 0, %s69
    %s73 = sphi 0, %s72
    %s89 = sphi 0, %s73
    %s95 = sphi 0, %s97
    %s98 = sphi 0, %s95
    %s99 = sphi 0, %s98
    %s115 = sphi 0, %s99
    %s121 = sphi 0, %s123
    %s124 = sphi 0, %s121
    %s125 = sphi 0, %s124
    %s141 = sphi 0, %s125
    %s149 = sphi 0, %s151
    %s152 = sphi 0, %s149
    %s153 = sphi 0, %s152
    %s169 = sphi 0, %s153
  $region4: #{param_lenet_forward.17} parent=0 // loop_header_branch
    %13 = sbr.rel (%p11) target = $region8
  $region5: #{param_lenet_forward.17} parent=0 // loop_body
    %s15 = ssub.s32 %s10, 1
    %s16 = ssub.s32 %s10, 2
    %s26 = sadd.s32 1, %s19
    %p27 = scmp.ge.s32.totalorder %s26, 1
    %s28 = scalar_select %p27, 0, %s26
    %s29 = sadd.s32 1, %s18
    %s30 = scalar_select %p27, %s29, %s18
    %p31 = scmp.ge.s32.totalorder %s30, 1
    %s32 = scalar_select %p31, 0, %s30
    %s33 = sadd.s32 1, %s17
    %s34 = scalar_select %p31, %s33, %s17
    %p35 = scmp.ge.s32.totalorder %s34, 2
    %s36 = scalar_select %p35, 0, %s34
    %s37 = ssub.s32 %s17, %s36
    %s38 = ssub.s32 %s19, %s28
    %s39 = sor.u32 %s37, %s38
    %p40 = scmp.eq.s32.totalorder %s39, 0
    %s42 = sadd.s32 %s41, 1
    %s43 = scalar_select %p40, %s41, %s42
    %p46 = pneg %p40
    %p47 = scmp.eq.s32.totalorder %s10, 1
    %p48 = por %p46, %p47
    %p49 = scmp.ne.s32.totalorder %s41, %s44
    %p50 = scmp.eq.s32.totalorder %s10, 0
    %p51 = por %p49, %p50
    %p52 = scmp.ne.s32.totalorder %s41, %s44
    %p53 = scmp.eq.s32.totalorder %s15, 1
    %p54 = por %p52, %p53
    %p55 = scmp.ne.s32.totalorder %s44, %s45
    %p56 = scmp.eq.s32.totalorder %s15, 0
    %p57 = por %p55, %p56
    %p58 = scmp.ne.s32.totalorder %s44, %s45
    %p59 = scmp.eq.s32.totalorder %s16, 1
    %p60 = por %p58, %p59
    %p62 = scmp.ne.s32.totalorder %s45, %s61
    %p63 = scmp.eq.s32.totalorder %s16, 0
    %p64 = por %p62, %p63
    %s65 = ssub.s32 %s19, %s28
    %s66 = ssub.s32 %s18, %s32
    %s67 = sor.u32 %s65, %s66
    %p68 = scmp.eq.s32.totalorder %s67, 0
    %s70 = sadd.s32 %s69, 1
    %s71 = scalar_select %p68, %s69, %s70
    %p74 = pneg %p68
    %p75 = scmp.eq.s32.totalorder %s10, 1
    %p76 = por %p74, %p75
    %p77 = scmp.ne.s32.totalorder %s69, %s72
    %p78 = scmp.eq.s32.totalorder %s10, 0
    %p79 = por %p77, %p78
    %p80 = scmp.ne.s32.totalorder %s69, %s72
    %p81 = scmp.eq.s32.totalorder %s15, 1
    %p82 = por %p80, %p81
    %p83 = scmp.ne.s32.totalorder %s72, %s73
    %p84 = scmp.eq.s32.totalorder %s15, 0
    %p85 = por %p83, %p84
    %p86 = scmp.ne.s32.totalorder %s72, %s73
    %p87 = scmp.eq.s32.totalorder %s16, 1
    %p88 = por %p86, %p87
    %p90 = scmp.ne.s32.totalorder %s73, %s89
    %p91 = scmp.eq.s32.totalorder %s16, 0
    %p92 = por %p90, %p91
    %s93 = ssub.s32 %s18, %s32
    %p94 = scmp.eq.s32.totalorder %s93, 0
    %s96 = sadd.s32 %s95, 1
    %s97 = scalar_select %p94, %s95, %s96
    %p100 = pneg %p94
    %p101 = scmp.eq.s32.totalorder %s10, 1
    %p102 = por %p100, %p101
    %p103 = scmp.ne.s32.totalorder %s95, %s98
    %p104 = scmp.eq.s32.totalorder %s10, 0
    %p105 = por %p103, %p104
    %p106 = scmp.ne.s32.totalorder %s95, %s98
    %p107 = scmp.eq.s32.totalorder %s15, 1
    %p108 = por %p106, %p107
    %p109 = scmp.ne.s32.totalorder %s98, %s99
    %p110 = scmp.eq.s32.totalorder %s15, 0
    %p111 = por %p109, %p110
    %p112 = scmp.ne.s32.totalorder %s98, %s99
    %p113 = scmp.eq.s32.totalorder %s16, 1
    %p114 = por %p112, %p113
    %p116 = scmp.ne.s32.totalorder %s99, %s115
    %p117 = scmp.eq.s32.totalorder %s16, 0
    %p118 = por %p116, %p117
    %s119 = ssub.s32 %s18, %s32
    %p120 = scmp.eq.s32.totalorder %s119, 0
    %s122 = sadd.s32 %s121, 1
    %s123 = scalar_select %p120, %s121, %s122
    %p126 = pneg %p120
    %p127 = scmp.eq.s32.totalorder %s10, 1
    %p128 = por %p126, %p127
    %p129 = scmp.ne.s32.totalorder %s121, %s124
    %p130 = scmp.eq.s32.totalorder %s10, 0
    %p131 = por %p129, %p130
    %p132 = scmp.ne.s32.totalorder %s121, %s124
    %p133 = scmp.eq.s32.totalorder %s15, 1
    %p134 = por %p132, %p133
    %p135 = scmp.ne.s32.totalorder %s124, %s125
    %p136 = scmp.eq.s32.totalorder %s15, 0
    %p137 = por %p135, %p136
    %p138 = scmp.ne.s32.totalorder %s124, %s125
    %p139 = scmp.eq.s32.totalorder %s16, 1
    %p140 = por %p138, %p139
    %p142 = scmp.ne.s32.totalorder %s125, %s141
    %p143 = scmp.eq.s32.totalorder %s16, 0
    %p144 = por %p142, %p143
    %s145 = ssub.s32 %s17, %s36
    %s146 = ssub.s32 %s18, %s32
    %s147 = sor.u32 %s145, %s146
    %p148 = scmp.eq.s32.totalorder %s147, 0
    %s150 = sadd.s32 %s149, 1
    %s151 = scalar_select %p148, %s149, %s150
    %p154 = pneg %p148
    %p155 = scmp.eq.s32.totalorder %s10, 1
    %p156 = por %p154, %p155
    %p157 = scmp.ne.s32.totalorder %s149, %s152
    %p158 = scmp.eq.s32.totalorder %s10, 0
    %p159 = por %p157, %p158
    %p160 = scmp.ne.s32.totalorder %s149, %s152
    %p161 = scmp.eq.s32.totalorder %s15, 1
    %p162 = por %p160, %p161
    %p163 = scmp.ne.s32.totalorder %s152, %s153
    %p164 = scmp.eq.s32.totalorder %s15, 0
    %p165 = por %p163, %p164
    %p166 = scmp.ne.s32.totalorder %s152, %s153
    %p167 = scmp.eq.s32.totalorder %s16, 1
    %p168 = por %p166, %p167
    %p170 = scmp.ne.s32.totalorder %s153, %s169
    %p171 = scmp.eq.s32.totalorder %s16, 0
    %p172 = por %p170, %p171
    %p173 = scmp.le.s32.totalorder 1, %s10
    %p174 = scmp.lt.s32.totalorder %s10, 3
    %p175 = pnand %p173, %p174
    %p176 = pneg %p175
    // Predicated region
    $region9: #{param_lenet_forward.17} parent=5 // pred_check
      _
    $region10: #{param_lenet_forward.17} parent=5 // pred_check_branch
      %178 = sbr.rel (%p175) target = $region12
    $region11: #{param_lenet_forward.17} parent=5 // pred_region
      %s179 = ssub.s32 %s10, 1
      // Predicated region
      $region13: #{param_lenet_forward.17} parent=11 // pred_check
        %p180 = pneg %p85
      $region14: #{param_lenet_forward.17} parent=11 // pred_check_branch
        %182 = sbr.rel (%p180) target = $region16
      $region15: #{param_lenet_forward.17} parent=11 // pred_region
        %s183 = smul.u32 32, %s22
        %p184 = scmp.lt.s32.totalorder %s183, 31
        %s185 = scalar_select %p184, %s183, 31
        %p186 = scmp.lt.s32.totalorder %s21, 0
        %s187 = scalar_select %p186, %s21, 0
        %s188 = sadd.s32 %s187, %s185
        %s189 = smul.addr %s188, 4
        %s190 = scalar_lea.vmem %s1, %s189
        %s191 = smul.u32 32, %s22
      $region16: #{param_lenet_forward.17} parent=11 // pred_fallthru
        _
      // Predicated region
      $region17: #{param_lenet_forward.17} parent=11 // pred_check
        %p192 = pneg %p111
      $region18: #{param_lenet_forward.17} parent=11 // pred_check_branch
        %194 = sbr.rel (%p192) target = $region20
      $region19: #{param_lenet_forward.17} parent=11 // pred_region
        %p195 = scmp.lt.s32.totalorder %s21, 0
        %s196 = scalar_select %p195, %s21, 0
        %s197 = scalar_lea.vmem %s2, %s196
      $region20: #{param_lenet_forward.17} parent=11 // pred_fallthru
        _
      // Predicated region
      $region21: #{param_lenet_forward.17} parent=11 // pred_check
        %p198 = pneg %p137
      $region22: #{param_lenet_forward.17} parent=11 // pred_check_branch
        %200 = sbr.rel (%p198) target = $region24
      $region23: #{param_lenet_forward.17} parent=11 // pred_region
        %p201 = scmp.lt.s32.totalorder %s21, 0
        %s202 = scalar_select %p201, %s21, 0
        %s203 = scalar_lea.vmem %s3, %s202
      $region24: #{param_lenet_forward.17} parent=11 // pred_fallthru
        _
    $region12: #{param_lenet_forward.17} parent=5 // pred_fallthru
      _
    %p204 = scmp.lt.s32.totalorder %s10, 2
    // Predicated region
    $region25: #{param_lenet_forward.17} parent=5 // pred_check
      %p205 = pneg %p204
    $region26: #{param_lenet_forward.17} parent=5 // pred_check_branch
      %207 = sbr.rel (%p205) target = $region28
    $region27: #{param_lenet_forward.17} parent=5 // pred_region
      // Predicated region
      $region29: #{param_lenet_forward.17} parent=27 // pred_check
        %p208 = pneg %p51
      $region30: #{param_lenet_forward.17} parent=27 // pred_check_branch
        %210 = sbr.rel (%p208) target = $region32
      $region31: #{param_lenet_forward.17} parent=27 // pred_region
        %s211 = smul.u32 32, %s17
        %s212 = smul.u32 2, %s19
        %p213 = scmp.lt.s32.totalorder %s211, 63
        %s214 = scalar_select %p213, %s211, 63
        %p215 = scmp.lt.s32.totalorder %s212, 1
        %s216 = scalar_select %p215, %s212, 1
        %s217 = smul.addr %s214, 2
        %s218 = sadd.s32 %s216, %s217
        %s219 = smul.addr %s218, 4
        %s220 = scalar_lea.vmem %s0, %s219
        %s221 = smul.u32 32, %s17
        %s222 = smul.u32 2, %s19
      $region32: #{param_lenet_forward.17} parent=27 // pred_fallthru
        _
    $region28: #{param_lenet_forward.17} parent=5 // pred_fallthru
      _
    %p223 = scmp.le.s32.totalorder 1, %s10
    %p224 = scmp.lt.s32.totalorder %s10, 3
    %p225 = pnand %p223, %p224
    %p226 = pneg %p225
    // Predicated region
    $region33: #{param_lenet_forward.17} parent=5 // pred_check
      _
    $region34: #{param_lenet_forward.17} parent=5 // pred_check_branch
      %228 = sbr.rel (%p225) target = $region36
    $region35: #{param_lenet_forward.17} parent=5 // pred_region
      %s229 = ssub.s32 %s10, 1
      %s230 = smul.u32 32, %s20
      %s231 = smul.u32 2, %s22
      %p232 = scmp.lt.s32.totalorder %s230, 63
      %s233 = scalar_select %p232, %s230, 63
      %p234 = scmp.lt.s32.totalorder %s231, 1
      %s235 = scalar_select %p234, %s231, 1
      %s236 = smul.addr %s233, 2
      %s237 = sadd.s32 %s235, %s236
      %s238 = smul.addr %s237, 4
      %s239 = scalar_lea.vmem %s0, %s238
      %p240 = pneg %p57
      %p241 = pneg %p54
      %s242 = smul.u32 32, %s22
      %p243 = scmp.lt.s32.totalorder %s242, 31
      %s244 = scalar_select %p243, %s242, 31
      %p245 = scmp.lt.s32.totalorder %s21, 0
      %s246 = scalar_select %p245, %s21, 0
      %s247 = sadd.s32 %s246, %s244
      %s248 = smul.addr %s247, 4
      %s249 = scalar_lea.vmem %s1, %s248
      %p250 = pneg %p85
      %p251 = pneg %p82
      %p252 = scmp.lt.s32.totalorder %s21, 0
      %s253 = scalar_select %p252, %s21, 0
      %s254 = scalar_lea.vmem %s2, %s253
      %p255 = pneg %p111
      %p256 = pneg %p108
      %p257 = scmp.lt.s32.totalorder %s21, 0
      %s258 = scalar_select %p257, %s21, 0
      %s259 = scalar_lea.vmem %s3, %s258
      %p260 = pneg %p137
      %p261 = pneg %p134
      %p262 = pneg %p165
      %p263 = pneg %p162
      %s264 = smul.u32 32, %s20
      %p265 = scmp.lt.s32.totalorder %s264, 63
      %s266 = scalar_select %p265, %s264, 63
      %p267 = scmp.lt.s32.totalorder %s21, 0
      %s268 = scalar_select %p267, %s21, 0
      %s269 = sadd.s32 %s268, %s266
      %s270 = smul.addr %s269, 4
      %s271 = scalar_lea.vmem %s4, %s270
      %s272 = smul.u32 32, %s20
      %s273 = smul.u32 2, %s22
      %p274 = scmp.lt.s32.totalorder %s272, 63
      %s275 = scalar_select %p274, %s272, 63
      %p276 = scmp.lt.s32.totalorder %s273, 1
      %s277 = scalar_select %p276, %s273, 1
      %s278 = smul.addr %s275, 2
      %s279 = sadd.s32 %s277, %s278
      %s280 = smul.addr %s279, 4
      %s281 = scalar_lea.vmem %s0, %s280
      %s282 = smul.u32 32, %s20
      %s283 = smul.u32 2, %s22
      %s284 = smul.u32 32, %s22
      %p285 = scmp.lt.s32.totalorder %s284, 31
      %s286 = scalar_select %p285, %s284, 31
      %p287 = scmp.lt.s32.totalorder %s21, 0
      %s288 = scalar_select %p287, %s21, 0
      %s289 = sadd.s32 %s288, %s286
      %s290 = smul.addr %s289, 4
      %s291 = scalar_lea.vmem %s1, %s290
      %s292 = smul.u32 32, %s22
      %p293 = scmp.lt.s32.totalorder %s21, 0
      %s294 = scalar_select %p293, %s21, 0
      %s295 = scalar_lea.vmem %s2, %s294
      %p296 = scmp.lt.s32.totalorder %s21, 0
      %s297 = scalar_select %p296, %s21, 0
      %s298 = scalar_lea.vmem %s3, %s297
      %s299 = smul.u32 32, %s20
      %p300 = scmp.lt.s32.totalorder %s299, 63
      %s301 = scalar_select %p300, %s299, 63
      %p302 = scmp.lt.s32.totalorder %s21, 0
      %s303 = scalar_select %p302, %s21, 0
      %s304 = sadd.s32 %s303, %s301
      %s305 = smul.addr %s304, 4
      %s306 = scalar_lea.vmem %s4, %s305
      %s307 = smul.u32 32, %s20
      %p308 = scmp.eq.s32.totalorder %s22, 0
      // Predicated region
      $region37: #{param_lenet_forward.17} parent=35 // pred_check
        %p309 = pneg %p308
      $region38: #{param_lenet_forward.17} parent=35 // pred_check_branch
        %311 = sbr.rel (%p309) target = $region40
      $region39: #{param_lenet_forward.17} parent=35 // pred_region
        %312 = vst [vmem:[#allocation2] sm:$0xff] 0.0
        %313 = vst [vmem:[#allocation2 + $0x8] sm:$0xff] 0.0
        %314 = vst [vmem:[#allocation2 + $0x10] sm:$0xff] 0.0
        %315 = vst [vmem:[#allocation2 + $0x18] sm:$0xff] 0.0
        %316 = vst [vmem:[#allocation2 + $0x20] sm:$0xff] 0.0
        %317 = vst [vmem:[#allocation2 + $0x28] sm:$0xff] 0.0
        %318 = vst [vmem:[#allocation2 + $0x30] sm:$0xff] 0.0
        %319 = vst [vmem:[#allocation2 + $0x38] sm:$0xff] 0.0
        %320 = vst [vmem:[#allocation2 + $0x40] sm:$0xff] 0.0
        %321 = vst [vmem:[#allocation2 + $0x48] sm:$0xff] 0.0
        %322 = vst [vmem:[#allocation2 + $0x50] sm:$0xff] 0.0
        %323 = vst [vmem:[#allocation2 + $0x58] sm:$0xff] 0.0
        %324 = vst [vmem:[#allocation2 + $0x60] sm:$0xff] 0.0
        %325 = vst [vmem:[#allocation2 + $0x68] sm:$0xff] 0.0
        %326 = vst [vmem:[#allocation2 + $0x70] sm:$0xff] 0.0
        %327 = vst [vmem:[#allocation2 + $0x78] sm:$0xff] 0.0
        %328 = vst [vmem:[#allocation2 + $0x80] sm:$0xff] 0.0
        %329 = vst [vmem:[#allocation2 + $0x88] sm:$0xff] 0.0
        %330 = vst [vmem:[#allocation2 + $0x90] sm:$0xff] 0.0
        %331 = vst [vmem:[#allocation2 + $0x98] sm:$0xff] 0.0
        %332 = vst [vmem:[#allocation2 + $0xa0] sm:$0xff] 0.0
        %333 = vst [vmem:[#allocation2 + $0xa8] sm:$0xff] 0.0
        %334 = vst [vmem:[#allocation2 + $0xb0] sm:$0xff] 0.0
        %335 = vst [vmem:[#allocation2 + $0xb8] sm:$0xff] 0.0
        %336 = vst [vmem:[#allocation2 + $0xc0] sm:$0xff] 0.0
        %337 = vst [vmem:[#allocation2 + $0xc8] sm:$0xff] 0.0
        %338 = vst [vmem:[#allocation2 + $0xd0] sm:$0xff] 0.0
        %339 = vst [vmem:[#allocation2 + $0xd8] sm:$0xff] 0.0
        %340 = vst [vmem:[#allocation2 + $0xe0] sm:$0xff] 0.0
        %341 = vst [vmem:[#allocation2 + $0xe8] sm:$0xff] 0.0
        %342 = vst [vmem:[#allocation2 + $0xf0] sm:$0xff] 0.0
        %343 = vst [vmem:[#allocation2 + $0xf8] sm:$0xff] 0.0
      $region40: #{param_lenet_forward.17} parent=35 // pred_fallthru
        _
      %v344 = vld [vmem:[%s281] sm:$0xff]
      %v345 = vld [vmem:[%s281 + $0x8] sm:$0xff]
      %v346 = vld [vmem:[%s281 + $0x10] sm:$0xff]
      %v347 = vld [vmem:[%s281 + $0x18] sm:$0xff]
      %v348 = vld [vmem:[%s281 + $0x20] sm:$0xff]
      %v349 = vld [vmem:[%s281 + $0x28] sm:$0xff]
      %v350 = vld [vmem:[%s281 + $0x30] sm:$0xff]
      %v351 = vld [vmem:[%s281 + $0x38] sm:$0xff]
      %v352 = vld [vmem:[%s281 + $0x40] sm:$0xff]
      %v353 = vld [vmem:[%s281 + $0x48] sm:$0xff]
      %v354 = vld [vmem:[%s281 + $0x50] sm:$0xff]
      %v355 = vld [vmem:[%s281 + $0x58] sm:$0xff]
      %v356 = vld [vmem:[%s281 + $0x60] sm:$0xff]
      %v357 = vld [vmem:[%s281 + $0x68] sm:$0xff]
      %v358 = vld [vmem:[%s281 + $0x70] sm:$0xff]
      %v359 = vld [vmem:[%s281 + $0x78] sm:$0xff]
      %v360 = vld [vmem:[%s281 + $0x80] sm:$0xff]
      %v361 = vld [vmem:[%s281 + $0x88] sm:$0xff]
      %v362 = vld [vmem:[%s281 + $0x90] sm:$0xff]
      %v363 = vld [vmem:[%s281 + $0x98] sm:$0xff]
      %v364 = vld [vmem:[%s281 + $0xa0] sm:$0xff]
      %v365 = vld [vmem:[%s281 + $0xa8] sm:$0xff]
      %v366 = vld [vmem:[%s281 + $0xb0] sm:$0xff]
      %v367 = vld [vmem:[%s281 + $0xb8] sm:$0xff]
      %v368 = vld [vmem:[%s281 + $0xc0] sm:$0xff]
      %v369 = vld [vmem:[%s281 + $0xc8] sm:$0xff]
      %v370 = vld [vmem:[%s281 + $0xd0] sm:$0xff]
      %v371 = vld [vmem:[%s281 + $0xd8] sm:$0xff]
      %v372 = vld [vmem:[%s281 + $0xe0] sm:$0xff]
      %v373 = vld [vmem:[%s281 + $0xe8] sm:$0xff]
      %v374 = vld [vmem:[%s281 + $0xf0] sm:$0xff]
      %v375 = vld [vmem:[%s281 + $0xf8] sm:$0xff]
      %v376 = vld [vmem:[#allocation2] sm:$0xff]
      %v377 = vld [vmem:[#allocation2 + $0x8] sm:$0xff]
      %v378 = vld [vmem:[#allocation2 + $0x10] sm:$0xff]
      %v379 = vld [vmem:[#allocation2 + $0x18] sm:$0xff]
      %v380 = vld [vmem:[#allocation2 + $0x20] sm:$0xff]
      %v381 = vld [vmem:[#allocation2 + $0x28] sm:$0xff]
      %v382 = vld [vmem:[#allocation2 + $0x30] sm:$0xff]
      %v383 = vld [vmem:[#allocation2 + $0x38] sm:$0xff]
      %v384 = vld [vmem:[#allocation2 + $0x40] sm:$0xff]
      %v385 = vld [vmem:[#allocation2 + $0x48] sm:$0xff]
      %v386 = vld [vmem:[#allocation2 + $0x50] sm:$0xff]
      %v387 = vld [vmem:[#allocation2 + $0x58] sm:$0xff]
      %v388 = vld [vmem:[#allocation2 + $0x60] sm:$0xff]
      %v389 = vld [vmem:[#allocation2 + $0x68] sm:$0xff]
      %v390 = vld [vmem:[#allocation2 + $0x70] sm:$0xff]
      %v391 = vld [vmem:[#allocation2 + $0x78] sm:$0xff]
      %v392 = vld [vmem:[#allocation2 + $0x80] sm:$0xff]
      %v393 = vld [vmem:[#allocation2 + $0x88] sm:$0xff]
      %v394 = vld [vmem:[#allocation2 + $0x90] sm:$0xff]
      %v395 = vld [vmem:[#allocation2 + $0x98] sm:$0xff]
      %v396 = vld [vmem:[#allocation2 + $0xa0] sm:$0xff]
      %v397 = vld [vmem:[#allocation2 + $0xa8] sm:$0xff]
      %v398 = vld [vmem:[#allocation2 + $0xb0] sm:$0xff]
      %v399 = vld [vmem:[#allocation2 + $0xb8] sm:$0xff]
      %v400 = vld [vmem:[#allocation2 + $0xc0] sm:$0xff]
      %v401 = vld [vmem:[#allocation2 + $0xc8] sm:$0xff]
      %v402 = vld [vmem:[#allocation2 + $0xd0] sm:$0xff]
      %v403 = vld [vmem:[#allocation2 + $0xd8] sm:$0xff]
      %v404 = vld [vmem:[#allocation2 + $0xe0] sm:$0xff]
      %v405 = vld [vmem:[#allocation2 + $0xe8] sm:$0xff]
      %v406 = vld [vmem:[#allocation2 + $0xf0] sm:$0xff]
      %v407 = vld [vmem:[#allocation2 + $0xf8] sm:$0xff]
      %v408 = vld [vmem:[%s291] sm:$0xf]
      %v409 = vld [vmem:[%s291 + $0x4] sm:$0xf]
      %v410 = vld [vmem:[%s291 + $0x8] sm:$0xf]
      %v411 = vld [vmem:[%s291 + $0xc] sm:$0xf]
      %v412 = vld [vmem:[%s291 + $0x10] sm:$0xf]
      %v413 = vld [vmem:[%s291 + $0x14] sm:$0xf]
      %v414 = vld [vmem:[%s291 + $0x18] sm:$0xf]
      %v415 = vld [vmem:[%s291 + $0x1c] sm:$0xf]
      %v416 = vld [vmem:[%s291 + $0x20] sm:$0xf]
      %v417 = vld [vmem:[%s291 + $0x24] sm:$0xf]
      %v418 = vld [vmem:[%s291 + $0x28] sm:$0xf]
      %v419 = vld [vmem:[%s291 + $0x2c] sm:$0xf]
      %v420 = vld [vmem:[%s291 + $0x30] sm:$0xf]
      %v421 = vld [vmem:[%s291 + $0x34] sm:$0xf]
      %v422 = vld [vmem:[%s291 + $0x38] sm:$0xf]
      %v423 = vld [vmem:[%s291 + $0x3c] sm:$0xf]
      %v424 = vld [vmem:[%s291 + $0x40] sm:$0xf]
      %v425 = vld [vmem:[%s291 + $0x44] sm:$0xf]
      %v426 = vld [vmem:[%s291 + $0x48] sm:$0xf]
      %v427 = vld [vmem:[%s291 + $0x4c] sm:$0xf]
      %v428 = vld [vmem:[%s291 + $0x50] sm:$0xf]
      %v429 = vld [vmem:[%s291 + $0x54] sm:$0xf]
      %v430 = vld [vmem:[%s291 + $0x58] sm:$0xf]
      %v431 = vld [vmem:[%s291 + $0x5c] sm:$0xf]
      %v432 = vld [vmem:[%s291 + $0x60] sm:$0xf]
      %v433 = vld [vmem:[%s291 + $0x64] sm:$0xf]
      %v434 = vld [vmem:[%s291 + $0x68] sm:$0xf]
      %v435 = vld [vmem:[%s291 + $0x6c] sm:$0xf]
      %v436 = vld [vmem:[%s291 + $0x70] sm:$0xf]
      %v437 = vld [vmem:[%s291 + $0x74] sm:$0xf]
      %v438 = vld [vmem:[%s291 + $0x78] sm:$0xf]
      %v439 = vld [vmem:[%s291 + $0x7c] sm:$0xf]
      %v472 = vunpack.c.l.b16 %v344
      %v473 = vunpack.c.h.b16 %v344
      %v474 = vunpack.c.l.b16 %v345
      %v475 = vunpack.c.h.b16 %v345
      %v476 = vunpack.c.l.b16 %v346
      %v477 = vunpack.c.h.b16 %v346
      %v478 = vunpack.c.l.b16 %v347
      %v479 = vunpack.c.h.b16 %v347
      %v480 = vunpack.c.l.b16 %v348
      %v481 = vunpack.c.h.b16 %v348
      %v482 = vunpack.c.l.b16 %v349
      %v483 = vunpack.c.h.b16 %v349
      %v484 = vunpack.c.l.b16 %v350
      %v485 = vunpack.c.h.b16 %v350
      %v486 = vunpack.c.l.b16 %v351
      %v487 = vunpack.c.h.b16 %v351
      %v488 = vunpack.c.l.b16 %v352
      %v489 = vunpack.c.h.b16 %v352
      %v490 = vunpack.c.l.b16 %v353
      %v491 = vunpack.c.h.b16 %v353
      %v492 = vunpack.c.l.b16 %v354
      %v493 = vunpack.c.h.b16 %v354
      %v494 = vunpack.c.l.b16 %v355
      %v495 = vunpack.c.h.b16 %v355
      %v496 = vunpack.c.l.b16 %v356
      %v497 = vunpack.c.h.b16 %v356
      %v498 = vunpack.c.l.b16 %v357
      %v499 = vunpack.c.h.b16 %v357
      %v500 = vunpack.c.l.b16 %v358
      %v501 = vunpack.c.h.b16 %v358
      %v502 = vunpack.c.l.b16 %v359
      %v503 = vunpack.c.h.b16 %v359
      %v504 = vunpack.c.l.b16 %v360
      %v505 = vunpack.c.h.b16 %v360
      %v506 = vunpack.c.l.b16 %v361
      %v507 = vunpack.c.h.b16 %v361
      %v508 = vunpack.c.l.b16 %v362
      %v509 = vunpack.c.h.b16 %v362
      %v510 = vunpack.c.l.b16 %v363
      %v511 = vunpack.c.h.b16 %v363
      %v512 = vunpack.c.l.b16 %v364
      %v513 = vunpack.c.h.b16 %v364
      %v514 = vunpack.c.l.b16 %v365
      %v515 = vunpack.c.h.b16 %v365
      %v516 = vunpack.c.l.b16 %v366
      %v517 = vunpack.c.h.b16 %v366
      %v518 = vunpack.c.l.b16 %v367
      %v519 = vunpack.c.h.b16 %v367
      %v520 = vunpack.c.l.b16 %v368
      %v521 = vunpack.c.h.b16 %v368
      %v522 = vunpack.c.l.b16 %v369
      %v523 = vunpack.c.h.b16 %v369
      %v524 = vunpack.c.l.b16 %v370
      %v525 = vunpack.c.h.b16 %v370
      %v526 = vunpack.c.l.b16 %v371
      %v527 = vunpack.c.h.b16 %v371
      %v528 = vunpack.c.l.b16 %v372
      %v529 = vunpack.c.h.b16 %v372
      %v530 = vunpack.c.l.b16 %v373
      %v531 = vunpack.c.h.b16 %v373
      %v532 = vunpack.c.l.b16 %v374
      %v533 = vunpack.c.h.b16 %v374
      %v534 = vunpack.c.l.b16 %v375
      %v535 = vunpack.c.h.b16 %v375
      %v536 = vpack.c.b16 %v474, %v472
      %v537 = vpack.c.b16 %v475, %v473
      %v538 = vpack.c.b16 %v478, %v476
      %v539 = vpack.c.b16 %v479, %v477
      %v540 = vpack.c.b16 %v482, %v480
      %v541 = vpack.c.b16 %v483, %v481
      %v542 = vpack.c.b16 %v486, %v484
      %v543 = vpack.c.b16 %v487, %v485
      %v544 = vpack.c.b16 %v490, %v488
      %v545 = vpack.c.b16 %v491, %v489
      %v546 = vpack.c.b16 %v494, %v492
      %v547 = vpack.c.b16 %v495, %v493
      %v548 = vpack.c.b16 %v498, %v496
      %v549 = vpack.c.b16 %v499, %v497
      %v550 = vpack.c.b16 %v502, %v500
      %v551 = vpack.c.b16 %v503, %v501
      %v552 = vpack.c.b16 %v506, %v504
      %v553 = vpack.c.b16 %v507, %v505
      %v554 = vpack.c.b16 %v510, %v508
      %v555 = vpack.c.b16 %v511, %v509
      %v556 = vpack.c.b16 %v514, %v512
      %v557 = vpack.c.b16 %v515, %v513
      %v558 = vpack.c.b16 %v518, %v516
      %v559 = vpack.c.b16 %v519, %v517
      %v560 = vpack.c.b16 %v522, %v520
      %v561 = vpack.c.b16 %v523, %v521
      %v562 = vpack.c.b16 %v526, %v524
      %v563 = vpack.c.b16 %v527, %v525
      %v564 = vpack.c.b16 %v530, %v528
      %v565 = vpack.c.b16 %v531, %v529
      %v566 = vpack.c.b16 %v534, %v532
      %v567 = vpack.c.b16 %v535, %v533
      %v632 = vunpack.c.l.b16 %v408
      %v633 = vunpack.c.l.b16 %v409
      %v634 = vunpack.c.l.b16 %v410
      %v635 = vunpack.c.l.b16 %v411
      %v636 = vunpack.c.l.b16 %v412
      %v637 = vunpack.c.l.b16 %v413
      %v638 = vunpack.c.l.b16 %v414
      %v639 = vunpack.c.l.b16 %v415
      %v640 = vunpack.c.l.b16 %v416
      %v641 = vunpack.c.l.b16 %v417
      %v642 = vunpack.c.l.b16 %v418
      %v643 = vunpack.c.l.b16 %v419
      %v644 = vunpack.c.l.b16 %v420
      %v645 = vunpack.c.l.b16 %v421
      %v646 = vunpack.c.l.b16 %v422
      %v647 = vunpack.c.l.b16 %v423
      %v648 = vunpack.c.l.b16 %v424
      %v649 = vunpack.c.l.b16 %v425
      %v650 = vunpack.c.l.b16 %v426
      %v651 = vunpack.c.l.b16 %v427
      %v652 = vunpack.c.l.b16 %v428
      %v653 = vunpack.c.l.b16 %v429
      %v654 = vunpack.c.l.b16 %v430
      %v655 = vunpack.c.l.b16 %v431
      %v656 = vunpack.c.l.b16 %v432
      %v657 = vunpack.c.l.b16 %v433
      %v658 = vunpack.c.l.b16 %v434
      %v659 = vunpack.c.l.b16 %v435
      %v660 = vunpack.c.l.b16 %v436
      %v661 = vunpack.c.l.b16 %v437
      %v662 = vunpack.c.l.b16 %v438
      %v663 = vunpack.c.l.b16 %v439
      %v664 = vpack.c.b16 %v633, %v632
      %v665 = vpack.c.b16 %v635, %v634
      %v666 = vpack.c.b16 %v637, %v636
      %v667 = vpack.c.b16 %v639, %v638
      %v668 = vpack.c.b16 %v641, %v640
      %v669 = vpack.c.b16 %v643, %v642
      %v670 = vpack.c.b16 %v645, %v644
      %v671 = vpack.c.b16 %v647, %v646
      %v672 = vpack.c.b16 %v649, %v648
      %v673 = vpack.c.b16 %v651, %v650
      %v674 = vpack.c.b16 %v653, %v652
      %v675 = vpack.c.b16 %v655, %v654
      %v676 = vpack.c.b16 %v657, %v656
      %v677 = vpack.c.b16 %v659, %v658
      %v678 = vpack.c.b16 %v661, %v660
      %v679 = vpack.c.b16 %v663, %v662
      %696 = vmatpush.bf16.msra.mxu0 %v671
      %697 = vmatpush.bf16.msra.mxu0 %v670
      %698 = vmatpush.bf16.msra.mxu0 %v669
      %699 = vmatpush.bf16.msra.mxu0 %v668
      %700 = vmatpush.bf16.msra.mxu0 %v667
      %701 = vmatpush.bf16.msra.mxu0 %v666
      %702 = vmatpush.bf16.msra.mxu0 %v665
      %703 = vmatpush.bf16.msra.mxu0 %v664
      %704 = vmatmul.bf16.gmra.mxu0 %v536
      %v705 = vpop.f32.mrf.mxu0
      %v706 = vadd.f32 0.0, %v705
      %v707 = vpop.f32.mrf.mxu0
      %v708 = vadd.f32 0.0, %v707
      %709 = vmatmul.bf16.gmra.mxu0 %v538
      %v710 = vpop.f32.mrf.mxu0
      %v711 = vadd.f32 0.0, %v710
      %v712 = vpop.f32.mrf.mxu0
      %v713 = vadd.f32 0.0, %v712
      %714 = vmatmul.bf16.gmra.mxu0 %v540
      %v715 = vpop.f32.mrf.mxu0
      %v716 = vadd.f32 0.0, %v715
      %v717 = vpop.f32.mrf.mxu0
      %v718 = vadd.f32 0.0, %v717
      %719 = vmatmul.bf16.gmra.mxu0 %v542
      %v720 = vpop.f32.mrf.mxu0
      %v721 = vadd.f32 0.0, %v720
      %v722 = vpop.f32.mrf.mxu0
      %v723 = vadd.f32 0.0, %v722
      %724 = vmatmul.bf16.gmra.mxu0 %v544
      %v725 = vpop.f32.mrf.mxu0
      %v726 = vadd.f32 0.0, %v725
      %v727 = vpop.f32.mrf.mxu0
      %v728 = vadd.f32 0.0, %v727
      %729 = vmatmul.bf16.gmra.mxu0 %v546
      %v730 = vpop.f32.mrf.mxu0
      %v731 = vadd.f32 0.0, %v730
      %v732 = vpop.f32.mrf.mxu0
      %v733 = vadd.f32 0.0, %v732
      %734 = vmatmul.bf16.gmra.mxu0 %v548
      %v735 = vpop.f32.mrf.mxu0
      %v736 = vadd.f32 0.0, %v735
      %v737 = vpop.f32.mrf.mxu0
      %v738 = vadd.f32 0.0, %v737
      %739 = vmatmul.bf16.gmra.mxu0 %v550
      %v740 = vpop.f32.mrf.mxu0
      %v741 = vadd.f32 0.0, %v740
      %v742 = vpop.f32.mrf.mxu0
      %v743 = vadd.f32 0.0, %v742
      %744 = vmatmul.bf16.gmra.mxu0 %v552
      %v745 = vpop.f32.mrf.mxu0
      %v746 = vadd.f32 0.0, %v745
      %v747 = vpop.f32.mrf.mxu0
      %v748 = vadd.f32 0.0, %v747
      %749 = vmatmul.bf16.gmra.mxu0 %v554
      %v750 = vpop.f32.mrf.mxu0
      %v751 = vadd.f32 0.0, %v750
      %v752 = vpop.f32.mrf.mxu0
      %v753 = vadd.f32 0.0, %v752
      %754 = vmatmul.bf16.gmra.mxu0 %v556
      %v755 = vpop.f32.mrf.mxu0
      %v756 = vadd.f32 0.0, %v755
      %v757 = vpop.f32.mrf.mxu0
      %v758 = vadd.f32 0.0, %v757
      %759 = vmatmul.bf16.gmra.mxu0 %v558
      %v760 = vpop.f32.mrf.mxu0
      %v761 = vadd.f32 0.0, %v760
      %v762 = vpop.f32.mrf.mxu0
      %v763 = vadd.f32 0.0, %v762
      %764 = vmatmul.bf16.gmra.mxu0 %v560
      %v765 = vpop.f32.mrf.mxu0
      %v766 = vadd.f32 0.0, %v765
      %v767 = vpop.f32.mrf.mxu0
      %v768 = vadd.f32 0.0, %v767
      %769 = vmatmul.bf16.gmra.mxu0 %v562
      %v770 = vpop.f32.mrf.mxu0
      %v771 = vadd.f32 0.0, %v770
      %v772 = vpop.f32.mrf.mxu0
      %v773 = vadd.f32 0.0, %v772
      %774 = vmatmul.bf16.gmra.mxu0 %v564
      %v775 = vpop.f32.mrf.mxu0
      %v776 = vadd.f32 0.0, %v775
      %v777 = vpop.f32.mrf.mxu0
      %v778 = vadd.f32 0.0, %v777
      %779 = vmatmul.bf16.gmra.mxu0 %v566
      %v780 = vpop.f32.mrf.mxu0
      %v781 = vadd.f32 0.0, %v780
      %v782 = vpop.f32.mrf.mxu0
      %v783 = vadd.f32 0.0, %v782
      %784 = vdwg.mxu0
      %785 = vmatpush.bf16.msra.mxu0 %v679
      %786 = vmatpush.bf16.msra.mxu0 %v678
      %787 = vmatpush.bf16.msra.mxu0 %v677
      %788 = vmatpush.bf16.msra.mxu0 %v676
      %789 = vmatpush.bf16.msra.mxu0 %v675
      %790 = vmatpush.bf16.msra.mxu0 %v674
      %791 = vmatpush.bf16.msra.mxu0 %v673
      %792 = vmatpush.bf16.msra.mxu0 %v672
      %793 = vmatmul.bf16.gmra.mxu0 %v537
      %v794 = vpop.f32.mrf.mxu0
      %v795 = vadd.f32 %v706, %v794
      %v796 = vpop.f32.mrf.mxu0
      %v797 = vadd.f32 %v708, %v796
      %798 = vmatmul.bf16.gmra.mxu0 %v539
      %v799 = vpop.f32.mrf.mxu0
      %v800 = vadd.f32 %v711, %v799
      %v801 = vpop.f32.mrf.mxu0
      %v802 = vadd.f32 %v713, %v801
      %803 = vmatmul.bf16.gmra.mxu0 %v541
      %v804 = vpop.f32.mrf.mxu0
      %v805 = vadd.f32 %v716, %v804
      %v806 = vpop.f32.mrf.mxu0
      %v807 = vadd.f32 %v718, %v806
      %808 = vmatmul.bf16.gmra.mxu0 %v543
      %v809 = vpop.f32.mrf.mxu0
      %v810 = vadd.f32 %v721, %v809
      %v811 = vpop.f32.mrf.mxu0
      %v812 = vadd.f32 %v723, %v811
      %813 = vmatmul.bf16.gmra.mxu0 %v545
      %v814 = vpop.f32.mrf.mxu0
      %v815 = vadd.f32 %v726, %v814
      %v816 = vpop.f32.mrf.mxu0
      %v817 = vadd.f32 %v728, %v816
      %818 = vmatmul.bf16.gmra.mxu0 %v547
      %v819 = vpop.f32.mrf.mxu0
      %v820 = vadd.f32 %v731, %v819
      %v821 = vpop.f32.mrf.mxu0
      %v822 = vadd.f32 %v733, %v821
      %823 = vmatmul.bf16.gmra.mxu0 %v549
      %v824 = vpop.f32.mrf.mxu0
      %v825 = vadd.f32 %v736, %v824
      %v826 = vpop.f32.mrf.mxu0
      %v827 = vadd.f32 %v738, %v826
      %828 = vmatmul.bf16.gmra.mxu0 %v551
      %v829 = vpop.f32.mrf.mxu0
      %v830 = vadd.f32 %v741, %v829
      %v831 = vpop.f32.mrf.mxu0
      %v832 = vadd.f32 %v743, %v831
      %833 = vmatmul.bf16.gmra.mxu0 %v553
      %v834 = vpop.f32.mrf.mxu0
      %v835 = vadd.f32 %v746, %v834
      %v836 = vpop.f32.mrf.mxu0
      %v837 = vadd.f32 %v748, %v836
      %838 = vmatmul.bf16.gmra.mxu0 %v555
      %v839 = vpop.f32.mrf.mxu0
      %v840 = vadd.f32 %v751, %v839
      %v841 = vpop.f32.mrf.mxu0
      %v842 = vadd.f32 %v753, %v841
      %843 = vmatmul.bf16.gmra.mxu0 %v557
      %v844 = vpop.f32.mrf.mxu0
      %v845 = vadd.f32 %v756, %v844
      %v846 = vpop.f32.mrf.mxu0
      %v847 = vadd.f32 %v758, %v846
      %848 = vmatmul.bf16.gmra.mxu0 %v559
      %v849 = vpop.f32.mrf.mxu0
      %v850 = vadd.f32 %v761, %v849
      %v851 = vpop.f32.mrf.mxu0
      %v852 = vadd.f32 %v763, %v851
      %853 = vmatmul.bf16.gmra.mxu0 %v561
      %v854 = vpop.f32.mrf.mxu0
      %v855 = vadd.f32 %v766, %v854
      %v856 = vpop.f32.mrf.mxu0
      %v857 = vadd.f32 %v768, %v856
      %858 = vmatmul.bf16.gmra.mxu0 %v563
      %v859 = vpop.f32.mrf.mxu0
      %v860 = vadd.f32 %v771, %v859
      %v861 = vpop.f32.mrf.mxu0
      %v862 = vadd.f32 %v773, %v861
      %863 = vmatmul.bf16.gmra.mxu0 %v565
      %v864 = vpop.f32.mrf.mxu0
      %v865 = vadd.f32 %v776, %v864
      %v866 = vpop.f32.mrf.mxu0
      %v867 = vadd.f32 %v778, %v866
      %868 = vmatmul.bf16.gmra.mxu0 %v567
      %v869 = vpop.f32.mrf.mxu0
      %v870 = vadd.f32 %v781, %v869
      %v871 = vpop.f32.mrf.mxu0
      %v872 = vadd.f32 %v783, %v871
      %873 = vdwg.mxu0
      %v874 = vadd.f32 %v376, %v795
      %v875 = vadd.f32 %v377, %v797
      %v876 = vadd.f32 %v378, %v800
      %v877 = vadd.f32 %v379, %v802
      %v878 = vadd.f32 %v380, %v805
      %v879 = vadd.f32 %v381, %v807
      %v880 = vadd.f32 %v382, %v810
      %v881 = vadd.f32 %v383, %v812
      %v882 = vadd.f32 %v384, %v815
      %v883 = vadd.f32 %v385, %v817
      %v884 = vadd.f32 %v386, %v820
      %v885 = vadd.f32 %v387, %v822
      %v886 = vadd.f32 %v388, %v825
      %v887 = vadd.f32 %v389, %v827
      %v888 = vadd.f32 %v390, %v830
      %v889 = vadd.f32 %v391, %v832
      %v890 = vadd.f32 %v392, %v835
      %v891 = vadd.f32 %v393, %v837
      %v892 = vadd.f32 %v394, %v840
      %v893 = vadd.f32 %v395, %v842
      %v894 = vadd.f32 %v396, %v845
      %v895 = vadd.f32 %v397, %v847
      %v896 = vadd.f32 %v398, %v850
      %v897 = vadd.f32 %v399, %v852
      %v898 = vadd.f32 %v400, %v855
      %v899 = vadd.f32 %v401, %v857
      %v900 = vadd.f32 %v402, %v860
      %v901 = vadd.f32 %v403, %v862
      %v902 = vadd.f32 %v404, %v865
      %v903 = vadd.f32 %v405, %v867
      %v904 = vadd.f32 %v406, %v870
      %v905 = vadd.f32 %v407, %v872
      %906 = vst [vmem:[#allocation2] sm:$0xff] %v874
      %907 = vst [vmem:[#allocation2 + $0x8] sm:$0xff] %v875
      %908 = vst [vmem:[#allocation2 + $0x10] sm:$0xff] %v876
      %909 = vst [vmem:[#allocation2 + $0x18] sm:$0xff] %v877
      %910 = vst [vmem:[#allocation2 + $0x20] sm:$0xff] %v878
      %911 = vst [vmem:[#allocation2 + $0x28] sm:$0xff] %v879
      %912 = vst [vmem:[#allocation2 + $0x30] sm:$0xff] %v880
      %913 = vst [vmem:[#allocation2 + $0x38] sm:$0xff] %v881
      %914 = vst [vmem:[#allocation2 + $0x40] sm:$0xff] %v882
      %915 = vst [vmem:[#allocation2 + $0x48] sm:$0xff] %v883
      %916 = vst [vmem:[#allocation2 + $0x50] sm:$0xff] %v884
      %917 = vst [vmem:[#allocation2 + $0x58] sm:$0xff] %v885
      %918 = vst [vmem:[#allocation2 + $0x60] sm:$0xff] %v886
      %919 = vst [vmem:[#allocation2 + $0x68] sm:$0xff] %v887
      %920 = vst [vmem:[#allocation2 + $0x70] sm:$0xff] %v888
      %921 = vst [vmem:[#allocation2 + $0x78] sm:$0xff] %v889
      %922 = vst [vmem:[#allocation2 + $0x80] sm:$0xff] %v890
      %923 = vst [vmem:[#allocation2 + $0x88] sm:$0xff] %v891
      %924 = vst [vmem:[#allocation2 + $0x90] sm:$0xff] %v892
      %925 = vst [vmem:[#allocation2 + $0x98] sm:$0xff] %v893
      %926 = vst [vmem:[#allocation2 + $0xa0] sm:$0xff] %v894
      %927 = vst [vmem:[#allocation2 + $0xa8] sm:$0xff] %v895
      %928 = vst [vmem:[#allocation2 + $0xb0] sm:$0xff] %v896
      %929 = vst [vmem:[#allocation2 + $0xb8] sm:$0xff] %v897
      %930 = vst [vmem:[#allocation2 + $0xc0] sm:$0xff] %v898
      %931 = vst [vmem:[#allocation2 + $0xc8] sm:$0xff] %v899
      %932 = vst [vmem:[#allocation2 + $0xd0] sm:$0xff] %v900
      %933 = vst [vmem:[#allocation2 + $0xd8] sm:$0xff] %v901
      %934 = vst [vmem:[#allocation2 + $0xe0] sm:$0xff] %v902
      %935 = vst [vmem:[#allocation2 + $0xe8] sm:$0xff] %v903
      %936 = vst [vmem:[#allocation2 + $0xf0] sm:$0xff] %v904
      %937 = vst [vmem:[#allocation2 + $0xf8] sm:$0xff] %v905
      // Predicated region
      $region41: #{param_lenet_forward.17} parent=35 // pred_check
        %p938 = pneg %p308
      $region42: #{param_lenet_forward.17} parent=35 // pred_check_branch
        %940 = sbr.rel (%p938) target = $region44
      $region43: #{param_lenet_forward.17} parent=35 // pred_region
        %v941 = vld [vmem:[#allocation2] sm:$0xff]
        %v942 = vld [vmem:[#allocation2 + $0x8] sm:$0xff]
        %v943 = vld [vmem:[#allocation2 + $0x10] sm:$0xff]
        %v944 = vld [vmem:[#allocation2 + $0x18] sm:$0xff]
        %v945 = vld [vmem:[#allocation2 + $0x20] sm:$0xff]
        %v946 = vld [vmem:[#allocation2 + $0x28] sm:$0xff]
        %v947 = vld [vmem:[#allocation2 + $0x30] sm:$0xff]
        %v948 = vld [vmem:[#allocation2 + $0x38] sm:$0xff]
        %v949 = vld [vmem:[#allocation2 + $0x40] sm:$0xff]
        %v950 = vld [vmem:[#allocation2 + $0x48] sm:$0xff]
        %v951 = vld [vmem:[#allocation2 + $0x50] sm:$0xff]
        %v952 = vld [vmem:[#allocation2 + $0x58] sm:$0xff]
        %v953 = vld [vmem:[#allocation2 + $0x60] sm:$0xff]
        %v954 = vld [vmem:[#allocation2 + $0x68] sm:$0xff]
        %v955 = vld [vmem:[#allocation2 + $0x70] sm:$0xff]
        %v956 = vld [vmem:[#allocation2 + $0x78] sm:$0xff]
        %v957 = vld [vmem:[#allocation2 + $0x80] sm:$0xff]
        %v958 = vld [vmem:[#allocation2 + $0x88] sm:$0xff]
        %v959 = vld [vmem:[#allocation2 + $0x90] sm:$0xff]
        %v960 = vld [vmem:[#allocation2 + $0x98] sm:$0xff]
        %v961 = vld [vmem:[#allocation2 + $0xa0] sm:$0xff]
        %v962 = vld [vmem:[#allocation2 + $0xa8] sm:$0xff]
        %v963 = vld [vmem:[#allocation2 + $0xb0] sm:$0xff]
        %v964 = vld [vmem:[#allocation2 + $0xb8] sm:$0xff]
        %v965 = vld [vmem:[#allocation2 + $0xc0] sm:$0xff]
        %v966 = vld [vmem:[#allocation2 + $0xc8] sm:$0xff]
        %v967 = vld [vmem:[#allocation2 + $0xd0] sm:$0xff]
        %v968 = vld [vmem:[#allocation2 + $0xd8] sm:$0xff]
        %v969 = vld [vmem:[#allocation2 + $0xe0] sm:$0xff]
        %v970 = vld [vmem:[#allocation2 + $0xe8] sm:$0xff]
        %v971 = vld [vmem:[#allocation2 + $0xf0] sm:$0xff]
        %v972 = vld [vmem:[#allocation2 + $0xf8] sm:$0xff]
        %v973 = vld [vmem:[%s295] sm:$0x1]
        %v975 = vperm.slane %v973, 0
        %v977 = vmul.f32 %v941, %v975
        %v978 = vmul.f32 %v942, %v975
        %v979 = vmul.f32 %v943, %v975
        %v980 = vmul.f32 %v944, %v975
        %v981 = vmul.f32 %v945, %v975
        %v982 = vmul.f32 %v946, %v975
        %v983 = vmul.f32 %v947, %v975
        %v984 = vmul.f32 %v948, %v975
        %v985 = vmul.f32 %v949, %v975
        %v986 = vmul.f32 %v950, %v975
        %v987 = vmul.f32 %v951, %v975
        %v988 = vmul.f32 %v952, %v975
        %v989 = vmul.f32 %v953, %v975
        %v990 = vmul.f32 %v954, %v975
        %v991 = vmul.f32 %v955, %v975
        %v992 = vmul.f32 %v956, %v975
        %v993 = vmul.f32 %v957, %v975
        %v994 = vmul.f32 %v958, %v975
        %v995 = vmul.f32 %v959, %v975
        %v996 = vmul.f32 %v960, %v975
        %v997 = vmul.f32 %v961, %v975
        %v998 = vmul.f32 %v962, %v975
        %v999 = vmul.f32 %v963, %v975
        %v1000 = vmul.f32 %v964, %v975
        %v1001 = vmul.f32 %v965, %v975
        %v1002 = vmul.f32 %v966, %v975
        %v1003 = vmul.f32 %v967, %v975
        %v1004 = vmul.f32 %v968, %v975
        %v1005 = vmul.f32 %v969, %v975
        %v1006 = vmul.f32 %v970, %v975
        %v1007 = vmul.f32 %v971, %v975
        %v1008 = vmul.f32 %v972, %v975
        %v1009 = vld [vmem:[%s298] sm:$0x1]
        %v1011 = vperm.slane %v1009, 0
        %v1013 = vadd.f32 %v977, %v1011
        %v1014 = vadd.f32 %v978, %v1011
        %v1015 = vadd.f32 %v979, %v1011
        %v1016 = vadd.f32 %v980, %v1011
        %v1017 = vadd.f32 %v981, %v1011
        %v1018 = vadd.f32 %v982, %v1011
        %v1019 = vadd.f32 %v983, %v1011
        %v1020 = vadd.f32 %v984, %v1011
        %v1021 = vadd.f32 %v985, %v1011
        %v1022 = vadd.f32 %v986, %v1011
        %v1023 = vadd.f32 %v987, %v1011
        %v1024 = vadd.f32 %v988, %v1011
        %v1025 = vadd.f32 %v989, %v1011
        %v1026 = vadd.f32 %v990, %v1011
        %v1027 = vadd.f32 %v991, %v1011
        %v1028 = vadd.f32 %v992, %v1011
        %v1029 = vadd.f32 %v993, %v1011
        %v1030 = vadd.f32 %v994, %v1011
        %v1031 = vadd.f32 %v995, %v1011
        %v1032 = vadd.f32 %v996, %v1011
        %v1033 = vadd.f32 %v997, %v1011
        %v1034 = vadd.f32 %v998, %v1011
        %v1035 = vadd.f32 %v999, %v1011
        %v1036 = vadd.f32 %v1000, %v1011
        %v1037 = vadd.f32 %v1001, %v1011
        %v1038 = vadd.f32 %v1002, %v1011
        %v1039 = vadd.f32 %v1003, %v1011
        %v1040 = vadd.f32 %v1004, %v1011
        %v1041 = vadd.f32 %v1005, %v1011
        %v1042 = vadd.f32 %v1006, %v1011
        %v1043 = vadd.f32 %v1007, %v1011
        %v1044 = vadd.f32 %v1008, %v1011
        %v1045 = vmax.f32 %v1013, 0.0
        %v1046 = vmax.f32 %v1014, 0.0
        %v1047 = vmax.f32 %v1015, 0.0
        %v1048 = vmax.f32 %v1016, 0.0
        %v1049 = vmax.f32 %v1017, 0.0
        %v1050 = vmax.f32 %v1018, 0.0
        %v1051 = vmax.f32 %v1019, 0.0
        %v1052 = vmax.f32 %v1020, 0.0
        %v1053 = vmax.f32 %v1021, 0.0
        %v1054 = vmax.f32 %v1022, 0.0
        %v1055 = vmax.f32 %v1023, 0.0
        %v1056 = vmax.f32 %v1024, 0.0
        %v1057 = vmax.f32 %v1025, 0.0
        %v1058 = vmax.f32 %v1026, 0.0
        %v1059 = vmax.f32 %v1027, 0.0
        %v1060 = vmax.f32 %v1028, 0.0
        %v1061 = vmax.f32 %v1029, 0.0
        %v1062 = vmax.f32 %v1030, 0.0
        %v1063 = vmax.f32 %v1031, 0.0
        %v1064 = vmax.f32 %v1032, 0.0
        %v1065 = vmax.f32 %v1033, 0.0
        %v1066 = vmax.f32 %v1034, 0.0
        %v1067 = vmax.f32 %v1035, 0.0
        %v1068 = vmax.f32 %v1036, 0.0
        %v1069 = vmax.f32 %v1037, 0.0
        %v1070 = vmax.f32 %v1038, 0.0
        %v1071 = vmax.f32 %v1039, 0.0
        %v1072 = vmax.f32 %v1040, 0.0
        %v1073 = vmax.f32 %v1041, 0.0
        %v1074 = vmax.f32 %v1042, 0.0
        %v1075 = vmax.f32 %v1043, 0.0
        %v1076 = vmax.f32 %v1044, 0.0
        %v1077 = vpack.c.bf16 %v1045, %v1045
        %v1078 = vpack.c.bf16 %v1046, %v1046
        %v1079 = vpack.c.bf16 %v1047, %v1047
        %v1080 = vpack.c.bf16 %v1048, %v1048
        %v1081 = vpack.c.bf16 %v1049, %v1049
        %v1082 = vpack.c.bf16 %v1050, %v1050
        %v1083 = vpack.c.bf16 %v1051, %v1051
        %v1084 = vpack.c.bf16 %v1052, %v1052
        %v1085 = vpack.c.bf16 %v1053, %v1053
        %v1086 = vpack.c.bf16 %v1054, %v1054
        %v1087 = vpack.c.bf16 %v1055, %v1055
        %v1088 = vpack.c.bf16 %v1056, %v1056
        %v1089 = vpack.c.bf16 %v1057, %v1057
        %v1090 = vpack.c.bf16 %v1058, %v1058
        %v1091 = vpack.c.bf16 %v1059, %v1059
        %v1092 = vpack.c.bf16 %v1060, %v1060
        %v1093 = vpack.c.bf16 %v1061, %v1061
        %v1094 = vpack.c.bf16 %v1062, %v1062
        %v1095 = vpack.c.bf16 %v1063, %v1063
        %v1096 = vpack.c.bf16 %v1064, %v1064
        %v1097 = vpack.c.bf16 %v1065, %v1065
        %v1098 = vpack.c.bf16 %v1066, %v1066
        %v1099 = vpack.c.bf16 %v1067, %v1067
        %v1100 = vpack.c.bf16 %v1068, %v1068
        %v1101 = vpack.c.bf16 %v1069, %v1069
        %v1102 = vpack.c.bf16 %v1070, %v1070
        %v1103 = vpack.c.bf16 %v1071, %v1071
        %v1104 = vpack.c.bf16 %v1072, %v1072
        %v1105 = vpack.c.bf16 %v1073, %v1073
        %v1106 = vpack.c.bf16 %v1074, %v1074
        %v1107 = vpack.c.bf16 %v1075, %v1075
        %v1108 = vpack.c.bf16 %v1076, %v1076
        %1109 = vst [vmem:[%s306] sm:$0xf] %v1077
        %1110 = vst [vmem:[%s306 + $0x4] sm:$0xf] %v1078
        %1111 = vst [vmem:[%s306 + $0x8] sm:$0xf] %v1079
        %1112 = vst [vmem:[%s306 + $0xc] sm:$0xf] %v1080
        %1113 = vst [vmem:[%s306 + $0x10] sm:$0xf] %v1081
        %1114 = vst [vmem:[%s306 + $0x14] sm:$0xf] %v1082
        %1115 = vst [vmem:[%s306 + $0x18] sm:$0xf] %v1083
        %1116 = vst [vmem:[%s306 + $0x1c] sm:$0xf] %v1084
        %1117 = vst [vmem:[%s306 + $0x20] sm:$0xf] %v1085
        %1118 = vst [vmem:[%s306 + $0x24] sm:$0xf] %v1086
        %1119 = vst [vmem:[%s306 + $0x28] sm:$0xf] %v1087
        %1120 = vst [vmem:[%s306 + $0x2c] sm:$0xf] %v1088
        %1121 = vst [vmem:[%s306 + $0x30] sm:$0xf] %v1089
        %1122 = vst [vmem:[%s306 + $0x34] sm:$0xf] %v1090
        %1123 = vst [vmem:[%s306 + $0x38] sm:$0xf] %v1091
        %1124 = vst [vmem:[%s306 + $0x3c] sm:$0xf] %v1092
        %1125 = vst [vmem:[%s306 + $0x40] sm:$0xf] %v1093
        %1126 = vst [vmem:[%s306 + $0x44] sm:$0xf] %v1094
        %1127 = vst [vmem:[%s306 + $0x48] sm:$0xf] %v1095
        %1128 = vst [vmem:[%s306 + $0x4c] sm:$0xf] %v1096
        %1129 = vst [vmem:[%s306 + $0x50] sm:$0xf] %v1097
        %1130 = vst [vmem:[%s306 + $0x54] sm:$0xf] %v1098
        %1131 = vst [vmem:[%s306 + $0x58] sm:$0xf] %v1099
        %1132 = vst [vmem:[%s306 + $0x5c] sm:$0xf] %v1100
        %1133 = vst [vmem:[%s306 + $0x60] sm:$0xf] %v1101
        %1134 = vst [vmem:[%s306 + $0x64] sm:$0xf] %v1102
        %1135 = vst [vmem:[%s306 + $0x68] sm:$0xf] %v1103
        %1136 = vst [vmem:[%s306 + $0x6c] sm:$0xf] %v1104
        %1137 = vst [vmem:[%s306 + $0x70] sm:$0xf] %v1105
        %1138 = vst [vmem:[%s306 + $0x74] sm:$0xf] %v1106
        %1139 = vst [vmem:[%s306 + $0x78] sm:$0xf] %v1107
        %1140 = vst [vmem:[%s306 + $0x7c] sm:$0xf] %v1108
      $region44: #{param_lenet_forward.17} parent=35 // pred_fallthru
        _
      %s1141 = smul.u32 32, %s20
      %p1142 = scmp.lt.s32.totalorder %s1141, 63
      %s1143 = scalar_select %p1142, %s1141, 63
      %p1144 = scmp.lt.s32.totalorder %s21, 0
      %s1145 = scalar_select %p1144, %s21, 0
      %s1146 = sadd.s32 %s1145, %s1143
      %s1147 = smul.addr %s1146, 4
      %s1148 = scalar_lea.vmem %s4, %s1147
      // Predicated region
      $region45: #{param_lenet_forward.17} parent=35 // pred_check
        %p1149 = pneg %p162
      $region46: #{param_lenet_forward.17} parent=35 // pred_check_branch
        %1151 = sbr.rel (%p1149) target = $region48
      $region47: #{param_lenet_forward.17} parent=35 // pred_region
        %s1152 = smul.u32 32, %s20
      $region48: #{param_lenet_forward.17} parent=35 // pred_fallthru
        _
    $region36: #{param_lenet_forward.17} parent=5 // pred_fallthru
      _
    %p1153 = scmp.le.s32.totalorder 2, %s10
    // Predicated region
    $region49: #{param_lenet_forward.17} parent=5 // pred_check
      %p1154 = pneg %p1153
    $region50: #{param_lenet_forward.17} parent=5 // pred_check_branch
      %1156 = sbr.rel (%p1154) target = $region52
    $region51: #{param_lenet_forward.17} parent=5 // pred_region
      %s1157 = ssub.s32 %s10, 2
      // Predicated region
      $region53: #{param_lenet_forward.17} parent=51 // pred_check
        %p1158 = pneg %p168
      $region54: #{param_lenet_forward.17} parent=51 // pred_check_branch
        %1160 = sbr.rel (%p1158) target = $region56
      $region55: #{param_lenet_forward.17} parent=51 // pred_region
        %s1161 = smul.u32 32, %s23
        %p1162 = scmp.lt.s32.totalorder %s1161, 63
        %s1163 = scalar_select %p1162, %s1161, 63
        %p1164 = scmp.lt.s32.totalorder %s24, 0
        %s1165 = scalar_select %p1164, %s24, 0
        %s1166 = sadd.s32 %s1165, %s1163
        %s1167 = smul.addr %s1166, 4
        %s1168 = scalar_lea.vmem %s4, %s1167
      $region56: #{param_lenet_forward.17} parent=51 // pred_fallthru
        _
    $region52: #{param_lenet_forward.17} parent=5 // pred_fallthru
      _
  $region6: #{param_lenet_forward.17} parent=0 // loop_footer
    %s14 = sadd.s32 1, %s10
  $region7: #{param_lenet_forward.17} parent=0 // loop_footer_branch
    %9 = sbr.rel target = $region3
  $region8: #{param_lenet_forward.17} parent=0 // loop_exit
    _

// kernel: param_lenet_forward.19
$region0: #{param_lenet_forward.19}
  #allocation0 [shape = 'u32[]', space=smem, size = 0x4, offset = 0x4, fixed_abs, tag = 'smem constant byte address 0x4 - core index']
  #allocation1 [shape = 'u32[72,128]{1,0:T(1,128)}', space=vmem, size = 0x9000, scoped, tag = 'internal scratch']
  #allocation2 [shape = 'f32[128,128]{1,0:T(8,128)}', space=vmem, size = 0x10000, scoped, tag = 'scratch operand']
  %s0 = inlined_call_operand.vmem [shape: bf16[128,128], index: 0, kind: input, shape index: {}]
  %s1 = inlined_call_operand.vmem [shape: bf16[128,128], index: 1, kind: input, shape index: {}]
  %s2 = inlined_call_operand.vmem [shape: f32[1,128], index: 2, kind: input, shape index: {}]
  %s3 = inlined_call_operand.vmem [shape: f32[1,128], index: 3, kind: input, shape index: {}]
  %s4 = inlined_call_operand.vmem [shape: f32[1,128], index: 4, kind: input, shape index: {}]
  %s5 = inlined_call_operand.vmem [shape: f32[1,128], index: 5, kind: input, shape index: {}]
  %s6 = inlined_call_operand.vmem [shape: bf16[128,128], index: 6, kind: output, shape index: {}]
  %s7 = sld [smem:[#allocation0]]
  $region42: #{param_lenet_forward.19} parent=0
    _
  %s9 = ssub.s32 1, %s7
  %s10 = scalar_select 0, %s9, %s7
  // Predicated region
  $region2: #{param_lenet_forward.19} parent=0 // pred_check
    _
  $region3: #{param_lenet_forward.19} parent=0 // pred_check_branch
    %12 = sbr.rel (0) target = $region5
  $region4: #{param_lenet_forward.19} parent=0 // pred_region
    _
  $region5: #{param_lenet_forward.19} parent=0 // pred_fallthru
    _
  // Predicated region
  $region6: #{param_lenet_forward.19} parent=0 // pred_check
    _
  $region7: #{param_lenet_forward.19} parent=0 // pred_check_branch
    %14 = sbr.rel (0) target = $region9
  $region8: #{param_lenet_forward.19} parent=0 // pred_region
    _
  $region9: #{param_lenet_forward.19} parent=0 // pred_fallthru
    _
  // Predicated region
  $region10: #{param_lenet_forward.19} parent=0 // pred_check
    _
  $region11: #{param_lenet_forward.19} parent=0 // pred_check_branch
    %16 = sbr.rel (0) target = $region13
  $region12: #{param_lenet_forward.19} parent=0 // pred_region
    _
  $region13: #{param_lenet_forward.19} parent=0 // pred_fallthru
    _
  // Predicated region
  $region14: #{param_lenet_forward.19} parent=0 // pred_check
    _
  $region15: #{param_lenet_forward.19} parent=0 // pred_check_branch
    %18 = sbr.rel (0) target = $region17
  $region16: #{param_lenet_forward.19} parent=0 // pred_region
    _
  $region17: #{param_lenet_forward.19} parent=0 // pred_fallthru
    _
  // Predicated region
  $region18: #{param_lenet_forward.19} parent=0 // pred_check
    _
  $region19: #{param_lenet_forward.19} parent=0 // pred_check_branch
    %20 = sbr.rel (0) target = $region21
  $region20: #{param_lenet_forward.19} parent=0 // pred_region
    _
  $region21: #{param_lenet_forward.19} parent=0 // pred_fallthru
    _
  // Predicated region
  $region22: #{param_lenet_forward.19} parent=0 // pred_check
    _
  $region23: #{param_lenet_forward.19} parent=0 // pred_check_branch
    %22 = sbr.rel (0) target = $region25
  $region24: #{param_lenet_forward.19} parent=0 // pred_region
    _
  $region25: #{param_lenet_forward.19} parent=0 // pred_fallthru
    _
  %p23 = scmp.eq.s32.totalorder 0, 0
  // Predicated region
  $region26: #{param_lenet_forward.19} parent=0 // pred_check
    %p24 = pneg %p23
  $region27: #{param_lenet_forward.19} parent=0 // pred_check_branch
    %26 = sbr.rel (%p24) target = $region29
  $region28: #{param_lenet_forward.19} parent=0 // pred_region
    %27 = vst [vmem:[#allocation2] sm:$0xff] 0.0
    %28 = vst [vmem:[#allocation2 + $0x8] sm:$0xff] 0.0
    %29 = vst [vmem:[#allocation2 + $0x10] sm:$0xff] 0.0
    %30 = vst [vmem:[#allocation2 + $0x18] sm:$0xff] 0.0
    %31 = vst [vmem:[#allocation2 + $0x20] sm:$0xff] 0.0
    %32 = vst [vmem:[#allocation2 + $0x28] sm:$0xff] 0.0
    %33 = vst [vmem:[#allocation2 + $0x30] sm:$0xff] 0.0
    %34 = vst [vmem:[#allocation2 + $0x38] sm:$0xff] 0.0
    %35 = vst [vmem:[#allocation2 + $0x40] sm:$0xff] 0.0
    %36 = vst [vmem:[#allocation2 + $0x48] sm:$0xff] 0.0
    %37 = vst [vmem:[#allocation2 + $0x50] sm:$0xff] 0.0
    %38 = vst [vmem:[#allocation2 + $0x58] sm:$0xff] 0.0
    %39 = vst [vmem:[#allocation2 + $0x60] sm:$0xff] 0.0
    %40 = vst [vmem:[#allocation2 + $0x68] sm:$0xff] 0.0
    %41 = vst [vmem:[#allocation2 + $0x70] sm:$0xff] 0.0
    %42 = vst [vmem:[#allocation2 + $0x78] sm:$0xff] 0.0
  $region29: #{param_lenet_forward.19} parent=0 // pred_fallthru
    _
  %v43 = vld [vmem:[%s0] sm:$0xf]
  %v44 = vld [vmem:[%s0 + $0x4] sm:$0xf]
  %v45 = vld [vmem:[%s0 + $0x8] sm:$0xf]
  %v46 = vld [vmem:[%s0 + $0xc] sm:$0xf]
  %v47 = vld [vmem:[%s0 + $0x10] sm:$0xf]
  %v48 = vld [vmem:[%s0 + $0x14] sm:$0xf]
  %v49 = vld [vmem:[%s0 + $0x18] sm:$0xf]
  %v50 = vld [vmem:[%s0 + $0x1c] sm:$0xf]
  %v51 = vld [vmem:[%s0 + $0x20] sm:$0xf]
  %v52 = vld [vmem:[%s0 + $0x24] sm:$0xf]
  %v53 = vld [vmem:[%s0 + $0x28] sm:$0xf]
  %v54 = vld [vmem:[%s0 + $0x2c] sm:$0xf]
  %v55 = vld [vmem:[%s0 + $0x30] sm:$0xf]
  %v56 = vld [vmem:[%s0 + $0x34] sm:$0xf]
  %v57 = vld [vmem:[%s0 + $0x38] sm:$0xf]
  %v58 = vld [vmem:[%s0 + $0x3c] sm:$0xf]
  %v59 = vunpack.c.l.bf16 %v43
  %v60 = vunpack.c.l.bf16 %v44
  %v61 = vunpack.c.l.bf16 %v45
  %v62 = vunpack.c.l.bf16 %v46
  %v63 = vunpack.c.l.bf16 %v47
  %v64 = vunpack.c.l.bf16 %v48
  %v65 = vunpack.c.l.bf16 %v49
  %v66 = vunpack.c.l.bf16 %v50
  %v67 = vunpack.c.l.bf16 %v51
  %v68 = vunpack.c.l.bf16 %v52
  %v69 = vunpack.c.l.bf16 %v53
  %v70 = vunpack.c.l.bf16 %v54
  %v71 = vunpack.c.l.bf16 %v55
  %v72 = vunpack.c.l.bf16 %v56
  %v73 = vunpack.c.l.bf16 %v57
  %v74 = vunpack.c.l.bf16 %v58
  %v75 = vld [vmem:[%s2] sm:$0x1]
  %v77 = vperm.slane %v75, 0
  %v79 = vmul.f32 %v59, %v77
  %v80 = vmul.f32 %v60, %v77
  %v81 = vmul.f32 %v61, %v77
  %v82 = vmul.f32 %v62, %v77
  %v83 = vmul.f32 %v63, %v77
  %v84 = vmul.f32 %v64, %v77
  %v85 = vmul.f32 %v65, %v77
  %v86 = vmul.f32 %v66, %v77
  %v87 = vmul.f32 %v67, %v77
  %v88 = vmul.f32 %v68, %v77
  %v89 = vmul.f32 %v69, %v77
  %v90 = vmul.f32 %v70, %v77
  %v91 = vmul.f32 %v71, %v77
  %v92 = vmul.f32 %v72, %v77
  %v93 = vmul.f32 %v73, %v77
  %v94 = vmul.f32 %v74, %v77
  %v95 = vld [vmem:[%s3] sm:$0x1]
  %v97 = vperm.slane %v95, 0
  %v99 = vadd.f32 %v79, %v97
  %v100 = vadd.f32 %v80, %v97
  %v101 = vadd.f32 %v81, %v97
  %v102 = vadd.f32 %v82, %v97
  %v103 = vadd.f32 %v83, %v97
  %v104 = vadd.f32 %v84, %v97
  %v105 = vadd.f32 %v85, %v97
  %v106 = vadd.f32 %v86, %v97
  %v107 = vadd.f32 %v87, %v97
  %v108 = vadd.f32 %v88, %v97
  %v109 = vadd.f32 %v89, %v97
  %v110 = vadd.f32 %v90, %v97
  %v111 = vadd.f32 %v91, %v97
  %v112 = vadd.f32 %v92, %v97
  %v113 = vadd.f32 %v93, %v97
  %v114 = vadd.f32 %v94, %v97
  %v115 = vmax.f32 %v99, 0.0
  %v116 = vmax.f32 %v100, 0.0
  %v117 = vmax.f32 %v101, 0.0
  %v118 = vmax.f32 %v102, 0.0
  %v119 = vmax.f32 %v103, 0.0
  %v120 = vmax.f32 %v104, 0.0
  %v121 = vmax.f32 %v105, 0.0
  %v122 = vmax.f32 %v106, 0.0
  %v123 = vmax.f32 %v107, 0.0
  %v124 = vmax.f32 %v108, 0.0
  %v125 = vmax.f32 %v109, 0.0
  %v126 = vmax.f32 %v110, 0.0
  %v127 = vmax.f32 %v111, 0.0
  %v128 = vmax.f32 %v112, 0.0
  %v129 = vmax.f32 %v113, 0.0
  %v130 = vmax.f32 %v114, 0.0
  %v131 = vpack.c.bf16 %v116, %v115
  %v132 = vpack.c.bf16 %v118, %v117
  %v133 = vpack.c.bf16 %v120, %v119
  %v134 = vpack.c.bf16 %v122, %v121
  %v135 = vpack.c.bf16 %v124, %v123
  %v136 = vpack.c.bf16 %v126, %v125
  %v137 = vpack.c.bf16 %v128, %v127
  %v138 = vpack.c.bf16 %v130, %v129
  %v139 = vld [vmem:[#allocation2] sm:$0xff]
  %v140 = vld [vmem:[#allocation2 + $0x8] sm:$0xff]
  %v141 = vld [vmem:[#allocation2 + $0x10] sm:$0xff]
  %v142 = vld [vmem:[#allocation2 + $0x18] sm:$0xff]
  %v143 = vld [vmem:[#allocation2 + $0x20] sm:$0xff]
  %v144 = vld [vmem:[#allocation2 + $0x28] sm:$0xff]
  %v145 = vld [vmem:[#allocation2 + $0x30] sm:$0xff]
  %v146 = vld [vmem:[#allocation2 + $0x38] sm:$0xff]
  %v147 = vld [vmem:[#allocation2 + $0x40] sm:$0xff]
  %v148 = vld [vmem:[#allocation2 + $0x48] sm:$0xff]
  %v149 = vld [vmem:[#allocation2 + $0x50] sm:$0xff]
  %v150 = vld [vmem:[#allocation2 + $0x58] sm:$0xff]
  %v151 = vld [vmem:[#allocation2 + $0x60] sm:$0xff]
  %v152 = vld [vmem:[#allocation2 + $0x68] sm:$0xff]
  %v153 = vld [vmem:[#allocation2 + $0x70] sm:$0xff]
  %v154 = vld [vmem:[#allocation2 + $0x78] sm:$0xff]
  %v155 = vld [vmem:[%s1] sm:$0xf]
  %v156 = vld [vmem:[%s1 + $0x4] sm:$0xf]
  %v157 = vld [vmem:[%s1 + $0x8] sm:$0xf]
  %v158 = vld [vmem:[%s1 + $0xc] sm:$0xf]
  %v159 = vld [vmem:[%s1 + $0x10] sm:$0xf]
  %v160 = vld [vmem:[%s1 + $0x14] sm:$0xf]
  %v161 = vld [vmem:[%s1 + $0x18] sm:$0xf]
  %v162 = vld [vmem:[%s1 + $0x1c] sm:$0xf]
  %v163 = vld [vmem:[%s1 + $0x20] sm:$0xf]
  %v164 = vld [vmem:[%s1 + $0x24] sm:$0xf]
  %v165 = vld [vmem:[%s1 + $0x28] sm:$0xf]
  %v166 = vld [vmem:[%s1 + $0x2c] sm:$0xf]
  %v167 = vld [vmem:[%s1 + $0x30] sm:$0xf]
  %v168 = vld [vmem:[%s1 + $0x34] sm:$0xf]
  %v169 = vld [vmem:[%s1 + $0x38] sm:$0xf]
  %v170 = vld [vmem:[%s1 + $0x3c] sm:$0xf]
  %v187 = vunpack.c.l.b16 %v155
  %v188 = vunpack.c.l.b16 %v156
  %v189 = vunpack.c.l.b16 %v157
  %v190 = vunpack.c.l.b16 %v158
  %v191 = vunpack.c.l.b16 %v159
  %v192 = vunpack.c.l.b16 %v160
  %v193 = vunpack.c.l.b16 %v161
  %v194 = vunpack.c.l.b16 %v162
  %v195 = vunpack.c.l.b16 %v163
  %v196 = vunpack.c.l.b16 %v164
  %v197 = vunpack.c.l.b16 %v165
  %v198 = vunpack.c.l.b16 %v166
  %v199 = vunpack.c.l.b16 %v167
  %v200 = vunpack.c.l.b16 %v168
  %v201 = vunpack.c.l.b16 %v169
  %v202 = vunpack.c.l.b16 %v170
  %v203 = vpack.c.b16 %v188, %v187
  %v204 = vpack.c.b16 %v190, %v189
  %v205 = vpack.c.b16 %v192, %v191
  %v206 = vpack.c.b16 %v194, %v193
  %v207 = vpack.c.b16 %v196, %v195
  %v208 = vpack.c.b16 %v198, %v197
  %v209 = vpack.c.b16 %v200, %v199
  %v210 = vpack.c.b16 %v202, %v201
  %219 = vmatpush.bf16.msra.mxu0 %v210
  %220 = vmatpush.bf16.msra.mxu0 %v209
  %221 = vmatpush.bf16.msra.mxu0 %v208
  %222 = vmatpush.bf16.msra.mxu0 %v207
  %223 = vmatpush.bf16.msra.mxu0 %v206
  %224 = vmatpush.bf16.msra.mxu0 %v205
  %225 = vmatpush.bf16.msra.mxu0 %v204
  %226 = vmatpush.bf16.msra.mxu0 %v203
  %227 = vmatmul.bf16.gmra.mxu0 %v131
  %v228 = vpop.f32.mrf.mxu0
  %v229 = vadd.f32 0.0, %v228
  %v230 = vpop.f32.mrf.mxu0
  %v231 = vadd.f32 0.0, %v230
  %232 = vmatmul.bf16.gmra.mxu0 %v132
  %v233 = vpop.f32.mrf.mxu0
  %v234 = vadd.f32 0.0, %v233
  %v235 = vpop.f32.mrf.mxu0
  %v236 = vadd.f32 0.0, %v235
  %237 = vmatmul.bf16.gmra.mxu0 %v133
  %v238 = vpop.f32.mrf.mxu0
  %v239 = vadd.f32 0.0, %v238
  %v240 = vpop.f32.mrf.mxu0
  %v241 = vadd.f32 0.0, %v240
  %242 = vmatmul.bf16.gmra.mxu0 %v134
  %v243 = vpop.f32.mrf.mxu0
  %v244 = vadd.f32 0.0, %v243
  %v245 = vpop.f32.mrf.mxu0
  %v246 = vadd.f32 0.0, %v245
  %247 = vmatmul.bf16.gmra.mxu0 %v135
  %v248 = vpop.f32.mrf.mxu0
  %v249 = vadd.f32 0.0, %v248
  %v250 = vpop.f32.mrf.mxu0
  %v251 = vadd.f32 0.0, %v250
  %252 = vmatmul.bf16.gmra.mxu0 %v136
  %v253 = vpop.f32.mrf.mxu0
  %v254 = vadd.f32 0.0, %v253
  %v255 = vpop.f32.mrf.mxu0
  %v256 = vadd.f32 0.0, %v255
  %257 = vmatmul.bf16.gmra.mxu0 %v137
  %v258 = vpop.f32.mrf.mxu0
  %v259 = vadd.f32 0.0, %v258
  %v260 = vpop.f32.mrf.mxu0
  %v261 = vadd.f32 0.0, %v260
  %262 = vmatmul.bf16.gmra.mxu0 %v138
  %v263 = vpop.f32.mrf.mxu0
  %v264 = vadd.f32 0.0, %v263
  %v265 = vpop.f32.mrf.mxu0
  %v266 = vadd.f32 0.0, %v265
  %267 = vdwg.mxu0
  %v268 = vadd.f32 %v139, %v229
  %v269 = vadd.f32 %v140, %v231
  %v270 = vadd.f32 %v141, %v234
  %v271 = vadd.f32 %v142, %v236
  %v272 = vadd.f32 %v143, %v239
  %v273 = vadd.f32 %v144, %v241
  %v274 = vadd.f32 %v145, %v244
  %v275 = vadd.f32 %v146, %v246
  %v276 = vadd.f32 %v147, %v249
  %v277 = vadd.f32 %v148, %v251
  %v278 = vadd.f32 %v149, %v254
  %v279 = vadd.f32 %v150, %v256
  %v280 = vadd.f32 %v151, %v259
  %v281 = vadd.f32 %v152, %v261
  %v282 = vadd.f32 %v153, %v264
  %v283 = vadd.f32 %v154, %v266
  %284 = vst [vmem:[#allocation2] sm:$0xff] %v268
  %285 = vst [vmem:[#allocation2 + $0x8] sm:$0xff] %v269
  %286 = vst [vmem:[#allocation2 + $0x10] sm:$0xff] %v270
  %287 = vst [vmem:[#allocation2 + $0x18] sm:$0xff] %v271
  %288 = vst [vmem:[#allocation2 + $0x20] sm:$0xff] %v272
  %289 = vst [vmem:[#allocation2 + $0x28] sm:$0xff] %v273
  %290 = vst [vmem:[#allocation2 + $0x30] sm:$0xff] %v274
  %291 = vst [vmem:[#allocation2 + $0x38] sm:$0xff] %v275
  %292 = vst [vmem:[#allocation2 + $0x40] sm:$0xff] %v276
  %293 = vst [vmem:[#allocation2 + $0x48] sm:$0xff] %v277
  %294 = vst [vmem:[#allocation2 + $0x50] sm:$0xff] %v278
  %295 = vst [vmem:[#allocation2 + $0x58] sm:$0xff] %v279
  %296 = vst [vmem:[#allocation2 + $0x60] sm:$0xff] %v280
  %297 = vst [vmem:[#allocation2 + $0x68] sm:$0xff] %v281
  %298 = vst [vmem:[#allocation2 + $0x70] sm:$0xff] %v282
  %299 = vst [vmem:[#allocation2 + $0x78] sm:$0xff] %v283
  // Predicated region
  $region30: #{param_lenet_forward.19} parent=0 // pred_check
    %p300 = pneg %p23
  $region31: #{param_lenet_forward.19} parent=0 // pred_check_branch
    %302 = sbr.rel (%p300) target = $region33
  $region32: #{param_lenet_forward.19} parent=0 // pred_region
    %v303 = vld [vmem:[#allocation2] sm:$0xff]
    %v304 = vld [vmem:[#allocation2 + $0x8] sm:$0xff]
    %v305 = vld [vmem:[#allocation2 + $0x10] sm:$0xff]
    %v306 = vld [vmem:[#allocation2 + $0x18] sm:$0xff]
    %v307 = vld [vmem:[#allocation2 + $0x20] sm:$0xff]
    %v308 = vld [vmem:[#allocation2 + $0x28] sm:$0xff]
    %v309 = vld [vmem:[#allocation2 + $0x30] sm:$0xff]
    %v310 = vld [vmem:[#allocation2 + $0x38] sm:$0xff]
    %v311 = vld [vmem:[#allocation2 + $0x40] sm:$0xff]
    %v312 = vld [vmem:[#allocation2 + $0x48] sm:$0xff]
    %v313 = vld [vmem:[#allocation2 + $0x50] sm:$0xff]
    %v314 = vld [vmem:[#allocation2 + $0x58] sm:$0xff]
    %v315 = vld [vmem:[#allocation2 + $0x60] sm:$0xff]
    %v316 = vld [vmem:[#allocation2 + $0x68] sm:$0xff]
    %v317 = vld [vmem:[#allocation2 + $0x70] sm:$0xff]
    %v318 = vld [vmem:[#allocation2 + $0x78] sm:$0xff]
    %v319 = vld [vmem:[%s4] sm:$0x1]
    %v321 = vperm.slane %v319, 0
    %v323 = vmul.f32 %v303, %v321
    %v324 = vmul.f32 %v304, %v321
    %v325 = vmul.f32 %v305, %v321
    %v326 = vmul.f32 %v306, %v321
    %v327 = vmul.f32 %v307, %v321
    %v328 = vmul.f32 %v308, %v321
    %v329 = vmul.f32 %v309, %v321
    %v330 = vmul.f32 %v310, %v321
    %v331 = vmul.f32 %v311, %v321
    %v332 = vmul.f32 %v312, %v321
    %v333 = vmul.f32 %v313, %v321
    %v334 = vmul.f32 %v314, %v321
    %v335 = vmul.f32 %v315, %v321
    %v336 = vmul.f32 %v316, %v321
    %v337 = vmul.f32 %v317, %v321
    %v338 = vmul.f32 %v318, %v321
    %v339 = vld [vmem:[%s5] sm:$0x1]
    %v341 = vperm.slane %v339, 0
    %v343 = vadd.f32 %v323, %v341
    %v344 = vadd.f32 %v324, %v341
    %v345 = vadd.f32 %v325, %v341
    %v346 = vadd.f32 %v326, %v341
    %v347 = vadd.f32 %v327, %v341
    %v348 = vadd.f32 %v328, %v341
    %v349 = vadd.f32 %v329, %v341
    %v350 = vadd.f32 %v330, %v341
    %v351 = vadd.f32 %v331, %v341
    %v352 = vadd.f32 %v332, %v341
    %v353 = vadd.f32 %v333, %v341
    %v354 = vadd.f32 %v334, %v341
    %v355 = vadd.f32 %v335, %v341
    %v356 = vadd.f32 %v336, %v341
    %v357 = vadd.f32 %v337, %v341
    %v358 = vadd.f32 %v338, %v341
    %v359 = vmax.f32 %v343, 0.0
    %v360 = vmax.f32 %v344, 0.0
    %v361 = vmax.f32 %v345, 0.0
    %v362 = vmax.f32 %v346, 0.0
    %v363 = vmax.f32 %v347, 0.0
    %v364 = vmax.f32 %v348, 0.0
    %v365 = vmax.f32 %v349, 0.0
    %v366 = vmax.f32 %v350, 0.0
    %v367 = vmax.f32 %v351, 0.0
    %v368 = vmax.f32 %v352, 0.0
    %v369 = vmax.f32 %v353, 0.0
    %v370 = vmax.f32 %v354, 0.0
    %v371 = vmax.f32 %v355, 0.0
    %v372 = vmax.f32 %v356, 0.0
    %v373 = vmax.f32 %v357, 0.0
    %v374 = vmax.f32 %v358, 0.0
    %v375 = vpack.c.bf16 %v359, %v359
    %v376 = vpack.c.bf16 %v360, %v360
    %v377 = vpack.c.bf16 %v361, %v361
    %v378 = vpack.c.bf16 %v362, %v362
    %v379 = vpack.c.bf16 %v363, %v363
    %v380 = vpack.c.bf16 %v364, %v364
    %v381 = vpack.c.bf16 %v365, %v365
    %v382 = vpack.c.bf16 %v366, %v366
    %v383 = vpack.c.bf16 %v367, %v367
    %v384 = vpack.c.bf16 %v368, %v368
    %v385 = vpack.c.bf16 %v369, %v369
    %v386 = vpack.c.bf16 %v370, %v370
    %v387 = vpack.c.bf16 %v371, %v371
    %v388 = vpack.c.bf16 %v372, %v372
    %v389 = vpack.c.bf16 %v373, %v373
    %v390 = vpack.c.bf16 %v374, %v374
    %391 = vst [vmem:[%s6] sm:$0xf] %v375
    %392 = vst [vmem:[%s6 + $0x4] sm:$0xf] %v376
    %393 = vst [vmem:[%s6 + $0x8] sm:$0xf] %v377
    %394 = vst [vmem:[%s6 + $0xc] sm:$0xf] %v378
    %395 = vst [vmem:[%s6 + $0x10] sm:$0xf] %v379
    %396 = vst [vmem:[%s6 + $0x14] sm:$0xf] %v380
    %397 = vst [vmem:[%s6 + $0x18] sm:$0xf] %v381
    %398 = vst [vmem:[%s6 + $0x1c] sm:$0xf] %v382
    %399 = vst [vmem:[%s6 + $0x20] sm:$0xf] %v383
    %400 = vst [vmem:[%s6 + $0x24] sm:$0xf] %v384
    %401 = vst [vmem:[%s6 + $0x28] sm:$0xf] %v385
    %402 = vst [vmem:[%s6 + $0x2c] sm:$0xf] %v386
    %403 = vst [vmem:[%s6 + $0x30] sm:$0xf] %v387
    %404 = vst [vmem:[%s6 + $0x34] sm:$0xf] %v388
    %405 = vst [vmem:[%s6 + $0x38] sm:$0xf] %v389
    %406 = vst [vmem:[%s6 + $0x3c] sm:$0xf] %v390
  $region33: #{param_lenet_forward.19} parent=0 // pred_fallthru
    _
  // Predicated region
  $region34: #{param_lenet_forward.19} parent=0 // pred_check
    _
  $region35: #{param_lenet_forward.19} parent=0 // pred_check_branch
    %408 = sbr.rel (0) target = $region37
  $region36: #{param_lenet_forward.19} parent=0 // pred_region
    _
  $region37: #{param_lenet_forward.19} parent=0 // pred_fallthru
    _
  // Predicated region
  $region38: #{param_lenet_forward.19} parent=0 // pred_check
    _
  $region39: #{param_lenet_forward.19} parent=0 // pred_check_branch
    %410 = sbr.rel (0) target = $region41
  $region40: #{param_lenet_forward.19} parent=0 // pred_region
    _
  $region41: #{param_lenet_forward.19} parent=0 // pred_fallthru
    _

// kernel: param_lenet_forward.20
$region0: #{param_lenet_forward.20}
  #allocation0 [shape = 'u32[]', space=smem, size = 0x4, offset = 0x4, fixed_abs, tag = 'smem constant byte address 0x4 - core index']
  #allocation1 [shape = 'u32[72,128]{1,0:T(1,128)}', space=vmem, size = 0x9000, scoped, tag = 'internal scratch']
  #allocation2 [shape = 'f32[128,128]{1,0:T(8,128)}', space=vmem, size = 0x10000, scoped, tag = 'scratch operand']
  %s0 = inlined_call_operand.vmem [shape: bf16[128,256], index: 0, kind: input, shape index: {}]
  %s1 = inlined_call_operand.vmem [shape: bf16[256,128], index: 1, kind: input, shape index: {}]
  %s2 = inlined_call_operand.vmem [shape: bf16[128,128], index: 2, kind: output, shape index: {}]
  %s3 = sld [smem:[#allocation0]]
  $region26: #{param_lenet_forward.20} parent=0
    _
  %s5 = ssub.s32 1, %s3
  %s6 = scalar_select 0, %s5, %s3
  // Predicated region
  $region2: #{param_lenet_forward.20} parent=0 // pred_check
    _
  $region3: #{param_lenet_forward.20} parent=0 // pred_check_branch
    %8 = sbr.rel (0) target = $region5
  $region4: #{param_lenet_forward.20} parent=0 // pred_region
    _
  $region5: #{param_lenet_forward.20} parent=0 // pred_fallthru
    _
  // Predicated region
  $region6: #{param_lenet_forward.20} parent=0 // pred_check
    _
  $region7: #{param_lenet_forward.20} parent=0 // pred_check_branch
    %10 = sbr.rel (0) target = $region9
  $region8: #{param_lenet_forward.20} parent=0 // pred_region
    _
  $region9: #{param_lenet_forward.20} parent=0 // pred_fallthru
    _
  %p11 = scmp.eq.s32.totalorder 0, 0
  // Predicated region
  $region10: #{param_lenet_forward.20} parent=0 // pred_check
    %p12 = pneg %p11
  $region11: #{param_lenet_forward.20} parent=0 // pred_check_branch
    %14 = sbr.rel (%p12) target = $region13
  $region12: #{param_lenet_forward.20} parent=0 // pred_region
    %15 = vst [vmem:[#allocation2] sm:$0xff] 0.0
    %16 = vst [vmem:[#allocation2 + $0x8] sm:$0xff] 0.0
    %17 = vst [vmem:[#allocation2 + $0x10] sm:$0xff] 0.0
    %18 = vst [vmem:[#allocation2 + $0x18] sm:$0xff] 0.0
    %19 = vst [vmem:[#allocation2 + $0x20] sm:$0xff] 0.0
    %20 = vst [vmem:[#allocation2 + $0x28] sm:$0xff] 0.0
    %21 = vst [vmem:[#allocation2 + $0x30] sm:$0xff] 0.0
    %22 = vst [vmem:[#allocation2 + $0x38] sm:$0xff] 0.0
    %23 = vst [vmem:[#allocation2 + $0x40] sm:$0xff] 0.0
    %24 = vst [vmem:[#allocation2 + $0x48] sm:$0xff] 0.0
    %25 = vst [vmem:[#allocation2 + $0x50] sm:$0xff] 0.0
    %26 = vst [vmem:[#allocation2 + $0x58] sm:$0xff] 0.0
    %27 = vst [vmem:[#allocation2 + $0x60] sm:$0xff] 0.0
    %28 = vst [vmem:[#allocation2 + $0x68] sm:$0xff] 0.0
    %29 = vst [vmem:[#allocation2 + $0x70] sm:$0xff] 0.0
    %30 = vst [vmem:[#allocation2 + $0x78] sm:$0xff] 0.0
  $region13: #{param_lenet_forward.20} parent=0 // pred_fallthru
    _
  %v31 = vld [vmem:[%s0] sm:$0xff]
  %v32 = vld [vmem:[%s0 + $0x8] sm:$0xff]
  %v33 = vld [vmem:[%s0 + $0x10] sm:$0xff]
  %v34 = vld [vmem:[%s0 + $0x18] sm:$0xff]
  %v35 = vld [vmem:[%s0 + $0x20] sm:$0xff]
  %v36 = vld [vmem:[%s0 + $0x28] sm:$0xff]
  %v37 = vld [vmem:[%s0 + $0x30] sm:$0xff]
  %v38 = vld [vmem:[%s0 + $0x38] sm:$0xff]
  %v39 = vld [vmem:[%s0 + $0x40] sm:$0xff]
  %v40 = vld [vmem:[%s0 + $0x48] sm:$0xff]
  %v41 = vld [vmem:[%s0 + $0x50] sm:$0xff]
  %v42 = vld [vmem:[%s0 + $0x58] sm:$0xff]
  %v43 = vld [vmem:[%s0 + $0x60] sm:$0xff]
  %v44 = vld [vmem:[%s0 + $0x68] sm:$0xff]
  %v45 = vld [vmem:[%s0 + $0x70] sm:$0xff]
  %v46 = vld [vmem:[%s0 + $0x78] sm:$0xff]
  %v47 = vld [vmem:[#allocation2] sm:$0xff]
  %v48 = vld [vmem:[#allocation2 + $0x8] sm:$0xff]
  %v49 = vld [vmem:[#allocation2 + $0x10] sm:$0xff]
  %v50 = vld [vmem:[#allocation2 + $0x18] sm:$0xff]
  %v51 = vld [vmem:[#allocation2 + $0x20] sm:$0xff]
  %v52 = vld [vmem:[#allocation2 + $0x28] sm:$0xff]
  %v53 = vld [vmem:[#allocation2 + $0x30] sm:$0xff]
  %v54 = vld [vmem:[#allocation2 + $0x38] sm:$0xff]
  %v55 = vld [vmem:[#allocation2 + $0x40] sm:$0xff]
  %v56 = vld [vmem:[#allocation2 + $0x48] sm:$0xff]
  %v57 = vld [vmem:[#allocation2 + $0x50] sm:$0xff]
  %v58 = vld [vmem:[#allocation2 + $0x58] sm:$0xff]
  %v59 = vld [vmem:[#allocation2 + $0x60] sm:$0xff]
  %v60 = vld [vmem:[#allocation2 + $0x68] sm:$0xff]
  %v61 = vld [vmem:[#allocation2 + $0x70] sm:$0xff]
  %v62 = vld [vmem:[#allocation2 + $0x78] sm:$0xff]
  %v63 = vld [vmem:[%s1] sm:$0xf]
  %v64 = vld [vmem:[%s1 + $0x4] sm:$0xf]
  %v65 = vld [vmem:[%s1 + $0x8] sm:$0xf]
  %v66 = vld [vmem:[%s1 + $0xc] sm:$0xf]
  %v67 = vld [vmem:[%s1 + $0x10] sm:$0xf]
  %v68 = vld [vmem:[%s1 + $0x14] sm:$0xf]
  %v69 = vld [vmem:[%s1 + $0x18] sm:$0xf]
  %v70 = vld [vmem:[%s1 + $0x1c] sm:$0xf]
  %v71 = vld [vmem:[%s1 + $0x20] sm:$0xf]
  %v72 = vld [vmem:[%s1 + $0x24] sm:$0xf]
  %v73 = vld [vmem:[%s1 + $0x28] sm:$0xf]
  %v74 = vld [vmem:[%s1 + $0x2c] sm:$0xf]
  %v75 = vld [vmem:[%s1 + $0x30] sm:$0xf]
  %v76 = vld [vmem:[%s1 + $0x34] sm:$0xf]
  %v77 = vld [vmem:[%s1 + $0x38] sm:$0xf]
  %v78 = vld [vmem:[%s1 + $0x3c] sm:$0xf]
  %v79 = vld [vmem:[%s1 + $0x40] sm:$0xf]
  %v80 = vld [vmem:[%s1 + $0x44] sm:$0xf]
  %v81 = vld [vmem:[%s1 + $0x48] sm:$0xf]
  %v82 = vld [vmem:[%s1 + $0x4c] sm:$0xf]
  %v83 = vld [vmem:[%s1 + $0x50] sm:$0xf]
  %v84 = vld [vmem:[%s1 + $0x54] sm:$0xf]
  %v85 = vld [vmem:[%s1 + $0x58] sm:$0xf]
  %v86 = vld [vmem:[%s1 + $0x5c] sm:$0xf]
  %v87 = vld [vmem:[%s1 + $0x60] sm:$0xf]
  %v88 = vld [vmem:[%s1 + $0x64] sm:$0xf]
  %v89 = vld [vmem:[%s1 + $0x68] sm:$0xf]
  %v90 = vld [vmem:[%s1 + $0x6c] sm:$0xf]
  %v91 = vld [vmem:[%s1 + $0x70] sm:$0xf]
  %v92 = vld [vmem:[%s1 + $0x74] sm:$0xf]
  %v93 = vld [vmem:[%s1 + $0x78] sm:$0xf]
  %v94 = vld [vmem:[%s1 + $0x7c] sm:$0xf]
  %v111 = vunpack.c.l.b16 %v31
  %v112 = vunpack.c.h.b16 %v31
  %v113 = vunpack.c.l.b16 %v32
  %v114 = vunpack.c.h.b16 %v32
  %v115 = vunpack.c.l.b16 %v33
  %v116 = vunpack.c.h.b16 %v33
  %v117 = vunpack.c.l.b16 %v34
  %v118 = vunpack.c.h.b16 %v34
  %v119 = vunpack.c.l.b16 %v35
  %v120 = vunpack.c.h.b16 %v35
  %v121 = vunpack.c.l.b16 %v36
  %v122 = vunpack.c.h.b16 %v36
  %v123 = vunpack.c.l.b16 %v37
  %v124 = vunpack.c.h.b16 %v37
  %v125 = vunpack.c.l.b16 %v38
  %v126 = vunpack.c.h.b16 %v38
  %v127 = vunpack.c.l.b16 %v39
  %v128 = vunpack.c.h.b16 %v39
  %v129 = vunpack.c.l.b16 %v40
  %v130 = vunpack.c.h.b16 %v40
  %v131 = vunpack.c.l.b16 %v41
  %v132 = vunpack.c.h.b16 %v41
  %v133 = vunpack.c.l.b16 %v42
  %v134 = vunpack.c.h.b16 %v42
  %v135 = vunpack.c.l.b16 %v43
  %v136 = vunpack.c.h.b16 %v43
  %v137 = vunpack.c.l.b16 %v44
  %v138 = vunpack.c.h.b16 %v44
  %v139 = vunpack.c.l.b16 %v45
  %v140 = vunpack.c.h.b16 %v45
  %v141 = vunpack.c.l.b16 %v46
  %v142 = vunpack.c.h.b16 %v46
  %v143 = vpack.c.b16 %v113, %v111
  %v144 = vpack.c.b16 %v114, %v112
  %v145 = vpack.c.b16 %v117, %v115
  %v146 = vpack.c.b16 %v118, %v116
  %v147 = vpack.c.b16 %v121, %v119
  %v148 = vpack.c.b16 %v122, %v120
  %v149 = vpack.c.b16 %v125, %v123
  %v150 = vpack.c.b16 %v126, %v124
  %v151 = vpack.c.b16 %v129, %v127
  %v152 = vpack.c.b16 %v130, %v128
  %v153 = vpack.c.b16 %v133, %v131
  %v154 = vpack.c.b16 %v134, %v132
  %v155 = vpack.c.b16 %v137, %v135
  %v156 = vpack.c.b16 %v138, %v136
  %v157 = vpack.c.b16 %v141, %v139
  %v158 = vpack.c.b16 %v142, %v140
  %v207 = vunpack.c.l.b16 %v63
  %v208 = vunpack.c.l.b16 %v64
  %v209 = vunpack.c.l.b16 %v65
  %v210 = vunpack.c.l.b16 %v66
  %v211 = vunpack.c.l.b16 %v67
  %v212 = vunpack.c.l.b16 %v68
  %v213 = vunpack.c.l.b16 %v69
  %v214 = vunpack.c.l.b16 %v70
  %v215 = vunpack.c.l.b16 %v71
  %v216 = vunpack.c.l.b16 %v72
  %v217 = vunpack.c.l.b16 %v73
  %v218 = vunpack.c.l.b16 %v74
  %v219 = vunpack.c.l.b16 %v75
  %v220 = vunpack.c.l.b16 %v76
  %v221 = vunpack.c.l.b16 %v77
  %v222 = vunpack.c.l.b16 %v78
  %v223 = vunpack.c.l.b16 %v79
  %v224 = vunpack.c.l.b16 %v80
  %v225 = vunpack.c.l.b16 %v81
  %v226 = vunpack.c.l.b16 %v82
  %v227 = vunpack.c.l.b16 %v83
  %v228 = vunpack.c.l.b16 %v84
  %v229 = vunpack.c.l.b16 %v85
  %v230 = vunpack.c.l.b16 %v86
  %v231 = vunpack.c.l.b16 %v87
  %v232 = vunpack.c.l.b16 %v88
  %v233 = vunpack.c.l.b16 %v89
  %v234 = vunpack.c.l.b16 %v90
  %v235 = vunpack.c.l.b16 %v91
  %v236 = vunpack.c.l.b16 %v92
  %v237 = vunpack.c.l.b16 %v93
  %v238 = vunpack.c.l.b16 %v94
  %v239 = vpack.c.b16 %v208, %v207
  %v240 = vpack.c.b16 %v210, %v209
  %v241 = vpack.c.b16 %v212, %v211
  %v242 = vpack.c.b16 %v214, %v213
  %v243 = vpack.c.b16 %v216, %v215
  %v244 = vpack.c.b16 %v218, %v217
  %v245 = vpack.c.b16 %v220, %v219
  %v246 = vpack.c.b16 %v222, %v221
  %v247 = vpack.c.b16 %v224, %v223
  %v248 = vpack.c.b16 %v226, %v225
  %v249 = vpack.c.b16 %v228, %v227
  %v250 = vpack.c.b16 %v230, %v229
  %v251 = vpack.c.b16 %v232, %v231
  %v252 = vpack.c.b16 %v234, %v233
  %v253 = vpack.c.b16 %v236, %v235
  %v254 = vpack.c.b16 %v238, %v237
  %271 = vmatpush.bf16.msra.mxu0 %v246
  %272 = vmatpush.bf16.msra.mxu0 %v245
  %273 = vmatpush.bf16.msra.mxu0 %v244
  %274 = vmatpush.bf16.msra.mxu0 %v243
  %275 = vmatpush.bf16.msra.mxu0 %v242
  %276 = vmatpush.bf16.msra.mxu0 %v241
  %277 = vmatpush.bf16.msra.mxu0 %v240
  %278 = vmatpush.bf16.msra.mxu0 %v239
  %279 = vmatmul.bf16.gmra.mxu0 %v143
  %v280 = vpop.f32.mrf.mxu0
  %v281 = vadd.f32 0.0, %v280
  %v282 = vpop.f32.mrf.mxu0
  %v283 = vadd.f32 0.0, %v282
  %284 = vmatmul.bf16.gmra.mxu0 %v145
  %v285 = vpop.f32.mrf.mxu0
  %v286 = vadd.f32 0.0, %v285
  %v287 = vpop.f32.mrf.mxu0
  %v288 = vadd.f32 0.0, %v287
  %289 = vmatmul.bf16.gmra.mxu0 %v147
  %v290 = vpop.f32.mrf.mxu0
  %v291 = vadd.f32 0.0, %v290
  %v292 = vpop.f32.mrf.mxu0
  %v293 = vadd.f32 0.0, %v292
  %294 = vmatmul.bf16.gmra.mxu0 %v149
  %v295 = vpop.f32.mrf.mxu0
  %v296 = vadd.f32 0.0, %v295
  %v297 = vpop.f32.mrf.mxu0
  %v298 = vadd.f32 0.0, %v297
  %299 = vmatmul.bf16.gmra.mxu0 %v151
  %v300 = vpop.f32.mrf.mxu0
  %v301 = vadd.f32 0.0, %v300
  %v302 = vpop.f32.mrf.mxu0
  %v303 = vadd.f32 0.0, %v302
  %304 = vmatmul.bf16.gmra.mxu0 %v153
  %v305 = vpop.f32.mrf.mxu0
  %v306 = vadd.f32 0.0, %v305
  %v307 = vpop.f32.mrf.mxu0
  %v308 = vadd.f32 0.0, %v307
  %309 = vmatmul.bf16.gmra.mxu0 %v155
  %v310 = vpop.f32.mrf.mxu0
  %v311 = vadd.f32 0.0, %v310
  %v312 = vpop.f32.mrf.mxu0
  %v313 = vadd.f32 0.0, %v312
  %314 = vmatmul.bf16.gmra.mxu0 %v157
  %v315 = vpop.f32.mrf.mxu0
  %v316 = vadd.f32 0.0, %v315
  %v317 = vpop.f32.mrf.mxu0
  %v318 = vadd.f32 0.0, %v317
  %319 = vdwg.mxu0
  %320 = vmatpush.bf16.msra.mxu0 %v254
  %321 = vmatpush.bf16.msra.mxu0 %v253
  %322 = vmatpush.bf16.msra.mxu0 %v252
  %323 = vmatpush.bf16.msra.mxu0 %v251
  %324 = vmatpush.bf16.msra.mxu0 %v250
  %325 = vmatpush.bf16.msra.mxu0 %v249
  %326 = vmatpush.bf16.msra.mxu0 %v248
  %327 = vmatpush.bf16.msra.mxu0 %v247
  %328 = vmatmul.bf16.gmra.mxu0 %v144
  %v329 = vpop.f32.mrf.mxu0
  %v330 = vadd.f32 %v281, %v329
  %v331 = vpop.f32.mrf.mxu0
  %v332 = vadd.f32 %v283, %v331
  %333 = vmatmul.bf16.gmra.mxu0 %v146
  %v334 = vpop.f32.mrf.mxu0
  %v335 = vadd.f32 %v286, %v334
  %v336 = vpop.f32.mrf.mxu0
  %v337 = vadd.f32 %v288, %v336
  %338 = vmatmul.bf16.gmra.mxu0 %v148
  %v339 = vpop.f32.mrf.mxu0
  %v340 = vadd.f32 %v291, %v339
  %v341 = vpop.f32.mrf.mxu0
  %v342 = vadd.f32 %v293, %v341
  %343 = vmatmul.bf16.gmra.mxu0 %v150
  %v344 = vpop.f32.mrf.mxu0
  %v345 = vadd.f32 %v296, %v344
  %v346 = vpop.f32.mrf.mxu0
  %v347 = vadd.f32 %v298, %v346
  %348 = vmatmul.bf16.gmra.mxu0 %v152
  %v349 = vpop.f32.mrf.mxu0
  %v350 = vadd.f32 %v301, %v349
  %v351 = vpop.f32.mrf.mxu0
  %v352 = vadd.f32 %v303, %v351
  %353 = vmatmul.bf16.gmra.mxu0 %v154
  %v354 = vpop.f32.mrf.mxu0
  %v355 = vadd.f32 %v306, %v354
  %v356 = vpop.f32.mrf.mxu0
  %v357 = vadd.f32 %v308, %v356
  %358 = vmatmul.bf16.gmra.mxu0 %v156
  %v359 = vpop.f32.mrf.mxu0
  %v360 = vadd.f32 %v311, %v359
  %v361 = vpop.f32.mrf.mxu0
  %v362 = vadd.f32 %v313, %v361
  %363 = vmatmul.bf16.gmra.mxu0 %v158
  %v364 = vpop.f32.mrf.mxu0
  %v365 = vadd.f32 %v316, %v364
  %v366 = vpop.f32.mrf.mxu0
  %v367 = vadd.f32 %v318, %v366
  %368 = vdwg.mxu0
  %v369 = vadd.f32 %v47, %v330
  %v370 = vadd.f32 %v48, %v332
  %v371 = vadd.f32 %v49, %v335
  %v372 = vadd.f32 %v50, %v337
  %v373 = vadd.f32 %v51, %v340
  %v374 = vadd.f32 %v52, %v342
  %v375 = vadd.f32 %v53, %v345
  %v376 = vadd.f32 %v54, %v347
  %v377 = vadd.f32 %v55, %v350
  %v378 = vadd.f32 %v56, %v352
  %v379 = vadd.f32 %v57, %v355
  %v380 = vadd.f32 %v58, %v357
  %v381 = vadd.f32 %v59, %v360
  %v382 = vadd.f32 %v60, %v362
  %v383 = vadd.f32 %v61, %v365
  %v384 = vadd.f32 %v62, %v367
  %385 = vst [vmem:[#allocation2] sm:$0xff] %v369
  %386 = vst [vmem:[#allocation2 + $0x8] sm:$0xff] %v370
  %387 = vst [vmem:[#allocation2 + $0x10] sm:$0xff] %v371
  %388 = vst [vmem:[#allocation2 + $0x18] sm:$0xff] %v372
  %389 = vst [vmem:[#allocation2 + $0x20] sm:$0xff] %v373
  %390 = vst [vmem:[#allocation2 + $0x28] sm:$0xff] %v374
  %391 = vst [vmem:[#allocation2 + $0x30] sm:$0xff] %v375
  %392 = vst [vmem:[#allocation2 + $0x38] sm:$0xff] %v376
  %393 = vst [vmem:[#allocation2 + $0x40] sm:$0xff] %v377
  %394 = vst [vmem:[#allocation2 + $0x48] sm:$0xff] %v378
  %395 = vst [vmem:[#allocation2 + $0x50] sm:$0xff] %v379
  %396 = vst [vmem:[#allocation2 + $0x58] sm:$0xff] %v380
  %397 = vst [vmem:[#allocation2 + $0x60] sm:$0xff] %v381
  %398 = vst [vmem:[#allocation2 + $0x68] sm:$0xff] %v382
  %399 = vst [vmem:[#allocation2 + $0x70] sm:$0xff] %v383
  %400 = vst [vmem:[#allocation2 + $0x78] sm:$0xff] %v384
  // Predicated region
  $region14: #{param_lenet_forward.20} parent=0 // pred_check
    %p401 = pneg %p11
  $region15: #{param_lenet_forward.20} parent=0 // pred_check_branch
    %403 = sbr.rel (%p401) target = $region17
  $region16: #{param_lenet_forward.20} parent=0 // pred_region
    %v404 = vld [vmem:[#allocation2] sm:$0xff]
    %v405 = vld [vmem:[#allocation2 + $0x8] sm:$0xff]
    %v406 = vld [vmem:[#allocation2 + $0x10] sm:$0xff]
    %v407 = vld [vmem:[#allocation2 + $0x18] sm:$0xff]
    %v408 = vld [vmem:[#allocation2 + $0x20] sm:$0xff]
    %v409 = vld [vmem:[#allocation2 + $0x28] sm:$0xff]
    %v410 = vld [vmem:[#allocation2 + $0x30] sm:$0xff]
    %v411 = vld [vmem:[#allocation2 + $0x38] sm:$0xff]
    %v412 = vld [vmem:[#allocation2 + $0x40] sm:$0xff]
    %v413 = vld [vmem:[#allocation2 + $0x48] sm:$0xff]
    %v414 = vld [vmem:[#allocation2 + $0x50] sm:$0xff]
    %v415 = vld [vmem:[#allocation2 + $0x58] sm:$0xff]
    %v416 = vld [vmem:[#allocation2 + $0x60] sm:$0xff]
    %v417 = vld [vmem:[#allocation2 + $0x68] sm:$0xff]
    %v418 = vld [vmem:[#allocation2 + $0x70] sm:$0xff]
    %v419 = vld [vmem:[#allocation2 + $0x78] sm:$0xff]
    %v420 = vpack.c.bf16 %v404, %v404
    %v421 = vpack.c.bf16 %v405, %v405
    %v422 = vpack.c.bf16 %v406, %v406
    %v423 = vpack.c.bf16 %v407, %v407
    %v424 = vpack.c.bf16 %v408, %v408
    %v425 = vpack.c.bf16 %v409, %v409
    %v426 = vpack.c.bf16 %v410, %v410
    %v427 = vpack.c.bf16 %v411, %v411
    %v428 = vpack.c.bf16 %v412, %v412
    %v429 = vpack.c.bf16 %v413, %v413
    %v430 = vpack.c.bf16 %v414, %v414
    %v431 = vpack.c.bf16 %v415, %v415
    %v432 = vpack.c.bf16 %v416, %v416
    %v433 = vpack.c.bf16 %v417, %v417
    %v434 = vpack.c.bf16 %v418, %v418
    %v435 = vpack.c.bf16 %v419, %v419
    %436 = vst [vmem:[%s2] sm:$0xf] %v420
    %437 = vst [vmem:[%s2 + $0x4] sm:$0xf] %v421
    %438 = vst [vmem:[%s2 + $0x8] sm:$0xf] %v422
    %439 = vst [vmem:[%s2 + $0xc] sm:$0xf] %v423
    %440 = vst [vmem:[%s2 + $0x10] sm:$0xf] %v424
    %441 = vst [vmem:[%s2 + $0x14] sm:$0xf] %v425
    %442 = vst [vmem:[%s2 + $0x18] sm:$0xf] %v426
    %443 = vst [vmem:[%s2 + $0x1c] sm:$0xf] %v427
    %444 = vst [vmem:[%s2 + $0x20] sm:$0xf] %v428
    %445 = vst [vmem:[%s2 + $0x24] sm:$0xf] %v429
    %446 = vst [vmem:[%s2 + $0x28] sm:$0xf] %v430
    %447 = vst [vmem:[%s2 + $0x2c] sm:$0xf] %v431
    %448 = vst [vmem:[%s2 + $0x30] sm:$0xf] %v432
    %449 = vst [vmem:[%s2 + $0x34] sm:$0xf] %v433
    %450 = vst [vmem:[%s2 + $0x38] sm:$0xf] %v434
    %451 = vst [vmem:[%s2 + $0x3c] sm:$0xf] %v435
  $region17: #{param_lenet_forward.20} parent=0 // pred_fallthru
    _
  // Predicated region
  $region18: #{param_lenet_forward.20} parent=0 // pred_check
    _
  $region19: #{param_lenet_forward.20} parent=0 // pred_check_branch
    %453 = sbr.rel (0) target = $region21
  $region20: #{param_lenet_forward.20} parent=0 // pred_region
    _
  $region21: #{param_lenet_forward.20} parent=0 // pred_fallthru
    _
  // Predicated region
  $region22: #{param_lenet_forward.20} parent=0 // pred_check
    _
  $region23: #{param_lenet_forward.20} parent=0 // pred_check_branch
    %455 = sbr.rel (0) target = $region25
  $region24: #{param_lenet_forward.20} parent=0 // pred_region
    _
  $region25: #{param_lenet_forward.20} parent=0 // pred_fallthru
    _

// kernel: param_lenet_forward.23
$region0: #{param_lenet_forward.23}
  #allocation0 [shape = 'u32[]', space=smem, size = 0x4, offset = 0x4, fixed_abs, tag = 'smem constant byte address 0x4 - core index']
  #allocation1 [shape = 'u32[72,128]{1,0:T(1,128)}', space=vmem, size = 0x9000, scoped, tag = 'internal scratch']
  #allocation2 [shape = 'f32[128,128]{1,0:T(8,128)}', space=vmem, size = 0x10000, scoped, tag = 'scratch operand']
  %s0 = inlined_call_operand.vmem [shape: bf16[128,128], index: 0, kind: input, shape index: {}]
  %s1 = inlined_call_operand.vmem [shape: bf16[128,128], index: 1, kind: input, shape index: {}]
  %s2 = inlined_call_operand.vmem [shape: f32[1,128], index: 2, kind: input, shape index: {}]
  %s3 = inlined_call_operand.vmem [shape: f32[1,128], index: 3, kind: input, shape index: {}]
  %s4 = inlined_call_operand.vmem [shape: bf16[128,128], index: 4, kind: output, shape index: {}]
  %s5 = sld [smem:[#allocation0]]
  $region34: #{param_lenet_forward.23} parent=0
    _
  %s7 = ssub.s32 1, %s5
  %s8 = scalar_select 0, %s7, %s5
  // Predicated region
  $region2: #{param_lenet_forward.23} parent=0 // pred_check
    _
  $region3: #{param_lenet_forward.23} parent=0 // pred_check_branch
    %10 = sbr.rel (0) target = $region5
  $region4: #{param_lenet_forward.23} parent=0 // pred_region
    _
  $region5: #{param_lenet_forward.23} parent=0 // pred_fallthru
    _
  // Predicated region
  $region6: #{param_lenet_forward.23} parent=0 // pred_check
    _
  $region7: #{param_lenet_forward.23} parent=0 // pred_check_branch
    %12 = sbr.rel (0) target = $region9
  $region8: #{param_lenet_forward.23} parent=0 // pred_region
    _
  $region9: #{param_lenet_forward.23} parent=0 // pred_fallthru
    _
  // Predicated region
  $region10: #{param_lenet_forward.23} parent=0 // pred_check
    _
  $region11: #{param_lenet_forward.23} parent=0 // pred_check_branch
    %14 = sbr.rel (0) target = $region13
  $region12: #{param_lenet_forward.23} parent=0 // pred_region
    _
  $region13: #{param_lenet_forward.23} parent=0 // pred_fallthru
    _
  // Predicated region
  $region14: #{param_lenet_forward.23} parent=0 // pred_check
    _
  $region15: #{param_lenet_forward.23} parent=0 // pred_check_branch
    %16 = sbr.rel (0) target = $region17
  $region16: #{param_lenet_forward.23} parent=0 // pred_region
    _
  $region17: #{param_lenet_forward.23} parent=0 // pred_fallthru
    _
  %p17 = scmp.eq.s32.totalorder 0, 0
  // Predicated region
  $region18: #{param_lenet_forward.23} parent=0 // pred_check
    %p18 = pneg %p17
  $region19: #{param_lenet_forward.23} parent=0 // pred_check_branch
    %20 = sbr.rel (%p18) target = $region21
  $region20: #{param_lenet_forward.23} parent=0 // pred_region
    %21 = vst [vmem:[#allocation2] sm:$0xff] 0.0
    %22 = vst [vmem:[#allocation2 + $0x8] sm:$0xff] 0.0
    %23 = vst [vmem:[#allocation2 + $0x10] sm:$0xff] 0.0
    %24 = vst [vmem:[#allocation2 + $0x18] sm:$0xff] 0.0
    %25 = vst [vmem:[#allocation2 + $0x20] sm:$0xff] 0.0
    %26 = vst [vmem:[#allocation2 + $0x28] sm:$0xff] 0.0
    %27 = vst [vmem:[#allocation2 + $0x30] sm:$0xff] 0.0
    %28 = vst [vmem:[#allocation2 + $0x38] sm:$0xff] 0.0
    %29 = vst [vmem:[#allocation2 + $0x40] sm:$0xff] 0.0
    %30 = vst [vmem:[#allocation2 + $0x48] sm:$0xff] 0.0
    %31 = vst [vmem:[#allocation2 + $0x50] sm:$0xff] 0.0
    %32 = vst [vmem:[#allocation2 + $0x58] sm:$0xff] 0.0
    %33 = vst [vmem:[#allocation2 + $0x60] sm:$0xff] 0.0
    %34 = vst [vmem:[#allocation2 + $0x68] sm:$0xff] 0.0
    %35 = vst [vmem:[#allocation2 + $0x70] sm:$0xff] 0.0
    %36 = vst [vmem:[#allocation2 + $0x78] sm:$0xff] 0.0
  $region21: #{param_lenet_forward.23} parent=0 // pred_fallthru
    _
  %v37 = vld [vmem:[%s0] sm:$0xf]
  %v38 = vld [vmem:[%s0 + $0x4] sm:$0xf]
  %v39 = vld [vmem:[%s0 + $0x8] sm:$0xf]
  %v40 = vld [vmem:[%s0 + $0xc] sm:$0xf]
  %v41 = vld [vmem:[%s0 + $0x10] sm:$0xf]
  %v42 = vld [vmem:[%s0 + $0x14] sm:$0xf]
  %v43 = vld [vmem:[%s0 + $0x18] sm:$0xf]
  %v44 = vld [vmem:[%s0 + $0x1c] sm:$0xf]
  %v45 = vld [vmem:[%s0 + $0x20] sm:$0xf]
  %v46 = vld [vmem:[%s0 + $0x24] sm:$0xf]
  %v47 = vld [vmem:[%s0 + $0x28] sm:$0xf]
  %v48 = vld [vmem:[%s0 + $0x2c] sm:$0xf]
  %v49 = vld [vmem:[%s0 + $0x30] sm:$0xf]
  %v50 = vld [vmem:[%s0 + $0x34] sm:$0xf]
  %v51 = vld [vmem:[%s0 + $0x38] sm:$0xf]
  %v52 = vld [vmem:[%s0 + $0x3c] sm:$0xf]
  %v53 = vunpack.c.l.bf16 %v37
  %v54 = vunpack.c.l.bf16 %v38
  %v55 = vunpack.c.l.bf16 %v39
  %v56 = vunpack.c.l.bf16 %v40
  %v57 = vunpack.c.l.bf16 %v41
  %v58 = vunpack.c.l.bf16 %v42
  %v59 = vunpack.c.l.bf16 %v43
  %v60 = vunpack.c.l.bf16 %v44
  %v61 = vunpack.c.l.bf16 %v45
  %v62 = vunpack.c.l.bf16 %v46
  %v63 = vunpack.c.l.bf16 %v47
  %v64 = vunpack.c.l.bf16 %v48
  %v65 = vunpack.c.l.bf16 %v49
  %v66 = vunpack.c.l.bf16 %v50
  %v67 = vunpack.c.l.bf16 %v51
  %v68 = vunpack.c.l.bf16 %v52
  %v69 = vld [vmem:[%s2] sm:$0x1]
  %v71 = vperm.slane %v69, 0
  %v73 = vmul.f32 %v53, %v71
  %v74 = vmul.f32 %v54, %v71
  %v75 = vmul.f32 %v55, %v71
  %v76 = vmul.f32 %v56, %v71
  %v77 = vmul.f32 %v57, %v71
  %v78 = vmul.f32 %v58, %v71
  %v79 = vmul.f32 %v59, %v71
  %v80 = vmul.f32 %v60, %v71
  %v81 = vmul.f32 %v61, %v71
  %v82 = vmul.f32 %v62, %v71
  %v83 = vmul.f32 %v63, %v71
  %v84 = vmul.f32 %v64, %v71
  %v85 = vmul.f32 %v65, %v71
  %v86 = vmul.f32 %v66, %v71
  %v87 = vmul.f32 %v67, %v71
  %v88 = vmul.f32 %v68, %v71
  %v89 = vld [vmem:[%s3] sm:$0x1]
  %v91 = vperm.slane %v89, 0
  %v93 = vadd.f32 %v73, %v91
  %v94 = vadd.f32 %v74, %v91
  %v95 = vadd.f32 %v75, %v91
  %v96 = vadd.f32 %v76, %v91
  %v97 = vadd.f32 %v77, %v91
  %v98 = vadd.f32 %v78, %v91
  %v99 = vadd.f32 %v79, %v91
  %v100 = vadd.f32 %v80, %v91
  %v101 = vadd.f32 %v81, %v91
  %v102 = vadd.f32 %v82, %v91
  %v103 = vadd.f32 %v83, %v91
  %v104 = vadd.f32 %v84, %v91
  %v105 = vadd.f32 %v85, %v91
  %v106 = vadd.f32 %v86, %v91
  %v107 = vadd.f32 %v87, %v91
  %v108 = vadd.f32 %v88, %v91
  %v109 = vmax.f32 %v93, 0.0
  %v110 = vmax.f32 %v94, 0.0
  %v111 = vmax.f32 %v95, 0.0
  %v112 = vmax.f32 %v96, 0.0
  %v113 = vmax.f32 %v97, 0.0
  %v114 = vmax.f32 %v98, 0.0
  %v115 = vmax.f32 %v99, 0.0
  %v116 = vmax.f32 %v100, 0.0
  %v117 = vmax.f32 %v101, 0.0
  %v118 = vmax.f32 %v102, 0.0
  %v119 = vmax.f32 %v103, 0.0
  %v120 = vmax.f32 %v104, 0.0
  %v121 = vmax.f32 %v105, 0.0
  %v122 = vmax.f32 %v106, 0.0
  %v123 = vmax.f32 %v107, 0.0
  %v124 = vmax.f32 %v108, 0.0
  %v125 = vpack.c.bf16 %v110, %v109
  %v126 = vpack.c.bf16 %v112, %v111
  %v127 = vpack.c.bf16 %v114, %v113
  %v128 = vpack.c.bf16 %v116, %v115
  %v129 = vpack.c.bf16 %v118, %v117
  %v130 = vpack.c.bf16 %v120, %v119
  %v131 = vpack.c.bf16 %v122, %v121
  %v132 = vpack.c.bf16 %v124, %v123
  %v133 = vld [vmem:[#allocation2] sm:$0xff]
  %v134 = vld [vmem:[#allocation2 + $0x8] sm:$0xff]
  %v135 = vld [vmem:[#allocation2 + $0x10] sm:$0xff]
  %v136 = vld [vmem:[#allocation2 + $0x18] sm:$0xff]
  %v137 = vld [vmem:[#allocation2 + $0x20] sm:$0xff]
  %v138 = vld [vmem:[#allocation2 + $0x28] sm:$0xff]
  %v139 = vld [vmem:[#allocation2 + $0x30] sm:$0xff]
  %v140 = vld [vmem:[#allocation2 + $0x38] sm:$0xff]
  %v141 = vld [vmem:[#allocation2 + $0x40] sm:$0xff]
  %v142 = vld [vmem:[#allocation2 + $0x48] sm:$0xff]
  %v143 = vld [vmem:[#allocation2 + $0x50] sm:$0xff]
  %v144 = vld [vmem:[#allocation2 + $0x58] sm:$0xff]
  %v145 = vld [vmem:[#allocation2 + $0x60] sm:$0xff]
  %v146 = vld [vmem:[#allocation2 + $0x68] sm:$0xff]
  %v147 = vld [vmem:[#allocation2 + $0x70] sm:$0xff]
  %v148 = vld [vmem:[#allocation2 + $0x78] sm:$0xff]
  %v149 = vld [vmem:[%s1] sm:$0xf]
  %v150 = vld [vmem:[%s1 + $0x4] sm:$0xf]
  %v151 = vld [vmem:[%s1 + $0x8] sm:$0xf]
  %v152 = vld [vmem:[%s1 + $0xc] sm:$0xf]
  %v153 = vld [vmem:[%s1 + $0x10] sm:$0xf]
  %v154 = vld [vmem:[%s1 + $0x14] sm:$0xf]
  %v155 = vld [vmem:[%s1 + $0x18] sm:$0xf]
  %v156 = vld [vmem:[%s1 + $0x1c] sm:$0xf]
  %v157 = vld [vmem:[%s1 + $0x20] sm:$0xf]
  %v158 = vld [vmem:[%s1 + $0x24] sm:$0xf]
  %v159 = vld [vmem:[%s1 + $0x28] sm:$0xf]
  %v160 = vld [vmem:[%s1 + $0x2c] sm:$0xf]
  %v161 = vld [vmem:[%s1 + $0x30] sm:$0xf]
  %v162 = vld [vmem:[%s1 + $0x34] sm:$0xf]
  %v163 = vld [vmem:[%s1 + $0x38] sm:$0xf]
  %v164 = vld [vmem:[%s1 + $0x3c] sm:$0xf]
  %v181 = vunpack.c.l.b16 %v149
  %v182 = vunpack.c.l.b16 %v150
  %v183 = vunpack.c.l.b16 %v151
  %v184 = vunpack.c.l.b16 %v152
  %v185 = vunpack.c.l.b16 %v153
  %v186 = vunpack.c.l.b16 %v154
  %v187 = vunpack.c.l.b16 %v155
  %v188 = vunpack.c.l.b16 %v156
  %v189 = vunpack.c.l.b16 %v157
  %v190 = vunpack.c.l.b16 %v158
  %v191 = vunpack.c.l.b16 %v159
  %v192 = vunpack.c.l.b16 %v160
  %v193 = vunpack.c.l.b16 %v161
  %v194 = vunpack.c.l.b16 %v162
  %v195 = vunpack.c.l.b16 %v163
  %v196 = vunpack.c.l.b16 %v164
  %v197 = vpack.c.b16 %v182, %v181
  %v198 = vpack.c.b16 %v184, %v183
  %v199 = vpack.c.b16 %v186, %v185
  %v200 = vpack.c.b16 %v188, %v187
  %v201 = vpack.c.b16 %v190, %v189
  %v202 = vpack.c.b16 %v192, %v191
  %v203 = vpack.c.b16 %v194, %v193
  %v204 = vpack.c.b16 %v196, %v195
  %213 = vmatpush.bf16.msra.mxu0 %v204
  %214 = vmatpush.bf16.msra.mxu0 %v203
  %215 = vmatpush.bf16.msra.mxu0 %v202
  %216 = vmatpush.bf16.msra.mxu0 %v201
  %217 = vmatpush.bf16.msra.mxu0 %v200
  %218 = vmatpush.bf16.msra.mxu0 %v199
  %219 = vmatpush.bf16.msra.mxu0 %v198
  %220 = vmatpush.bf16.msra.mxu0 %v197
  %221 = vmatmul.bf16.gmra.mxu0 %v125
  %v222 = vpop.f32.mrf.mxu0
  %v223 = vadd.f32 0.0, %v222
  %v224 = vpop.f32.mrf.mxu0
  %v225 = vadd.f32 0.0, %v224
  %226 = vmatmul.bf16.gmra.mxu0 %v126
  %v227 = vpop.f32.mrf.mxu0
  %v228 = vadd.f32 0.0, %v227
  %v229 = vpop.f32.mrf.mxu0
  %v230 = vadd.f32 0.0, %v229
  %231 = vmatmul.bf16.gmra.mxu0 %v127
  %v232 = vpop.f32.mrf.mxu0
  %v233 = vadd.f32 0.0, %v232
  %v234 = vpop.f32.mrf.mxu0
  %v235 = vadd.f32 0.0, %v234
  %236 = vmatmul.bf16.gmra.mxu0 %v128
  %v237 = vpop.f32.mrf.mxu0
  %v238 = vadd.f32 0.0, %v237
  %v239 = vpop.f32.mrf.mxu0
  %v240 = vadd.f32 0.0, %v239
  %241 = vmatmul.bf16.gmra.mxu0 %v129
  %v242 = vpop.f32.mrf.mxu0
  %v243 = vadd.f32 0.0, %v242
  %v244 = vpop.f32.mrf.mxu0
  %v245 = vadd.f32 0.0, %v244
  %246 = vmatmul.bf16.gmra.mxu0 %v130
  %v247 = vpop.f32.mrf.mxu0
  %v248 = vadd.f32 0.0, %v247
  %v249 = vpop.f32.mrf.mxu0
  %v250 = vadd.f32 0.0, %v249
  %251 = vmatmul.bf16.gmra.mxu0 %v131
  %v252 = vpop.f32.mrf.mxu0
  %v253 = vadd.f32 0.0, %v252
  %v254 = vpop.f32.mrf.mxu0
  %v255 = vadd.f32 0.0, %v254
  %256 = vmatmul.bf16.gmra.mxu0 %v132
  %v257 = vpop.f32.mrf.mxu0
  %v258 = vadd.f32 0.0, %v257
  %v259 = vpop.f32.mrf.mxu0
  %v260 = vadd.f32 0.0, %v259
  %261 = vdwg.mxu0
  %v262 = vadd.f32 %v133, %v223
  %v263 = vadd.f32 %v134, %v225
  %v264 = vadd.f32 %v135, %v228
  %v265 = vadd.f32 %v136, %v230
  %v266 = vadd.f32 %v137, %v233
  %v267 = vadd.f32 %v138, %v235
  %v268 = vadd.f32 %v139, %v238
  %v269 = vadd.f32 %v140, %v240
  %v270 = vadd.f32 %v141, %v243
  %v271 = vadd.f32 %v142, %v245
  %v272 = vadd.f32 %v143, %v248
  %v273 = vadd.f32 %v144, %v250
  %v274 = vadd.f32 %v145, %v253
  %v275 = vadd.f32 %v146, %v255
  %v276 = vadd.f32 %v147, %v258
  %v277 = vadd.f32 %v148, %v260
  %278 = vst [vmem:[#allocation2] sm:$0xff] %v262
  %279 = vst [vmem:[#allocation2 + $0x8] sm:$0xff] %v263
  %280 = vst [vmem:[#allocation2 + $0x10] sm:$0xff] %v264
  %281 = vst [vmem:[#allocation2 + $0x18] sm:$0xff] %v265
  %282 = vst [vmem:[#allocation2 + $0x20] sm:$0xff] %v266
  %283 = vst [vmem:[#allocation2 + $0x28] sm:$0xff] %v267
  %284 = vst [vmem:[#allocation2 + $0x30] sm:$0xff] %v268
  %285 = vst [vmem:[#allocation2 + $0x38] sm:$0xff] %v269
  %286 = vst [vmem:[#allocation2 + $0x40] sm:$0xff] %v270
  %287 = vst [vmem:[#allocation2 + $0x48] sm:$0xff] %v271
  %288 = vst [vmem:[#allocation2 + $0x50] sm:$0xff] %v272
  %289 = vst [vmem:[#allocation2 + $0x58] sm:$0xff] %v273
  %290 = vst [vmem:[#allocation2 + $0x60] sm:$0xff] %v274
  %291 = vst [vmem:[#allocation2 + $0x68] sm:$0xff] %v275
  %292 = vst [vmem:[#allocation2 + $0x70] sm:$0xff] %v276
  %293 = vst [vmem:[#allocation2 + $0x78] sm:$0xff] %v277
  // Predicated region
  $region22: #{param_lenet_forward.23} parent=0 // pred_check
    %p294 = pneg %p17
  $region23: #{param_lenet_forward.23} parent=0 // pred_check_branch
    %296 = sbr.rel (%p294) target = $region25
  $region24: #{param_lenet_forward.23} parent=0 // pred_region
    %v297 = vld [vmem:[#allocation2] sm:$0xff]
    %v298 = vld [vmem:[#allocation2 + $0x8] sm:$0xff]
    %v299 = vld [vmem:[#allocation2 + $0x10] sm:$0xff]
    %v300 = vld [vmem:[#allocation2 + $0x18] sm:$0xff]
    %v301 = vld [vmem:[#allocation2 + $0x20] sm:$0xff]
    %v302 = vld [vmem:[#allocation2 + $0x28] sm:$0xff]
    %v303 = vld [vmem:[#allocation2 + $0x30] sm:$0xff]
    %v304 = vld [vmem:[#allocation2 + $0x38] sm:$0xff]
    %v305 = vld [vmem:[#allocation2 + $0x40] sm:$0xff]
    %v306 = vld [vmem:[#allocation2 + $0x48] sm:$0xff]
    %v307 = vld [vmem:[#allocation2 + $0x50] sm:$0xff]
    %v308 = vld [vmem:[#allocation2 + $0x58] sm:$0xff]
    %v309 = vld [vmem:[#allocation2 + $0x60] sm:$0xff]
    %v310 = vld [vmem:[#allocation2 + $0x68] sm:$0xff]
    %v311 = vld [vmem:[#allocation2 + $0x70] sm:$0xff]
    %v312 = vld [vmem:[#allocation2 + $0x78] sm:$0xff]
    %v313 = vpack.c.bf16 %v297, %v297
    %v314 = vpack.c.bf16 %v298, %v298
    %v315 = vpack.c.bf16 %v299, %v299
    %v316 = vpack.c.bf16 %v300, %v300
    %v317 = vpack.c.bf16 %v301, %v301
    %v318 = vpack.c.bf16 %v302, %v302
    %v319 = vpack.c.bf16 %v303, %v303
    %v320 = vpack.c.bf16 %v304, %v304
    %v321 = vpack.c.bf16 %v305, %v305
    %v322 = vpack.c.bf16 %v306, %v306
    %v323 = vpack.c.bf16 %v307, %v307
    %v324 = vpack.c.bf16 %v308, %v308
    %v325 = vpack.c.bf16 %v309, %v309
    %v326 = vpack.c.bf16 %v310, %v310
    %v327 = vpack.c.bf16 %v311, %v311
    %v328 = vpack.c.bf16 %v312, %v312
    %329 = vst [vmem:[%s4] sm:$0xf] %v313
    %330 = vst [vmem:[%s4 + $0x4] sm:$0xf] %v314
    %331 = vst [vmem:[%s4 + $0x8] sm:$0xf] %v315
    %332 = vst [vmem:[%s4 + $0xc] sm:$0xf] %v316
    %333 = vst [vmem:[%s4 + $0x10] sm:$0xf] %v317
    %334 = vst [vmem:[%s4 + $0x14] sm:$0xf] %v318
    %335 = vst [vmem:[%s4 + $0x18] sm:$0xf] %v319
    %336 = vst [vmem:[%s4 + $0x1c] sm:$0xf] %v320
    %337 = vst [vmem:[%s4 + $0x20] sm:$0xf] %v321
    %338 = vst [vmem:[%s4 + $0x24] sm:$0xf] %v322
    %339 = vst [vmem:[%s4 + $0x28] sm:$0xf] %v323
    %340 = vst [vmem:[%s4 + $0x2c] sm:$0xf] %v324
    %341 = vst [vmem:[%s4 + $0x30] sm:$0xf] %v325
    %342 = vst [vmem:[%s4 + $0x34] sm:$0xf] %v326
    %343 = vst [vmem:[%s4 + $0x38] sm:$0xf] %v327
    %344 = vst [vmem:[%s4 + $0x3c] sm:$0xf] %v328
  $region25: #{param_lenet_forward.23} parent=0 // pred_fallthru
    _
  // Predicated region
  $region26: #{param_lenet_forward.23} parent=0 // pred_check
    _
  $region27: #{param_lenet_forward.23} parent=0 // pred_check_branch
    %346 = sbr.rel (0) target = $region29
  $region28: #{param_lenet_forward.23} parent=0 // pred_region
    _
  $region29: #{param_lenet_forward.23} parent=0 // pred_fallthru
    _
  // Predicated region
  $region30: #{param_lenet_forward.23} parent=0 // pred_check
    _
  $region31: #{param_lenet_forward.23} parent=0 // pred_check_branch
    %348 = sbr.rel (0) target = $region33
  $region32: #{param_lenet_forward.23} parent=0 // pred_region
    _
  $region33: #{param_lenet_forward.23} parent=0 // pred_fallthru
    _

// kernel: param_lenet_forward.24
$region0: #{param_lenet_forward.24}
  #allocation0 [shape = 'u32[]', space=smem, size = 0x4, offset = 0x4, fixed_abs, tag = 'smem constant byte address 0x4 - core index']
  #allocation1 [shape = 'u32[72,128]{1,0:T(1,128)}', space=vmem, size = 0x9000, scoped, tag = 'internal scratch']
  %s0 = inlined_call_operand.vmem [shape: bf16[8,2,4,2,16], index: 0, kind: input, shape index: {}]
  %s1 = inlined_call_operand.vmem [shape: bf16[8,4,1,16], index: 1, kind: output, shape index: {}]
  %s2 = sld [smem:[#allocation0]]
  $region14: #{param_lenet_forward.24} parent=0
    _
  %s4 = ssub.s32 1, %s2
  %s5 = scalar_select 0, %s4, %s2
  // Predicated region
  $region2: #{param_lenet_forward.24} parent=0 // pred_check
    _
  $region3: #{param_lenet_forward.24} parent=0 // pred_check_branch
    %7 = sbr.rel (0) target = $region5
  $region4: #{param_lenet_forward.24} parent=0 // pred_region
    _
  $region5: #{param_lenet_forward.24} parent=0 // pred_fallthru
    _
  %v8 = vld [vmem:[%s0] sm:$0x1]
  %v9 = vld [vmem:[%s0 + $0x1] sm:$0x1]
  %v10 = vld [vmem:[%s0 + $0x2] sm:$0x1]
  %v11 = vld [vmem:[%s0 + $0x3] sm:$0x1]
  %v12 = vld [vmem:[%s0 + $0x4] sm:$0x1]
  %v13 = vld [vmem:[%s0 + $0x5] sm:$0x1]
  %v14 = vld [vmem:[%s0 + $0x6] sm:$0x1]
  %v15 = vld [vmem:[%s0 + $0x7] sm:$0x1]
  %v16 = vld [vmem:[%s0 + $0x8] sm:$0x1]
  %v17 = vld [vmem:[%s0 + $0x9] sm:$0x1]
  %v18 = vld [vmem:[%s0 + $0xa] sm:$0x1]
  %v19 = vld [vmem:[%s0 + $0xb] sm:$0x1]
  %v20 = vld [vmem:[%s0 + $0xc] sm:$0x1]
  %v21 = vld [vmem:[%s0 + $0xd] sm:$0x1]
  %v22 = vld [vmem:[%s0 + $0xe] sm:$0x1]
  %v23 = vld [vmem:[%s0 + $0xf] sm:$0x1]
  %v24 = vld [vmem:[%s0 + $0x10] sm:$0x1]
  %v25 = vld [vmem:[%s0 + $0x11] sm:$0x1]
  %v26 = vld [vmem:[%s0 + $0x12] sm:$0x1]
  %v27 = vld [vmem:[%s0 + $0x13] sm:$0x1]
  %v28 = vld [vmem:[%s0 + $0x14] sm:$0x1]
  %v29 = vld [vmem:[%s0 + $0x15] sm:$0x1]
  %v30 = vld [vmem:[%s0 + $0x16] sm:$0x1]
  %v31 = vld [vmem:[%s0 + $0x17] sm:$0x1]
  %v32 = vld [vmem:[%s0 + $0x18] sm:$0x1]
  %v33 = vld [vmem:[%s0 + $0x19] sm:$0x1]
  %v34 = vld [vmem:[%s0 + $0x1a] sm:$0x1]
  %v35 = vld [vmem:[%s0 + $0x1b] sm:$0x1]
  %v36 = vld [vmem:[%s0 + $0x1c] sm:$0x1]
  %v37 = vld [vmem:[%s0 + $0x1d] sm:$0x1]
  %v38 = vld [vmem:[%s0 + $0x1e] sm:$0x1]
  %v39 = vld [vmem:[%s0 + $0x1f] sm:$0x1]
  %v40 = vld [vmem:[%s0 + $0x20] sm:$0x1]
  %v41 = vld [vmem:[%s0 + $0x21] sm:$0x1]
  %v42 = vld [vmem:[%s0 + $0x22] sm:$0x1]
  %v43 = vld [vmem:[%s0 + $0x23] sm:$0x1]
  %v44 = vld [vmem:[%s0 + $0x24] sm:$0x1]
  %v45 = vld [vmem:[%s0 + $0x25] sm:$0x1]
  %v46 = vld [vmem:[%s0 + $0x26] sm:$0x1]
  %v47 = vld [vmem:[%s0 + $0x27] sm:$0x1]
  %v48 = vld [vmem:[%s0 + $0x28] sm:$0x1]
  %v49 = vld [vmem:[%s0 + $0x29] sm:$0x1]
  %v50 = vld [vmem:[%s0 + $0x2a] sm:$0x1]
  %v51 = vld [vmem:[%s0 + $0x2b] sm:$0x1]
  %v52 = vld [vmem:[%s0 + $0x2c] sm:$0x1]
  %v53 = vld [vmem:[%s0 + $0x2d] sm:$0x1]
  %v54 = vld [vmem:[%s0 + $0x2e] sm:$0x1]
  %v55 = vld [vmem:[%s0 + $0x2f] sm:$0x1]
  %v56 = vld [vmem:[%s0 + $0x30] sm:$0x1]
  %v57 = vld [vmem:[%s0 + $0x31] sm:$0x1]
  %v58 = vld [vmem:[%s0 + $0x32] sm:$0x1]
  %v59 = vld [vmem:[%s0 + $0x33] sm:$0x1]
  %v60 = vld [vmem:[%s0 + $0x34] sm:$0x1]
  %v61 = vld [vmem:[%s0 + $0x35] sm:$0x1]
  %v62 = vld [vmem:[%s0 + $0x36] sm:$0x1]
  %v63 = vld [vmem:[%s0 + $0x37] sm:$0x1]
  %v64 = vld [vmem:[%s0 + $0x38] sm:$0x1]
  %v65 = vld [vmem:[%s0 + $0x39] sm:$0x1]
  %v66 = vld [vmem:[%s0 + $0x3a] sm:$0x1]
  %v67 = vld [vmem:[%s0 + $0x3b] sm:$0x1]
  %v68 = vld [vmem:[%s0 + $0x3c] sm:$0x1]
  %v69 = vld [vmem:[%s0 + $0x3d] sm:$0x1]
  %v70 = vld [vmem:[%s0 + $0x3e] sm:$0x1]
  %v71 = vld [vmem:[%s0 + $0x3f] sm:$0x1]
  %v72 = vunpack.c.l.bf16 %v8
  %v73 = vunpack.c.l.bf16 %v9
  %v74 = vunpack.c.l.bf16 %v10
  %v75 = vunpack.c.l.bf16 %v11
  %v76 = vunpack.c.l.bf16 %v12
  %v77 = vunpack.c.l.bf16 %v13
  %v78 = vunpack.c.l.bf16 %v14
  %v79 = vunpack.c.l.bf16 %v15
  %v80 = vunpack.c.l.bf16 %v16
  %v81 = vunpack.c.l.bf16 %v17
  %v82 = vunpack.c.l.bf16 %v18
  %v83 = vunpack.c.l.bf16 %v19
  %v84 = vunpack.c.l.bf16 %v20
  %v85 = vunpack.c.l.bf16 %v21
  %v86 = vunpack.c.l.bf16 %v22
  %v87 = vunpack.c.l.bf16 %v23
  %v88 = vunpack.c.l.bf16 %v24
  %v89 = vunpack.c.l.bf16 %v25
  %v90 = vunpack.c.l.bf16 %v26
  %v91 = vunpack.c.l.bf16 %v27
  %v92 = vunpack.c.l.bf16 %v28
  %v93 = vunpack.c.l.bf16 %v29
  %v94 = vunpack.c.l.bf16 %v30
  %v95 = vunpack.c.l.bf16 %v31
  %v96 = vunpack.c.l.bf16 %v32
  %v97 = vunpack.c.l.bf16 %v33
  %v98 = vunpack.c.l.bf16 %v34
  %v99 = vunpack.c.l.bf16 %v35
  %v100 = vunpack.c.l.bf16 %v36
  %v101 = vunpack.c.l.bf16 %v37
  %v102 = vunpack.c.l.bf16 %v38
  %v103 = vunpack.c.l.bf16 %v39
  %v104 = vunpack.c.l.bf16 %v40
  %v105 = vunpack.c.l.bf16 %v41
  %v106 = vunpack.c.l.bf16 %v42
  %v107 = vunpack.c.l.bf16 %v43
  %v108 = vunpack.c.l.bf16 %v44
  %v109 = vunpack.c.l.bf16 %v45
  %v110 = vunpack.c.l.bf16 %v46
  %v111 = vunpack.c.l.bf16 %v47
  %v112 = vunpack.c.l.bf16 %v48
  %v113 = vunpack.c.l.bf16 %v49
  %v114 = vunpack.c.l.bf16 %v50
  %v115 = vunpack.c.l.bf16 %v51
  %v116 = vunpack.c.l.bf16 %v52
  %v117 = vunpack.c.l.bf16 %v53
  %v118 = vunpack.c.l.bf16 %v54
  %v119 = vunpack.c.l.bf16 %v55
  %v120 = vunpack.c.l.bf16 %v56
  %v121 = vunpack.c.l.bf16 %v57
  %v122 = vunpack.c.l.bf16 %v58
  %v123 = vunpack.c.l.bf16 %v59
  %v124 = vunpack.c.l.bf16 %v60
  %v125 = vunpack.c.l.bf16 %v61
  %v126 = vunpack.c.l.bf16 %v62
  %v127 = vunpack.c.l.bf16 %v63
  %v128 = vunpack.c.l.bf16 %v64
  %v129 = vunpack.c.l.bf16 %v65
  %v130 = vunpack.c.l.bf16 %v66
  %v131 = vunpack.c.l.bf16 %v67
  %v132 = vunpack.c.l.bf16 %v68
  %v133 = vunpack.c.l.bf16 %v69
  %v134 = vunpack.c.l.bf16 %v70
  %v135 = vunpack.c.l.bf16 %v71
  %v136 = vadd.f32 %v72, %v76
  %v137 = vadd.f32 %v73, %v77
  %v138 = vadd.f32 %v74, %v78
  %v139 = vadd.f32 %v75, %v79
  %v140 = vadd.f32 %v80, %v84
  %v141 = vadd.f32 %v81, %v85
  %v142 = vadd.f32 %v82, %v86
  %v143 = vadd.f32 %v83, %v87
  %v144 = vadd.f32 %v88, %v92
  %v145 = vadd.f32 %v89, %v93
  %v146 = vadd.f32 %v90, %v94
  %v147 = vadd.f32 %v91, %v95
  %v148 = vadd.f32 %v96, %v100
  %v149 = vadd.f32 %v97, %v101
  %v150 = vadd.f32 %v98, %v102
  %v151 = vadd.f32 %v99, %v103
  %v152 = vadd.f32 %v104, %v108
  %v153 = vadd.f32 %v105, %v109
  %v154 = vadd.f32 %v106, %v110
  %v155 = vadd.f32 %v107, %v111
  %v156 = vadd.f32 %v112, %v116
  %v157 = vadd.f32 %v113, %v117
  %v158 = vadd.f32 %v114, %v118
  %v159 = vadd.f32 %v115, %v119
  %v160 = vadd.f32 %v120, %v124
  %v161 = vadd.f32 %v121, %v125
  %v162 = vadd.f32 %v122, %v126
  %v163 = vadd.f32 %v123, %v127
  %v164 = vadd.f32 %v128, %v132
  %v165 = vadd.f32 %v129, %v133
  %v166 = vadd.f32 %v130, %v134
  %v167 = vadd.f32 %v131, %v135
  %v200 = vrot.slane %v136, 7
  %v201 = vrot.slane %v200, 2
  %v202 = vrot.slane %v137, 7
  %v203 = vrot.slane %v202, 2
  %v204 = vrot.slane %v138, 7
  %v205 = vrot.slane %v204, 2
  %v206 = vrot.slane %v139, 7
  %v207 = vrot.slane %v206, 2
  %v208 = vrot.slane %v140, 7
  %v209 = vrot.slane %v208, 2
  %v210 = vrot.slane %v141, 7
  %v211 = vrot.slane %v210, 2
  %v212 = vrot.slane %v142, 7
  %v213 = vrot.slane %v212, 2
  %v214 = vrot.slane %v143, 7
  %v215 = vrot.slane %v214, 2
  %v216 = vrot.slane %v144, 7
  %v217 = vrot.slane %v216, 2
  %v218 = vrot.slane %v145, 7
  %v219 = vrot.slane %v218, 2
  %v220 = vrot.slane %v146, 7
  %v221 = vrot.slane %v220, 2
  %v222 = vrot.slane %v147, 7
  %v223 = vrot.slane %v222, 2
  %v224 = vrot.slane %v148, 7
  %v225 = vrot.slane %v224, 2
  %v226 = vrot.slane %v149, 7
  %v227 = vrot.slane %v226, 2
  %v228 = vrot.slane %v150, 7
  %v229 = vrot.slane %v228, 2
  %v230 = vrot.slane %v151, 7
  %v231 = vrot.slane %v230, 2
  %v232 = vrot.slane %v152, 7
  %v233 = vrot.slane %v232, 2
  %v234 = vrot.slane %v153, 7
  %v235 = vrot.slane %v234, 2
  %v236 = vrot.slane %v154, 7
  %v237 = vrot.slane %v236, 2
  %v238 = vrot.slane %v155, 7
  %v239 = vrot.slane %v238, 2
  %v240 = vrot.slane %v156, 7
  %v241 = vrot.slane %v240, 2
  %v242 = vrot.slane %v157, 7
  %v243 = vrot.slane %v242, 2
  %v244 = vrot.slane %v158, 7
  %v245 = vrot.slane %v244, 2
  %v246 = vrot.slane %v159, 7
  %v247 = vrot.slane %v246, 2
  %v248 = vrot.slane %v160, 7
  %v249 = vrot.slane %v248, 2
  %v250 = vrot.slane %v161, 7
  %v251 = vrot.slane %v250, 2
  %v252 = vrot.slane %v162, 7
  %v253 = vrot.slane %v252, 2
  %v254 = vrot.slane %v163, 7
  %v255 = vrot.slane %v254, 2
  %v256 = vrot.slane %v164, 7
  %v257 = vrot.slane %v256, 2
  %v258 = vrot.slane %v165, 7
  %v259 = vrot.slane %v258, 2
  %v260 = vrot.slane %v166, 7
  %v261 = vrot.slane %v260, 2
  %v262 = vrot.slane %v167, 7
  %v263 = vrot.slane %v262, 2
  %v296 = vadd.f32 %v136, %v201
  %v297 = vadd.f32 %v137, %v203
  %v298 = vadd.f32 %v138, %v205
  %v299 = vadd.f32 %v139, %v207
  %v300 = vadd.f32 %v140, %v209
  %v301 = vadd.f32 %v141, %v211
  %v302 = vadd.f32 %v142, %v213
  %v303 = vadd.f32 %v143, %v215
  %v304 = vadd.f32 %v144, %v217
  %v305 = vadd.f32 %v145, %v219
  %v306 = vadd.f32 %v146, %v221
  %v307 = vadd.f32 %v147, %v223
  %v308 = vadd.f32 %v148, %v225
  %v309 = vadd.f32 %v149, %v227
  %v310 = vadd.f32 %v150, %v229
  %v311 = vadd.f32 %v151, %v231
  %v312 = vadd.f32 %v152, %v233
  %v313 = vadd.f32 %v153, %v235
  %v314 = vadd.f32 %v154, %v237
  %v315 = vadd.f32 %v155, %v239
  %v316 = vadd.f32 %v156, %v241
  %v317 = vadd.f32 %v157, %v243
  %v318 = vadd.f32 %v158, %v245
  %v319 = vadd.f32 %v159, %v247
  %v320 = vadd.f32 %v160, %v249
  %v321 = vadd.f32 %v161, %v251
  %v322 = vadd.f32 %v162, %v253
  %v323 = vadd.f32 %v163, %v255
  %v324 = vadd.f32 %v164, %v257
  %v325 = vadd.f32 %v165, %v259
  %v326 = vadd.f32 %v166, %v261
  %v327 = vadd.f32 %v167, %v263
  %v328 = vmul.f32 %v296, 0.25
  %v329 = vmul.f32 %v297, 0.25
  %v330 = vmul.f32 %v298, 0.25
  %v331 = vmul.f32 %v299, 0.25
  %v332 = vmul.f32 %v300, 0.25
  %v333 = vmul.f32 %v301, 0.25
  %v334 = vmul.f32 %v302, 0.25
  %v335 = vmul.f32 %v303, 0.25
  %v336 = vmul.f32 %v304, 0.25
  %v337 = vmul.f32 %v305, 0.25
  %v338 = vmul.f32 %v306, 0.25
  %v339 = vmul.f32 %v307, 0.25
  %v340 = vmul.f32 %v308, 0.25
  %v341 = vmul.f32 %v309, 0.25
  %v342 = vmul.f32 %v310, 0.25
  %v343 = vmul.f32 %v311, 0.25
  %v344 = vmul.f32 %v312, 0.25
  %v345 = vmul.f32 %v313, 0.25
  %v346 = vmul.f32 %v314, 0.25
  %v347 = vmul.f32 %v315, 0.25
  %v348 = vmul.f32 %v316, 0.25
  %v349 = vmul.f32 %v317, 0.25
  %v350 = vmul.f32 %v318, 0.25
  %v351 = vmul.f32 %v319, 0.25
  %v352 = vmul.f32 %v320, 0.25
  %v353 = vmul.f32 %v321, 0.25
  %v354 = vmul.f32 %v322, 0.25
  %v355 = vmul.f32 %v323, 0.25
  %v356 = vmul.f32 %v324, 0.25
  %v357 = vmul.f32 %v325, 0.25
  %v358 = vmul.f32 %v326, 0.25
  %v359 = vmul.f32 %v327, 0.25
  %v360 = vpack.c.bf16 %v328, %v328
  %v361 = vpack.c.bf16 %v329, %v329
  %v362 = vpack.c.bf16 %v330, %v330
  %v363 = vpack.c.bf16 %v331, %v331
  %v364 = vpack.c.bf16 %v332, %v332
  %v365 = vpack.c.bf16 %v333, %v333
  %v366 = vpack.c.bf16 %v334, %v334
  %v367 = vpack.c.bf16 %v335, %v335
  %v368 = vpack.c.bf16 %v336, %v336
  %v369 = vpack.c.bf16 %v337, %v337
  %v370 = vpack.c.bf16 %v338, %v338
  %v371 = vpack.c.bf16 %v339, %v339
  %v372 = vpack.c.bf16 %v340, %v340
  %v373 = vpack.c.bf16 %v341, %v341
  %v374 = vpack.c.bf16 %v342, %v342
  %v375 = vpack.c.bf16 %v343, %v343
  %v376 = vpack.c.bf16 %v344, %v344
  %v377 = vpack.c.bf16 %v345, %v345
  %v378 = vpack.c.bf16 %v346, %v346
  %v379 = vpack.c.bf16 %v347, %v347
  %v380 = vpack.c.bf16 %v348, %v348
  %v381 = vpack.c.bf16 %v349, %v349
  %v382 = vpack.c.bf16 %v350, %v350
  %v383 = vpack.c.bf16 %v351, %v351
  %v384 = vpack.c.bf16 %v352, %v352
  %v385 = vpack.c.bf16 %v353, %v353
  %v386 = vpack.c.bf16 %v354, %v354
  %v387 = vpack.c.bf16 %v355, %v355
  %v388 = vpack.c.bf16 %v356, %v356
  %v389 = vpack.c.bf16 %v357, %v357
  %v390 = vpack.c.bf16 %v358, %v358
  %v391 = vpack.c.bf16 %v359, %v359
  %vm392 = vcmask 122880
  %vm393 = vsmask.f32 256
  %vm394 = vmand %vm392, %vm393
  %v395 = vld [vmem:[%s1] sm:$0x1]
  %v396 = vsel %vm394, %v360, %v395
  %397 = vst [vmem:[%s1] sm:$0x1] %v396
  %v398 = vld [vmem:[%s1 + $0x1] sm:$0x1]
  %v399 = vsel %vm394, %v361, %v398
  %400 = vst [vmem:[%s1 + $0x1] sm:$0x1] %v399
  %v401 = vld [vmem:[%s1 + $0x2] sm:$0x1]
  %v402 = vsel %vm394, %v362, %v401
  %403 = vst [vmem:[%s1 + $0x2] sm:$0x1] %v402
  %v404 = vld [vmem:[%s1 + $0x3] sm:$0x1]
  %v405 = vsel %vm394, %v363, %v404
  %406 = vst [vmem:[%s1 + $0x3] sm:$0x1] %v405
  %v407 = vld [vmem:[%s1 + $0x4] sm:$0x1]
  %v408 = vsel %vm394, %v364, %v407
  %409 = vst [vmem:[%s1 + $0x4] sm:$0x1] %v408
  %v410 = vld [vmem:[%s1 + $0x5] sm:$0x1]
  %v411 = vsel %vm394, %v365, %v410
  %412 = vst [vmem:[%s1 + $0x5] sm:$0x1] %v411
  %v413 = vld [vmem:[%s1 + $0x6] sm:$0x1]
  %v414 = vsel %vm394, %v366, %v413
  %415 = vst [vmem:[%s1 + $0x6] sm:$0x1] %v414
  %v416 = vld [vmem:[%s1 + $0x7] sm:$0x1]
  %v417 = vsel %vm394, %v367, %v416
  %418 = vst [vmem:[%s1 + $0x7] sm:$0x1] %v417
  %v419 = vld [vmem:[%s1 + $0x8] sm:$0x1]
  %v420 = vsel %vm394, %v368, %v419
  %421 = vst [vmem:[%s1 + $0x8] sm:$0x1] %v420
  %v422 = vld [vmem:[%s1 + $0x9] sm:$0x1]
  %v423 = vsel %vm394, %v369, %v422
  %424 = vst [vmem:[%s1 + $0x9] sm:$0x1] %v423
  %v425 = vld [vmem:[%s1 + $0xa] sm:$0x1]
  %v426 = vsel %vm394, %v370, %v425
  %427 = vst [vmem:[%s1 + $0xa] sm:$0x1] %v426
  %v428 = vld [vmem:[%s1 + $0xb] sm:$0x1]
  %v429 = vsel %vm394, %v371, %v428
  %430 = vst [vmem:[%s1 + $0xb] sm:$0x1] %v429
  %v431 = vld [vmem:[%s1 + $0xc] sm:$0x1]
  %v432 = vsel %vm394, %v372, %v431
  %433 = vst [vmem:[%s1 + $0xc] sm:$0x1] %v432
  %v434 = vld [vmem:[%s1 + $0xd] sm:$0x1]
  %v435 = vsel %vm394, %v373, %v434
  %436 = vst [vmem:[%s1 + $0xd] sm:$0x1] %v435
  %v437 = vld [vmem:[%s1 + $0xe] sm:$0x1]
  %v438 = vsel %vm394, %v374, %v437
  %439 = vst [vmem:[%s1 + $0xe] sm:$0x1] %v438
  %v440 = vld [vmem:[%s1 + $0xf] sm:$0x1]
  %v441 = vsel %vm394, %v375, %v440
  %442 = vst [vmem:[%s1 + $0xf] sm:$0x1] %v441
  %v443 = vld [vmem:[%s1 + $0x10] sm:$0x1]
  %v444 = vsel %vm394, %v376, %v443
  %445 = vst [vmem:[%s1 + $0x10] sm:$0x1] %v444
  %v446 = vld [vmem:[%s1 + $0x11] sm:$0x1]
  %v447 = vsel %vm394, %v377, %v446
  %448 = vst [vmem:[%s1 + $0x11] sm:$0x1] %v447
  %v449 = vld [vmem:[%s1 + $0x12] sm:$0x1]
  %v450 = vsel %vm394, %v378, %v449
  %451 = vst [vmem:[%s1 + $0x12] sm:$0x1] %v450
  %v452 = vld [vmem:[%s1 + $0x13] sm:$0x1]
  %v453 = vsel %vm394, %v379, %v452
  %454 = vst [vmem:[%s1 + $0x13] sm:$0x1] %v453
  %v455 = vld [vmem:[%s1 + $0x14] sm:$0x1]
  %v456 = vsel %vm394, %v380, %v455
  %457 = vst [vmem:[%s1 + $0x14] sm:$0x1] %v456
  %v458 = vld [vmem:[%s1 + $0x15] sm:$0x1]
  %v459 = vsel %vm394, %v381, %v458
  %460 = vst [vmem:[%s1 + $0x15] sm:$0x1] %v459
  %v461 = vld [vmem:[%s1 + $0x16] sm:$0x1]
  %v462 = vsel %vm394, %v382, %v461
  %463 = vst [vmem:[%s1 + $0x16] sm:$0x1] %v462
  %v464 = vld [vmem:[%s1 + $0x17] sm:$0x1]
  %v465 = vsel %vm394, %v383, %v464
  %466 = vst [vmem:[%s1 + $0x17] sm:$0x1] %v465
  %v467 = vld [vmem:[%s1 + $0x18] sm:$0x1]
  %v468 = vsel %vm394, %v384, %v467
  %469 = vst [vmem:[%s1 + $0x18] sm:$0x1] %v468
  %v470 = vld [vmem:[%s1 + $0x19] sm:$0x1]
  %v471 = vsel %vm394, %v385, %v470
  %472 = vst [vmem:[%s1 + $0x19] sm:$0x1] %v471
  %v473 = vld [vmem:[%s1 + $0x1a] sm:$0x1]
  %v474 = vsel %vm394, %v386, %v473
  %475 = vst [vmem:[%s1 + $0x1a] sm:$0x1] %v474
  %v476 = vld [vmem:[%s1 + $0x1b] sm:$0x1]
  %v477 = vsel %vm394, %v387, %v476
  %478 = vst [vmem:[%s1 + $0x1b] sm:$0x1] %v477
  %v479 = vld [vmem:[%s1 + $0x1c] sm:$0x1]
  %v480 = vsel %vm394, %v388, %v479
  %481 = vst [vmem:[%s1 + $0x1c] sm:$0x1] %v480
  %v482 = vld [vmem:[%s1 + $0x1d] sm:$0x1]
  %v483 = vsel %vm394, %v389, %v482
  %484 = vst [vmem:[%s1 + $0x1d] sm:$0x1] %v483
  %v485 = vld [vmem:[%s1 + $0x1e] sm:$0x1]
  %v486 = vsel %vm394, %v390, %v485
  %487 = vst [vmem:[%s1 + $0x1e] sm:$0x1] %v486
  %v488 = vld [vmem:[%s1 + $0x1f] sm:$0x1]
  %v489 = vsel %vm394, %v391, %v488
  %490 = vst [vmem:[%s1 + $0x1f] sm:$0x1] %v489
  // Predicated region
  $region6: #{param_lenet_forward.24} parent=0 // pred_check
    _
  $region7: #{param_lenet_forward.24} parent=0 // pred_check_branch
    %492 = sbr.rel (0) target = $region9
  $region8: #{param_lenet_forward.24} parent=0 // pred_region
    _
  $region9: #{param_lenet_forward.24} parent=0 // pred_fallthru
    _
  // Predicated region
  $region10: #{param_lenet_forward.24} parent=0 // pred_check
    _
  $region11: #{param_lenet_forward.24} parent=0 // pred_check_branch
    %494 = sbr.rel (0) target = $region13
  $region12: #{param_lenet_forward.24} parent=0 // pred_region
    _
  $region13: #{param_lenet_forward.24} parent=0 // pred_fallthru
    _

// kernel: param_lenet_forward.25
$region0: #{param_lenet_forward.25}
  #allocation0 [shape = 'u32[]', space=smem, size = 0x4, offset = 0x4, fixed_abs, tag = 'smem constant byte address 0x4 - core index']
  #allocation1 [shape = 'u32[72,128]{1,0:T(1,128)}', space=vmem, size = 0x9000, scoped, tag = 'internal scratch']
  #allocation2 [shape = 'f32[32,128]{1,0:T(8,128)}', space=vmem, size = 0x4000, scoped, tag = 'scratch operand']
  %s0 = inlined_call_operand.vmem [shape: bf16[32,128], index: 0, kind: input, shape index: {}]
  %s1 = inlined_call_operand.vmem [shape: bf16[128,128], index: 1, kind: input, shape index: {}]
  %s2 = inlined_call_operand.vmem [shape: f32[1,128], index: 2, kind: input, shape index: {}]
  %s3 = inlined_call_operand.vmem [shape: f32[1,128], index: 3, kind: input, shape index: {}]
  %s4 = inlined_call_operand.vmem [shape: f32[1,128], index: 4, kind: input, shape index: {}]
  %s5 = inlined_call_operand.vmem [shape: f32[1,128], index: 5, kind: input, shape index: {}]
  %s6 = inlined_call_operand.vmem [shape: bf16[32,128], index: 6, kind: output, shape index: {}]
  %s7 = sld [smem:[#allocation0]]
  $region42: #{param_lenet_forward.25} parent=0
    _
  %s9 = ssub.s32 1, %s7
  %s10 = scalar_select 0, %s9, %s7
  // Predicated region
  $region2: #{param_lenet_forward.25} parent=0 // pred_check
    _
  $region3: #{param_lenet_forward.25} parent=0 // pred_check_branch
    %12 = sbr.rel (0) target = $region5
  $region4: #{param_lenet_forward.25} parent=0 // pred_region
    _
  $region5: #{param_lenet_forward.25} parent=0 // pred_fallthru
    _
  // Predicated region
  $region6: #{param_lenet_forward.25} parent=0 // pred_check
    _
  $region7: #{param_lenet_forward.25} parent=0 // pred_check_branch
    %14 = sbr.rel (0) target = $region9
  $region8: #{param_lenet_forward.25} parent=0 // pred_region
    _
  $region9: #{param_lenet_forward.25} parent=0 // pred_fallthru
    _
  // Predicated region
  $region10: #{param_lenet_forward.25} parent=0 // pred_check
    _
  $region11: #{param_lenet_forward.25} parent=0 // pred_check_branch
    %16 = sbr.rel (0) target = $region13
  $region12: #{param_lenet_forward.25} parent=0 // pred_region
    _
  $region13: #{param_lenet_forward.25} parent=0 // pred_fallthru
    _
  // Predicated region
  $region14: #{param_lenet_forward.25} parent=0 // pred_check
    _
  $region15: #{param_lenet_forward.25} parent=0 // pred_check_branch
    %18 = sbr.rel (0) target = $region17
  $region16: #{param_lenet_forward.25} parent=0 // pred_region
    _
  $region17: #{param_lenet_forward.25} parent=0 // pred_fallthru
    _
  // Predicated region
  $region18: #{param_lenet_forward.25} parent=0 // pred_check
    _
  $region19: #{param_lenet_forward.25} parent=0 // pred_check_branch
    %20 = sbr.rel (0) target = $region21
  $region20: #{param_lenet_forward.25} parent=0 // pred_region
    _
  $region21: #{param_lenet_forward.25} parent=0 // pred_fallthru
    _
  // Predicated region
  $region22: #{param_lenet_forward.25} parent=0 // pred_check
    _
  $region23: #{param_lenet_forward.25} parent=0 // pred_check_branch
    %22 = sbr.rel (0) target = $region25
  $region24: #{param_lenet_forward.25} parent=0 // pred_region
    _
  $region25: #{param_lenet_forward.25} parent=0 // pred_fallthru
    _
  %p23 = scmp.eq.s32.totalorder 0, 0
  // Predicated region
  $region26: #{param_lenet_forward.25} parent=0 // pred_check
    %p24 = pneg %p23
  $region27: #{param_lenet_forward.25} parent=0 // pred_check_branch
    %26 = sbr.rel (%p24) target = $region29
  $region28: #{param_lenet_forward.25} parent=0 // pred_region
    %27 = vst [vmem:[#allocation2] sm:$0xff] 0.0
    %28 = vst [vmem:[#allocation2 + $0x8] sm:$0xff] 0.0
    %29 = vst [vmem:[#allocation2 + $0x10] sm:$0xff] 0.0
    %30 = vst [vmem:[#allocation2 + $0x18] sm:$0xff] 0.0
  $region29: #{param_lenet_forward.25} parent=0 // pred_fallthru
    _
  %v31 = vld [vmem:[%s0] sm:$0xf]
  %v32 = vld [vmem:[%s0 + $0x4] sm:$0xf]
  %v33 = vld [vmem:[%s0 + $0x8] sm:$0xf]
  %v34 = vld [vmem:[%s0 + $0xc] sm:$0xf]
  %v35 = vunpack.c.l.bf16 %v31
  %v36 = vunpack.c.l.bf16 %v32
  %v37 = vunpack.c.l.bf16 %v33
  %v38 = vunpack.c.l.bf16 %v34
  %v39 = vld [vmem:[%s2] sm:$0x1]
  %v41 = vperm.slane %v39, 0
  %v43 = vmul.f32 %v35, %v41
  %v44 = vmul.f32 %v36, %v41
  %v45 = vmul.f32 %v37, %v41
  %v46 = vmul.f32 %v38, %v41
  %v47 = vld [vmem:[%s3] sm:$0x1]
  %v49 = vperm.slane %v47, 0
  %v51 = vadd.f32 %v43, %v49
  %v52 = vadd.f32 %v44, %v49
  %v53 = vadd.f32 %v45, %v49
  %v54 = vadd.f32 %v46, %v49
  %v55 = vmax.f32 %v51, 0.0
  %v56 = vmax.f32 %v52, 0.0
  %v57 = vmax.f32 %v53, 0.0
  %v58 = vmax.f32 %v54, 0.0
  %v59 = vpack.c.bf16 %v56, %v55
  %v60 = vpack.c.bf16 %v58, %v57
  %v61 = vld [vmem:[#allocation2] sm:$0xff]
  %v62 = vld [vmem:[#allocation2 + $0x8] sm:$0xff]
  %v63 = vld [vmem:[#allocation2 + $0x10] sm:$0xff]
  %v64 = vld [vmem:[#allocation2 + $0x18] sm:$0xff]
  %v65 = vld [vmem:[%s1] sm:$0xf]
  %v66 = vld [vmem:[%s1 + $0x4] sm:$0xf]
  %v67 = vld [vmem:[%s1 + $0x8] sm:$0xf]
  %v68 = vld [vmem:[%s1 + $0xc] sm:$0xf]
  %v69 = vld [vmem:[%s1 + $0x10] sm:$0xf]
  %v70 = vld [vmem:[%s1 + $0x14] sm:$0xf]
  %v71 = vld [vmem:[%s1 + $0x18] sm:$0xf]
  %v72 = vld [vmem:[%s1 + $0x1c] sm:$0xf]
  %v73 = vld [vmem:[%s1 + $0x20] sm:$0xf]
  %v74 = vld [vmem:[%s1 + $0x24] sm:$0xf]
  %v75 = vld [vmem:[%s1 + $0x28] sm:$0xf]
  %v76 = vld [vmem:[%s1 + $0x2c] sm:$0xf]
  %v77 = vld [vmem:[%s1 + $0x30] sm:$0xf]
  %v78 = vld [vmem:[%s1 + $0x34] sm:$0xf]
  %v79 = vld [vmem:[%s1 + $0x38] sm:$0xf]
  %v80 = vld [vmem:[%s1 + $0x3c] sm:$0xf]
  %v97 = vunpack.c.l.b16 %v65
  %v98 = vunpack.c.l.b16 %v66
  %v99 = vunpack.c.l.b16 %v67
  %v100 = vunpack.c.l.b16 %v68
  %v101 = vunpack.c.l.b16 %v69
  %v102 = vunpack.c.l.b16 %v70
  %v103 = vunpack.c.l.b16 %v71
  %v104 = vunpack.c.l.b16 %v72
  %v105 = vunpack.c.l.b16 %v73
  %v106 = vunpack.c.l.b16 %v74
  %v107 = vunpack.c.l.b16 %v75
  %v108 = vunpack.c.l.b16 %v76
  %v109 = vunpack.c.l.b16 %v77
  %v110 = vunpack.c.l.b16 %v78
  %v111 = vunpack.c.l.b16 %v79
  %v112 = vunpack.c.l.b16 %v80
  %v113 = vpack.c.b16 %v98, %v97
  %v114 = vpack.c.b16 %v100, %v99
  %v115 = vpack.c.b16 %v102, %v101
  %v116 = vpack.c.b16 %v104, %v103
  %v117 = vpack.c.b16 %v106, %v105
  %v118 = vpack.c.b16 %v108, %v107
  %v119 = vpack.c.b16 %v110, %v109
  %v120 = vpack.c.b16 %v112, %v111
  %129 = vmatpush.bf16.msra.mxu0 %v120
  %130 = vmatpush.bf16.msra.mxu0 %v119
  %131 = vmatpush.bf16.msra.mxu0 %v118
  %132 = vmatpush.bf16.msra.mxu0 %v117
  %133 = vmatpush.bf16.msra.mxu0 %v116
  %134 = vmatpush.bf16.msra.mxu0 %v115
  %135 = vmatpush.bf16.msra.mxu0 %v114
  %136 = vmatpush.bf16.msra.mxu0 %v113
  %137 = vmatmul.bf16.gmra.mxu0 %v59
  %v138 = vpop.f32.mrf.mxu0
  %v139 = vadd.f32 0.0, %v138
  %v140 = vpop.f32.mrf.mxu0
  %v141 = vadd.f32 0.0, %v140
  %142 = vmatmul.bf16.gmra.mxu0 %v60
  %v143 = vpop.f32.mrf.mxu0
  %v144 = vadd.f32 0.0, %v143
  %v145 = vpop.f32.mrf.mxu0
  %v146 = vadd.f32 0.0, %v145
  %147 = vdwg.mxu0
  %v148 = vadd.f32 %v61, %v139
  %v149 = vadd.f32 %v62, %v141
  %v150 = vadd.f32 %v63, %v144
  %v151 = vadd.f32 %v64, %v146
  %152 = vst [vmem:[#allocation2] sm:$0xff] %v148
  %153 = vst [vmem:[#allocation2 + $0x8] sm:$0xff] %v149
  %154 = vst [vmem:[#allocation2 + $0x10] sm:$0xff] %v150
  %155 = vst [vmem:[#allocation2 + $0x18] sm:$0xff] %v151
  // Predicated region
  $region30: #{param_lenet_forward.25} parent=0 // pred_check
    %p156 = pneg %p23
  $region31: #{param_lenet_forward.25} parent=0 // pred_check_branch
    %158 = sbr.rel (%p156) target = $region33
  $region32: #{param_lenet_forward.25} parent=0 // pred_region
    %v159 = vld [vmem:[#allocation2] sm:$0xff]
    %v160 = vld [vmem:[#allocation2 + $0x8] sm:$0xff]
    %v161 = vld [vmem:[#allocation2 + $0x10] sm:$0xff]
    %v162 = vld [vmem:[#allocation2 + $0x18] sm:$0xff]
    %v163 = vld [vmem:[%s4] sm:$0x1]
    %v165 = vperm.slane %v163, 0
    %v167 = vmul.f32 %v159, %v165
    %v168 = vmul.f32 %v160, %v165
    %v169 = vmul.f32 %v161, %v165
    %v170 = vmul.f32 %v162, %v165
    %v171 = vld [vmem:[%s5] sm:$0x1]
    %v173 = vperm.slane %v171, 0
    %v175 = vadd.f32 %v167, %v173
    %v176 = vadd.f32 %v168, %v173
    %v177 = vadd.f32 %v169, %v173
    %v178 = vadd.f32 %v170, %v173
    %v179 = vmax.f32 %v175, 0.0
    %v180 = vmax.f32 %v176, 0.0
    %v181 = vmax.f32 %v177, 0.0
    %v182 = vmax.f32 %v178, 0.0
    %v183 = vpack.c.bf16 %v179, %v179
    %v184 = vpack.c.bf16 %v180, %v180
    %v185 = vpack.c.bf16 %v181, %v181
    %v186 = vpack.c.bf16 %v182, %v182
    %187 = vst [vmem:[%s6] sm:$0xf] %v183
    %188 = vst [vmem:[%s6 + $0x4] sm:$0xf] %v184
    %189 = vst [vmem:[%s6 + $0x8] sm:$0xf] %v185
    %190 = vst [vmem:[%s6 + $0xc] sm:$0xf] %v186
  $region33: #{param_lenet_forward.25} parent=0 // pred_fallthru
    _
  // Predicated region
  $region34: #{param_lenet_forward.25} parent=0 // pred_check
    _
  $region35: #{param_lenet_forward.25} parent=0 // pred_check_branch
    %192 = sbr.rel (0) target = $region37
  $region36: #{param_lenet_forward.25} parent=0 // pred_region
    _
  $region37: #{param_lenet_forward.25} parent=0 // pred_fallthru
    _
  // Predicated region
  $region38: #{param_lenet_forward.25} parent=0 // pred_check
    _
  $region39: #{param_lenet_forward.25} parent=0 // pred_check_branch
    %194 = sbr.rel (0) target = $region41
  $region40: #{param_lenet_forward.25} parent=0 // pred_region
    _
  $region41: #{param_lenet_forward.25} parent=0 // pred_fallthru
    _

// kernel: param_lenet_forward.18
$region0: #{param_lenet_forward.18}
  #allocation0 [shape = 'u32[]', space=smem, size = 0x4, offset = 0x4, fixed_abs, tag = 'smem constant byte address 0x4 - core index']
  #allocation1 [shape = 'u32[72,128]{1,0:T(1,128)}', space=vmem, size = 0x9000, scoped, tag = 'internal scratch']
  %s0 = inlined_call_operand.vmem [shape: bf16[2,9,2,9,2,16], index: 0, kind: input, shape index: {}]
  %s1 = inlined_call_operand.vmem [shape: bf16[2,8,8,1,16], index: 1, kind: output, shape index: {}]
  %s2 = sld [smem:[#allocation0]]
  $region14: #{param_lenet_forward.18} parent=0
    _
  %s4 = ssub.s32 1, %s2
  %s5 = scalar_select 0, %s4, %s2
  // Predicated region
  $region2: #{param_lenet_forward.18} parent=0 // pred_check
    _
  $region3: #{param_lenet_forward.18} parent=0 // pred_check_branch
    %7 = sbr.rel (0) target = $region5
  $region4: #{param_lenet_forward.18} parent=0 // pred_region
    _
  $region5: #{param_lenet_forward.18} parent=0 // pred_fallthru
    _
  %v8 = vld [vmem:[%s0] sm:$0x1]
  %v9 = vld [vmem:[%s0 + $0x1] sm:$0x1]
  %v10 = vld [vmem:[%s0 + $0x2] sm:$0x1]
  %v11 = vld [vmem:[%s0 + $0x3] sm:$0x1]
  %v12 = vld [vmem:[%s0 + $0x4] sm:$0x1]
  %v13 = vld [vmem:[%s0 + $0x5] sm:$0x1]
  %v14 = vld [vmem:[%s0 + $0x6] sm:$0x1]
  %v15 = vld [vmem:[%s0 + $0x7] sm:$0x1]
  %v16 = vld [vmem:[%s0 + $0x8] sm:$0x1]
  %v17 = vld [vmem:[%s0 + $0x9] sm:$0x1]
  %v18 = vld [vmem:[%s0 + $0xa] sm:$0x1]
  %v19 = vld [vmem:[%s0 + $0xb] sm:$0x1]
  %v20 = vld [vmem:[%s0 + $0xc] sm:$0x1]
  %v21 = vld [vmem:[%s0 + $0xd] sm:$0x1]
  %v22 = vld [vmem:[%s0 + $0xe] sm:$0x1]
  %v23 = vld [vmem:[%s0 + $0xf] sm:$0x1]
  %v24 = vld [vmem:[%s0 + $0x10] sm:$0x1]
  %v25 = vld [vmem:[%s0 + $0x11] sm:$0x1]
  %v26 = vld [vmem:[%s0 + $0x12] sm:$0x1]
  %v27 = vld [vmem:[%s0 + $0x13] sm:$0x1]
  %v28 = vld [vmem:[%s0 + $0x14] sm:$0x1]
  %v29 = vld [vmem:[%s0 + $0x15] sm:$0x1]
  %v30 = vld [vmem:[%s0 + $0x16] sm:$0x1]
  %v31 = vld [vmem:[%s0 + $0x17] sm:$0x1]
  %v32 = vld [vmem:[%s0 + $0x18] sm:$0x1]
  %v33 = vld [vmem:[%s0 + $0x19] sm:$0x1]
  %v34 = vld [vmem:[%s0 + $0x1a] sm:$0x1]
  %v35 = vld [vmem:[%s0 + $0x1b] sm:$0x1]
  %v36 = vld [vmem:[%s0 + $0x1c] sm:$0x1]
  %v37 = vld [vmem:[%s0 + $0x1d] sm:$0x1]
  %v38 = vld [vmem:[%s0 + $0x1e] sm:$0x1]
  %v39 = vld [vmem:[%s0 + $0x1f] sm:$0x1]
  %v40 = vld [vmem:[%s0 + $0x20] sm:$0x1]
  %v41 = vld [vmem:[%s0 + $0x21] sm:$0x1]
  %v42 = vld [vmem:[%s0 + $0x22] sm:$0x1]
  %v43 = vld [vmem:[%s0 + $0x23] sm:$0x1]
  %v44 = vld [vmem:[%s0 + $0x24] sm:$0x1]
  %v45 = vld [vmem:[%s0 + $0x25] sm:$0x1]
  %v46 = vld [vmem:[%s0 + $0x26] sm:$0x1]
  %v47 = vld [vmem:[%s0 + $0x27] sm:$0x1]
  %v48 = vld [vmem:[%s0 + $0x28] sm:$0x1]
  %v49 = vld [vmem:[%s0 + $0x29] sm:$0x1]
  %v50 = vld [vmem:[%s0 + $0x2a] sm:$0x1]
  %v51 = vld [vmem:[%s0 + $0x2b] sm:$0x1]
  %v52 = vld [vmem:[%s0 + $0x2c] sm:$0x1]
  %v53 = vld [vmem:[%s0 + $0x2d] sm:$0x1]
  %v54 = vld [vmem:[%s0 + $0x2e] sm:$0x1]
  %v55 = vld [vmem:[%s0 + $0x2f] sm:$0x1]
  %v56 = vld [vmem:[%s0 + $0x30] sm:$0x1]
  %v57 = vld [vmem:[%s0 + $0x31] sm:$0x1]
  %v58 = vld [vmem:[%s0 + $0x32] sm:$0x1]
  %v59 = vld [vmem:[%s0 + $0x33] sm:$0x1]
  %v60 = vld [vmem:[%s0 + $0x34] sm:$0x1]
  %v61 = vld [vmem:[%s0 + $0x35] sm:$0x1]
  %v62 = vld [vmem:[%s0 + $0x36] sm:$0x1]
  %v63 = vld [vmem:[%s0 + $0x37] sm:$0x1]
  %v64 = vld [vmem:[%s0 + $0x38] sm:$0x1]
  %v65 = vld [vmem:[%s0 + $0x39] sm:$0x1]
  %v66 = vld [vmem:[%s0 + $0x3a] sm:$0x1]
  %v67 = vld [vmem:[%s0 + $0x3b] sm:$0x1]
  %v68 = vld [vmem:[%s0 + $0x3c] sm:$0x1]
  %v69 = vld [vmem:[%s0 + $0x3d] sm:$0x1]
  %v70 = vld [vmem:[%s0 + $0x3e] sm:$0x1]
  %v71 = vld [vmem:[%s0 + $0x3f] sm:$0x1]
  %v72 = vld [vmem:[%s0 + $0x40] sm:$0x1]
  %v73 = vld [vmem:[%s0 + $0x41] sm:$0x1]
  %v74 = vld [vmem:[%s0 + $0x42] sm:$0x1]
  %v75 = vld [vmem:[%s0 + $0x43] sm:$0x1]
  %v76 = vld [vmem:[%s0 + $0x44] sm:$0x1]
  %v77 = vld [vmem:[%s0 + $0x45] sm:$0x1]
  %v78 = vld [vmem:[%s0 + $0x46] sm:$0x1]
  %v79 = vld [vmem:[%s0 + $0x47] sm:$0x1]
  %v80 = vld [vmem:[%s0 + $0x48] sm:$0x1]
  %v81 = vld [vmem:[%s0 + $0x49] sm:$0x1]
  %v82 = vld [vmem:[%s0 + $0x4a] sm:$0x1]
  %v83 = vld [vmem:[%s0 + $0x4b] sm:$0x1]
  %v84 = vld [vmem:[%s0 + $0x4c] sm:$0x1]
  %v85 = vld [vmem:[%s0 + $0x4d] sm:$0x1]
  %v86 = vld [vmem:[%s0 + $0x4e] sm:$0x1]
  %v87 = vld [vmem:[%s0 + $0x4f] sm:$0x1]
  %v88 = vld [vmem:[%s0 + $0x50] sm:$0x1]
  %v89 = vld [vmem:[%s0 + $0x51] sm:$0x1]
  %v90 = vld [vmem:[%s0 + $0x52] sm:$0x1]
  %v91 = vld [vmem:[%s0 + $0x53] sm:$0x1]
  %v92 = vld [vmem:[%s0 + $0x54] sm:$0x1]
  %v93 = vld [vmem:[%s0 + $0x55] sm:$0x1]
  %v94 = vld [vmem:[%s0 + $0x56] sm:$0x1]
  %v95 = vld [vmem:[%s0 + $0x57] sm:$0x1]
  %v96 = vld [vmem:[%s0 + $0x58] sm:$0x1]
  %v97 = vld [vmem:[%s0 + $0x59] sm:$0x1]
  %v98 = vld [vmem:[%s0 + $0x5a] sm:$0x1]
  %v99 = vld [vmem:[%s0 + $0x5b] sm:$0x1]
  %v100 = vld [vmem:[%s0 + $0x5c] sm:$0x1]
  %v101 = vld [vmem:[%s0 + $0x5d] sm:$0x1]
  %v102 = vld [vmem:[%s0 + $0x5e] sm:$0x1]
  %v103 = vld [vmem:[%s0 + $0x5f] sm:$0x1]
  %v104 = vld [vmem:[%s0 + $0x60] sm:$0x1]
  %v105 = vld [vmem:[%s0 + $0x61] sm:$0x1]
  %v106 = vld [vmem:[%s0 + $0x62] sm:$0x1]
  %v107 = vld [vmem:[%s0 + $0x63] sm:$0x1]
  %v108 = vld [vmem:[%s0 + $0x64] sm:$0x1]
  %v109 = vld [vmem:[%s0 + $0x65] sm:$0x1]
  %v110 = vld [vmem:[%s0 + $0x66] sm:$0x1]
  %v111 = vld [vmem:[%s0 + $0x67] sm:$0x1]
  %v112 = vld [vmem:[%s0 + $0x68] sm:$0x1]
  %v113 = vld [vmem:[%s0 + $0x69] sm:$0x1]
  %v114 = vld [vmem:[%s0 + $0x6a] sm:$0x1]
  %v115 = vld [vmem:[%s0 + $0x6b] sm:$0x1]
  %v116 = vld [vmem:[%s0 + $0x6c] sm:$0x1]
  %v117 = vld [vmem:[%s0 + $0x6d] sm:$0x1]
  %v118 = vld [vmem:[%s0 + $0x6e] sm:$0x1]
  %v119 = vld [vmem:[%s0 + $0x6f] sm:$0x1]
  %v120 = vld [vmem:[%s0 + $0x70] sm:$0x1]
  %v121 = vld [vmem:[%s0 + $0x71] sm:$0x1]
  %v122 = vld [vmem:[%s0 + $0x72] sm:$0x1]
  %v123 = vld [vmem:[%s0 + $0x73] sm:$0x1]
  %v124 = vld [vmem:[%s0 + $0x74] sm:$0x1]
  %v125 = vld [vmem:[%s0 + $0x75] sm:$0x1]
  %v126 = vld [vmem:[%s0 + $0x76] sm:$0x1]
  %v127 = vld [vmem:[%s0 + $0x77] sm:$0x1]
  %v128 = vld [vmem:[%s0 + $0x78] sm:$0x1]
  %v129 = vld [vmem:[%s0 + $0x79] sm:$0x1]
  %v130 = vld [vmem:[%s0 + $0x7a] sm:$0x1]
  %v131 = vld [vmem:[%s0 + $0x7b] sm:$0x1]
  %v132 = vld [vmem:[%s0 + $0x7c] sm:$0x1]
  %v133 = vld [vmem:[%s0 + $0x7d] sm:$0x1]
  %v134 = vld [vmem:[%s0 + $0x7e] sm:$0x1]
  %v135 = vld [vmem:[%s0 + $0x7f] sm:$0x1]
  %v136 = vld [vmem:[%s0 + $0x80] sm:$0x1]
  %v137 = vld [vmem:[%s0 + $0x81] sm:$0x1]
  %v138 = vld [vmem:[%s0 + $0x82] sm:$0x1]
  %v139 = vld [vmem:[%s0 + $0x83] sm:$0x1]
  %v140 = vld [vmem:[%s0 + $0x84] sm:$0x1]
  %v141 = vld [vmem:[%s0 + $0x85] sm:$0x1]
  %v142 = vld [vmem:[%s0 + $0x86] sm:$0x1]
  %v143 = vld [vmem:[%s0 + $0x87] sm:$0x1]
  %v144 = vld [vmem:[%s0 + $0x88] sm:$0x1]
  %v145 = vld [vmem:[%s0 + $0x89] sm:$0x1]
  %v146 = vld [vmem:[%s0 + $0x8a] sm:$0x1]
  %v147 = vld [vmem:[%s0 + $0x8b] sm:$0x1]
  %v148 = vld [vmem:[%s0 + $0x8c] sm:$0x1]
  %v149 = vld [vmem:[%s0 + $0x8d] sm:$0x1]
  %v150 = vld [vmem:[%s0 + $0x8e] sm:$0x1]
  %v151 = vld [vmem:[%s0 + $0x8f] sm:$0x1]
  %v152 = vld [vmem:[%s0 + $0x90] sm:$0x1]
  %v153 = vld [vmem:[%s0 + $0x91] sm:$0x1]
  %v154 = vld [vmem:[%s0 + $0x92] sm:$0x1]
  %v155 = vld [vmem:[%s0 + $0x93] sm:$0x1]
  %v156 = vld [vmem:[%s0 + $0x94] sm:$0x1]
  %v157 = vld [vmem:[%s0 + $0x95] sm:$0x1]
  %v158 = vld [vmem:[%s0 + $0x96] sm:$0x1]
  %v159 = vld [vmem:[%s0 + $0x97] sm:$0x1]
  %v160 = vld [vmem:[%s0 + $0x98] sm:$0x1]
  %v161 = vld [vmem:[%s0 + $0xa2] sm:$0x1]
  %v162 = vld [vmem:[%s0 + $0xa3] sm:$0x1]
  %v163 = vld [vmem:[%s0 + $0xa4] sm:$0x1]
  %v164 = vld [vmem:[%s0 + $0xa5] sm:$0x1]
  %v165 = vld [vmem:[%s0 + $0xa6] sm:$0x1]
  %v166 = vld [vmem:[%s0 + $0xa7] sm:$0x1]
  %v167 = vld [vmem:[%s0 + $0xa8] sm:$0x1]
  %v168 = vld [vmem:[%s0 + $0xa9] sm:$0x1]
  %v169 = vld [vmem:[%s0 + $0xaa] sm:$0x1]
  %v170 = vld [vmem:[%s0 + $0xab] sm:$0x1]
  %v171 = vld [vmem:[%s0 + $0xac] sm:$0x1]
  %v172 = vld [vmem:[%s0 + $0xad] sm:$0x1]
  %v173 = vld [vmem:[%s0 + $0xae] sm:$0x1]
  %v174 = vld [vmem:[%s0 + $0xaf] sm:$0x1]
  %v175 = vld [vmem:[%s0 + $0xb0] sm:$0x1]
  %v176 = vld [vmem:[%s0 + $0xb1] sm:$0x1]
  %v177 = vld [vmem:[%s0 + $0xb2] sm:$0x1]
  %v178 = vld [vmem:[%s0 + $0xb3] sm:$0x1]
  %v179 = vld [vmem:[%s0 + $0xb4] sm:$0x1]
  %v180 = vld [vmem:[%s0 + $0xb5] sm:$0x1]
  %v181 = vld [vmem:[%s0 + $0xb6] sm:$0x1]
  %v182 = vld [vmem:[%s0 + $0xb7] sm:$0x1]
  %v183 = vld [vmem:[%s0 + $0xb8] sm:$0x1]
  %v184 = vld [vmem:[%s0 + $0xb9] sm:$0x1]
  %v185 = vld [vmem:[%s0 + $0xba] sm:$0x1]
  %v186 = vld [vmem:[%s0 + $0xbb] sm:$0x1]
  %v187 = vld [vmem:[%s0 + $0xbc] sm:$0x1]
  %v188 = vld [vmem:[%s0 + $0xbd] sm:$0x1]
  %v189 = vld [vmem:[%s0 + $0xbe] sm:$0x1]
  %v190 = vld [vmem:[%s0 + $0xbf] sm:$0x1]
  %v191 = vld [vmem:[%s0 + $0xc0] sm:$0x1]
  %v192 = vld [vmem:[%s0 + $0xc1] sm:$0x1]
  %v193 = vld [vmem:[%s0 + $0xc2] sm:$0x1]
  %v194 = vld [vmem:[%s0 + $0xc3] sm:$0x1]
  %v195 = vld [vmem:[%s0 + $0xc4] sm:$0x1]
  %v196 = vld [vmem:[%s0 + $0xc5] sm:$0x1]
  %v197 = vld [vmem:[%s0 + $0xc6] sm:$0x1]
  %v198 = vld [vmem:[%s0 + $0xc7] sm:$0x1]
  %v199 = vld [vmem:[%s0 + $0xc8] sm:$0x1]
  %v200 = vld [vmem:[%s0 + $0xc9] sm:$0x1]
  %v201 = vld [vmem:[%s0 + $0xca] sm:$0x1]
  %v202 = vld [vmem:[%s0 + $0xcb] sm:$0x1]
  %v203 = vld [vmem:[%s0 + $0xcc] sm:$0x1]
  %v204 = vld [vmem:[%s0 + $0xcd] sm:$0x1]
  %v205 = vld [vmem:[%s0 + $0xce] sm:$0x1]
  %v206 = vld [vmem:[%s0 + $0xcf] sm:$0x1]
  %v207 = vld [vmem:[%s0 + $0xd0] sm:$0x1]
  %v208 = vld [vmem:[%s0 + $0xd1] sm:$0x1]
  %v209 = vld [vmem:[%s0 + $0xd2] sm:$0x1]
  %v210 = vld [vmem:[%s0 + $0xd3] sm:$0x1]
  %v211 = vld [vmem:[%s0 + $0xd4] sm:$0x1]
  %v212 = vld [vmem:[%s0 + $0xd5] sm:$0x1]
  %v213 = vld [vmem:[%s0 + $0xd6] sm:$0x1]
  %v214 = vld [vmem:[%s0 + $0xd7] sm:$0x1]
  %v215 = vld [vmem:[%s0 + $0xd8] sm:$0x1]
  %v216 = vld [vmem:[%s0 + $0xd9] sm:$0x1]
  %v217 = vld [vmem:[%s0 + $0xda] sm:$0x1]
  %v218 = vld [vmem:[%s0 + $0xdb] sm:$0x1]
  %v219 = vld [vmem:[%s0 + $0xdc] sm:$0x1]
  %v220 = vld [vmem:[%s0 + $0xdd] sm:$0x1]
  %v221 = vld [vmem:[%s0 + $0xde] sm:$0x1]
  %v222 = vld [vmem:[%s0 + $0xdf] sm:$0x1]
  %v223 = vld [vmem:[%s0 + $0xe0] sm:$0x1]
  %v224 = vld [vmem:[%s0 + $0xe1] sm:$0x1]
  %v225 = vld [vmem:[%s0 + $0xe2] sm:$0x1]
  %v226 = vld [vmem:[%s0 + $0xe3] sm:$0x1]
  %v227 = vld [vmem:[%s0 + $0xe4] sm:$0x1]
  %v228 = vld [vmem:[%s0 + $0xe5] sm:$0x1]
  %v229 = vld [vmem:[%s0 + $0xe6] sm:$0x1]
  %v230 = vld [vmem:[%s0 + $0xe7] sm:$0x1]
  %v231 = vld [vmem:[%s0 + $0xe8] sm:$0x1]
  %v232 = vld [vmem:[%s0 + $0xe9] sm:$0x1]
  %v233 = vld [vmem:[%s0 + $0xea] sm:$0x1]
  %v234 = vld [vmem:[%s0 + $0xeb] sm:$0x1]
  %v235 = vld [vmem:[%s0 + $0xec] sm:$0x1]
  %v236 = vld [vmem:[%s0 + $0xed] sm:$0x1]
  %v237 = vld [vmem:[%s0 + $0xee] sm:$0x1]
  %v238 = vld [vmem:[%s0 + $0xef] sm:$0x1]
  %v239 = vld [vmem:[%s0 + $0xf0] sm:$0x1]
  %v240 = vld [vmem:[%s0 + $0xf1] sm:$0x1]
  %v241 = vld [vmem:[%s0 + $0xf2] sm:$0x1]
  %v242 = vld [vmem:[%s0 + $0xf3] sm:$0x1]
  %v243 = vld [vmem:[%s0 + $0xf4] sm:$0x1]
  %v244 = vld [vmem:[%s0 + $0xf5] sm:$0x1]
  %v245 = vld [vmem:[%s0 + $0xf6] sm:$0x1]
  %v246 = vld [vmem:[%s0 + $0xf7] sm:$0x1]
  %v247 = vld [vmem:[%s0 + $0xf8] sm:$0x1]
  %v248 = vld [vmem:[%s0 + $0xf9] sm:$0x1]
  %v249 = vld [vmem:[%s0 + $0xfa] sm:$0x1]
  %v250 = vld [vmem:[%s0 + $0xfb] sm:$0x1]
  %v251 = vld [vmem:[%s0 + $0xfc] sm:$0x1]
  %v252 = vld [vmem:[%s0 + $0xfd] sm:$0x1]
  %v253 = vld [vmem:[%s0 + $0xfe] sm:$0x1]
  %v254 = vld [vmem:[%s0 + $0xff] sm:$0x1]
  %v255 = vld [vmem:[%s0 + $0x100] sm:$0x1]
  %v256 = vld [vmem:[%s0 + $0x101] sm:$0x1]
  %v257 = vld [vmem:[%s0 + $0x102] sm:$0x1]
  %v258 = vld [vmem:[%s0 + $0x103] sm:$0x1]
  %v259 = vld [vmem:[%s0 + $0x104] sm:$0x1]
  %v260 = vld [vmem:[%s0 + $0x105] sm:$0x1]
  %v261 = vld [vmem:[%s0 + $0x106] sm:$0x1]
  %v262 = vld [vmem:[%s0 + $0x107] sm:$0x1]
  %v263 = vld [vmem:[%s0 + $0x108] sm:$0x1]
  %v264 = vld [vmem:[%s0 + $0x109] sm:$0x1]
  %v265 = vld [vmem:[%s0 + $0x10a] sm:$0x1]
  %v266 = vld [vmem:[%s0 + $0x10b] sm:$0x1]
  %v267 = vld [vmem:[%s0 + $0x10c] sm:$0x1]
  %v268 = vld [vmem:[%s0 + $0x10d] sm:$0x1]
  %v269 = vld [vmem:[%s0 + $0x10e] sm:$0x1]
  %v270 = vld [vmem:[%s0 + $0x10f] sm:$0x1]
  %v271 = vld [vmem:[%s0 + $0x110] sm:$0x1]
  %v272 = vld [vmem:[%s0 + $0x111] sm:$0x1]
  %v273 = vld [vmem:[%s0 + $0x112] sm:$0x1]
  %v274 = vld [vmem:[%s0 + $0x113] sm:$0x1]
  %v275 = vld [vmem:[%s0 + $0x114] sm:$0x1]
  %v276 = vld [vmem:[%s0 + $0x115] sm:$0x1]
  %v277 = vld [vmem:[%s0 + $0x116] sm:$0x1]
  %v278 = vld [vmem:[%s0 + $0x117] sm:$0x1]
  %v279 = vld [vmem:[%s0 + $0x118] sm:$0x1]
  %v280 = vld [vmem:[%s0 + $0x119] sm:$0x1]
  %v281 = vld [vmem:[%s0 + $0x11a] sm:$0x1]
  %v282 = vld [vmem:[%s0 + $0x11b] sm:$0x1]
  %v283 = vld [vmem:[%s0 + $0x11c] sm:$0x1]
  %v284 = vld [vmem:[%s0 + $0x11d] sm:$0x1]
  %v285 = vld [vmem:[%s0 + $0x11e] sm:$0x1]
  %v286 = vld [vmem:[%s0 + $0x11f] sm:$0x1]
  %v287 = vld [vmem:[%s0 + $0x120] sm:$0x1]
  %v288 = vld [vmem:[%s0 + $0x121] sm:$0x1]
  %v289 = vld [vmem:[%s0 + $0x122] sm:$0x1]
  %v290 = vld [vmem:[%s0 + $0x123] sm:$0x1]
  %v291 = vld [vmem:[%s0 + $0x124] sm:$0x1]
  %v292 = vld [vmem:[%s0 + $0x125] sm:$0x1]
  %v293 = vld [vmem:[%s0 + $0x126] sm:$0x1]
  %v294 = vld [vmem:[%s0 + $0x127] sm:$0x1]
  %v295 = vld [vmem:[%s0 + $0x128] sm:$0x1]
  %v296 = vld [vmem:[%s0 + $0x129] sm:$0x1]
  %v297 = vld [vmem:[%s0 + $0x12a] sm:$0x1]
  %v298 = vld [vmem:[%s0 + $0x12b] sm:$0x1]
  %v299 = vld [vmem:[%s0 + $0x12c] sm:$0x1]
  %v300 = vld [vmem:[%s0 + $0x12d] sm:$0x1]
  %v301 = vld [vmem:[%s0 + $0x12e] sm:$0x1]
  %v302 = vld [vmem:[%s0 + $0x12f] sm:$0x1]
  %v303 = vld [vmem:[%s0 + $0x130] sm:$0x1]
  %v304 = vld [vmem:[%s0 + $0x131] sm:$0x1]
  %v305 = vld [vmem:[%s0 + $0x132] sm:$0x1]
  %v306 = vld [vmem:[%s0 + $0x133] sm:$0x1]
  %v307 = vld [vmem:[%s0 + $0x134] sm:$0x1]
  %v308 = vld [vmem:[%s0 + $0x135] sm:$0x1]
  %v309 = vld [vmem:[%s0 + $0x136] sm:$0x1]
  %v310 = vld [vmem:[%s0 + $0x137] sm:$0x1]
  %v311 = vld [vmem:[%s0 + $0x138] sm:$0x1]
  %v312 = vld [vmem:[%s0 + $0x139] sm:$0x1]
  %v313 = vld [vmem:[%s0 + $0x13a] sm:$0x1]
  %v314 = vunpack.c.l.bf16 %v8
  %v315 = vunpack.c.l.bf16 %v9
  %v316 = vunpack.c.l.bf16 %v10
  %v317 = vunpack.c.l.bf16 %v11
  %v318 = vunpack.c.l.bf16 %v12
  %v319 = vunpack.c.l.bf16 %v13
  %v320 = vunpack.c.l.bf16 %v14
  %v321 = vunpack.c.l.bf16 %v15
  %v322 = vunpack.c.l.bf16 %v16
  %v323 = vunpack.c.l.bf16 %v26
  %v324 = vunpack.c.l.bf16 %v27
  %v325 = vunpack.c.l.bf16 %v28
  %v326 = vunpack.c.l.bf16 %v29
  %v327 = vunpack.c.l.bf16 %v30
  %v328 = vunpack.c.l.bf16 %v31
  %v329 = vunpack.c.l.bf16 %v32
  %v330 = vunpack.c.l.bf16 %v33
  %v331 = vunpack.c.l.bf16 %v34
  %v332 = vunpack.c.l.bf16 %v44
  %v333 = vunpack.c.l.bf16 %v45
  %v334 = vunpack.c.l.bf16 %v46
  %v335 = vunpack.c.l.bf16 %v47
  %v336 = vunpack.c.l.bf16 %v48
  %v337 = vunpack.c.l.bf16 %v49
  %v338 = vunpack.c.l.bf16 %v50
  %v339 = vunpack.c.l.bf16 %v51
  %v340 = vunpack.c.l.bf16 %v52
  %v341 = vunpack.c.l.bf16 %v62
  %v342 = vunpack.c.l.bf16 %v63
  %v343 = vunpack.c.l.bf16 %v64
  %v344 = vunpack.c.l.bf16 %v65
  %v345 = vunpack.c.l.bf16 %v66
  %v346 = vunpack.c.l.bf16 %v67
  %v347 = vunpack.c.l.bf16 %v68
  %v348 = vunpack.c.l.bf16 %v69
  %v349 = vunpack.c.l.bf16 %v70
  %v350 = vunpack.c.l.bf16 %v80
  %v351 = vunpack.c.l.bf16 %v81
  %v352 = vunpack.c.l.bf16 %v82
  %v353 = vunpack.c.l.bf16 %v83
  %v354 = vunpack.c.l.bf16 %v84
  %v355 = vunpack.c.l.bf16 %v85
  %v356 = vunpack.c.l.bf16 %v86
  %v357 = vunpack.c.l.bf16 %v87
  %v358 = vunpack.c.l.bf16 %v88
  %v359 = vunpack.c.l.bf16 %v98
  %v360 = vunpack.c.l.bf16 %v99
  %v361 = vunpack.c.l.bf16 %v100
  %v362 = vunpack.c.l.bf16 %v101
  %v363 = vunpack.c.l.bf16 %v102
  %v364 = vunpack.c.l.bf16 %v103
  %v365 = vunpack.c.l.bf16 %v104
  %v366 = vunpack.c.l.bf16 %v105
  %v367 = vunpack.c.l.bf16 %v106
  %v368 = vunpack.c.l.bf16 %v116
  %v369 = vunpack.c.l.bf16 %v117
  %v370 = vunpack.c.l.bf16 %v118
  %v371 = vunpack.c.l.bf16 %v119
  %v372 = vunpack.c.l.bf16 %v120
  %v373 = vunpack.c.l.bf16 %v121
  %v374 = vunpack.c.l.bf16 %v122
  %v375 = vunpack.c.l.bf16 %v123
  %v376 = vunpack.c.l.bf16 %v124
  %v377 = vunpack.c.l.bf16 %v134
  %v378 = vunpack.c.l.bf16 %v135
  %v379 = vunpack.c.l.bf16 %v136
  %v380 = vunpack.c.l.bf16 %v137
  %v381 = vunpack.c.l.bf16 %v138
  %v382 = vunpack.c.l.bf16 %v139
  %v383 = vunpack.c.l.bf16 %v140
  %v384 = vunpack.c.l.bf16 %v141
  %v385 = vunpack.c.l.bf16 %v142
  %v386 = vunpack.c.l.bf16 %v161
  %v387 = vunpack.c.l.bf16 %v162
  %v388 = vunpack.c.l.bf16 %v163
  %v389 = vunpack.c.l.bf16 %v164
  %v390 = vunpack.c.l.bf16 %v165
  %v391 = vunpack.c.l.bf16 %v166
  %v392 = vunpack.c.l.bf16 %v167
  %v393 = vunpack.c.l.bf16 %v168
  %v394 = vunpack.c.l.bf16 %v169
  %v395 = vunpack.c.l.bf16 %v179
  %v396 = vunpack.c.l.bf16 %v180
  %v397 = vunpack.c.l.bf16 %v181
  %v398 = vunpack.c.l.bf16 %v182
  %v399 = vunpack.c.l.bf16 %v183
  %v400 = vunpack.c.l.bf16 %v184
  %v401 = vunpack.c.l.bf16 %v185
  %v402 = vunpack.c.l.bf16 %v186
  %v403 = vunpack.c.l.bf16 %v187
  %v404 = vunpack.c.l.bf16 %v197
  %v405 = vunpack.c.l.bf16 %v198
  %v406 = vunpack.c.l.bf16 %v199
  %v407 = vunpack.c.l.bf16 %v200
  %v408 = vunpack.c.l.bf16 %v201
  %v409 = vunpack.c.l.bf16 %v202
  %v410 = vunpack.c.l.bf16 %v203
  %v411 = vunpack.c.l.bf16 %v204
  %v412 = vunpack.c.l.bf16 %v205
  %v413 = vunpack.c.l.bf16 %v215
  %v414 = vunpack.c.l.bf16 %v216
  %v415 = vunpack.c.l.bf16 %v217
  %v416 = vunpack.c.l.bf16 %v218
  %v417 = vunpack.c.l.bf16 %v219
  %v418 = vunpack.c.l.bf16 %v220
  %v419 = vunpack.c.l.bf16 %v221
  %v420 = vunpack.c.l.bf16 %v222
  %v421 = vunpack.c.l.bf16 %v223
  %v422 = vunpack.c.l.bf16 %v233
  %v423 = vunpack.c.l.bf16 %v234
  %v424 = vunpack.c.l.bf16 %v235
  %v425 = vunpack.c.l.bf16 %v236
  %v426 = vunpack.c.l.bf16 %v237
  %v427 = vunpack.c.l.bf16 %v238
  %v428 = vunpack.c.l.bf16 %v239
  %v429 = vunpack.c.l.bf16 %v240
  %v430 = vunpack.c.l.bf16 %v241
  %v431 = vunpack.c.l.bf16 %v251
  %v432 = vunpack.c.l.bf16 %v252
  %v433 = vunpack.c.l.bf16 %v253
  %v434 = vunpack.c.l.bf16 %v254
  %v435 = vunpack.c.l.bf16 %v255
  %v436 = vunpack.c.l.bf16 %v256
  %v437 = vunpack.c.l.bf16 %v257
  %v438 = vunpack.c.l.bf16 %v258
  %v439 = vunpack.c.l.bf16 %v259
  %v440 = vunpack.c.l.bf16 %v269
  %v441 = vunpack.c.l.bf16 %v270
  %v442 = vunpack.c.l.bf16 %v271
  %v443 = vunpack.c.l.bf16 %v272
  %v444 = vunpack.c.l.bf16 %v273
  %v445 = vunpack.c.l.bf16 %v274
  %v446 = vunpack.c.l.bf16 %v275
  %v447 = vunpack.c.l.bf16 %v276
  %v448 = vunpack.c.l.bf16 %v277
  %v449 = vunpack.c.l.bf16 %v287
  %v450 = vunpack.c.l.bf16 %v288
  %v451 = vunpack.c.l.bf16 %v289
  %v452 = vunpack.c.l.bf16 %v290
  %v453 = vunpack.c.l.bf16 %v291
  %v454 = vunpack.c.l.bf16 %v292
  %v455 = vunpack.c.l.bf16 %v293
  %v456 = vunpack.c.l.bf16 %v294
  %v457 = vunpack.c.l.bf16 %v295
  %v458 = vunpack.c.l.bf16 %v17
  %v459 = vunpack.c.l.bf16 %v18
  %v460 = vunpack.c.l.bf16 %v19
  %v461 = vunpack.c.l.bf16 %v20
  %v462 = vunpack.c.l.bf16 %v21
  %v463 = vunpack.c.l.bf16 %v22
  %v464 = vunpack.c.l.bf16 %v23
  %v465 = vunpack.c.l.bf16 %v24
  %v466 = vunpack.c.l.bf16 %v25
  %v467 = vunpack.c.l.bf16 %v35
  %v468 = vunpack.c.l.bf16 %v36
  %v469 = vunpack.c.l.bf16 %v37
  %v470 = vunpack.c.l.bf16 %v38
  %v471 = vunpack.c.l.bf16 %v39
  %v472 = vunpack.c.l.bf16 %v40
  %v473 = vunpack.c.l.bf16 %v41
  %v474 = vunpack.c.l.bf16 %v42
  %v475 = vunpack.c.l.bf16 %v43
  %v476 = vunpack.c.l.bf16 %v53
  %v477 = vunpack.c.l.bf16 %v54
  %v478 = vunpack.c.l.bf16 %v55
  %v479 = vunpack.c.l.bf16 %v56
  %v480 = vunpack.c.l.bf16 %v57
  %v481 = vunpack.c.l.bf16 %v58
  %v482 = vunpack.c.l.bf16 %v59
  %v483 = vunpack.c.l.bf16 %v60
  %v484 = vunpack.c.l.bf16 %v61
  %v485 = vunpack.c.l.bf16 %v71
  %v486 = vunpack.c.l.bf16 %v72
  %v487 = vunpack.c.l.bf16 %v73
  %v488 = vunpack.c.l.bf16 %v74
  %v489 = vunpack.c.l.bf16 %v75
  %v490 = vunpack.c.l.bf16 %v76
  %v491 = vunpack.c.l.bf16 %v77
  %v492 = vunpack.c.l.bf16 %v78
  %v493 = vunpack.c.l.bf16 %v79
  %v494 = vunpack.c.l.bf16 %v89
  %v495 = vunpack.c.l.bf16 %v90
  %v496 = vunpack.c.l.bf16 %v91
  %v497 = vunpack.c.l.bf16 %v92
  %v498 = vunpack.c.l.bf16 %v93
  %v499 = vunpack.c.l.bf16 %v94
  %v500 = vunpack.c.l.bf16 %v95
  %v501 = vunpack.c.l.bf16 %v96
  %v502 = vunpack.c.l.bf16 %v97
  %v503 = vunpack.c.l.bf16 %v107
  %v504 = vunpack.c.l.bf16 %v108
  %v505 = vunpack.c.l.bf16 %v109
  %v506 = vunpack.c.l.bf16 %v110
  %v507 = vunpack.c.l.bf16 %v111
  %v508 = vunpack.c.l.bf16 %v112
  %v509 = vunpack.c.l.bf16 %v113
  %v510 = vunpack.c.l.bf16 %v114
  %v511 = vunpack.c.l.bf16 %v115
  %v512 = vunpack.c.l.bf16 %v125
  %v513 = vunpack.c.l.bf16 %v126
  %v514 = vunpack.c.l.bf16 %v127
  %v515 = vunpack.c.l.bf16 %v128
  %v516 = vunpack.c.l.bf16 %v129
  %v517 = vunpack.c.l.bf16 %v130
  %v518 = vunpack.c.l.bf16 %v131
  %v519 = vunpack.c.l.bf16 %v132
  %v520 = vunpack.c.l.bf16 %v133
  %v521 = vunpack.c.l.bf16 %v143
  %v522 = vunpack.c.l.bf16 %v144
  %v523 = vunpack.c.l.bf16 %v145
  %v524 = vunpack.c.l.bf16 %v146
  %v525 = vunpack.c.l.bf16 %v147
  %v526 = vunpack.c.l.bf16 %v148
  %v527 = vunpack.c.l.bf16 %v149
  %v528 = vunpack.c.l.bf16 %v150
  %v529 = vunpack.c.l.bf16 %v151
  %v530 = vunpack.c.l.bf16 %v170
  %v531 = vunpack.c.l.bf16 %v171
  %v532 = vunpack.c.l.bf16 %v172
  %v533 = vunpack.c.l.bf16 %v173
  %v534 = vunpack.c.l.bf16 %v174
  %v535 = vunpack.c.l.bf16 %v175
  %v536 = vunpack.c.l.bf16 %v176
  %v537 = vunpack.c.l.bf16 %v177
  %v538 = vunpack.c.l.bf16 %v178
  %v539 = vunpack.c.l.bf16 %v188
  %v540 = vunpack.c.l.bf16 %v189
  %v541 = vunpack.c.l.bf16 %v190
  %v542 = vunpack.c.l.bf16 %v191
  %v543 = vunpack.c.l.bf16 %v192
  %v544 = vunpack.c.l.bf16 %v193
  %v545 = vunpack.c.l.bf16 %v194
  %v546 = vunpack.c.l.bf16 %v195
  %v547 = vunpack.c.l.bf16 %v196
  %v548 = vunpack.c.l.bf16 %v206
  %v549 = vunpack.c.l.bf16 %v207
  %v550 = vunpack.c.l.bf16 %v208
  %v551 = vunpack.c.l.bf16 %v209
  %v552 = vunpack.c.l.bf16 %v210
  %v553 = vunpack.c.l.bf16 %v211
  %v554 = vunpack.c.l.bf16 %v212
  %v555 = vunpack.c.l.bf16 %v213
  %v556 = vunpack.c.l.bf16 %v214
  %v557 = vunpack.c.l.bf16 %v224
  %v558 = vunpack.c.l.bf16 %v225
  %v559 = vunpack.c.l.bf16 %v226
  %v560 = vunpack.c.l.bf16 %v227
  %v561 = vunpack.c.l.bf16 %v228
  %v562 = vunpack.c.l.bf16 %v229
  %v563 = vunpack.c.l.bf16 %v230
  %v564 = vunpack.c.l.bf16 %v231
  %v565 = vunpack.c.l.bf16 %v232
  %v566 = vunpack.c.l.bf16 %v242
  %v567 = vunpack.c.l.bf16 %v243
  %v568 = vunpack.c.l.bf16 %v244
  %v569 = vunpack.c.l.bf16 %v245
  %v570 = vunpack.c.l.bf16 %v246
  %v571 = vunpack.c.l.bf16 %v247
  %v572 = vunpack.c.l.bf16 %v248
  %v573 = vunpack.c.l.bf16 %v249
  %v574 = vunpack.c.l.bf16 %v250
  %v575 = vunpack.c.l.bf16 %v260
  %v576 = vunpack.c.l.bf16 %v261
  %v577 = vunpack.c.l.bf16 %v262
  %v578 = vunpack.c.l.bf16 %v263
  %v579 = vunpack.c.l.bf16 %v264
  %v580 = vunpack.c.l.bf16 %v265
  %v581 = vunpack.c.l.bf16 %v266
  %v582 = vunpack.c.l.bf16 %v267
  %v583 = vunpack.c.l.bf16 %v268
  %v584 = vunpack.c.l.bf16 %v278
  %v585 = vunpack.c.l.bf16 %v279
  %v586 = vunpack.c.l.bf16 %v280
  %v587 = vunpack.c.l.bf16 %v281
  %v588 = vunpack.c.l.bf16 %v282
  %v589 = vunpack.c.l.bf16 %v283
  %v590 = vunpack.c.l.bf16 %v284
  %v591 = vunpack.c.l.bf16 %v285
  %v592 = vunpack.c.l.bf16 %v286
  %v593 = vunpack.c.l.bf16 %v296
  %v594 = vunpack.c.l.bf16 %v297
  %v595 = vunpack.c.l.bf16 %v298
  %v596 = vunpack.c.l.bf16 %v299
  %v597 = vunpack.c.l.bf16 %v300
  %v598 = vunpack.c.l.bf16 %v301
  %v599 = vunpack.c.l.bf16 %v302
  %v600 = vunpack.c.l.bf16 %v303
  %v601 = vunpack.c.l.bf16 %v304
  %v602 = vmax.f32 %v314, %v458
  %v603 = vmax.f32 %v315, %v459
  %v604 = vmax.f32 %v316, %v460
  %v605 = vmax.f32 %v317, %v461
  %v606 = vmax.f32 %v318, %v462
  %v607 = vmax.f32 %v319, %v463
  %v608 = vmax.f32 %v320, %v464
  %v609 = vmax.f32 %v321, %v465
  %v610 = vmax.f32 %v322, %v466
  %v611 = vmax.f32 %v323, %v467
  %v612 = vmax.f32 %v324, %v468
  %v613 = vmax.f32 %v325, %v469
  %v614 = vmax.f32 %v326, %v470
  %v615 = vmax.f32 %v327, %v471
  %v616 = vmax.f32 %v328, %v472
  %v617 = vmax.f32 %v329, %v473
  %v618 = vmax.f32 %v330, %v474
  %v619 = vmax.f32 %v331, %v475
  %v620 = vmax.f32 %v332, %v476
  %v621 = vmax.f32 %v333, %v477
  %v622 = vmax.f32 %v334, %v478
  %v623 = vmax.f32 %v335, %v479
  %v624 = vmax.f32 %v336, %v480
  %v625 = vmax.f32 %v337, %v481
  %v626 = vmax.f32 %v338, %v482
  %v627 = vmax.f32 %v339, %v483
  %v628 = vmax.f32 %v340, %v484
  %v629 = vmax.f32 %v341, %v485
  %v630 = vmax.f32 %v342, %v486
  %v631 = vmax.f32 %v343, %v487
  %v632 = vmax.f32 %v344, %v488
  %v633 = vmax.f32 %v345, %v489
  %v634 = vmax.f32 %v346, %v490
  %v635 = vmax.f32 %v347, %v491
  %v636 = vmax.f32 %v348, %v492
  %v637 = vmax.f32 %v349, %v493
  %v638 = vmax.f32 %v350, %v494
  %v639 = vmax.f32 %v351, %v495
  %v640 = vmax.f32 %v352, %v496
  %v641 = vmax.f32 %v353, %v497
  %v642 = vmax.f32 %v354, %v498
  %v643 = vmax.f32 %v355, %v499
  %v644 = vmax.f32 %v356, %v500
  %v645 = vmax.f32 %v357, %v501
  %v646 = vmax.f32 %v358, %v502
  %v647 = vmax.f32 %v359, %v503
  %v648 = vmax.f32 %v360, %v504
  %v649 = vmax.f32 %v361, %v505
  %v650 = vmax.f32 %v362, %v506
  %v651 = vmax.f32 %v363, %v507
  %v652 = vmax.f32 %v364, %v508
  %v653 = vmax.f32 %v365, %v509
  %v654 = vmax.f32 %v366, %v510
  %v655 = vmax.f32 %v367, %v511
  %v656 = vmax.f32 %v368, %v512
  %v657 = vmax.f32 %v369, %v513
  %v658 = vmax.f32 %v370, %v514
  %v659 = vmax.f32 %v371, %v515
  %v660 = vmax.f32 %v372, %v516
  %v661 = vmax.f32 %v373, %v517
  %v662 = vmax.f32 %v374, %v518
  %v663 = vmax.f32 %v375, %v519
  %v664 = vmax.f32 %v376, %v520
  %v665 = vmax.f32 %v377, %v521
  %v666 = vmax.f32 %v378, %v522
  %v667 = vmax.f32 %v379, %v523
  %v668 = vmax.f32 %v380, %v524
  %v669 = vmax.f32 %v381, %v525
  %v670 = vmax.f32 %v382, %v526
  %v671 = vmax.f32 %v383, %v527
  %v672 = vmax.f32 %v384, %v528
  %v673 = vmax.f32 %v385, %v529
  %v674 = vmax.f32 %v386, %v530
  %v675 = vmax.f32 %v387, %v531
  %v676 = vmax.f32 %v388, %v532
  %v677 = vmax.f32 %v389, %v533
  %v678 = vmax.f32 %v390, %v534
  %v679 = vmax.f32 %v391, %v535
  %v680 = vmax.f32 %v392, %v536
  %v681 = vmax.f32 %v393, %v537
  %v682 = vmax.f32 %v394, %v538
  %v683 = vmax.f32 %v395, %v539
  %v684 = vmax.f32 %v396, %v540
  %v685 = vmax.f32 %v397, %v541
  %v686 = vmax.f32 %v398, %v542
  %v687 = vmax.f32 %v399, %v543
  %v688 = vmax.f32 %v400, %v544
  %v689 = vmax.f32 %v401, %v545
  %v690 = vmax.f32 %v402, %v546
  %v691 = vmax.f32 %v403, %v547
  %v692 = vmax.f32 %v404, %v548
  %v693 = vmax.f32 %v405, %v549
  %v694 = vmax.f32 %v406, %v550
  %v695 = vmax.f32 %v407, %v551
  %v696 = vmax.f32 %v408, %v552
  %v697 = vmax.f32 %v409, %v553
  %v698 = vmax.f32 %v410, %v554
  %v699 = vmax.f32 %v411, %v555
  %v700 = vmax.f32 %v412, %v556
  %v701 = vmax.f32 %v413, %v557
  %v702 = vmax.f32 %v414, %v558
  %v703 = vmax.f32 %v415, %v559
  %v704 = vmax.f32 %v416, %v560
  %v705 = vmax.f32 %v417, %v561
  %v706 = vmax.f32 %v418, %v562
  %v707 = vmax.f32 %v419, %v563
  %v708 = vmax.f32 %v420, %v564
  %v709 = vmax.f32 %v421, %v565
  %v710 = vmax.f32 %v422, %v566
  %v711 = vmax.f32 %v423, %v567
  %v712 = vmax.f32 %v424, %v568
  %v713 = vmax.f32 %v425, %v569
  %v714 = vmax.f32 %v426, %v570
  %v715 = vmax.f32 %v427, %v571
  %v716 = vmax.f32 %v428, %v572
  %v717 = vmax.f32 %v429, %v573
  %v718 = vmax.f32 %v430, %v574
  %v719 = vmax.f32 %v431, %v575
  %v720 = vmax.f32 %v432, %v576
  %v721 = vmax.f32 %v433, %v577
  %v722 = vmax.f32 %v434, %v578
  %v723 = vmax.f32 %v435, %v579
  %v724 = vmax.f32 %v436, %v580
  %v725 = vmax.f32 %v437, %v581
  %v726 = vmax.f32 %v438, %v582
  %v727 = vmax.f32 %v439, %v583
  %v728 = vmax.f32 %v440, %v584
  %v729 = vmax.f32 %v441, %v585
  %v730 = vmax.f32 %v442, %v586
  %v731 = vmax.f32 %v443, %v587
  %v732 = vmax.f32 %v444, %v588
  %v733 = vmax.f32 %v445, %v589
  %v734 = vmax.f32 %v446, %v590
  %v735 = vmax.f32 %v447, %v591
  %v736 = vmax.f32 %v448, %v592
  %v737 = vmax.f32 %v449, %v593
  %v738 = vmax.f32 %v450, %v594
  %v739 = vmax.f32 %v451, %v595
  %v740 = vmax.f32 %v452, %v596
  %v741 = vmax.f32 %v453, %v597
  %v742 = vmax.f32 %v454, %v598
  %v743 = vmax.f32 %v455, %v599
  %v744 = vmax.f32 %v456, %v600
  %v745 = vmax.f32 %v457, %v601
  %v746 = vpack.c.bf16 %v602, %v602
  %v747 = vpack.c.bf16 %v603, %v603
  %v748 = vpack.c.bf16 %v604, %v604
  %v749 = vpack.c.bf16 %v605, %v605
  %v750 = vpack.c.bf16 %v606, %v606
  %v751 = vpack.c.bf16 %v607, %v607
  %v752 = vpack.c.bf16 %v608, %v608
  %v753 = vpack.c.bf16 %v609, %v609
  %v754 = vpack.c.bf16 %v610, %v610
  %v755 = vpack.c.bf16 %v611, %v611
  %v756 = vpack.c.bf16 %v612, %v612
  %v757 = vpack.c.bf16 %v613, %v613
  %v758 = vpack.c.bf16 %v614, %v614
  %v759 = vpack.c.bf16 %v615, %v615
  %v760 = vpack.c.bf16 %v616, %v616
  %v761 = vpack.c.bf16 %v617, %v617
  %v762 = vpack.c.bf16 %v618, %v618
  %v763 = vpack.c.bf16 %v619, %v619
  %v764 = vpack.c.bf16 %v620, %v620
  %v765 = vpack.c.bf16 %v621, %v621
  %v766 = vpack.c.bf16 %v622, %v622
  %v767 = vpack.c.bf16 %v623, %v623
  %v768 = vpack.c.bf16 %v624, %v624
  %v769 = vpack.c.bf16 %v625, %v625
  %v770 = vpack.c.bf16 %v626, %v626
  %v771 = vpack.c.bf16 %v627, %v627
  %v772 = vpack.c.bf16 %v628, %v628
  %v773 = vpack.c.bf16 %v629, %v629
  %v774 = vpack.c.bf16 %v630, %v630
  %v775 = vpack.c.bf16 %v631, %v631
  %v776 = vpack.c.bf16 %v632, %v632
  %v777 = vpack.c.bf16 %v633, %v633
  %v778 = vpack.c.bf16 %v634, %v634
  %v779 = vpack.c.bf16 %v635, %v635
  %v780 = vpack.c.bf16 %v636, %v636
  %v781 = vpack.c.bf16 %v637, %v637
  %v782 = vpack.c.bf16 %v638, %v638
  %v783 = vpack.c.bf16 %v639, %v639
  %v784 = vpack.c.bf16 %v640, %v640
  %v785 = vpack.c.bf16 %v641, %v641
  %v786 = vpack.c.bf16 %v642, %v642
  %v787 = vpack.c.bf16 %v643, %v643
  %v788 = vpack.c.bf16 %v644, %v644
  %v789 = vpack.c.bf16 %v645, %v645
  %v790 = vpack.c.bf16 %v646, %v646
  %v791 = vpack.c.bf16 %v647, %v647
  %v792 = vpack.c.bf16 %v648, %v648
  %v793 = vpack.c.bf16 %v649, %v649
  %v794 = vpack.c.bf16 %v650, %v650
  %v795 = vpack.c.bf16 %v651, %v651
  %v796 = vpack.c.bf16 %v652, %v652
  %v797 = vpack.c.bf16 %v653, %v653
  %v798 = vpack.c.bf16 %v654, %v654
  %v799 = vpack.c.bf16 %v655, %v655
  %v800 = vpack.c.bf16 %v656, %v656
  %v801 = vpack.c.bf16 %v657, %v657
  %v802 = vpack.c.bf16 %v658, %v658
  %v803 = vpack.c.bf16 %v659, %v659
  %v804 = vpack.c.bf16 %v660, %v660
  %v805 = vpack.c.bf16 %v661, %v661
  %v806 = vpack.c.bf16 %v662, %v662
  %v807 = vpack.c.bf16 %v663, %v663
  %v808 = vpack.c.bf16 %v664, %v664
  %v809 = vpack.c.bf16 %v665, %v665
  %v810 = vpack.c.bf16 %v666, %v666
  %v811 = vpack.c.bf16 %v667, %v667
  %v812 = vpack.c.bf16 %v668, %v668
  %v813 = vpack.c.bf16 %v669, %v669
  %v814 = vpack.c.bf16 %v670, %v670
  %v815 = vpack.c.bf16 %v671, %v671
  %v816 = vpack.c.bf16 %v672, %v672
  %v817 = vpack.c.bf16 %v673, %v673
  %v818 = vpack.c.bf16 %v674, %v674
  %v819 = vpack.c.bf16 %v675, %v675
  %v820 = vpack.c.bf16 %v676, %v676
  %v821 = vpack.c.bf16 %v677, %v677
  %v822 = vpack.c.bf16 %v678, %v678
  %v823 = vpack.c.bf16 %v679, %v679
  %v824 = vpack.c.bf16 %v680, %v680
  %v825 = vpack.c.bf16 %v681, %v681
  %v826 = vpack.c.bf16 %v682, %v682
  %v827 = vpack.c.bf16 %v683, %v683
  %v828 = vpack.c.bf16 %v684, %v684
  %v829 = vpack.c.bf16 %v685, %v685
  %v830 = vpack.c.bf16 %v686, %v686
  %v831 = vpack.c.bf16 %v687, %v687
  %v832 = vpack.c.bf16 %v688, %v688
  %v833 = vpack.c.bf16 %v689, %v689
  %v834 = vpack.c.bf16 %v690, %v690
  %v835 = vpack.c.bf16 %v691, %v691
  %v836 = vpack.c.bf16 %v692, %v692
  %v837 = vpack.c.bf16 %v693, %v693
  %v838 = vpack.c.bf16 %v694, %v694
  %v839 = vpack.c.bf16 %v695, %v695
  %v840 = vpack.c.bf16 %v696, %v696
  %v841 = vpack.c.bf16 %v697, %v697
  %v842 = vpack.c.bf16 %v698, %v698
  %v843 = vpack.c.bf16 %v699, %v699
  %v844 = vpack.c.bf16 %v700, %v700
  %v845 = vpack.c.bf16 %v701, %v701
  %v846 = vpack.c.bf16 %v702, %v702
  %v847 = vpack.c.bf16 %v703, %v703
  %v848 = vpack.c.bf16 %v704, %v704
  %v849 = vpack.c.bf16 %v705, %v705
  %v850 = vpack.c.bf16 %v706, %v706
  %v851 = vpack.c.bf16 %v707, %v707
  %v852 = vpack.c.bf16 %v708, %v708
  %v853 = vpack.c.bf16 %v709, %v709
  %v854 = vpack.c.bf16 %v710, %v710
  %v855 = vpack.c.bf16 %v711, %v711
  %v856 = vpack.c.bf16 %v712, %v712
  %v857 = vpack.c.bf16 %v713, %v713
  %v858 = vpack.c.bf16 %v714, %v714
  %v859 = vpack.c.bf16 %v715, %v715
  %v860 = vpack.c.bf16 %v716, %v716
  %v861 = vpack.c.bf16 %v717, %v717
  %v862 = vpack.c.bf16 %v718, %v718
  %v863 = vpack.c.bf16 %v719, %v719
  %v864 = vpack.c.bf16 %v720, %v720
  %v865 = vpack.c.bf16 %v721, %v721
  %v866 = vpack.c.bf16 %v722, %v722
  %v867 = vpack.c.bf16 %v723, %v723
  %v868 = vpack.c.bf16 %v724, %v724
  %v869 = vpack.c.bf16 %v725, %v725
  %v870 = vpack.c.bf16 %v726, %v726
  %v871 = vpack.c.bf16 %v727, %v727
  %v872 = vpack.c.bf16 %v728, %v728
  %v873 = vpack.c.bf16 %v729, %v729
  %v874 = vpack.c.bf16 %v730, %v730
  %v875 = vpack.c.bf16 %v731, %v731
  %v876 = vpack.c.bf16 %v732, %v732
  %v877 = vpack.c.bf16 %v733, %v733
  %v878 = vpack.c.bf16 %v734, %v734
  %v879 = vpack.c.bf16 %v735, %v735
  %v880 = vpack.c.bf16 %v736, %v736
  %v881 = vpack.c.bf16 %v737, %v737
  %v882 = vpack.c.bf16 %v738, %v738
  %v883 = vpack.c.bf16 %v739, %v739
  %v884 = vpack.c.bf16 %v740, %v740
  %v885 = vpack.c.bf16 %v741, %v741
  %v886 = vpack.c.bf16 %v742, %v742
  %v887 = vpack.c.bf16 %v743, %v743
  %v888 = vpack.c.bf16 %v744, %v744
  %v889 = vpack.c.bf16 %v745, %v745
  %v890 = vunpack.c.l.bf16 %v746
  %v891 = vunpack.c.l.bf16 %v747
  %v892 = vunpack.c.l.bf16 %v748
  %v893 = vunpack.c.l.bf16 %v749
  %v894 = vunpack.c.l.bf16 %v750
  %v895 = vunpack.c.l.bf16 %v751
  %v896 = vunpack.c.l.bf16 %v752
  %v897 = vunpack.c.l.bf16 %v753
  %v898 = vunpack.c.l.bf16 %v754
  %v899 = vunpack.c.l.bf16 %v755
  %v900 = vunpack.c.l.bf16 %v756
  %v901 = vunpack.c.l.bf16 %v757
  %v902 = vunpack.c.l.bf16 %v758
  %v903 = vunpack.c.l.bf16 %v759
  %v904 = vunpack.c.l.bf16 %v760
  %v905 = vunpack.c.l.bf16 %v761
  %v906 = vunpack.c.l.bf16 %v762
  %v907 = vunpack.c.l.bf16 %v763
  %v908 = vunpack.c.l.bf16 %v764
  %v909 = vunpack.c.l.bf16 %v765
  %v910 = vunpack.c.l.bf16 %v766
  %v911 = vunpack.c.l.bf16 %v767
  %v912 = vunpack.c.l.bf16 %v768
  %v913 = vunpack.c.l.bf16 %v769
  %v914 = vunpack.c.l.bf16 %v770
  %v915 = vunpack.c.l.bf16 %v771
  %v916 = vunpack.c.l.bf16 %v772
  %v917 = vunpack.c.l.bf16 %v773
  %v918 = vunpack.c.l.bf16 %v774
  %v919 = vunpack.c.l.bf16 %v775
  %v920 = vunpack.c.l.bf16 %v776
  %v921 = vunpack.c.l.bf16 %v777
  %v922 = vunpack.c.l.bf16 %v778
  %v923 = vunpack.c.l.bf16 %v779
  %v924 = vunpack.c.l.bf16 %v780
  %v925 = vunpack.c.l.bf16 %v781
  %v926 = vunpack.c.l.bf16 %v782
  %v927 = vunpack.c.l.bf16 %v783
  %v928 = vunpack.c.l.bf16 %v784
  %v929 = vunpack.c.l.bf16 %v785
  %v930 = vunpack.c.l.bf16 %v786
  %v931 = vunpack.c.l.bf16 %v787
  %v932 = vunpack.c.l.bf16 %v788
  %v933 = vunpack.c.l.bf16 %v789
  %v934 = vunpack.c.l.bf16 %v790
  %v935 = vunpack.c.l.bf16 %v791
  %v936 = vunpack.c.l.bf16 %v792
  %v937 = vunpack.c.l.bf16 %v793
  %v938 = vunpack.c.l.bf16 %v794
  %v939 = vunpack.c.l.bf16 %v795
  %v940 = vunpack.c.l.bf16 %v796
  %v941 = vunpack.c.l.bf16 %v797
  %v942 = vunpack.c.l.bf16 %v798
  %v943 = vunpack.c.l.bf16 %v799
  %v944 = vunpack.c.l.bf16 %v800
  %v945 = vunpack.c.l.bf16 %v801
  %v946 = vunpack.c.l.bf16 %v802
  %v947 = vunpack.c.l.bf16 %v803
  %v948 = vunpack.c.l.bf16 %v804
  %v949 = vunpack.c.l.bf16 %v805
  %v950 = vunpack.c.l.bf16 %v806
  %v951 = vunpack.c.l.bf16 %v807
  %v952 = vunpack.c.l.bf16 %v808
  %v953 = vunpack.c.l.bf16 %v809
  %v954 = vunpack.c.l.bf16 %v810
  %v955 = vunpack.c.l.bf16 %v811
  %v956 = vunpack.c.l.bf16 %v812
  %v957 = vunpack.c.l.bf16 %v813
  %v958 = vunpack.c.l.bf16 %v814
  %v959 = vunpack.c.l.bf16 %v815
  %v960 = vunpack.c.l.bf16 %v816
  %v961 = vunpack.c.l.bf16 %v817
  %v962 = vunpack.c.l.bf16 %v818
  %v963 = vunpack.c.l.bf16 %v819
  %v964 = vunpack.c.l.bf16 %v820
  %v965 = vunpack.c.l.bf16 %v821
  %v966 = vunpack.c.l.bf16 %v822
  %v967 = vunpack.c.l.bf16 %v823
  %v968 = vunpack.c.l.bf16 %v824
  %v969 = vunpack.c.l.bf16 %v825
  %v970 = vunpack.c.l.bf16 %v826
  %v971 = vunpack.c.l.bf16 %v827
  %v972 = vunpack.c.l.bf16 %v828
  %v973 = vunpack.c.l.bf16 %v829
  %v974 = vunpack.c.l.bf16 %v830
  %v975 = vunpack.c.l.bf16 %v831
  %v976 = vunpack.c.l.bf16 %v832
  %v977 = vunpack.c.l.bf16 %v833
  %v978 = vunpack.c.l.bf16 %v834
  %v979 = vunpack.c.l.bf16 %v835
  %v980 = vunpack.c.l.bf16 %v836
  %v981 = vunpack.c.l.bf16 %v837
  %v982 = vunpack.c.l.bf16 %v838
  %v983 = vunpack.c.l.bf16 %v839
  %v984 = vunpack.c.l.bf16 %v840
  %v985 = vunpack.c.l.bf16 %v841
  %v986 = vunpack.c.l.bf16 %v842
  %v987 = vunpack.c.l.bf16 %v843
  %v988 = vunpack.c.l.bf16 %v844
  %v989 = vunpack.c.l.bf16 %v845
  %v990 = vunpack.c.l.bf16 %v846
  %v991 = vunpack.c.l.bf16 %v847
  %v992 = vunpack.c.l.bf16 %v848
  %v993 = vunpack.c.l.bf16 %v849
  %v994 = vunpack.c.l.bf16 %v850
  %v995 = vunpack.c.l.bf16 %v851
  %v996 = vunpack.c.l.bf16 %v852
  %v997 = vunpack.c.l.bf16 %v853
  %v998 = vunpack.c.l.bf16 %v854
  %v999 = vunpack.c.l.bf16 %v855
  %v1000 = vunpack.c.l.bf16 %v856
  %v1001 = vunpack.c.l.bf16 %v857
  %v1002 = vunpack.c.l.bf16 %v858
  %v1003 = vunpack.c.l.bf16 %v859
  %v1004 = vunpack.c.l.bf16 %v860
  %v1005 = vunpack.c.l.bf16 %v861
  %v1006 = vunpack.c.l.bf16 %v862
  %v1007 = vunpack.c.l.bf16 %v863
  %v1008 = vunpack.c.l.bf16 %v864
  %v1009 = vunpack.c.l.bf16 %v865
  %v1010 = vunpack.c.l.bf16 %v866
  %v1011 = vunpack.c.l.bf16 %v867
  %v1012 = vunpack.c.l.bf16 %v868
  %v1013 = vunpack.c.l.bf16 %v869
  %v1014 = vunpack.c.l.bf16 %v870
  %v1015 = vunpack.c.l.bf16 %v871
  %v1016 = vunpack.c.l.bf16 %v872
  %v1017 = vunpack.c.l.bf16 %v873
  %v1018 = vunpack.c.l.bf16 %v874
  %v1019 = vunpack.c.l.bf16 %v875
  %v1020 = vunpack.c.l.bf16 %v876
  %v1021 = vunpack.c.l.bf16 %v877
  %v1022 = vunpack.c.l.bf16 %v878
  %v1023 = vunpack.c.l.bf16 %v879
  %v1024 = vunpack.c.l.bf16 %v880
  %v1025 = vunpack.c.l.bf16 %v881
  %v1026 = vunpack.c.l.bf16 %v882
  %v1027 = vunpack.c.l.bf16 %v883
  %v1028 = vunpack.c.l.bf16 %v884
  %v1029 = vunpack.c.l.bf16 %v885
  %v1030 = vunpack.c.l.bf16 %v886
  %v1031 = vunpack.c.l.bf16 %v887
  %v1032 = vunpack.c.l.bf16 %v888
  %v1033 = vunpack.c.l.bf16 %v889
  %v1034 = vunpack.c.l.bf16 %v152
  %v1035 = vunpack.c.l.bf16 %v153
  %v1036 = vunpack.c.l.bf16 %v154
  %v1037 = vunpack.c.l.bf16 %v155
  %v1038 = vunpack.c.l.bf16 %v156
  %v1039 = vunpack.c.l.bf16 %v157
  %v1040 = vunpack.c.l.bf16 %v158
  %v1041 = vunpack.c.l.bf16 %v159
  %v1042 = vunpack.c.l.bf16 %v160
  %v1043 = vunpack.c.l.bf16 %v305
  %v1044 = vunpack.c.l.bf16 %v306
  %v1045 = vunpack.c.l.bf16 %v307
  %v1046 = vunpack.c.l.bf16 %v308
  %v1047 = vunpack.c.l.bf16 %v309
  %v1048 = vunpack.c.l.bf16 %v310
  %v1049 = vunpack.c.l.bf16 %v311
  %v1050 = vunpack.c.l.bf16 %v312
  %v1051 = vunpack.c.l.bf16 %v313
  %v1052 = vmax.f32 %v890, %v323
  %v1053 = vmax.f32 %v891, %v324
  %v1054 = vmax.f32 %v892, %v325
  %v1055 = vmax.f32 %v893, %v326
  %v1056 = vmax.f32 %v894, %v327
  %v1057 = vmax.f32 %v895, %v328
  %v1058 = vmax.f32 %v896, %v329
  %v1059 = vmax.f32 %v897, %v330
  %v1060 = vmax.f32 %v898, %v331
  %v1061 = vmax.f32 %v899, %v332
  %v1062 = vmax.f32 %v900, %v333
  %v1063 = vmax.f32 %v901, %v334
  %v1064 = vmax.f32 %v902, %v335
  %v1065 = vmax.f32 %v903, %v336
  %v1066 = vmax.f32 %v904, %v337
  %v1067 = vmax.f32 %v905, %v338
  %v1068 = vmax.f32 %v906, %v339
  %v1069 = vmax.f32 %v907, %v340
  %v1070 = vmax.f32 %v908, %v341
  %v1071 = vmax.f32 %v909, %v342
  %v1072 = vmax.f32 %v910, %v343
  %v1073 = vmax.f32 %v911, %v344
  %v1074 = vmax.f32 %v912, %v345
  %v1075 = vmax.f32 %v913, %v346
  %v1076 = vmax.f32 %v914, %v347
  %v1077 = vmax.f32 %v915, %v348
  %v1078 = vmax.f32 %v916, %v349
  %v1079 = vmax.f32 %v917, %v350
  %v1080 = vmax.f32 %v918, %v351
  %v1081 = vmax.f32 %v919, %v352
  %v1082 = vmax.f32 %v920, %v353
  %v1083 = vmax.f32 %v921, %v354
  %v1084 = vmax.f32 %v922, %v355
  %v1085 = vmax.f32 %v923, %v356
  %v1086 = vmax.f32 %v924, %v357
  %v1087 = vmax.f32 %v925, %v358
  %v1088 = vmax.f32 %v926, %v359
  %v1089 = vmax.f32 %v927, %v360
  %v1090 = vmax.f32 %v928, %v361
  %v1091 = vmax.f32 %v929, %v362
  %v1092 = vmax.f32 %v930, %v363
  %v1093 = vmax.f32 %v931, %v364
  %v1094 = vmax.f32 %v932, %v365
  %v1095 = vmax.f32 %v933, %v366
  %v1096 = vmax.f32 %v934, %v367
  %v1097 = vmax.f32 %v935, %v368
  %v1098 = vmax.f32 %v936, %v369
  %v1099 = vmax.f32 %v937, %v370
  %v1100 = vmax.f32 %v938, %v371
  %v1101 = vmax.f32 %v939, %v372
  %v1102 = vmax.f32 %v940, %v373
  %v1103 = vmax.f32 %v941, %v374
  %v1104 = vmax.f32 %v942, %v375
  %v1105 = vmax.f32 %v943, %v376
  %v1106 = vmax.f32 %v944, %v377
  %v1107 = vmax.f32 %v945, %v378
  %v1108 = vmax.f32 %v946, %v379
  %v1109 = vmax.f32 %v947, %v380
  %v1110 = vmax.f32 %v948, %v381
  %v1111 = vmax.f32 %v949, %v382
  %v1112 = vmax.f32 %v950, %v383
  %v1113 = vmax.f32 %v951, %v384
  %v1114 = vmax.f32 %v952, %v385
  %v1115 = vmax.f32 %v953, %v1034
  %v1116 = vmax.f32 %v954, %v1035
  %v1117 = vmax.f32 %v955, %v1036
  %v1118 = vmax.f32 %v956, %v1037
  %v1119 = vmax.f32 %v957, %v1038
  %v1120 = vmax.f32 %v958, %v1039
  %v1121 = vmax.f32 %v959, %v1040
  %v1122 = vmax.f32 %v960, %v1041
  %v1123 = vmax.f32 %v961, %v1042
  %v1124 = vmax.f32 %v962, %v395
  %v1125 = vmax.f32 %v963, %v396
  %v1126 = vmax.f32 %v964, %v397
  %v1127 = vmax.f32 %v965, %v398
  %v1128 = vmax.f32 %v966, %v399
  %v1129 = vmax.f32 %v967, %v400
  %v1130 = vmax.f32 %v968, %v401
  %v1131 = vmax.f32 %v969, %v402
  %v1132 = vmax.f32 %v970, %v403
  %v1133 = vmax.f32 %v971, %v404
  %v1134 = vmax.f32 %v972, %v405
  %v1135 = vmax.f32 %v973, %v406
  %v1136 = vmax.f32 %v974, %v407
  %v1137 = vmax.f32 %v975, %v408
  %v1138 = vmax.f32 %v976, %v409
  %v1139 = vmax.f32 %v977, %v410
  %v1140 = vmax.f32 %v978, %v411
  %v1141 = vmax.f32 %v979, %v412
  %v1142 = vmax.f32 %v980, %v413
  %v1143 = vmax.f32 %v981, %v414
  %v1144 = vmax.f32 %v982, %v415
  %v1145 = vmax.f32 %v983, %v416
  %v1146 = vmax.f32 %v984, %v417
  %v1147 = vmax.f32 %v985, %v418
  %v1148 = vmax.f32 %v986, %v419
  %v1149 = vmax.f32 %v987, %v420
  %v1150 = vmax.f32 %v988, %v421
  %v1151 = vmax.f32 %v989, %v422
  %v1152 = vmax.f32 %v990, %v423
  %v1153 = vmax.f32 %v991, %v424
  %v1154 = vmax.f32 %v992, %v425
  %v1155 = vmax.f32 %v993, %v426
  %v1156 = vmax.f32 %v994, %v427
  %v1157 = vmax.f32 %v995, %v428
  %v1158 = vmax.f32 %v996, %v429
  %v1159 = vmax.f32 %v997, %v430
  %v1160 = vmax.f32 %v998, %v431
  %v1161 = vmax.f32 %v999, %v432
  %v1162 = vmax.f32 %v1000, %v433
  %v1163 = vmax.f32 %v1001, %v434
  %v1164 = vmax.f32 %v1002, %v435
  %v1165 = vmax.f32 %v1003, %v436
  %v1166 = vmax.f32 %v1004, %v437
  %v1167 = vmax.f32 %v1005, %v438
  %v1168 = vmax.f32 %v1006, %v439
  %v1169 = vmax.f32 %v1007, %v440
  %v1170 = vmax.f32 %v1008, %v441
  %v1171 = vmax.f32 %v1009, %v442
  %v1172 = vmax.f32 %v1010, %v443
  %v1173 = vmax.f32 %v1011, %v444
  %v1174 = vmax.f32 %v1012, %v445
  %v1175 = vmax.f32 %v1013, %v446
  %v1176 = vmax.f32 %v1014, %v447
  %v1177 = vmax.f32 %v1015, %v448
  %v1178 = vmax.f32 %v1016, %v449
  %v1179 = vmax.f32 %v1017, %v450
  %v1180 = vmax.f32 %v1018, %v451
  %v1181 = vmax.f32 %v1019, %v452
  %v1182 = vmax.f32 %v1020, %v453
  %v1183 = vmax.f32 %v1021, %v454
  %v1184 = vmax.f32 %v1022, %v455
  %v1185 = vmax.f32 %v1023, %v456
  %v1186 = vmax.f32 %v1024, %v457
  %v1187 = vmax.f32 %v1025, %v1043
  %v1188 = vmax.f32 %v1026, %v1044
  %v1189 = vmax.f32 %v1027, %v1045
  %v1190 = vmax.f32 %v1028, %v1046
  %v1191 = vmax.f32 %v1029, %v1047
  %v1192 = vmax.f32 %v1030, %v1048
  %v1193 = vmax.f32 %v1031, %v1049
  %v1194 = vmax.f32 %v1032, %v1050
  %v1195 = vmax.f32 %v1033, %v1051
  %v1196 = vpack.c.bf16 %v1052, %v1052
  %v1197 = vpack.c.bf16 %v1053, %v1053
  %v1198 = vpack.c.bf16 %v1054, %v1054
  %v1199 = vpack.c.bf16 %v1055, %v1055
  %v1200 = vpack.c.bf16 %v1056, %v1056
  %v1201 = vpack.c.bf16 %v1057, %v1057
  %v1202 = vpack.c.bf16 %v1058, %v1058
  %v1203 = vpack.c.bf16 %v1059, %v1059
  %v1204 = vpack.c.bf16 %v1060, %v1060
  %v1205 = vpack.c.bf16 %v1061, %v1061
  %v1206 = vpack.c.bf16 %v1062, %v1062
  %v1207 = vpack.c.bf16 %v1063, %v1063
  %v1208 = vpack.c.bf16 %v1064, %v1064
  %v1209 = vpack.c.bf16 %v1065, %v1065
  %v1210 = vpack.c.bf16 %v1066, %v1066
  %v1211 = vpack.c.bf16 %v1067, %v1067
  %v1212 = vpack.c.bf16 %v1068, %v1068
  %v1213 = vpack.c.bf16 %v1069, %v1069
  %v1214 = vpack.c.bf16 %v1070, %v1070
  %v1215 = vpack.c.bf16 %v1071, %v1071
  %v1216 = vpack.c.bf16 %v1072, %v1072
  %v1217 = vpack.c.bf16 %v1073, %v1073
  %v1218 = vpack.c.bf16 %v1074, %v1074
  %v1219 = vpack.c.bf16 %v1075, %v1075
  %v1220 = vpack.c.bf16 %v1076, %v1076
  %v1221 = vpack.c.bf16 %v1077, %v1077
  %v1222 = vpack.c.bf16 %v1078, %v1078
  %v1223 = vpack.c.bf16 %v1079, %v1079
  %v1224 = vpack.c.bf16 %v1080, %v1080
  %v1225 = vpack.c.bf16 %v1081, %v1081
  %v1226 = vpack.c.bf16 %v1082, %v1082
  %v1227 = vpack.c.bf16 %v1083, %v1083
  %v1228 = vpack.c.bf16 %v1084, %v1084
  %v1229 = vpack.c.bf16 %v1085, %v1085
  %v1230 = vpack.c.bf16 %v1086, %v1086
  %v1231 = vpack.c.bf16 %v1087, %v1087
  %v1232 = vpack.c.bf16 %v1088, %v1088
  %v1233 = vpack.c.bf16 %v1089, %v1089
  %v1234 = vpack.c.bf16 %v1090, %v1090
  %v1235 = vpack.c.bf16 %v1091, %v1091
  %v1236 = vpack.c.bf16 %v1092, %v1092
  %v1237 = vpack.c.bf16 %v1093, %v1093
  %v1238 = vpack.c.bf16 %v1094, %v1094
  %v1239 = vpack.c.bf16 %v1095, %v1095
  %v1240 = vpack.c.bf16 %v1096, %v1096
  %v1241 = vpack.c.bf16 %v1097, %v1097
  %v1242 = vpack.c.bf16 %v1098, %v1098
  %v1243 = vpack.c.bf16 %v1099, %v1099
  %v1244 = vpack.c.bf16 %v1100, %v1100
  %v1245 = vpack.c.bf16 %v1101, %v1101
  %v1246 = vpack.c.bf16 %v1102, %v1102
  %v1247 = vpack.c.bf16 %v1103, %v1103
  %v1248 = vpack.c.bf16 %v1104, %v1104
  %v1249 = vpack.c.bf16 %v1105, %v1105
  %v1250 = vpack.c.bf16 %v1106, %v1106
  %v1251 = vpack.c.bf16 %v1107, %v1107
  %v1252 = vpack.c.bf16 %v1108, %v1108
  %v1253 = vpack.c.bf16 %v1109, %v1109
  %v1254 = vpack.c.bf16 %v1110, %v1110
  %v1255 = vpack.c.bf16 %v1111, %v1111
  %v1256 = vpack.c.bf16 %v1112, %v1112
  %v1257 = vpack.c.bf16 %v1113, %v1113
  %v1258 = vpack.c.bf16 %v1114, %v1114
  %v1259 = vpack.c.bf16 %v1115, %v1115
  %v1260 = vpack.c.bf16 %v1116, %v1116
  %v1261 = vpack.c.bf16 %v1117, %v1117
  %v1262 = vpack.c.bf16 %v1118, %v1118
  %v1263 = vpack.c.bf16 %v1119, %v1119
  %v1264 = vpack.c.bf16 %v1120, %v1120
  %v1265 = vpack.c.bf16 %v1121, %v1121
  %v1266 = vpack.c.bf16 %v1122, %v1122
  %v1267 = vpack.c.bf16 %v1123, %v1123
  %v1268 = vpack.c.bf16 %v1124, %v1124
  %v1269 = vpack.c.bf16 %v1125, %v1125
  %v1270 = vpack.c.bf16 %v1126, %v1126
  %v1271 = vpack.c.bf16 %v1127, %v1127
  %v1272 = vpack.c.bf16 %v1128, %v1128
  %v1273 = vpack.c.bf16 %v1129, %v1129
  %v1274 = vpack.c.bf16 %v1130, %v1130
  %v1275 = vpack.c.bf16 %v1131, %v1131
  %v1276 = vpack.c.bf16 %v1132, %v1132
  %v1277 = vpack.c.bf16 %v1133, %v1133
  %v1278 = vpack.c.bf16 %v1134, %v1134
  %v1279 = vpack.c.bf16 %v1135, %v1135
  %v1280 = vpack.c.bf16 %v1136, %v1136
  %v1281 = vpack.c.bf16 %v1137, %v1137
  %v1282 = vpack.c.bf16 %v1138, %v1138
  %v1283 = vpack.c.bf16 %v1139, %v1139
  %v1284 = vpack.c.bf16 %v1140, %v1140
  %v1285 = vpack.c.bf16 %v1141, %v1141
  %v1286 = vpack.c.bf16 %v1142, %v1142
  %v1287 = vpack.c.bf16 %v1143, %v1143
  %v1288 = vpack.c.bf16 %v1144, %v1144
  %v1289 = vpack.c.bf16 %v1145, %v1145
  %v1290 = vpack.c.bf16 %v1146, %v1146
  %v1291 = vpack.c.bf16 %v1147, %v1147
  %v1292 = vpack.c.bf16 %v1148, %v1148
  %v1293 = vpack.c.bf16 %v1149, %v1149
  %v1294 = vpack.c.bf16 %v1150, %v1150
  %v1295 = vpack.c.bf16 %v1151, %v1151
  %v1296 = vpack.c.bf16 %v1152, %v1152
  %v1297 = vpack.c.bf16 %v1153, %v1153
  %v1298 = vpack.c.bf16 %v1154, %v1154
  %v1299 = vpack.c.bf16 %v1155, %v1155
  %v1300 = vpack.c.bf16 %v1156, %v1156
  %v1301 = vpack.c.bf16 %v1157, %v1157
  %v1302 = vpack.c.bf16 %v1158, %v1158
  %v1303 = vpack.c.bf16 %v1159, %v1159
  %v1304 = vpack.c.bf16 %v1160, %v1160
  %v1305 = vpack.c.bf16 %v1161, %v1161
  %v1306 = vpack.c.bf16 %v1162, %v1162
  %v1307 = vpack.c.bf16 %v1163, %v1163
  %v1308 = vpack.c.bf16 %v1164, %v1164
  %v1309 = vpack.c.bf16 %v1165, %v1165
  %v1310 = vpack.c.bf16 %v1166, %v1166
  %v1311 = vpack.c.bf16 %v1167, %v1167
  %v1312 = vpack.c.bf16 %v1168, %v1168
  %v1313 = vpack.c.bf16 %v1169, %v1169
  %v1314 = vpack.c.bf16 %v1170, %v1170
  %v1315 = vpack.c.bf16 %v1171, %v1171
  %v1316 = vpack.c.bf16 %v1172, %v1172
  %v1317 = vpack.c.bf16 %v1173, %v1173
  %v1318 = vpack.c.bf16 %v1174, %v1174
  %v1319 = vpack.c.bf16 %v1175, %v1175
  %v1320 = vpack.c.bf16 %v1176, %v1176
  %v1321 = vpack.c.bf16 %v1177, %v1177
  %v1322 = vpack.c.bf16 %v1178, %v1178
  %v1323 = vpack.c.bf16 %v1179, %v1179
  %v1324 = vpack.c.bf16 %v1180, %v1180
  %v1325 = vpack.c.bf16 %v1181, %v1181
  %v1326 = vpack.c.bf16 %v1182, %v1182
  %v1327 = vpack.c.bf16 %v1183, %v1183
  %v1328 = vpack.c.bf16 %v1184, %v1184
  %v1329 = vpack.c.bf16 %v1185, %v1185
  %v1330 = vpack.c.bf16 %v1186, %v1186
  %v1331 = vpack.c.bf16 %v1187, %v1187
  %v1332 = vpack.c.bf16 %v1188, %v1188
  %v1333 = vpack.c.bf16 %v1189, %v1189
  %v1334 = vpack.c.bf16 %v1190, %v1190
  %v1335 = vpack.c.bf16 %v1191, %v1191
  %v1336 = vpack.c.bf16 %v1192, %v1192
  %v1337 = vpack.c.bf16 %v1193, %v1193
  %v1338 = vpack.c.bf16 %v1194, %v1194
  %v1339 = vpack.c.bf16 %v1195, %v1195
  %v1340 = vunpack.c.l.bf16 %v1196
  %v1341 = vunpack.c.l.bf16 %v1197
  %v1342 = vunpack.c.l.bf16 %v1198
  %v1343 = vunpack.c.l.bf16 %v1199
  %v1344 = vunpack.c.l.bf16 %v1200
  %v1345 = vunpack.c.l.bf16 %v1201
  %v1346 = vunpack.c.l.bf16 %v1202
  %v1347 = vunpack.c.l.bf16 %v1203
  %v1348 = vunpack.c.l.bf16 %v1205
  %v1349 = vunpack.c.l.bf16 %v1206
  %v1350 = vunpack.c.l.bf16 %v1207
  %v1351 = vunpack.c.l.bf16 %v1208
  %v1352 = vunpack.c.l.bf16 %v1209
  %v1353 = vunpack.c.l.bf16 %v1210
  %v1354 = vunpack.c.l.bf16 %v1211
  %v1355 = vunpack.c.l.bf16 %v1212
  %v1356 = vunpack.c.l.bf16 %v1214
  %v1357 = vunpack.c.l.bf16 %v1215
  %v1358 = vunpack.c.l.bf16 %v1216
  %v1359 = vunpack.c.l.bf16 %v1217
  %v1360 = vunpack.c.l.bf16 %v1218
  %v1361 = vunpack.c.l.bf16 %v1219
  %v1362 = vunpack.c.l.bf16 %v1220
  %v1363 = vunpack.c.l.bf16 %v1221
  %v1364 = vunpack.c.l.bf16 %v1223
  %v1365 = vunpack.c.l.bf16 %v1224
  %v1366 = vunpack.c.l.bf16 %v1225
  %v1367 = vunpack.c.l.bf16 %v1226
  %v1368 = vunpack.c.l.bf16 %v1227
  %v1369 = vunpack.c.l.bf16 %v1228
  %v1370 = vunpack.c.l.bf16 %v1229
  %v1371 = vunpack.c.l.bf16 %v1230
  %v1372 = vunpack.c.l.bf16 %v1232
  %v1373 = vunpack.c.l.bf16 %v1233
  %v1374 = vunpack.c.l.bf16 %v1234
  %v1375 = vunpack.c.l.bf16 %v1235
  %v1376 = vunpack.c.l.bf16 %v1236
  %v1377 = vunpack.c.l.bf16 %v1237
  %v1378 = vunpack.c.l.bf16 %v1238
  %v1379 = vunpack.c.l.bf16 %v1239
  %v1380 = vunpack.c.l.bf16 %v1241
  %v1381 = vunpack.c.l.bf16 %v1242
  %v1382 = vunpack.c.l.bf16 %v1243
  %v1383 = vunpack.c.l.bf16 %v1244
  %v1384 = vunpack.c.l.bf16 %v1245
  %v1385 = vunpack.c.l.bf16 %v1246
  %v1386 = vunpack.c.l.bf16 %v1247
  %v1387 = vunpack.c.l.bf16 %v1248
  %v1388 = vunpack.c.l.bf16 %v1250
  %v1389 = vunpack.c.l.bf16 %v1251
  %v1390 = vunpack.c.l.bf16 %v1252
  %v1391 = vunpack.c.l.bf16 %v1253
  %v1392 = vunpack.c.l.bf16 %v1254
  %v1393 = vunpack.c.l.bf16 %v1255
  %v1394 = vunpack.c.l.bf16 %v1256
  %v1395 = vunpack.c.l.bf16 %v1257
  %v1396 = vunpack.c.l.bf16 %v1259
  %v1397 = vunpack.c.l.bf16 %v1260
  %v1398 = vunpack.c.l.bf16 %v1261
  %v1399 = vunpack.c.l.bf16 %v1262
  %v1400 = vunpack.c.l.bf16 %v1263
  %v1401 = vunpack.c.l.bf16 %v1264
  %v1402 = vunpack.c.l.bf16 %v1265
  %v1403 = vunpack.c.l.bf16 %v1266
  %v1404 = vunpack.c.l.bf16 %v1268
  %v1405 = vunpack.c.l.bf16 %v1269
  %v1406 = vunpack.c.l.bf16 %v1270
  %v1407 = vunpack.c.l.bf16 %v1271
  %v1408 = vunpack.c.l.bf16 %v1272
  %v1409 = vunpack.c.l.bf16 %v1273
  %v1410 = vunpack.c.l.bf16 %v1274
  %v1411 = vunpack.c.l.bf16 %v1275
  %v1412 = vunpack.c.l.bf16 %v1277
  %v1413 = vunpack.c.l.bf16 %v1278
  %v1414 = vunpack.c.l.bf16 %v1279
  %v1415 = vunpack.c.l.bf16 %v1280
  %v1416 = vunpack.c.l.bf16 %v1281
  %v1417 = vunpack.c.l.bf16 %v1282
  %v1418 = vunpack.c.l.bf16 %v1283
  %v1419 = vunpack.c.l.bf16 %v1284
  %v1420 = vunpack.c.l.bf16 %v1286
  %v1421 = vunpack.c.l.bf16 %v1287
  %v1422 = vunpack.c.l.bf16 %v1288
  %v1423 = vunpack.c.l.bf16 %v1289
  %v1424 = vunpack.c.l.bf16 %v1290
  %v1425 = vunpack.c.l.bf16 %v1291
  %v1426 = vunpack.c.l.bf16 %v1292
  %v1427 = vunpack.c.l.bf16 %v1293
  %v1428 = vunpack.c.l.bf16 %v1295
  %v1429 = vunpack.c.l.bf16 %v1296
  %v1430 = vunpack.c.l.bf16 %v1297
  %v1431 = vunpack.c.l.bf16 %v1298
  %v1432 = vunpack.c.l.bf16 %v1299
  %v1433 = vunpack.c.l.bf16 %v1300
  %v1434 = vunpack.c.l.bf16 %v1301
  %v1435 = vunpack.c.l.bf16 %v1302
  %v1436 = vunpack.c.l.bf16 %v1304
  %v1437 = vunpack.c.l.bf16 %v1305
  %v1438 = vunpack.c.l.bf16 %v1306
  %v1439 = vunpack.c.l.bf16 %v1307
  %v1440 = vunpack.c.l.bf16 %v1308
  %v1441 = vunpack.c.l.bf16 %v1309
  %v1442 = vunpack.c.l.bf16 %v1310
  %v1443 = vunpack.c.l.bf16 %v1311
  %v1444 = vunpack.c.l.bf16 %v1313
  %v1445 = vunpack.c.l.bf16 %v1314
  %v1446 = vunpack.c.l.bf16 %v1315
  %v1447 = vunpack.c.l.bf16 %v1316
  %v1448 = vunpack.c.l.bf16 %v1317
  %v1449 = vunpack.c.l.bf16 %v1318
  %v1450 = vunpack.c.l.bf16 %v1319
  %v1451 = vunpack.c.l.bf16 %v1320
  %v1452 = vunpack.c.l.bf16 %v1322
  %v1453 = vunpack.c.l.bf16 %v1323
  %v1454 = vunpack.c.l.bf16 %v1324
  %v1455 = vunpack.c.l.bf16 %v1325
  %v1456 = vunpack.c.l.bf16 %v1326
  %v1457 = vunpack.c.l.bf16 %v1327
  %v1458 = vunpack.c.l.bf16 %v1328
  %v1459 = vunpack.c.l.bf16 %v1329
  %v1460 = vunpack.c.l.bf16 %v1331
  %v1461 = vunpack.c.l.bf16 %v1332
  %v1462 = vunpack.c.l.bf16 %v1333
  %v1463 = vunpack.c.l.bf16 %v1334
  %v1464 = vunpack.c.l.bf16 %v1335
  %v1465 = vunpack.c.l.bf16 %v1336
  %v1466 = vunpack.c.l.bf16 %v1337
  %v1467 = vunpack.c.l.bf16 %v1338
  %v1596 = vrot.slane %v1340, 1
  %v1597 = vrot.slane %v1341, 1
  %v1598 = vrot.slane %v1342, 1
  %v1599 = vrot.slane %v1343, 1
  %v1600 = vrot.slane %v1344, 1
  %v1601 = vrot.slane %v1345, 1
  %v1602 = vrot.slane %v1346, 1
  %v1603 = vrot.slane %v1347, 1
  %v1604 = vrot.slane %v1348, 1
  %v1605 = vrot.slane %v1349, 1
  %v1606 = vrot.slane %v1350, 1
  %v1607 = vrot.slane %v1351, 1
  %v1608 = vrot.slane %v1352, 1
  %v1609 = vrot.slane %v1353, 1
  %v1610 = vrot.slane %v1354, 1
  %v1611 = vrot.slane %v1355, 1
  %v1612 = vrot.slane %v1356, 1
  %v1613 = vrot.slane %v1357, 1
  %v1614 = vrot.slane %v1358, 1
  %v1615 = vrot.slane %v1359, 1
  %v1616 = vrot.slane %v1360, 1
  %v1617 = vrot.slane %v1361, 1
  %v1618 = vrot.slane %v1362, 1
  %v1619 = vrot.slane %v1363, 1
  %v1620 = vrot.slane %v1364, 1
  %v1621 = vrot.slane %v1365, 1
  %v1622 = vrot.slane %v1366, 1
  %v1623 = vrot.slane %v1367, 1
  %v1624 = vrot.slane %v1368, 1
  %v1625 = vrot.slane %v1369, 1
  %v1626 = vrot.slane %v1370, 1
  %v1627 = vrot.slane %v1371, 1
  %v1628 = vrot.slane %v1372, 1
  %v1629 = vrot.slane %v1373, 1
  %v1630 = vrot.slane %v1374, 1
  %v1631 = vrot.slane %v1375, 1
  %v1632 = vrot.slane %v1376, 1
  %v1633 = vrot.slane %v1377, 1
  %v1634 = vrot.slane %v1378, 1
  %v1635 = vrot.slane %v1379, 1
  %v1636 = vrot.slane %v1380, 1
  %v1637 = vrot.slane %v1381, 1
  %v1638 = vrot.slane %v1382, 1
  %v1639 = vrot.slane %v1383, 1
  %v1640 = vrot.slane %v1384, 1
  %v1641 = vrot.slane %v1385, 1
  %v1642 = vrot.slane %v1386, 1
  %v1643 = vrot.slane %v1387, 1
  %v1644 = vrot.slane %v1388, 1
  %v1645 = vrot.slane %v1389, 1
  %v1646 = vrot.slane %v1390, 1
  %v1647 = vrot.slane %v1391, 1
  %v1648 = vrot.slane %v1392, 1
  %v1649 = vrot.slane %v1393, 1
  %v1650 = vrot.slane %v1394, 1
  %v1651 = vrot.slane %v1395, 1
  %v1652 = vrot.slane %v1396, 1
  %v1653 = vrot.slane %v1397, 1
  %v1654 = vrot.slane %v1398, 1
  %v1655 = vrot.slane %v1399, 1
  %v1656 = vrot.slane %v1400, 1
  %v1657 = vrot.slane %v1401, 1
  %v1658 = vrot.slane %v1402, 1
  %v1659 = vrot.slane %v1403, 1
  %v1660 = vrot.slane %v1404, 1
  %v1661 = vrot.slane %v1405, 1
  %v1662 = vrot.slane %v1406, 1
  %v1663 = vrot.slane %v1407, 1
  %v1664 = vrot.slane %v1408, 1
  %v1665 = vrot.slane %v1409, 1
  %v1666 = vrot.slane %v1410, 1
  %v1667 = vrot.slane %v1411, 1
  %v1668 = vrot.slane %v1412, 1
  %v1669 = vrot.slane %v1413, 1
  %v1670 = vrot.slane %v1414, 1
  %v1671 = vrot.slane %v1415, 1
  %v1672 = vrot.slane %v1416, 1
  %v1673 = vrot.slane %v1417, 1
  %v1674 = vrot.slane %v1418, 1
  %v1675 = vrot.slane %v1419, 1
  %v1676 = vrot.slane %v1420, 1
  %v1677 = vrot.slane %v1421, 1
  %v1678 = vrot.slane %v1422, 1
  %v1679 = vrot.slane %v1423, 1
  %v1680 = vrot.slane %v1424, 1
  %v1681 = vrot.slane %v1425, 1
  %v1682 = vrot.slane %v1426, 1
  %v1683 = vrot.slane %v1427, 1
  %v1684 = vrot.slane %v1428, 1
  %v1685 = vrot.slane %v1429, 1
  %v1686 = vrot.slane %v1430, 1
  %v1687 = vrot.slane %v1431, 1
  %v1688 = vrot.slane %v1432, 1
  %v1689 = vrot.slane %v1433, 1
  %v1690 = vrot.slane %v1434, 1
  %v1691 = vrot.slane %v1435, 1
  %v1692 = vrot.slane %v1436, 1
  %v1693 = vrot.slane %v1437, 1
  %v1694 = vrot.slane %v1438, 1
  %v1695 = vrot.slane %v1439, 1
  %v1696 = vrot.slane %v1440, 1
  %v1697 = vrot.slane %v1441, 1
  %v1698 = vrot.slane %v1442, 1
  %v1699 = vrot.slane %v1443, 1
  %v1700 = vrot.slane %v1444, 1
  %v1701 = vrot.slane %v1445, 1
  %v1702 = vrot.slane %v1446, 1
  %v1703 = vrot.slane %v1447, 1
  %v1704 = vrot.slane %v1448, 1
  %v1705 = vrot.slane %v1449, 1
  %v1706 = vrot.slane %v1450, 1
  %v1707 = vrot.slane %v1451, 1
  %v1708 = vrot.slane %v1452, 1
  %v1709 = vrot.slane %v1453, 1
  %v1710 = vrot.slane %v1454, 1
  %v1711 = vrot.slane %v1455, 1
  %v1712 = vrot.slane %v1456, 1
  %v1713 = vrot.slane %v1457, 1
  %v1714 = vrot.slane %v1458, 1
  %v1715 = vrot.slane %v1459, 1
  %v1716 = vrot.slane %v1460, 1
  %v1717 = vrot.slane %v1461, 1
  %v1718 = vrot.slane %v1462, 1
  %v1719 = vrot.slane %v1463, 1
  %v1720 = vrot.slane %v1464, 1
  %v1721 = vrot.slane %v1465, 1
  %v1722 = vrot.slane %v1466, 1
  %v1723 = vrot.slane %v1467, 1
  %v1852 = vmax.f32 %v1340, %v1596
  %v1853 = vmax.f32 %v1341, %v1597
  %v1854 = vmax.f32 %v1342, %v1598
  %v1855 = vmax.f32 %v1343, %v1599
  %v1856 = vmax.f32 %v1344, %v1600
  %v1857 = vmax.f32 %v1345, %v1601
  %v1858 = vmax.f32 %v1346, %v1602
  %v1859 = vmax.f32 %v1347, %v1603
  %v1860 = vmax.f32 %v1348, %v1604
  %v1861 = vmax.f32 %v1349, %v1605
  %v1862 = vmax.f32 %v1350, %v1606
  %v1863 = vmax.f32 %v1351, %v1607
  %v1864 = vmax.f32 %v1352, %v1608
  %v1865 = vmax.f32 %v1353, %v1609
  %v1866 = vmax.f32 %v1354, %v1610
  %v1867 = vmax.f32 %v1355, %v1611
  %v1868 = vmax.f32 %v1356, %v1612
  %v1869 = vmax.f32 %v1357, %v1613
  %v1870 = vmax.f32 %v1358, %v1614
  %v1871 = vmax.f32 %v1359, %v1615
  %v1872 = vmax.f32 %v1360, %v1616
  %v1873 = vmax.f32 %v1361, %v1617
  %v1874 = vmax.f32 %v1362, %v1618
  %v1875 = vmax.f32 %v1363, %v1619
  %v1876 = vmax.f32 %v1364, %v1620
  %v1877 = vmax.f32 %v1365, %v1621
  %v1878 = vmax.f32 %v1366, %v1622
  %v1879 = vmax.f32 %v1367, %v1623
  %v1880 = vmax.f32 %v1368, %v1624
  %v1881 = vmax.f32 %v1369, %v1625
  %v1882 = vmax.f32 %v1370, %v1626
  %v1883 = vmax.f32 %v1371, %v1627
  %v1884 = vmax.f32 %v1372, %v1628
  %v1885 = vmax.f32 %v1373, %v1629
  %v1886 = vmax.f32 %v1374, %v1630
  %v1887 = vmax.f32 %v1375, %v1631
  %v1888 = vmax.f32 %v1376, %v1632
  %v1889 = vmax.f32 %v1377, %v1633
  %v1890 = vmax.f32 %v1378, %v1634
  %v1891 = vmax.f32 %v1379, %v1635
  %v1892 = vmax.f32 %v1380, %v1636
  %v1893 = vmax.f32 %v1381, %v1637
  %v1894 = vmax.f32 %v1382, %v1638
  %v1895 = vmax.f32 %v1383, %v1639
  %v1896 = vmax.f32 %v1384, %v1640
  %v1897 = vmax.f32 %v1385, %v1641
  %v1898 = vmax.f32 %v1386, %v1642
  %v1899 = vmax.f32 %v1387, %v1643
  %v1900 = vmax.f32 %v1388, %v1644
  %v1901 = vmax.f32 %v1389, %v1645
  %v1902 = vmax.f32 %v1390, %v1646
  %v1903 = vmax.f32 %v1391, %v1647
  %v1904 = vmax.f32 %v1392, %v1648
  %v1905 = vmax.f32 %v1393, %v1649
  %v1906 = vmax.f32 %v1394, %v1650
  %v1907 = vmax.f32 %v1395, %v1651
  %v1908 = vmax.f32 %v1396, %v1652
  %v1909 = vmax.f32 %v1397, %v1653
  %v1910 = vmax.f32 %v1398, %v1654
  %v1911 = vmax.f32 %v1399, %v1655
  %v1912 = vmax.f32 %v1400, %v1656
  %v1913 = vmax.f32 %v1401, %v1657
  %v1914 = vmax.f32 %v1402, %v1658
  %v1915 = vmax.f32 %v1403, %v1659
  %v1916 = vmax.f32 %v1404, %v1660
  %v1917 = vmax.f32 %v1405, %v1661
  %v1918 = vmax.f32 %v1406, %v1662
  %v1919 = vmax.f32 %v1407, %v1663
  %v1920 = vmax.f32 %v1408, %v1664
  %v1921 = vmax.f32 %v1409, %v1665
  %v1922 = vmax.f32 %v1410, %v1666
  %v1923 = vmax.f32 %v1411, %v1667
  %v1924 = vmax.f32 %v1412, %v1668
  %v1925 = vmax.f32 %v1413, %v1669
  %v1926 = vmax.f32 %v1414, %v1670
  %v1927 = vmax.f32 %v1415, %v1671
  %v1928 = vmax.f32 %v1416, %v1672
  %v1929 = vmax.f32 %v1417, %v1673
  %v1930 = vmax.f32 %v1418, %v1674
  %v1931 = vmax.f32 %v1419, %v1675
  %v1932 = vmax.f32 %v1420, %v1676
  %v1933 = vmax.f32 %v1421, %v1677
  %v1934 = vmax.f32 %v1422, %v1678
  %v1935 = vmax.f32 %v1423, %v1679
  %v1936 = vmax.f32 %v1424, %v1680
  %v1937 = vmax.f32 %v1425, %v1681
  %v1938 = vmax.f32 %v1426, %v1682
  %v1939 = vmax.f32 %v1427, %v1683
  %v1940 = vmax.f32 %v1428, %v1684
  %v1941 = vmax.f32 %v1429, %v1685
  %v1942 = vmax.f32 %v1430, %v1686
  %v1943 = vmax.f32 %v1431, %v1687
  %v1944 = vmax.f32 %v1432, %v1688
  %v1945 = vmax.f32 %v1433, %v1689
  %v1946 = vmax.f32 %v1434, %v1690
  %v1947 = vmax.f32 %v1435, %v1691
  %v1948 = vmax.f32 %v1436, %v1692
  %v1949 = vmax.f32 %v1437, %v1693
  %v1950 = vmax.f32 %v1438, %v1694
  %v1951 = vmax.f32 %v1439, %v1695
  %v1952 = vmax.f32 %v1440, %v1696
  %v1953 = vmax.f32 %v1441, %v1697
  %v1954 = vmax.f32 %v1442, %v1698
  %v1955 = vmax.f32 %v1443, %v1699
  %v1956 = vmax.f32 %v1444, %v1700
  %v1957 = vmax.f32 %v1445, %v1701
  %v1958 = vmax.f32 %v1446, %v1702
  %v1959 = vmax.f32 %v1447, %v1703
  %v1960 = vmax.f32 %v1448, %v1704
  %v1961 = vmax.f32 %v1449, %v1705
  %v1962 = vmax.f32 %v1450, %v1706
  %v1963 = vmax.f32 %v1451, %v1707
  %v1964 = vmax.f32 %v1452, %v1708
  %v1965 = vmax.f32 %v1453, %v1709
  %v1966 = vmax.f32 %v1454, %v1710
  %v1967 = vmax.f32 %v1455, %v1711
  %v1968 = vmax.f32 %v1456, %v1712
  %v1969 = vmax.f32 %v1457, %v1713
  %v1970 = vmax.f32 %v1458, %v1714
  %v1971 = vmax.f32 %v1459, %v1715
  %v1972 = vmax.f32 %v1460, %v1716
  %v1973 = vmax.f32 %v1461, %v1717
  %v1974 = vmax.f32 %v1462, %v1718
  %v1975 = vmax.f32 %v1463, %v1719
  %v1976 = vmax.f32 %v1464, %v1720
  %v1977 = vmax.f32 %v1465, %v1721
  %v1978 = vmax.f32 %v1466, %v1722
  %v1979 = vmax.f32 %v1467, %v1723
  %v1980 = vpack.c.bf16 %v1852, %v1852
  %v1981 = vpack.c.bf16 %v1853, %v1853
  %v1982 = vpack.c.bf16 %v1854, %v1854
  %v1983 = vpack.c.bf16 %v1855, %v1855
  %v1984 = vpack.c.bf16 %v1856, %v1856
  %v1985 = vpack.c.bf16 %v1857, %v1857
  %v1986 = vpack.c.bf16 %v1858, %v1858
  %v1987 = vpack.c.bf16 %v1859, %v1859
  %v1988 = vpack.c.bf16 %v1860, %v1860
  %v1989 = vpack.c.bf16 %v1861, %v1861
  %v1990 = vpack.c.bf16 %v1862, %v1862
  %v1991 = vpack.c.bf16 %v1863, %v1863
  %v1992 = vpack.c.bf16 %v1864, %v1864
  %v1993 = vpack.c.bf16 %v1865, %v1865
  %v1994 = vpack.c.bf16 %v1866, %v1866
  %v1995 = vpack.c.bf16 %v1867, %v1867
  %v1996 = vpack.c.bf16 %v1868, %v1868
  %v1997 = vpack.c.bf16 %v1869, %v1869
  %v1998 = vpack.c.bf16 %v1870, %v1870
  %v1999 = vpack.c.bf16 %v1871, %v1871
  %v2000 = vpack.c.bf16 %v1872, %v1872
  %v2001 = vpack.c.bf16 %v1873, %v1873
  %v2002 = vpack.c.bf16 %v1874, %v1874
  %v2003 = vpack.c.bf16 %v1875, %v1875
  %v2004 = vpack.c.bf16 %v1876, %v1876
  %v2005 = vpack.c.bf16 %v1877, %v1877
  %v2006 = vpack.c.bf16 %v1878, %v1878
  %v2007 = vpack.c.bf16 %v1879, %v1879
  %v2008 = vpack.c.bf16 %v1880, %v1880
  %v2009 = vpack.c.bf16 %v1881, %v1881
  %v2010 = vpack.c.bf16 %v1882, %v1882
  %v2011 = vpack.c.bf16 %v1883, %v1883
  %v2012 = vpack.c.bf16 %v1884, %v1884
  %v2013 = vpack.c.bf16 %v1885, %v1885
  %v2014 = vpack.c.bf16 %v1886, %v1886
  %v2015 = vpack.c.bf16 %v1887, %v1887
  %v2016 = vpack.c.bf16 %v1888, %v1888
  %v2017 = vpack.c.bf16 %v1889, %v1889
  %v2018 = vpack.c.bf16 %v1890, %v1890
  %v2019 = vpack.c.bf16 %v1891, %v1891
  %v2020 = vpack.c.bf16 %v1892, %v1892
  %v2021 = vpack.c.bf16 %v1893, %v1893
  %v2022 = vpack.c.bf16 %v1894, %v1894
  %v2023 = vpack.c.bf16 %v1895, %v1895
  %v2024 = vpack.c.bf16 %v1896, %v1896
  %v2025 = vpack.c.bf16 %v1897, %v1897
  %v2026 = vpack.c.bf16 %v1898, %v1898
  %v2027 = vpack.c.bf16 %v1899, %v1899
  %v2028 = vpack.c.bf16 %v1900, %v1900
  %v2029 = vpack.c.bf16 %v1901, %v1901
  %v2030 = vpack.c.bf16 %v1902, %v1902
  %v2031 = vpack.c.bf16 %v1903, %v1903
  %v2032 = vpack.c.bf16 %v1904, %v1904
  %v2033 = vpack.c.bf16 %v1905, %v1905
  %v2034 = vpack.c.bf16 %v1906, %v1906
  %v2035 = vpack.c.bf16 %v1907, %v1907
  %v2036 = vpack.c.bf16 %v1908, %v1908
  %v2037 = vpack.c.bf16 %v1909, %v1909
  %v2038 = vpack.c.bf16 %v1910, %v1910
  %v2039 = vpack.c.bf16 %v1911, %v1911
  %v2040 = vpack.c.bf16 %v1912, %v1912
  %v2041 = vpack.c.bf16 %v1913, %v1913
  %v2042 = vpack.c.bf16 %v1914, %v1914
  %v2043 = vpack.c.bf16 %v1915, %v1915
  %v2044 = vpack.c.bf16 %v1916, %v1916
  %v2045 = vpack.c.bf16 %v1917, %v1917
  %v2046 = vpack.c.bf16 %v1918, %v1918
  %v2047 = vpack.c.bf16 %v1919, %v1919
  %v2048 = vpack.c.bf16 %v1920, %v1920
  %v2049 = vpack.c.bf16 %v1921, %v1921
  %v2050 = vpack.c.bf16 %v1922, %v1922
  %v2051 = vpack.c.bf16 %v1923, %v1923
  %v2052 = vpack.c.bf16 %v1924, %v1924
  %v2053 = vpack.c.bf16 %v1925, %v1925
  %v2054 = vpack.c.bf16 %v1926, %v1926
  %v2055 = vpack.c.bf16 %v1927, %v1927
  %v2056 = vpack.c.bf16 %v1928, %v1928
  %v2057 = vpack.c.bf16 %v1929, %v1929
  %v2058 = vpack.c.bf16 %v1930, %v1930
  %v2059 = vpack.c.bf16 %v1931, %v1931
  %v2060 = vpack.c.bf16 %v1932, %v1932
  %v2061 = vpack.c.bf16 %v1933, %v1933
  %v2062 = vpack.c.bf16 %v1934, %v1934
  %v2063 = vpack.c.bf16 %v1935, %v1935
  %v2064 = vpack.c.bf16 %v1936, %v1936
  %v2065 = vpack.c.bf16 %v1937, %v1937
  %v2066 = vpack.c.bf16 %v1938, %v1938
  %v2067 = vpack.c.bf16 %v1939, %v1939
  %v2068 = vpack.c.bf16 %v1940, %v1940
  %v2069 = vpack.c.bf16 %v1941, %v1941
  %v2070 = vpack.c.bf16 %v1942, %v1942
  %v2071 = vpack.c.bf16 %v1943, %v1943
  %v2072 = vpack.c.bf16 %v1944, %v1944
  %v2073 = vpack.c.bf16 %v1945, %v1945
  %v2074 = vpack.c.bf16 %v1946, %v1946
  %v2075 = vpack.c.bf16 %v1947, %v1947
  %v2076 = vpack.c.bf16 %v1948, %v1948
  %v2077 = vpack.c.bf16 %v1949, %v1949
  %v2078 = vpack.c.bf16 %v1950, %v1950
  %v2079 = vpack.c.bf16 %v1951, %v1951
  %v2080 = vpack.c.bf16 %v1952, %v1952
  %v2081 = vpack.c.bf16 %v1953, %v1953
  %v2082 = vpack.c.bf16 %v1954, %v1954
  %v2083 = vpack.c.bf16 %v1955, %v1955
  %v2084 = vpack.c.bf16 %v1956, %v1956
  %v2085 = vpack.c.bf16 %v1957, %v1957
  %v2086 = vpack.c.bf16 %v1958, %v1958
  %v2087 = vpack.c.bf16 %v1959, %v1959
  %v2088 = vpack.c.bf16 %v1960, %v1960
  %v2089 = vpack.c.bf16 %v1961, %v1961
  %v2090 = vpack.c.bf16 %v1962, %v1962
  %v2091 = vpack.c.bf16 %v1963, %v1963
  %v2092 = vpack.c.bf16 %v1964, %v1964
  %v2093 = vpack.c.bf16 %v1965, %v1965
  %v2094 = vpack.c.bf16 %v1966, %v1966
  %v2095 = vpack.c.bf16 %v1967, %v1967
  %v2096 = vpack.c.bf16 %v1968, %v1968
  %v2097 = vpack.c.bf16 %v1969, %v1969
  %v2098 = vpack.c.bf16 %v1970, %v1970
  %v2099 = vpack.c.bf16 %v1971, %v1971
  %v2100 = vpack.c.bf16 %v1972, %v1972
  %v2101 = vpack.c.bf16 %v1973, %v1973
  %v2102 = vpack.c.bf16 %v1974, %v1974
  %v2103 = vpack.c.bf16 %v1975, %v1975
  %v2104 = vpack.c.bf16 %v1976, %v1976
  %v2105 = vpack.c.bf16 %v1977, %v1977
  %v2106 = vpack.c.bf16 %v1978, %v1978
  %v2107 = vpack.c.bf16 %v1979, %v1979
  %v2108 = vunpack.c.l.bf16 %v1980
  %v2109 = vunpack.c.l.bf16 %v1981
  %v2110 = vunpack.c.l.bf16 %v1982
  %v2111 = vunpack.c.l.bf16 %v1983
  %v2112 = vunpack.c.l.bf16 %v1984
  %v2113 = vunpack.c.l.bf16 %v1985
  %v2114 = vunpack.c.l.bf16 %v1986
  %v2115 = vunpack.c.l.bf16 %v1987
  %v2116 = vunpack.c.l.bf16 %v1988
  %v2117 = vunpack.c.l.bf16 %v1989
  %v2118 = vunpack.c.l.bf16 %v1990
  %v2119 = vunpack.c.l.bf16 %v1991
  %v2120 = vunpack.c.l.bf16 %v1992
  %v2121 = vunpack.c.l.bf16 %v1993
  %v2122 = vunpack.c.l.bf16 %v1994
  %v2123 = vunpack.c.l.bf16 %v1995
  %v2124 = vunpack.c.l.bf16 %v1996
  %v2125 = vunpack.c.l.bf16 %v1997
  %v2126 = vunpack.c.l.bf16 %v1998
  %v2127 = vunpack.c.l.bf16 %v1999
  %v2128 = vunpack.c.l.bf16 %v2000
  %v2129 = vunpack.c.l.bf16 %v2001
  %v2130 = vunpack.c.l.bf16 %v2002
  %v2131 = vunpack.c.l.bf16 %v2003
  %v2132 = vunpack.c.l.bf16 %v2004
  %v2133 = vunpack.c.l.bf16 %v2005
  %v2134 = vunpack.c.l.bf16 %v2006
  %v2135 = vunpack.c.l.bf16 %v2007
  %v2136 = vunpack.c.l.bf16 %v2008
  %v2137 = vunpack.c.l.bf16 %v2009
  %v2138 = vunpack.c.l.bf16 %v2010
  %v2139 = vunpack.c.l.bf16 %v2011
  %v2140 = vunpack.c.l.bf16 %v2012
  %v2141 = vunpack.c.l.bf16 %v2013
  %v2142 = vunpack.c.l.bf16 %v2014
  %v2143 = vunpack.c.l.bf16 %v2015
  %v2144 = vunpack.c.l.bf16 %v2016
  %v2145 = vunpack.c.l.bf16 %v2017
  %v2146 = vunpack.c.l.bf16 %v2018
  %v2147 = vunpack.c.l.bf16 %v2019
  %v2148 = vunpack.c.l.bf16 %v2020
  %v2149 = vunpack.c.l.bf16 %v2021
  %v2150 = vunpack.c.l.bf16 %v2022
  %v2151 = vunpack.c.l.bf16 %v2023
  %v2152 = vunpack.c.l.bf16 %v2024
  %v2153 = vunpack.c.l.bf16 %v2025
  %v2154 = vunpack.c.l.bf16 %v2026
  %v2155 = vunpack.c.l.bf16 %v2027
  %v2156 = vunpack.c.l.bf16 %v2028
  %v2157 = vunpack.c.l.bf16 %v2029
  %v2158 = vunpack.c.l.bf16 %v2030
  %v2159 = vunpack.c.l.bf16 %v2031
  %v2160 = vunpack.c.l.bf16 %v2032
  %v2161 = vunpack.c.l.bf16 %v2033
  %v2162 = vunpack.c.l.bf16 %v2034
  %v2163 = vunpack.c.l.bf16 %v2035
  %v2164 = vunpack.c.l.bf16 %v2036
  %v2165 = vunpack.c.l.bf16 %v2037
  %v2166 = vunpack.c.l.bf16 %v2038
  %v2167 = vunpack.c.l.bf16 %v2039
  %v2168 = vunpack.c.l.bf16 %v2040
  %v2169 = vunpack.c.l.bf16 %v2041
  %v2170 = vunpack.c.l.bf16 %v2042
  %v2171 = vunpack.c.l.bf16 %v2043
  %v2172 = vunpack.c.l.bf16 %v2044
  %v2173 = vunpack.c.l.bf16 %v2045
  %v2174 = vunpack.c.l.bf16 %v2046
  %v2175 = vunpack.c.l.bf16 %v2047
  %v2176 = vunpack.c.l.bf16 %v2048
  %v2177 = vunpack.c.l.bf16 %v2049
  %v2178 = vunpack.c.l.bf16 %v2050
  %v2179 = vunpack.c.l.bf16 %v2051
  %v2180 = vunpack.c.l.bf16 %v2052
  %v2181 = vunpack.c.l.bf16 %v2053
  %v2182 = vunpack.c.l.bf16 %v2054
  %v2183 = vunpack.c.l.bf16 %v2055
  %v2184 = vunpack.c.l.bf16 %v2056
  %v2185 = vunpack.c.l.bf16 %v2057
  %v2186 = vunpack.c.l.bf16 %v2058
  %v2187 = vunpack.c.l.bf16 %v2059
  %v2188 = vunpack.c.l.bf16 %v2060
  %v2189 = vunpack.c.l.bf16 %v2061
  %v2190 = vunpack.c.l.bf16 %v2062
  %v2191 = vunpack.c.l.bf16 %v2063
  %v2192 = vunpack.c.l.bf16 %v2064
  %v2193 = vunpack.c.l.bf16 %v2065
  %v2194 = vunpack.c.l.bf16 %v2066
  %v2195 = vunpack.c.l.bf16 %v2067
  %v2196 = vunpack.c.l.bf16 %v2068
  %v2197 = vunpack.c.l.bf16 %v2069
  %v2198 = vunpack.c.l.bf16 %v2070
  %v2199 = vunpack.c.l.bf16 %v2071
  %v2200 = vunpack.c.l.bf16 %v2072
  %v2201 = vunpack.c.l.bf16 %v2073
  %v2202 = vunpack.c.l.bf16 %v2074
  %v2203 = vunpack.c.l.bf16 %v2075
  %v2204 = vunpack.c.l.bf16 %v2076
  %v2205 = vunpack.c.l.bf16 %v2077
  %v2206 = vunpack.c.l.bf16 %v2078
  %v2207 = vunpack.c.l.bf16 %v2079
  %v2208 = vunpack.c.l.bf16 %v2080
  %v2209 = vunpack.c.l.bf16 %v2081
  %v2210 = vunpack.c.l.bf16 %v2082
  %v2211 = vunpack.c.l.bf16 %v2083
  %v2212 = vunpack.c.l.bf16 %v2084
  %v2213 = vunpack.c.l.bf16 %v2085
  %v2214 = vunpack.c.l.bf16 %v2086
  %v2215 = vunpack.c.l.bf16 %v2087
  %v2216 = vunpack.c.l.bf16 %v2088
  %v2217 = vunpack.c.l.bf16 %v2089
  %v2218 = vunpack.c.l.bf16 %v2090
  %v2219 = vunpack.c.l.bf16 %v2091
  %v2220 = vunpack.c.l.bf16 %v2092
  %v2221 = vunpack.c.l.bf16 %v2093
  %v2222 = vunpack.c.l.bf16 %v2094
  %v2223 = vunpack.c.l.bf16 %v2095
  %v2224 = vunpack.c.l.bf16 %v2096
  %v2225 = vunpack.c.l.bf16 %v2097
  %v2226 = vunpack.c.l.bf16 %v2098
  %v2227 = vunpack.c.l.bf16 %v2099
  %v2228 = vunpack.c.l.bf16 %v2100
  %v2229 = vunpack.c.l.bf16 %v2101
  %v2230 = vunpack.c.l.bf16 %v2102
  %v2231 = vunpack.c.l.bf16 %v2103
  %v2232 = vunpack.c.l.bf16 %v2104
  %v2233 = vunpack.c.l.bf16 %v2105
  %v2234 = vunpack.c.l.bf16 %v2106
  %v2235 = vunpack.c.l.bf16 %v2107
  %v2236 = vunpack.c.l.bf16 %v1204
  %v2237 = vunpack.c.l.bf16 %v1213
  %v2238 = vunpack.c.l.bf16 %v1222
  %v2239 = vunpack.c.l.bf16 %v1231
  %v2240 = vunpack.c.l.bf16 %v1240
  %v2241 = vunpack.c.l.bf16 %v1249
  %v2242 = vunpack.c.l.bf16 %v1258
  %v2243 = vunpack.c.l.bf16 %v1267
  %v2244 = vunpack.c.l.bf16 %v1276
  %v2245 = vunpack.c.l.bf16 %v1285
  %v2246 = vunpack.c.l.bf16 %v1294
  %v2247 = vunpack.c.l.bf16 %v1303
  %v2248 = vunpack.c.l.bf16 %v1312
  %v2249 = vunpack.c.l.bf16 %v1321
  %v2250 = vunpack.c.l.bf16 %v1330
  %v2251 = vunpack.c.l.bf16 %v1339
  %v2252 = vmax.f32 %v2108, %v1341
  %v2253 = vmax.f32 %v2109, %v1342
  %v2254 = vmax.f32 %v2110, %v1343
  %v2255 = vmax.f32 %v2111, %v1344
  %v2256 = vmax.f32 %v2112, %v1345
  %v2257 = vmax.f32 %v2113, %v1346
  %v2258 = vmax.f32 %v2114, %v1347
  %v2259 = vmax.f32 %v2115, %v2236
  %v2260 = vmax.f32 %v2116, %v1349
  %v2261 = vmax.f32 %v2117, %v1350
  %v2262 = vmax.f32 %v2118, %v1351
  %v2263 = vmax.f32 %v2119, %v1352
  %v2264 = vmax.f32 %v2120, %v1353
  %v2265 = vmax.f32 %v2121, %v1354
  %v2266 = vmax.f32 %v2122, %v1355
  %v2267 = vmax.f32 %v2123, %v2237
  %v2268 = vmax.f32 %v2124, %v1357
  %v2269 = vmax.f32 %v2125, %v1358
  %v2270 = vmax.f32 %v2126, %v1359
  %v2271 = vmax.f32 %v2127, %v1360
  %v2272 = vmax.f32 %v2128, %v1361
  %v2273 = vmax.f32 %v2129, %v1362
  %v2274 = vmax.f32 %v2130, %v1363
  %v2275 = vmax.f32 %v2131, %v2238
  %v2276 = vmax.f32 %v2132, %v1365
  %v2277 = vmax.f32 %v2133, %v1366
  %v2278 = vmax.f32 %v2134, %v1367
  %v2279 = vmax.f32 %v2135, %v1368
  %v2280 = vmax.f32 %v2136, %v1369
  %v2281 = vmax.f32 %v2137, %v1370
  %v2282 = vmax.f32 %v2138, %v1371
  %v2283 = vmax.f32 %v2139, %v2239
  %v2284 = vmax.f32 %v2140, %v1373
  %v2285 = vmax.f32 %v2141, %v1374
  %v2286 = vmax.f32 %v2142, %v1375
  %v2287 = vmax.f32 %v2143, %v1376
  %v2288 = vmax.f32 %v2144, %v1377
  %v2289 = vmax.f32 %v2145, %v1378
  %v2290 = vmax.f32 %v2146, %v1379
  %v2291 = vmax.f32 %v2147, %v2240
  %v2292 = vmax.f32 %v2148, %v1381
  %v2293 = vmax.f32 %v2149, %v1382
  %v2294 = vmax.f32 %v2150, %v1383
  %v2295 = vmax.f32 %v2151, %v1384
  %v2296 = vmax.f32 %v2152, %v1385
  %v2297 = vmax.f32 %v2153, %v1386
  %v2298 = vmax.f32 %v2154, %v1387
  %v2299 = vmax.f32 %v2155, %v2241
  %v2300 = vmax.f32 %v2156, %v1389
  %v2301 = vmax.f32 %v2157, %v1390
  %v2302 = vmax.f32 %v2158, %v1391
  %v2303 = vmax.f32 %v2159, %v1392
  %v2304 = vmax.f32 %v2160, %v1393
  %v2305 = vmax.f32 %v2161, %v1394
  %v2306 = vmax.f32 %v2162, %v1395
  %v2307 = vmax.f32 %v2163, %v2242
  %v2308 = vmax.f32 %v2164, %v1397
  %v2309 = vmax.f32 %v2165, %v1398
  %v2310 = vmax.f32 %v2166, %v1399
  %v2311 = vmax.f32 %v2167, %v1400
  %v2312 = vmax.f32 %v2168, %v1401
  %v2313 = vmax.f32 %v2169, %v1402
  %v2314 = vmax.f32 %v2170, %v1403
  %v2315 = vmax.f32 %v2171, %v2243
  %v2316 = vmax.f32 %v2172, %v1405
  %v2317 = vmax.f32 %v2173, %v1406
  %v2318 = vmax.f32 %v2174, %v1407
  %v2319 = vmax.f32 %v2175, %v1408
  %v2320 = vmax.f32 %v2176, %v1409
  %v2321 = vmax.f32 %v2177, %v1410
  %v2322 = vmax.f32 %v2178, %v1411
  %v2323 = vmax.f32 %v2179, %v2244
  %v2324 = vmax.f32 %v2180, %v1413
  %v2325 = vmax.f32 %v2181, %v1414
  %v2326 = vmax.f32 %v2182, %v1415
  %v2327 = vmax.f32 %v2183, %v1416
  %v2328 = vmax.f32 %v2184, %v1417
  %v2329 = vmax.f32 %v2185, %v1418
  %v2330 = vmax.f32 %v2186, %v1419
  %v2331 = vmax.f32 %v2187, %v2245
  %v2332 = vmax.f32 %v2188, %v1421
  %v2333 = vmax.f32 %v2189, %v1422
  %v2334 = vmax.f32 %v2190, %v1423
  %v2335 = vmax.f32 %v2191, %v1424
  %v2336 = vmax.f32 %v2192, %v1425
  %v2337 = vmax.f32 %v2193, %v1426
  %v2338 = vmax.f32 %v2194, %v1427
  %v2339 = vmax.f32 %v2195, %v2246
  %v2340 = vmax.f32 %v2196, %v1429
  %v2341 = vmax.f32 %v2197, %v1430
  %v2342 = vmax.f32 %v2198, %v1431
  %v2343 = vmax.f32 %v2199, %v1432
  %v2344 = vmax.f32 %v2200, %v1433
  %v2345 = vmax.f32 %v2201, %v1434
  %v2346 = vmax.f32 %v2202, %v1435
  %v2347 = vmax.f32 %v2203, %v2247
  %v2348 = vmax.f32 %v2204, %v1437
  %v2349 = vmax.f32 %v2205, %v1438
  %v2350 = vmax.f32 %v2206, %v1439
  %v2351 = vmax.f32 %v2207, %v1440
  %v2352 = vmax.f32 %v2208, %v1441
  %v2353 = vmax.f32 %v2209, %v1442
  %v2354 = vmax.f32 %v2210, %v1443
  %v2355 = vmax.f32 %v2211, %v2248
  %v2356 = vmax.f32 %v2212, %v1445
  %v2357 = vmax.f32 %v2213, %v1446
  %v2358 = vmax.f32 %v2214, %v1447
  %v2359 = vmax.f32 %v2215, %v1448
  %v2360 = vmax.f32 %v2216, %v1449
  %v2361 = vmax.f32 %v2217, %v1450
  %v2362 = vmax.f32 %v2218, %v1451
  %v2363 = vmax.f32 %v2219, %v2249
  %v2364 = vmax.f32 %v2220, %v1453
  %v2365 = vmax.f32 %v2221, %v1454
  %v2366 = vmax.f32 %v2222, %v1455
  %v2367 = vmax.f32 %v2223, %v1456
  %v2368 = vmax.f32 %v2224, %v1457
  %v2369 = vmax.f32 %v2225, %v1458
  %v2370 = vmax.f32 %v2226, %v1459
  %v2371 = vmax.f32 %v2227, %v2250
  %v2372 = vmax.f32 %v2228, %v1461
  %v2373 = vmax.f32 %v2229, %v1462
  %v2374 = vmax.f32 %v2230, %v1463
  %v2375 = vmax.f32 %v2231, %v1464
  %v2376 = vmax.f32 %v2232, %v1465
  %v2377 = vmax.f32 %v2233, %v1466
  %v2378 = vmax.f32 %v2234, %v1467
  %v2379 = vmax.f32 %v2235, %v2251
  %v2380 = vpack.c.bf16 %v2252, %v2252
  %v2381 = vpack.c.bf16 %v2253, %v2253
  %v2382 = vpack.c.bf16 %v2254, %v2254
  %v2383 = vpack.c.bf16 %v2255, %v2255
  %v2384 = vpack.c.bf16 %v2256, %v2256
  %v2385 = vpack.c.bf16 %v2257, %v2257
  %v2386 = vpack.c.bf16 %v2258, %v2258
  %v2387 = vpack.c.bf16 %v2259, %v2259
  %v2388 = vpack.c.bf16 %v2260, %v2260
  %v2389 = vpack.c.bf16 %v2261, %v2261
  %v2390 = vpack.c.bf16 %v2262, %v2262
  %v2391 = vpack.c.bf16 %v2263, %v2263
  %v2392 = vpack.c.bf16 %v2264, %v2264
  %v2393 = vpack.c.bf16 %v2265, %v2265
  %v2394 = vpack.c.bf16 %v2266, %v2266
  %v2395 = vpack.c.bf16 %v2267, %v2267
  %v2396 = vpack.c.bf16 %v2268, %v2268
  %v2397 = vpack.c.bf16 %v2269, %v2269
  %v2398 = vpack.c.bf16 %v2270, %v2270
  %v2399 = vpack.c.bf16 %v2271, %v2271
  %v2400 = vpack.c.bf16 %v2272, %v2272
  %v2401 = vpack.c.bf16 %v2273, %v2273
  %v2402 = vpack.c.bf16 %v2274, %v2274
  %v2403 = vpack.c.bf16 %v2275, %v2275
  %v2404 = vpack.c.bf16 %v2276, %v2276
  %v2405 = vpack.c.bf16 %v2277, %v2277
  %v2406 = vpack.c.bf16 %v2278, %v2278
  %v2407 = vpack.c.bf16 %v2279, %v2279
  %v2408 = vpack.c.bf16 %v2280, %v2280
  %v2409 = vpack.c.bf16 %v2281, %v2281
  %v2410 = vpack.c.bf16 %v2282, %v2282
  %v2411 = vpack.c.bf16 %v2283, %v2283
  %v2412 = vpack.c.bf16 %v2284, %v2284
  %v2413 = vpack.c.bf16 %v2285, %v2285
  %v2414 = vpack.c.bf16 %v2286, %v2286
  %v2415 = vpack.c.bf16 %v2287, %v2287
  %v2416 = vpack.c.bf16 %v2288, %v2288
  %v2417 = vpack.c.bf16 %v2289, %v2289
  %v2418 = vpack.c.bf16 %v2290, %v2290
  %v2419 = vpack.c.bf16 %v2291, %v2291
  %v2420 = vpack.c.bf16 %v2292, %v2292
  %v2421 = vpack.c.bf16 %v2293, %v2293
  %v2422 = vpack.c.bf16 %v2294, %v2294
  %v2423 = vpack.c.bf16 %v2295, %v2295
  %v2424 = vpack.c.bf16 %v2296, %v2296
  %v2425 = vpack.c.bf16 %v2297, %v2297
  %v2426 = vpack.c.bf16 %v2298, %v2298
  %v2427 = vpack.c.bf16 %v2299, %v2299
  %v2428 = vpack.c.bf16 %v2300, %v2300
  %v2429 = vpack.c.bf16 %v2301, %v2301
  %v2430 = vpack.c.bf16 %v2302, %v2302
  %v2431 = vpack.c.bf16 %v2303, %v2303
  %v2432 = vpack.c.bf16 %v2304, %v2304
  %v2433 = vpack.c.bf16 %v2305, %v2305
  %v2434 = vpack.c.bf16 %v2306, %v2306
  %v2435 = vpack.c.bf16 %v2307, %v2307
  %v2436 = vpack.c.bf16 %v2308, %v2308
  %v2437 = vpack.c.bf16 %v2309, %v2309
  %v2438 = vpack.c.bf16 %v2310, %v2310
  %v2439 = vpack.c.bf16 %v2311, %v2311
  %v2440 = vpack.c.bf16 %v2312, %v2312
  %v2441 = vpack.c.bf16 %v2313, %v2313
  %v2442 = vpack.c.bf16 %v2314, %v2314
  %v2443 = vpack.c.bf16 %v2315, %v2315
  %v2444 = vpack.c.bf16 %v2316, %v2316
  %v2445 = vpack.c.bf16 %v2317, %v2317
  %v2446 = vpack.c.bf16 %v2318, %v2318
  %v2447 = vpack.c.bf16 %v2319, %v2319
  %v2448 = vpack.c.bf16 %v2320, %v2320
  %v2449 = vpack.c.bf16 %v2321, %v2321
  %v2450 = vpack.c.bf16 %v2322, %v2322
  %v2451 = vpack.c.bf16 %v2323, %v2323
  %v2452 = vpack.c.bf16 %v2324, %v2324
  %v2453 = vpack.c.bf16 %v2325, %v2325
  %v2454 = vpack.c.bf16 %v2326, %v2326
  %v2455 = vpack.c.bf16 %v2327, %v2327
  %v2456 = vpack.c.bf16 %v2328, %v2328
  %v2457 = vpack.c.bf16 %v2329, %v2329
  %v2458 = vpack.c.bf16 %v2330, %v2330
  %v2459 = vpack.c.bf16 %v2331, %v2331
  %v2460 = vpack.c.bf16 %v2332, %v2332
  %v2461 = vpack.c.bf16 %v2333, %v2333
  %v2462 = vpack.c.bf16 %v2334, %v2334
  %v2463 = vpack.c.bf16 %v2335, %v2335
  %v2464 = vpack.c.bf16 %v2336, %v2336
  %v2465 = vpack.c.bf16 %v2337, %v2337
  %v2466 = vpack.c.bf16 %v2338, %v2338
  %v2467 = vpack.c.bf16 %v2339, %v2339
  %v2468 = vpack.c.bf16 %v2340, %v2340
  %v2469 = vpack.c.bf16 %v2341, %v2341
  %v2470 = vpack.c.bf16 %v2342, %v2342
  %v2471 = vpack.c.bf16 %v2343, %v2343
  %v2472 = vpack.c.bf16 %v2344, %v2344
  %v2473 = vpack.c.bf16 %v2345, %v2345
  %v2474 = vpack.c.bf16 %v2346, %v2346
  %v2475 = vpack.c.bf16 %v2347, %v2347
  %v2476 = vpack.c.bf16 %v2348, %v2348
  %v2477 = vpack.c.bf16 %v2349, %v2349
  %v2478 = vpack.c.bf16 %v2350, %v2350
  %v2479 = vpack.c.bf16 %v2351, %v2351
  %v2480 = vpack.c.bf16 %v2352, %v2352
  %v2481 = vpack.c.bf16 %v2353, %v2353
  %v2482 = vpack.c.bf16 %v2354, %v2354
  %v2483 = vpack.c.bf16 %v2355, %v2355
  %v2484 = vpack.c.bf16 %v2356, %v2356
  %v2485 = vpack.c.bf16 %v2357, %v2357
  %v2486 = vpack.c.bf16 %v2358, %v2358
  %v2487 = vpack.c.bf16 %v2359, %v2359
  %v2488 = vpack.c.bf16 %v2360, %v2360
  %v2489 = vpack.c.bf16 %v2361, %v2361
  %v2490 = vpack.c.bf16 %v2362, %v2362
  %v2491 = vpack.c.bf16 %v2363, %v2363
  %v2492 = vpack.c.bf16 %v2364, %v2364
  %v2493 = vpack.c.bf16 %v2365, %v2365
  %v2494 = vpack.c.bf16 %v2366, %v2366
  %v2495 = vpack.c.bf16 %v2367, %v2367
  %v2496 = vpack.c.bf16 %v2368, %v2368
  %v2497 = vpack.c.bf16 %v2369, %v2369
  %v2498 = vpack.c.bf16 %v2370, %v2370
  %v2499 = vpack.c.bf16 %v2371, %v2371
  %v2500 = vpack.c.bf16 %v2372, %v2372
  %v2501 = vpack.c.bf16 %v2373, %v2373
  %v2502 = vpack.c.bf16 %v2374, %v2374
  %v2503 = vpack.c.bf16 %v2375, %v2375
  %v2504 = vpack.c.bf16 %v2376, %v2376
  %v2505 = vpack.c.bf16 %v2377, %v2377
  %v2506 = vpack.c.bf16 %v2378, %v2378
  %v2507 = vpack.c.bf16 %v2379, %v2379
  %vm2508 = vcmask 122880
  %vm2509 = vsmask.f32 256
  %vm2510 = vmand %vm2508, %vm2509
  %v2511 = vld [vmem:[%s1] sm:$0x1]
  %v2512 = vsel %vm2510, %v2380, %v2511
  %2513 = vst [vmem:[%s1] sm:$0x1] %v2512
  %v2514 = vld [vmem:[%s1 + $0x1] sm:$0x1]
  %v2515 = vsel %vm2510, %v2381, %v2514
  %2516 = vst [vmem:[%s1 + $0x1] sm:$0x1] %v2515
  %v2517 = vld [vmem:[%s1 + $0x2] sm:$0x1]
  %v2518 = vsel %vm2510, %v2382, %v2517
  %2519 = vst [vmem:[%s1 + $0x2] sm:$0x1] %v2518
  %v2520 = vld [vmem:[%s1 + $0x3] sm:$0x1]
  %v2521 = vsel %vm2510, %v2383, %v2520
  %2522 = vst [vmem:[%s1 + $0x3] sm:$0x1] %v2521
  %v2523 = vld [vmem:[%s1 + $0x4] sm:$0x1]
  %v2524 = vsel %vm2510, %v2384, %v2523
  %2525 = vst [vmem:[%s1 + $0x4] sm:$0x1] %v2524
  %v2526 = vld [vmem:[%s1 + $0x5] sm:$0x1]
  %v2527 = vsel %vm2510, %v2385, %v2526
  %2528 = vst [vmem:[%s1 + $0x5] sm:$0x1] %v2527
  %v2529 = vld [vmem:[%s1 + $0x6] sm:$0x1]
  %v2530 = vsel %vm2510, %v2386, %v2529
  %2531 = vst [vmem:[%s1 + $0x6] sm:$0x1] %v2530
  %v2532 = vld [vmem:[%s1 + $0x7] sm:$0x1]
  %v2533 = vsel %vm2510, %v2387, %v2532
  %2534 = vst [vmem:[%s1 + $0x7] sm:$0x1] %v2533
  %v2535 = vld [vmem:[%s1 + $0x8] sm:$0x1]
  %v2536 = vsel %vm2510, %v2388, %v2535
  %2537 = vst [vmem:[%s1 + $0x8] sm:$0x1] %v2536
  %v2538 = vld [vmem:[%s1 + $0x9] sm:$0x1]
  %v2539 = vsel %vm2510, %v2389, %v2538
  %2540 = vst [vmem:[%s1 + $0x9] sm:$0x1] %v2539
  %v2541 = vld [vmem:[%s1 + $0xa] sm:$0x1]
  %v2542 = vsel %vm2510, %v2390, %v2541
  %2543 = vst [vmem:[%s1 + $0xa] sm:$0x1] %v2542
  %v2544 = vld [vmem:[%s1 + $0xb] sm:$0x1]
  %v2545 = vsel %vm2510, %v2391, %v2544
  %2546 = vst [vmem:[%s1 + $0xb] sm:$0x1] %v2545
  %v2547 = vld [vmem:[%s1 + $0xc] sm:$0x1]
  %v2548 = vsel %vm2510, %v2392, %v2547
  %2549 = vst [vmem:[%s1 + $0xc] sm:$0x1] %v2548
  %v2550 = vld [vmem:[%s1 + $0xd] sm:$0x1]
  %v2551 = vsel %vm2510, %v2393, %v2550
  %2552 = vst [vmem:[%s1 + $0xd] sm:$0x1] %v2551
  %v2553 = vld [vmem:[%s1 + $0xe] sm:$0x1]
  %v2554 = vsel %vm2510, %v2394, %v2553
  %2555 = vst [vmem:[%s1 + $0xe] sm:$0x1] %v2554
  %v2556 = vld [vmem:[%s1 + $0xf] sm:$0x1]
  %v2557 = vsel %vm2510, %v2395, %v2556
  %2558 = vst [vmem:[%s1 + $0xf] sm:$0x1] %v2557
  %v2559 = vld [vmem:[%s1 + $0x10] sm:$0x1]
  %v2560 = vsel %vm2510, %v2396, %v2559
  %2561 = vst [vmem:[%s1 + $0x10] sm:$0x1] %v2560
  %v2562 = vld [vmem:[%s1 + $0x11] sm:$0x1]
  %v2563 = vsel %vm2510, %v2397, %v2562
  %2564 = vst [vmem:[%s1 + $0x11] sm:$0x1] %v2563
  %v2565 = vld [vmem:[%s1 + $0x12] sm:$0x1]
  %v2566 = vsel %vm2510, %v2398, %v2565
  %2567 = vst [vmem:[%s1 + $0x12] sm:$0x1] %v2566
  %v2568 = vld [vmem:[%s1 + $0x13] sm:$0x1]
  %v2569 = vsel %vm2510, %v2399, %v2568
  %2570 = vst [vmem:[%s1 + $0x13] sm:$0x1] %v2569
  %v2571 = vld [vmem:[%s1 + $0x14] sm:$0x1]
  %v2572 = vsel %vm2510, %v2400, %v2571
  %2573 = vst [vmem:[%s1 + $0x14] sm:$0x1] %v2572
  %v2574 = vld [vmem:[%s1 + $0x15] sm:$0x1]
  %v2575 = vsel %vm2510, %v2401, %v2574
  %2576 = vst [vmem:[%s1 + $0x15] sm:$0x1] %v2575
  %v2577 = vld [vmem:[%s1 + $0x16] sm:$0x1]
  %v2578 = vsel %vm2510, %v2402, %v2577
  %2579 = vst [vmem:[%s1 + $0x16] sm:$0x1] %v2578
  %v2580 = vld [vmem:[%s1 + $0x17] sm:$0x1]
  %v2581 = vsel %vm2510, %v2403, %v2580
  %2582 = vst [vmem:[%s1 + $0x17] sm:$0x1] %v2581
  %v2583 = vld [vmem:[%s1 + $0x18] sm:$0x1]
  %v2584 = vsel %vm2510, %v2404, %v2583
  %2585 = vst [vmem:[%s1 + $0x18] sm:$0x1] %v2584
  %v2586 = vld [vmem:[%s1 + $0x19] sm:$0x1]
  %v2587 = vsel %vm2510, %v2405, %v2586
  %2588 = vst [vmem:[%s1 + $0x19] sm:$0x1] %v2587
  %v2589 = vld [vmem:[%s1 + $0x1a] sm:$0x1]
  %v2590 = vsel %vm2510, %v2406, %v2589
  %2591 = vst [vmem:[%s1 + $0x1a] sm:$0x1] %v2590
  %v2592 = vld [vmem:[%s1 + $0x1b] sm:$0x1]
  %v2593 = vsel %vm2510, %v2407, %v2592
  %2594 = vst [vmem:[%s1 + $0x1b] sm:$0x1] %v2593
  %v2595 = vld [vmem:[%s1 + $0x1c] sm:$0x1]
  %v2596 = vsel %vm2510, %v2408, %v2595
  %2597 = vst [vmem:[%s1 + $0x1c] sm:$0x1] %v2596
  %v2598 = vld [vmem:[%s1 + $0x1d] sm:$0x1]
  %v2599 = vsel %vm2510, %v2409, %v2598
  %2600 = vst [vmem:[%s1 + $0x1d] sm:$0x1] %v2599
  %v2601 = vld [vmem:[%s1 + $0x1e] sm:$0x1]
  %v2602 = vsel %vm2510, %v2410, %v2601
  %2603 = vst [vmem:[%s1 + $0x1e] sm:$0x1] %v2602
  %v2604 = vld [vmem:[%s1 + $0x1f] sm:$0x1]
  %v2605 = vsel %vm2510, %v2411, %v2604
  %2606 = vst [vmem:[%s1 + $0x1f] sm:$0x1] %v2605
  %v2607 = vld [vmem:[%s1 + $0x20] sm:$0x1]
  %v2608 = vsel %vm2510, %v2412, %v2607
  %2609 = vst [vmem:[%s1 + $0x20] sm:$0x1] %v2608
  %v2610 = vld [vmem:[%s1 + $0x21] sm:$0x1]
  %v2611 = vsel %vm2510, %v2413, %v2610
  %2612 = vst [vmem:[%s1 + $0x21] sm:$0x1] %v2611
  %v2613 = vld [vmem:[%s1 + $0x22] sm:$0x1]
  %v2614 = vsel %vm2510, %v2414, %v2613
  %2615 = vst [vmem:[%s1 + $0x22] sm:$0x1] %v2614
  %v2616 = vld [vmem:[%s1 + $0x23] sm:$0x1]
  %v2617 = vsel %vm2510, %v2415, %v2616
  %2618 = vst [vmem:[%s1 + $0x23] sm:$0x1] %v2617
  %v2619 = vld [vmem:[%s1 + $0x24] sm:$0x1]
  %v2620 = vsel %vm2510, %v2416, %v2619
  %2621 = vst [vmem:[%s1 + $0x24] sm:$0x1] %v2620
  %v2622 = vld [vmem:[%s1 + $0x25] sm:$0x1]
  %v2623 = vsel %vm2510, %v2417, %v2622
  %2624 = vst [vmem:[%s1 + $0x25] sm:$0x1] %v2623
  %v2625 = vld [vmem:[%s1 + $0x26] sm:$0x1]
  %v2626 = vsel %vm2510, %v2418, %v2625
  %2627 = vst [vmem:[%s1 + $0x26] sm:$0x1] %v2626
  %v2628 = vld [vmem:[%s1 + $0x27] sm:$0x1]
  %v2629 = vsel %vm2510, %v2419, %v2628
  %2630 = vst [vmem:[%s1 + $0x27] sm:$0x1] %v2629
  %v2631 = vld [vmem:[%s1 + $0x28] sm:$0x1]
  %v2632 = vsel %vm2510, %v2420, %v2631
  %2633 = vst [vmem:[%s1 + $0x28] sm:$0x1] %v2632
  %v2634 = vld [vmem:[%s1 + $0x29] sm:$0x1]
  %v2635 = vsel %vm2510, %v2421, %v2634
  %2636 = vst [vmem:[%s1 + $0x29] sm:$0x1] %v2635
  %v2637 = vld [vmem:[%s1 + $0x2a] sm:$0x1]
  %v2638 = vsel %vm2510, %v2422, %v2637
  %2639 = vst [vmem:[%s1 + $0x2a] sm:$0x1] %v2638
  %v2640 = vld [vmem:[%s1 + $0x2b] sm:$0x1]
  %v2641 = vsel %vm2510, %v2423, %v2640
  %2642 = vst [vmem:[%s1 + $0x2b] sm:$0x1] %v2641
  %v2643 = vld [vmem:[%s1 + $0x2c] sm:$0x1]
  %v2644 = vsel %vm2510, %v2424, %v2643
  %2645 = vst [vmem:[%s1 + $0x2c] sm:$0x1] %v2644
  %v2646 = vld [vmem:[%s1 + $0x2d] sm:$0x1]
  %v2647 = vsel %vm2510, %v2425, %v2646
  %2648 = vst [vmem:[%s1 + $0x2d] sm:$0x1] %v2647
  %v2649 = vld [vmem:[%s1 + $0x2e] sm:$0x1]
  %v2650 = vsel %vm2510, %v2426, %v2649
  %2651 = vst [vmem:[%s1 + $0x2e] sm:$0x1] %v2650
  %v2652 = vld [vmem:[%s1 + $0x2f] sm:$0x1]
  %v2653 = vsel %vm2510, %v2427, %v2652
  %2654 = vst [vmem:[%s1 + $0x2f] sm:$0x1] %v2653
  %v2655 = vld [vmem:[%s1 + $0x30] sm:$0x1]
  %v2656 = vsel %vm2510, %v2428, %v2655
  %2657 = vst [vmem:[%s1 + $0x30] sm:$0x1] %v2656
  %v2658 = vld [vmem:[%s1 + $0x31] sm:$0x1]
  %v2659 = vsel %vm2510, %v2429, %v2658
  %2660 = vst [vmem:[%s1 + $0x31] sm:$0x1] %v2659
  %v2661 = vld [vmem:[%s1 + $0x32] sm:$0x1]
  %v2662 = vsel %vm2510, %v2430, %v2661
  %2663 = vst [vmem:[%s1 + $0x32] sm:$0x1] %v2662
  %v2664 = vld [vmem:[%s1 + $0x33] sm:$0x1]
  %v2665 = vsel %vm2510, %v2431, %v2664
  %2666 = vst [vmem:[%s1 + $0x33] sm:$0x1] %v2665
  %v2667 = vld [vmem:[%s1 + $0x34] sm:$0x1]
  %v2668 = vsel %vm2510, %v2432, %v2667
  %2669 = vst [vmem:[%s1 + $0x34] sm:$0x1] %v2668
  %v2670 = vld [vmem:[%s1 + $0x35] sm:$0x1]
  %v2671 = vsel %vm2510, %v2433, %v2670
  %2672 = vst [vmem:[%s1 + $0x35] sm:$0x1] %v2671
  %v2673 = vld [vmem:[%s1 + $0x36] sm:$0x1]
  %v2674 = vsel %vm2510, %v2434, %v2673
  %2675 = vst [vmem:[%s1 + $0x36] sm:$0x1] %v2674
  %v2676 = vld [vmem:[%s1 + $0x37] sm:$0x1]
  %v2677 = vsel %vm2510, %v2435, %v2676
  %2678 = vst [vmem:[%s1 + $0x37] sm:$0x1] %v2677
  %v2679 = vld [vmem:[%s1 + $0x38] sm:$0x1]
  %v2680 = vsel %vm2510, %v2436, %v2679
  %2681 = vst [vmem:[%s1 + $0x38] sm:$0x1] %v2680
  %v2682 = vld [vmem:[%s1 + $0x39] sm:$0x1]
  %v2683 = vsel %vm2510, %v2437, %v2682
  %2684 = vst [vmem:[%s1 + $0x39] sm:$0x1] %v2683
  %v2685 = vld [vmem:[%s1 + $0x3a] sm:$0x1]
  %v2686 = vsel %vm2510, %v2438, %v2685
  %2687 = vst [vmem:[%s1 + $0x3a] sm:$0x1] %v2686
  %v2688 = vld [vmem:[%s1 + $0x3b] sm:$0x1]
  %v2689 = vsel %vm2510, %v2439, %v2688
  %2690 = vst [vmem:[%s1 + $0x3b] sm:$0x1] %v2689
  %v2691 = vld [vmem:[%s1 + $0x3c] sm:$0x1]
  %v2692 = vsel %vm2510, %v2440, %v2691
  %2693 = vst [vmem:[%s1 + $0x3c] sm:$0x1] %v2692
  %v2694 = vld [vmem:[%s1 + $0x3d] sm:$0x1]
  %v2695 = vsel %vm2510, %v2441, %v2694
  %2696 = vst [vmem:[%s1 + $0x3d] sm:$0x1] %v2695
  %v2697 = vld [vmem:[%s1 + $0x3e] sm:$0x1]
  %v2698 = vsel %vm2510, %v2442, %v2697
  %2699 = vst [vmem:[%s1 + $0x3e] sm:$0x1] %v2698
  %v2700 = vld [vmem:[%s1 + $0x3f] sm:$0x1]
  %v2701 = vsel %vm2510, %v2443, %v2700
  %2702 = vst [vmem:[%s1 + $0x3f] sm:$0x1] %v2701
  %v2703 = vld [vmem:[%s1 + $0x40] sm:$0x1]
  %v2704 = vsel %vm2510, %v2444, %v2703
  %2705 = vst [vmem:[%s1 + $0x40] sm:$0x1] %v2704
  %v2706 = vld [vmem:[%s1 + $0x41] sm:$0x1]
  %v2707 = vsel %vm2510, %v2445, %v2706
  %2708 = vst [vmem:[%s1 + $0x41] sm:$0x1] %v2707
  %v2709 = vld [vmem:[%s1 + $0x42] sm:$0x1]
  %v2710 = vsel %vm2510, %v2446, %v2709
  %2711 = vst [vmem:[%s1 + $0x42] sm:$0x1] %v2710
  %v2712 = vld [vmem:[%s1 + $0x43] sm:$0x1]
  %v2713 = vsel %vm2510, %v2447, %v2712
  %2714 = vst [vmem:[%s1 + $0x43] sm:$0x1] %v2713
  %v2715 = vld [vmem:[%s1 + $0x44] sm:$0x1]
  %v2716 = vsel %vm2510, %v2448, %v2715
  %2717 = vst [vmem:[%s1 + $0x44] sm:$0x1] %v2716
  %v2718 = vld [vmem:[%s1 + $0x45] sm:$0x1]
  %v2719 = vsel %vm2510, %v2449, %v2718
  %2720 = vst [vmem:[%s1 + $0x45] sm:$0x1] %v2719
  %v2721 = vld [vmem:[%s1 + $0x46] sm:$0x1]
  %v2722 = vsel %vm2510, %v2450, %v2721
  %2723 = vst [vmem:[%s1 + $0x46] sm:$0x1] %v2722
  %v2724 = vld [vmem:[%s1 + $0x47] sm:$0x1]
  %v2725 = vsel %vm2510, %v2451, %v2724
  %2726 = vst [vmem:[%s1 + $0x47] sm:$0x1] %v2725
  %v2727 = vld [vmem:[%s1 + $0x48] sm:$0x1]
  %v2728 = vsel %vm2510, %v2452, %v2727
  %2729 = vst [vmem:[%s1 + $0x48] sm:$0x1] %v2728
  %v2730 = vld [vmem:[%s1 + $0x49] sm:$0x1]
  %v2731 = vsel %vm2510, %v2453, %v2730
  %2732 = vst [vmem:[%s1 + $0x49] sm:$0x1] %v2731
  %v2733 = vld [vmem:[%s1 + $0x4a] sm:$0x1]
  %v2734 = vsel %vm2510, %v2454, %v2733
  %2735 = vst [vmem:[%s1 + $0x4a] sm:$0x1] %v2734
  %v2736 = vld [vmem:[%s1 + $0x4b] sm:$0x1]
  %v2737 = vsel %vm2510, %v2455, %v2736
  %2738 = vst [vmem:[%s1 + $0x4b] sm:$0x1] %v2737
  %v2739 = vld [vmem:[%s1 + $0x4c] sm:$0x1]
  %v2740 = vsel %vm2510, %v2456, %v2739
  %2741 = vst [vmem:[%s1 + $0x4c] sm:$0x1] %v2740
  %v2742 = vld [vmem:[%s1 + $0x4d] sm:$0x1]
  %v2743 = vsel %vm2510, %v2457, %v2742
  %2744 = vst [vmem:[%s1 + $0x4d] sm:$0x1] %v2743
  %v2745 = vld [vmem:[%s1 + $0x4e] sm:$0x1]
  %v2746 = vsel %vm2510, %v2458, %v2745
  %2747 = vst [vmem:[%s1 + $0x4e] sm:$0x1] %v2746
  %v2748 = vld [vmem:[%s1 + $0x4f] sm:$0x1]
  %v2749 = vsel %vm2510, %v2459, %v2748
  %2750 = vst [vmem:[%s1 + $0x4f] sm:$0x1] %v2749
  %v2751 = vld [vmem:[%s1 + $0x50] sm:$0x1]
  %v2752 = vsel %vm2510, %v2460, %v2751
  %2753 = vst [vmem:[%s1 + $0x50] sm:$0x1] %v2752
  %v2754 = vld [vmem:[%s1 + $0x51] sm:$0x1]
  %v2755 = vsel %vm2510, %v2461, %v2754
  %2756 = vst [vmem:[%s1 + $0x51] sm:$0x1] %v2755
  %v2757 = vld [vmem:[%s1 + $0x52] sm:$0x1]
  %v2758 = vsel %vm2510, %v2462, %v2757
  %2759 = vst [vmem:[%s1 + $0x52] sm:$0x1] %v2758
  %v2760 = vld [vmem:[%s1 + $0x53] sm:$0x1]
  %v2761 = vsel %vm2510, %v2463, %v2760
  %2762 = vst [vmem:[%s1 + $0x53] sm:$0x1] %v2761
  %v2763 = vld [vmem:[%s1 + $0x54] sm:$0x1]
  %v2764 = vsel %vm2510, %v2464, %v2763
  %2765 = vst [vmem:[%s1 + $0x54] sm:$0x1] %v2764
  %v2766 = vld [vmem:[%s1 + $0x55] sm:$0x1]
  %v2767 = vsel %vm2510, %v2465, %v2766
  %2768 = vst [vmem:[%s1 + $0x55] sm:$0x1] %v2767
  %v2769 = vld [vmem:[%s1 + $0x56] sm:$0x1]
  %v2770 = vsel %vm2510, %v2466, %v2769
  %2771 = vst [vmem:[%s1 + $0x56] sm:$0x1] %v2770
  %v2772 = vld [vmem:[%s1 + $0x57] sm:$0x1]
  %v2773 = vsel %vm2510, %v2467, %v2772
  %2774 = vst [vmem:[%s1 + $0x57] sm:$0x1] %v2773
  %v2775 = vld [vmem:[%s1 + $0x58] sm:$0x1]
  %v2776 = vsel %vm2510, %v2468, %v2775
  %2777 = vst [vmem:[%s1 + $0x58] sm:$0x1] %v2776
  %v2778 = vld [vmem:[%s1 + $0x59] sm:$0x1]
  %v2779 = vsel %vm2510, %v2469, %v2778
  %2780 = vst [vmem:[%s1 + $0x59] sm:$0x1] %v2779
  %v2781 = vld [vmem:[%s1 + $0x5a] sm:$0x1]
  %v2782 = vsel %vm2510, %v2470, %v2781
  %2783 = vst [vmem:[%s1 + $0x5a] sm:$0x1] %v2782
  %v2784 = vld [vmem:[%s1 + $0x5b] sm:$0x1]
  %v2785 = vsel %vm2510, %v2471, %v2784
  %2786 = vst [vmem:[%s1 + $0x5b] sm:$0x1] %v2785
  %v2787 = vld [vmem:[%s1 + $0x5c] sm:$0x1]
  %v2788 = vsel %vm2510, %v2472, %v2787
  %2789 = vst [vmem:[%s1 + $0x5c] sm:$0x1] %v2788
  %v2790 = vld [vmem:[%s1 + $0x5d] sm:$0x1]
  %v2791 = vsel %vm2510, %v2473, %v2790
  %2792 = vst [vmem:[%s1 + $0x5d] sm:$0x1] %v2791
  %v2793 = vld [vmem:[%s1 + $0x5e] sm:$0x1]
  %v2794 = vsel %vm2510, %v2474, %v2793
  %2795 = vst [vmem:[%s1 + $0x5e] sm:$0x1] %v2794
  %v2796 = vld [vmem:[%s1 + $0x5f] sm:$0x1]
  %v2797 = vsel %vm2510, %v2475, %v2796
  %2798 = vst [vmem:[%s1 + $0x5f] sm:$0x1] %v2797
  %v2799 = vld [vmem:[%s1 + $0x60] sm:$0x1]
  %v2800 = vsel %vm2510, %v2476, %v2799
  %2801 = vst [vmem:[%s1 + $0x60] sm:$0x1] %v2800
  %v2802 = vld [vmem:[%s1 + $0x61] sm:$0x1]
  %v2803 = vsel %vm2510, %v2477, %v2802
  %2804 = vst [vmem:[%s1 + $0x61] sm:$0x1] %v2803
  %v2805 = vld [vmem:[%s1 + $0x62] sm:$0x1]
  %v2806 = vsel %vm2510, %v2478, %v2805
  %2807 = vst [vmem:[%s1 + $0x62] sm:$0x1] %v2806
  %v2808 = vld [vmem:[%s1 + $0x63] sm:$0x1]
  %v2809 = vsel %vm2510, %v2479, %v2808
  %2810 = vst [vmem:[%s1 + $0x63] sm:$0x1] %v2809
  %v2811 = vld [vmem:[%s1 + $0x64] sm:$0x1]
  %v2812 = vsel %vm2510, %v2480, %v2811
  %2813 = vst [vmem:[%s1 + $0x64] sm:$0x1] %v2812
  %v2814 = vld [vmem:[%s1 + $0x65] sm:$0x1]
  %v2815 = vsel %vm2510, %v2481, %v2814
  %2816 = vst [vmem:[%s1 + $0x65] sm:$0x1] %v2815
  %v2817 = vld [vmem:[%s1 + $0x66] sm:$0x1]
  %v2818 = vsel %vm2510, %v2482, %v2817
  %2819 = vst [vmem:[%s1 + $0x66] sm:$0x1] %v2818
  %v2820 = vld [vmem:[%s1 + $0x67] sm:$0x1]
  %v2821 = vsel %vm2510, %v2483, %v2820
  %2822 = vst [vmem:[%s1 + $0x67] sm:$0x1] %v2821
  %v2823 = vld [vmem:[%s1 + $0x68] sm:$0x1]
  %v2824 = vsel %vm2510, %v2484, %v2823
  %2825 = vst [vmem:[%s1 + $0x68] sm:$0x1] %v2824
  %v2826 = vld [vmem:[%s1 + $0x69] sm:$0x1]
  %v2827 = vsel %vm2510, %v2485, %v2826
  %2828 = vst [vmem:[%s1 + $0x69] sm:$0x1] %v2827
  %v2829 = vld [vmem:[%s1 + $0x6a] sm:$0x1]
  %v2830 = vsel %vm2510, %v2486, %v2829
  %2831 = vst [vmem:[%s1 + $0x6a] sm:$0x1] %v2830
  %v2832 = vld [vmem:[%s1 + $0x6b] sm:$0x1]
  %v2833 = vsel %vm2510, %v2487, %v2832
  %2834 = vst [vmem:[%s1 + $0x6b] sm:$0x1] %v2833
  %v2835 = vld [vmem:[%s1 + $0x6c] sm:$0x1]
  %v2836 = vsel %vm2510, %v2488, %v2835
  %2837 = vst [vmem:[%s1 + $0x6c] sm:$0x1] %v2836
  %v2838 = vld [vmem:[%s1 + $0x6d] sm:$0x1]
  %v2839 = vsel %vm2510, %v2489, %v2838
  %2840 = vst [vmem:[%s1 + $0x6d] sm:$0x1] %v2839
  %v2841 = vld [vmem:[%s1 + $0x6e] sm:$0x1]
  %v2842 = vsel %vm2510, %v2490, %v2841
  %2843 = vst [vmem:[%s1 + $0x6e] sm:$0x1] %v2842
  %v2844 = vld [vmem:[%s1 + $0x6f] sm:$0x1]
  %v2845 = vsel %vm2510, %v2491, %v2844
  %2846 = vst [vmem:[%s1 + $0x6f] sm:$0x1] %v2845
  %v2847 = vld [vmem:[%s1 + $0x70] sm:$0x1]
  %v2848 = vsel %vm2510, %v2492, %v2847
  %2849 = vst [vmem:[%s1 + $0x70] sm:$0x1] %v2848
  %v2850 = vld [vmem:[%s1 + $0x71] sm:$0x1]
  %v2851 = vsel %vm2510, %v2493, %v2850
  %2852 = vst [vmem:[%s1 + $0x71] sm:$0x1] %v2851
  %v2853 = vld [vmem:[%s1 + $0x72] sm:$0x1]
  %v2854 = vsel %vm2510, %v2494, %v2853
  %2855 = vst [vmem:[%s1 + $0x72] sm:$0x1] %v2854
  %v2856 = vld [vmem:[%s1 + $0x73] sm:$0x1]
  %v2857 = vsel %vm2510, %v2495, %v2856
  %2858 = vst [vmem:[%s1 + $0x73] sm:$0x1] %v2857
  %v2859 = vld [vmem:[%s1 + $0x74] sm:$0x1]
  %v2860 = vsel %vm2510, %v2496, %v2859
  %2861 = vst [vmem:[%s1 + $0x74] sm:$0x1] %v2860
  %v2862 = vld [vmem:[%s1 + $0x75] sm:$0x1]
  %v2863 = vsel %vm2510, %v2497, %v2862
  %2864 = vst [vmem:[%s1 + $0x75] sm:$0x1] %v2863
  %v2865 = vld [vmem:[%s1 + $0x76] sm:$0x1]
  %v2866 = vsel %vm2510, %v2498, %v2865
  %2867 = vst [vmem:[%s1 + $0x76] sm:$0x1] %v2866
  %v2868 = vld [vmem:[%s1 + $0x77] sm:$0x1]
  %v2869 = vsel %vm2510, %v2499, %v2868
  %2870 = vst [vmem:[%s1 + $0x77] sm:$0x1] %v2869
  %v2871 = vld [vmem:[%s1 + $0x78] sm:$0x1]
  %v2872 = vsel %vm2510, %v2500, %v2871
  %2873 = vst [vmem:[%s1 + $0x78] sm:$0x1] %v2872
  %v2874 = vld [vmem:[%s1 + $0x79] sm:$0x1]
  %v2875 = vsel %vm2510, %v2501, %v2874
  %2876 = vst [vmem:[%s1 + $0x79] sm:$0x1] %v2875
  %v2877 = vld [vmem:[%s1 + $0x7a] sm:$0x1]
  %v2878 = vsel %vm2510, %v2502, %v2877
  %2879 = vst [vmem:[%s1 + $0x7a] sm:$0x1] %v2878
  %v2880 = vld [vmem:[%s1 + $0x7b] sm:$0x1]
  %v2881 = vsel %vm2510, %v2503, %v2880
  %2882 = vst [vmem:[%s1 + $0x7b] sm:$0x1] %v2881
  %v2883 = vld [vmem:[%s1 + $0x7c] sm:$0x1]
  %v2884 = vsel %vm2510, %v2504, %v2883
  %2885 = vst [vmem:[%s1 + $0x7c] sm:$0x1] %v2884
  %v2886 = vld [vmem:[%s1 + $0x7d] sm:$0x1]
  %v2887 = vsel %vm2510, %v2505, %v2886
  %2888 = vst [vmem:[%s1 + $0x7d] sm:$0x1] %v2887
  %v2889 = vld [vmem:[%s1 + $0x7e] sm:$0x1]
  %v2890 = vsel %vm2510, %v2506, %v2889
  %2891 = vst [vmem:[%s1 + $0x7e] sm:$0x1] %v2890
  %v2892 = vld [vmem:[%s1 + $0x7f] sm:$0x1]
  %v2893 = vsel %vm2510, %v2507, %v2892
  %2894 = vst [vmem:[%s1 + $0x7f] sm:$0x1] %v2893
  // Predicated region
  $region6: #{param_lenet_forward.18} parent=0 // pred_check
    _
  $region7: #{param_lenet_forward.18} parent=0 // pred_check_branch
    %2896 = sbr.rel (0) target = $region9
  $region8: #{param_lenet_forward.18} parent=0 // pred_region
    _
  $region9: #{param_lenet_forward.18} parent=0 // pred_fallthru
    _
  // Predicated region
  $region10: #{param_lenet_forward.18} parent=0 // pred_check
    _
  $region11: #{param_lenet_forward.18} parent=0 // pred_check_branch
    %2898 = sbr.rel (0) target = $region13
  $region12: #{param_lenet_forward.18} parent=0 // pred_region
    _
  $region13: #{param_lenet_forward.18} parent=0 // pred_fallthru
    _

// kernel: param_lenet_forward.26
$region0: #{param_lenet_forward.26}
  #allocation0 [shape = 'u32[]', space=smem, size = 0x4, offset = 0x4, fixed_abs, tag = 'smem constant byte address 0x4 - core index']
  #allocation1 [shape = 'u32[72,128]{1,0:T(1,128)}', space=vmem, size = 0x9000, scoped, tag = 'internal scratch']
  #allocation2 [shape = 'f32[32,128]{1,0:T(8,128)}', space=vmem, size = 0x4000, scoped, tag = 'scratch operand']
  %s0 = inlined_call_operand.vmem [shape: bf16[32,256], index: 0, kind: input, shape index: {}]
  %s1 = inlined_call_operand.vmem [shape: bf16[256,128], index: 1, kind: input, shape index: {}]
  %s2 = inlined_call_operand.vmem [shape: bf16[32,128], index: 2, kind: output, shape index: {}]
  %s3 = sld [smem:[#allocation0]]
  $region26: #{param_lenet_forward.26} parent=0
    _
  %s5 = ssub.s32 1, %s3
  %s6 = scalar_select 0, %s5, %s3
  // Predicated region
  $region2: #{param_lenet_forward.26} parent=0 // pred_check
    _
  $region3: #{param_lenet_forward.26} parent=0 // pred_check_branch
    %8 = sbr.rel (0) target = $region5
  $region4: #{param_lenet_forward.26} parent=0 // pred_region
    _
  $region5: #{param_lenet_forward.26} parent=0 // pred_fallthru
    _
  // Predicated region
  $region6: #{param_lenet_forward.26} parent=0 // pred_check
    _
  $region7: #{param_lenet_forward.26} parent=0 // pred_check_branch
    %10 = sbr.rel (0) target = $region9
  $region8: #{param_lenet_forward.26} parent=0 // pred_region
    _
  $region9: #{param_lenet_forward.26} parent=0 // pred_fallthru
    _
  %p11 = scmp.eq.s32.totalorder 0, 0
  // Predicated region
  $region10: #{param_lenet_forward.26} parent=0 // pred_check
    %p12 = pneg %p11
  $region11: #{param_lenet_forward.26} parent=0 // pred_check_branch
    %14 = sbr.rel (%p12) target = $region13
  $region12: #{param_lenet_forward.26} parent=0 // pred_region
    %15 = vst [vmem:[#allocation2] sm:$0xff] 0.0
    %16 = vst [vmem:[#allocation2 + $0x8] sm:$0xff] 0.0
    %17 = vst [vmem:[#allocation2 + $0x10] sm:$0xff] 0.0
    %18 = vst [vmem:[#allocation2 + $0x18] sm:$0xff] 0.0
  $region13: #{param_lenet_forward.26} parent=0 // pred_fallthru
    _
  %v19 = vld [vmem:[%s0] sm:$0xff]
  %v20 = vld [vmem:[%s0 + $0x8] sm:$0xff]
  %v21 = vld [vmem:[%s0 + $0x10] sm:$0xff]
  %v22 = vld [vmem:[%s0 + $0x18] sm:$0xff]
  %v23 = vld [vmem:[#allocation2] sm:$0xff]
  %v24 = vld [vmem:[#allocation2 + $0x8] sm:$0xff]
  %v25 = vld [vmem:[#allocation2 + $0x10] sm:$0xff]
  %v26 = vld [vmem:[#allocation2 + $0x18] sm:$0xff]
  %v27 = vld [vmem:[%s1] sm:$0xf]
  %v28 = vld [vmem:[%s1 + $0x4] sm:$0xf]
  %v29 = vld [vmem:[%s1 + $0x8] sm:$0xf]
  %v30 = vld [vmem:[%s1 + $0xc] sm:$0xf]
  %v31 = vld [vmem:[%s1 + $0x10] sm:$0xf]
  %v32 = vld [vmem:[%s1 + $0x14] sm:$0xf]
  %v33 = vld [vmem:[%s1 + $0x18] sm:$0xf]
  %v34 = vld [vmem:[%s1 + $0x1c] sm:$0xf]
  %v35 = vld [vmem:[%s1 + $0x20] sm:$0xf]
  %v36 = vld [vmem:[%s1 + $0x24] sm:$0xf]
  %v37 = vld [vmem:[%s1 + $0x28] sm:$0xf]
  %v38 = vld [vmem:[%s1 + $0x2c] sm:$0xf]
  %v39 = vld [vmem:[%s1 + $0x30] sm:$0xf]
  %v40 = vld [vmem:[%s1 + $0x34] sm:$0xf]
  %v41 = vld [vmem:[%s1 + $0x38] sm:$0xf]
  %v42 = vld [vmem:[%s1 + $0x3c] sm:$0xf]
  %v43 = vld [vmem:[%s1 + $0x40] sm:$0xf]
  %v44 = vld [vmem:[%s1 + $0x44] sm:$0xf]
  %v45 = vld [vmem:[%s1 + $0x48] sm:$0xf]
  %v46 = vld [vmem:[%s1 + $0x4c] sm:$0xf]
  %v47 = vld [vmem:[%s1 + $0x50] sm:$0xf]
  %v48 = vld [vmem:[%s1 + $0x54] sm:$0xf]
  %v49 = vld [vmem:[%s1 + $0x58] sm:$0xf]
  %v50 = vld [vmem:[%s1 + $0x5c] sm:$0xf]
  %v51 = vld [vmem:[%s1 + $0x60] sm:$0xf]
  %v52 = vld [vmem:[%s1 + $0x64] sm:$0xf]
  %v53 = vld [vmem:[%s1 + $0x68] sm:$0xf]
  %v54 = vld [vmem:[%s1 + $0x6c] sm:$0xf]
  %v55 = vld [vmem:[%s1 + $0x70] sm:$0xf]
  %v56 = vld [vmem:[%s1 + $0x74] sm:$0xf]
  %v57 = vld [vmem:[%s1 + $0x78] sm:$0xf]
  %v58 = vld [vmem:[%s1 + $0x7c] sm:$0xf]
  %v63 = vunpack.c.l.b16 %v19
  %v64 = vunpack.c.h.b16 %v19
  %v65 = vunpack.c.l.b16 %v20
  %v66 = vunpack.c.h.b16 %v20
  %v67 = vunpack.c.l.b16 %v21
  %v68 = vunpack.c.h.b16 %v21
  %v69 = vunpack.c.l.b16 %v22
  %v70 = vunpack.c.h.b16 %v22
  %v71 = vpack.c.b16 %v65, %v63
  %v72 = vpack.c.b16 %v66, %v64
  %v73 = vpack.c.b16 %v69, %v67
  %v74 = vpack.c.b16 %v70, %v68
  %v111 = vunpack.c.l.b16 %v27
  %v112 = vunpack.c.l.b16 %v28
  %v113 = vunpack.c.l.b16 %v29
  %v114 = vunpack.c.l.b16 %v30
  %v115 = vunpack.c.l.b16 %v31
  %v116 = vunpack.c.l.b16 %v32
  %v117 = vunpack.c.l.b16 %v33
  %v118 = vunpack.c.l.b16 %v34
  %v119 = vunpack.c.l.b16 %v35
  %v120 = vunpack.c.l.b16 %v36
  %v121 = vunpack.c.l.b16 %v37
  %v122 = vunpack.c.l.b16 %v38
  %v123 = vunpack.c.l.b16 %v39
  %v124 = vunpack.c.l.b16 %v40
  %v125 = vunpack.c.l.b16 %v41
  %v126 = vunpack.c.l.b16 %v42
  %v127 = vunpack.c.l.b16 %v43
  %v128 = vunpack.c.l.b16 %v44
  %v129 = vunpack.c.l.b16 %v45
  %v130 = vunpack.c.l.b16 %v46
  %v131 = vunpack.c.l.b16 %v47
  %v132 = vunpack.c.l.b16 %v48
  %v133 = vunpack.c.l.b16 %v49
  %v134 = vunpack.c.l.b16 %v50
  %v135 = vunpack.c.l.b16 %v51
  %v136 = vunpack.c.l.b16 %v52
  %v137 = vunpack.c.l.b16 %v53
  %v138 = vunpack.c.l.b16 %v54
  %v139 = vunpack.c.l.b16 %v55
  %v140 = vunpack.c.l.b16 %v56
  %v141 = vunpack.c.l.b16 %v57
  %v142 = vunpack.c.l.b16 %v58
  %v143 = vpack.c.b16 %v112, %v111
  %v144 = vpack.c.b16 %v114, %v113
  %v145 = vpack.c.b16 %v116, %v115
  %v146 = vpack.c.b16 %v118, %v117
  %v147 = vpack.c.b16 %v120, %v119
  %v148 = vpack.c.b16 %v122, %v121
  %v149 = vpack.c.b16 %v124, %v123
  %v150 = vpack.c.b16 %v126, %v125
  %v151 = vpack.c.b16 %v128, %v127
  %v152 = vpack.c.b16 %v130, %v129
  %v153 = vpack.c.b16 %v132, %v131
  %v154 = vpack.c.b16 %v134, %v133
  %v155 = vpack.c.b16 %v136, %v135
  %v156 = vpack.c.b16 %v138, %v137
  %v157 = vpack.c.b16 %v140, %v139
  %v158 = vpack.c.b16 %v142, %v141
  %175 = vmatpush.bf16.msra.mxu0 %v150
  %176 = vmatpush.bf16.msra.mxu0 %v149
  %177 = vmatpush.bf16.msra.mxu0 %v148
  %178 = vmatpush.bf16.msra.mxu0 %v147
  %179 = vmatpush.bf16.msra.mxu0 %v146
  %180 = vmatpush.bf16.msra.mxu0 %v145
  %181 = vmatpush.bf16.msra.mxu0 %v144
  %182 = vmatpush.bf16.msra.mxu0 %v143
  %183 = vmatmul.bf16.gmra.mxu0 %v71
  %v184 = vpop.f32.mrf.mxu0
  %v185 = vadd.f32 0.0, %v184
  %v186 = vpop.f32.mrf.mxu0
  %v187 = vadd.f32 0.0, %v186
  %188 = vmatmul.bf16.gmra.mxu0 %v73
  %v189 = vpop.f32.mrf.mxu0
  %v190 = vadd.f32 0.0, %v189
  %v191 = vpop.f32.mrf.mxu0
  %v192 = vadd.f32 0.0, %v191
  %193 = vdwg.mxu0
  %194 = vmatpush.bf16.msra.mxu0 %v158
  %195 = vmatpush.bf16.msra.mxu0 %v157
  %196 = vmatpush.bf16.msra.mxu0 %v156
  %197 = vmatpush.bf16.msra.mxu0 %v155
  %198 = vmatpush.bf16.msra.mxu0 %v154
  %199 = vmatpush.bf16.msra.mxu0 %v153
  %200 = vmatpush.bf16.msra.mxu0 %v152
  %201 = vmatpush.bf16.msra.mxu0 %v151
  %202 = vmatmul.bf16.gmra.mxu0 %v72
  %v203 = vpop.f32.mrf.mxu0
  %v204 = vadd.f32 %v185, %v203
  %v205 = vpop.f32.mrf.mxu0
  %v206 = vadd.f32 %v187, %v205
  %207 = vmatmul.bf16.gmra.mxu0 %v74
  %v208 = vpop.f32.mrf.mxu0
  %v209 = vadd.f32 %v190, %v208
  %v210 = vpop.f32.mrf.mxu0
  %v211 = vadd.f32 %v192, %v210
  %212 = vdwg.mxu0
  %v213 = vadd.f32 %v23, %v204
  %v214 = vadd.f32 %v24, %v206
  %v215 = vadd.f32 %v25, %v209
  %v216 = vadd.f32 %v26, %v211
  %217 = vst [vmem:[#allocation2] sm:$0xff] %v213
  %218 = vst [vmem:[#allocation2 + $0x8] sm:$0xff] %v214
  %219 = vst [vmem:[#allocation2 + $0x10] sm:$0xff] %v215
  %220 = vst [vmem:[#allocation2 + $0x18] sm:$0xff] %v216
  // Predicated region
  $region14: #{param_lenet_forward.26} parent=0 // pred_check
    %p221 = pneg %p11
  $region15: #{param_lenet_forward.26} parent=0 // pred_check_branch
    %223 = sbr.rel (%p221) target = $region17
  $region16: #{param_lenet_forward.26} parent=0 // pred_region
    %v224 = vld [vmem:[#allocation2] sm:$0xff]
    %v225 = vld [vmem:[#allocation2 + $0x8] sm:$0xff]
    %v226 = vld [vmem:[#allocation2 + $0x10] sm:$0xff]
    %v227 = vld [vmem:[#allocation2 + $0x18] sm:$0xff]
    %v228 = vpack.c.bf16 %v224, %v224
    %v229 = vpack.c.bf16 %v225, %v225
    %v230 = vpack.c.bf16 %v226, %v226
    %v231 = vpack.c.bf16 %v227, %v227
    %232 = vst [vmem:[%s2] sm:$0xf] %v228
    %233 = vst [vmem:[%s2 + $0x4] sm:$0xf] %v229
    %234 = vst [vmem:[%s2 + $0x8] sm:$0xf] %v230
    %235 = vst [vmem:[%s2 + $0xc] sm:$0xf] %v231
  $region17: #{param_lenet_forward.26} parent=0 // pred_fallthru
    _
  // Predicated region
  $region18: #{param_lenet_forward.26} parent=0 // pred_check
    _
  $region19: #{param_lenet_forward.26} parent=0 // pred_check_branch
    %237 = sbr.rel (0) target = $region21
  $region20: #{param_lenet_forward.26} parent=0 // pred_region
    _
  $region21: #{param_lenet_forward.26} parent=0 // pred_fallthru
    _
  // Predicated region
  $region22: #{param_lenet_forward.26} parent=0 // pred_check
    _
  $region23: #{param_lenet_forward.26} parent=0 // pred_check_branch
    %239 = sbr.rel (0) target = $region25
  $region24: #{param_lenet_forward.26} parent=0 // pred_region
    _
  $region25: #{param_lenet_forward.26} parent=0 // pred_fallthru
    _

// kernel: param_lenet_forward.29
$region0: #{param_lenet_forward.29}
  #allocation0 [shape = 'u32[]', space=smem, size = 0x4, offset = 0x4, fixed_abs, tag = 'smem constant byte address 0x4 - core index']
  #allocation1 [shape = 'u32[72,128]{1,0:T(1,128)}', space=vmem, size = 0x9000, scoped, tag = 'internal scratch']
  %s0 = inlined_call_operand.vmem [shape: bf16[2,16,32], index: 0, kind: input, shape index: {}]
  %s1 = inlined_call_operand.vmem [shape: f32[2,32], index: 1, kind: output, shape index: {}]
  %s2 = sld [smem:[#allocation0]]
  $region14: #{param_lenet_forward.29} parent=0
    _
  %s4 = ssub.s32 1, %s2
  %s5 = scalar_select 0, %s4, %s2
  // Predicated region
  $region2: #{param_lenet_forward.29} parent=0 // pred_check
    _
  $region3: #{param_lenet_forward.29} parent=0 // pred_check_branch
    %7 = sbr.rel (0) target = $region5
  $region4: #{param_lenet_forward.29} parent=0 // pred_region
    _
  $region5: #{param_lenet_forward.29} parent=0 // pred_fallthru
    _
  %v8 = vld [vmem:[%s0] sm:$0xf]
  %v9 = vld [vmem:[%s0 + $0x4] sm:$0xf]
  %v10 = vld [vmem:[%s0 + $0x8] sm:$0xf]
  %v11 = vld [vmem:[%s0 + $0xc] sm:$0xf]
  %v12 = vunpack.c.l.bf16 %v8
  %v13 = vunpack.c.l.bf16 %v9
  %v14 = vunpack.c.l.bf16 %v10
  %v15 = vunpack.c.l.bf16 %v11
  %v16 = vmax.f32 %v12, 0.0
  %v17 = vmax.f32 %v13, 0.0
  %v18 = vmax.f32 %v14, 0.0
  %v19 = vmax.f32 %v15, 0.0
  %vm20 = vcmask 261120
  %v21 = vsel %vm20, %v16, 0.0
  %v22 = vsel %vm20, %v17, 0.0
  %v23 = vadd.f32 %v21, %v22
  %v24 = vrot.slane %v23, 4
  %v25 = vadd.f32 %v23, %v24
  %v26 = vrot.slane %v25, 2
  %v27 = vadd.f32 %v25, %v26
  %v28 = vrot.slane %v27, 1
  %v29 = vadd.f32 %v27, %v28
  %v30 = vsel %vm20, %v18, 0.0
  %v31 = vsel %vm20, %v19, 0.0
  %v32 = vadd.f32 %v30, %v31
  %v33 = vrot.slane %v32, 4
  %v34 = vadd.f32 %v32, %v33
  %v35 = vrot.slane %v34, 2
  %v36 = vadd.f32 %v34, %v35
  %v37 = vrot.slane %v36, 1
  %v38 = vadd.f32 %v36, %v37
  %v39 = vrcp.pop 16.0
  %v40 = vmul.f32 16.0, %v39
  %v41 = vsub.f32 1.0, %v40
  %v42 = vmul.f32 %v39, %v41
  %v43 = vadd.f32 %v39, %v42
  %vm44 = vweird.f32 %v39
  %v45 = vsel %vm44, %v39, %v43
  %v46 = vmul.f32 %v29, %v45
  %v47 = vmul.f32 %v38, %v45
  %vm50 = vcmask 1041409
  %v51 = vsel %vm50, %v47, %v46
  %vm53 = vcmask 254976
  %54 = vst.msk [vmem:[%s1] sm:$0x3] %vm53, %v51
  // Predicated region
  $region6: #{param_lenet_forward.29} parent=0 // pred_check
    _
  $region7: #{param_lenet_forward.29} parent=0 // pred_check_branch
    %56 = sbr.rel (0) target = $region9
  $region8: #{param_lenet_forward.29} parent=0 // pred_region
    _
  $region9: #{param_lenet_forward.29} parent=0 // pred_fallthru
    _
  // Predicated region
  $region10: #{param_lenet_forward.29} parent=0 // pred_check
    _
  $region11: #{param_lenet_forward.29} parent=0 // pred_check_branch
    %58 = sbr.rel (0) target = $region13
  $region12: #{param_lenet_forward.29} parent=0 // pred_region
    _
  $region13: #{param_lenet_forward.29} parent=0 // pred_fallthru
    _

// kernel: param_lenet_forward.30
$region0: #{param_lenet_forward.30}
  #allocation0 [shape = 'u32[]', space=smem, size = 0x4, offset = 0x4, fixed_abs, tag = 'smem constant byte address 0x4 - core index']
  #allocation1 [shape = 'u32[72,128]{1,0:T(1,128)}', space=vmem, size = 0x9000, scoped, tag = 'internal scratch']
  #allocation2 [shape = 'f32[8,128]{1,0:T(8,128)}', space=vmem, size = 0x1000, scoped, tag = 'scratch operand']
  %s0 = inlined_call_operand.vmem [shape: bf16[8,128], index: 0, kind: input, shape index: {}]
  %s1 = inlined_call_operand.vmem [shape: bf16[128,128], index: 1, kind: input, shape index: {}]
  %s2 = inlined_call_operand.vmem [shape: f32[1,128], index: 2, kind: input, shape index: {}]
  %s3 = inlined_call_operand.vmem [shape: f32[1,128], index: 3, kind: input, shape index: {}]
  %s4 = inlined_call_operand.vmem [shape: f32[8,128], index: 4, kind: output, shape index: {}]
  %s5 = sld [smem:[#allocation0]]
  $region34: #{param_lenet_forward.30} parent=0
    _
  %s7 = ssub.s32 1, %s5
  %s8 = scalar_select 0, %s7, %s5
  // Predicated region
  $region2: #{param_lenet_forward.30} parent=0 // pred_check
    _
  $region3: #{param_lenet_forward.30} parent=0 // pred_check_branch
    %10 = sbr.rel (0) target = $region5
  $region4: #{param_lenet_forward.30} parent=0 // pred_region
    _
  $region5: #{param_lenet_forward.30} parent=0 // pred_fallthru
    _
  // Predicated region
  $region6: #{param_lenet_forward.30} parent=0 // pred_check
    _
  $region7: #{param_lenet_forward.30} parent=0 // pred_check_branch
    %12 = sbr.rel (0) target = $region9
  $region8: #{param_lenet_forward.30} parent=0 // pred_region
    _
  $region9: #{param_lenet_forward.30} parent=0 // pred_fallthru
    _
  // Predicated region
  $region10: #{param_lenet_forward.30} parent=0 // pred_check
    _
  $region11: #{param_lenet_forward.30} parent=0 // pred_check_branch
    %14 = sbr.rel (0) target = $region13
  $region12: #{param_lenet_forward.30} parent=0 // pred_region
    _
  $region13: #{param_lenet_forward.30} parent=0 // pred_fallthru
    _
  // Predicated region
  $region14: #{param_lenet_forward.30} parent=0 // pred_check
    _
  $region15: #{param_lenet_forward.30} parent=0 // pred_check_branch
    %16 = sbr.rel (0) target = $region17
  $region16: #{param_lenet_forward.30} parent=0 // pred_region
    _
  $region17: #{param_lenet_forward.30} parent=0 // pred_fallthru
    _
  %p17 = scmp.eq.s32.totalorder 0, 0
  // Predicated region
  $region18: #{param_lenet_forward.30} parent=0 // pred_check
    %p18 = pneg %p17
  $region19: #{param_lenet_forward.30} parent=0 // pred_check_branch
    %20 = sbr.rel (%p18) target = $region21
  $region20: #{param_lenet_forward.30} parent=0 // pred_region
    %21 = vst [vmem:[#allocation2] sm:$0xff] 0.0
  $region21: #{param_lenet_forward.30} parent=0 // pred_fallthru
    _
  %v22 = vld [vmem:[%s0] sm:$0xf]
  %v23 = vld [vmem:[#allocation2] sm:$0xff]
  %v24 = vld [vmem:[%s1] sm:$0xf]
  %v25 = vld [vmem:[%s1 + $0x4] sm:$0xf]
  %v26 = vld [vmem:[%s1 + $0x8] sm:$0xf]
  %v27 = vld [vmem:[%s1 + $0xc] sm:$0xf]
  %v28 = vld [vmem:[%s1 + $0x10] sm:$0xf]
  %v29 = vld [vmem:[%s1 + $0x14] sm:$0xf]
  %v30 = vld [vmem:[%s1 + $0x18] sm:$0xf]
  %v31 = vld [vmem:[%s1 + $0x1c] sm:$0xf]
  %v32 = vld [vmem:[%s1 + $0x20] sm:$0xf]
  %v33 = vld [vmem:[%s1 + $0x24] sm:$0xf]
  %v34 = vld [vmem:[%s1 + $0x28] sm:$0xf]
  %v35 = vld [vmem:[%s1 + $0x2c] sm:$0xf]
  %v36 = vld [vmem:[%s1 + $0x30] sm:$0xf]
  %v37 = vld [vmem:[%s1 + $0x34] sm:$0xf]
  %v38 = vld [vmem:[%s1 + $0x38] sm:$0xf]
  %v39 = vld [vmem:[%s1 + $0x3c] sm:$0xf]
  %v56 = vunpack.c.l.b16 %v24
  %v57 = vunpack.c.l.b16 %v25
  %v58 = vunpack.c.l.b16 %v26
  %v59 = vunpack.c.l.b16 %v27
  %v60 = vunpack.c.l.b16 %v28
  %v61 = vunpack.c.l.b16 %v29
  %v62 = vunpack.c.l.b16 %v30
  %v63 = vunpack.c.l.b16 %v31
  %v64 = vunpack.c.l.b16 %v32
  %v65 = vunpack.c.l.b16 %v33
  %v66 = vunpack.c.l.b16 %v34
  %v67 = vunpack.c.l.b16 %v35
  %v68 = vunpack.c.l.b16 %v36
  %v69 = vunpack.c.l.b16 %v37
  %v70 = vunpack.c.l.b16 %v38
  %v71 = vunpack.c.l.b16 %v39
  %v72 = vpack.c.b16 %v57, %v56
  %v73 = vpack.c.b16 %v59, %v58
  %v74 = vpack.c.b16 %v61, %v60
  %v75 = vpack.c.b16 %v63, %v62
  %v76 = vpack.c.b16 %v65, %v64
  %v77 = vpack.c.b16 %v67, %v66
  %v78 = vpack.c.b16 %v69, %v68
  %v79 = vpack.c.b16 %v71, %v70
  %88 = vmatpush.bf16.msra.mxu0 %v79
  %89 = vmatpush.bf16.msra.mxu0 %v78
  %90 = vmatpush.bf16.msra.mxu0 %v77
  %91 = vmatpush.bf16.msra.mxu0 %v76
  %92 = vmatpush.bf16.msra.mxu0 %v75
  %93 = vmatpush.bf16.msra.mxu0 %v74
  %94 = vmatpush.bf16.msra.mxu0 %v73
  %95 = vmatpush.bf16.msra.mxu0 %v72
  %96 = vmatmul.bf16.gmra.mxu0 %v22
  %v97 = vpop.f32.mrf.mxu0
  %v98 = vadd.f32 0.0, %v97
  %v99 = vpop.f32.mrf.mxu0
  %100 = vdwg.mxu0
  %v101 = vadd.f32 %v23, %v98
  %102 = vst [vmem:[#allocation2] sm:$0xff] %v101
  // Predicated region
  $region22: #{param_lenet_forward.30} parent=0 // pred_check
    %p103 = pneg %p17
  $region23: #{param_lenet_forward.30} parent=0 // pred_check_branch
    %105 = sbr.rel (%p103) target = $region25
  $region24: #{param_lenet_forward.30} parent=0 // pred_region
    %v106 = vld [vmem:[#allocation2] sm:$0xff]
    %v107 = vld [vmem:[%s2] sm:$0x1]
    %v109 = vperm.slane %v107, 0
    %v111 = vadd.f32 %v106, %v109
    %v112 = vld [vmem:[%s3] sm:$0x1]
    %v114 = vperm.slane %v112, 0
    %v116 = vmax.f32 %v111, %v114
    %117 = vst [vmem:[%s4] sm:$0xff] %v116
  $region25: #{param_lenet_forward.30} parent=0 // pred_fallthru
    _
  // Predicated region
  $region26: #{param_lenet_forward.30} parent=0 // pred_check
    _
  $region27: #{param_lenet_forward.30} parent=0 // pred_check_branch
    %119 = sbr.rel (0) target = $region29
  $region28: #{param_lenet_forward.30} parent=0 // pred_region
    _
  $region29: #{param_lenet_forward.30} parent=0 // pred_fallthru
    _
  // Predicated region
  $region30: #{param_lenet_forward.30} parent=0 // pred_check
    _
  $region31: #{param_lenet_forward.30} parent=0 // pred_check_branch
    %121 = sbr.rel (0) target = $region33
  $region32: #{param_lenet_forward.30} parent=0 // pred_region
    _
  $region33: #{param_lenet_forward.30} parent=0 // pred_fallthru
    _

</llo_original>
